<compile_context>
chip_gen: v5e
topology: v5e:2x2
jax: 0.10.0
libtpu: 0.0.40
codegen_flags: <defaults>
</compile_context>

<pallas_src>
import functools
from math import sqrt

import jax
import jax.numpy as jnp
from jax.experimental import pallas as pl
from jax.experimental.pallas import tpu as pltpu


def _initial_predictor_kernel(
    noisy_ref,                        # (1, 1, N) f32, N = Bt * L
    w_in_ref, b_in_ref,               # (C, 1) f32, (C, 1) f32
    w_dil_ref, b_dil_ref,             # (NL, 2C, 3C) bf16, (NL, 2C, 1) f32
    w_rs_ref, b_res_ref,              # (NL, 2C, C) bf16, (NL, C, 1) f32
    b_skp_sum_ref,                    # (C, 1) f32  == sum_l b_skip[l] (folded)
    w_sp_ref, b_sp_ref,               # (C, C) bf16, (C, 1) f32
    w_out_ref, b_out_ref,             # (C, 1) f32, (1, 1) f32
    out_ref,                          # (1, 1, N) f32
    *, num_layers, dilations, seq_len, batch_tile, channels,
):
    L, C, Bt = seq_len, channels, batch_tile
    N = Bt * L
    f32 = jnp.float32
    bf16 = jnp.bfloat16

    noisy = noisy_ref[0]                                             # (1, N)

    # input_projection (1 -> C, kernel 1) + ReLU: pure VPU broadcast math.
    x = jnp.maximum(w_in_ref[...] * noisy + b_in_ref[...], 0.0)      # (C, N)

    # Per-sequence lane position (lane % L) so the dilated-conv rolls never mix
    # the Bt sequences folded onto the lane axis.  Masks are hoisted out of the
    # layer loop: one (mask_m, mask_p) pair per *unique* dilation.
    lane = jax.lax.broadcasted_iota(jnp.int32, (C, N), 1)
    if (L & (L - 1)) == 0:
        pos = lane & (L - 1)
    else:
        pos = lane % L
    masks = {d: (pos >= d, pos < (L - d)) for d in sorted(set(dilations))}

    skip_acc = jnp.zeros((C, N), f32)
    inv_sqrt2 = 1.0 / sqrt(2.0)

    # static Python loop over residual layers (num_layers is small & static).
    # TODO(synk): for production sizes (C~512, NL~30) move the layers onto an
    # "arbitrary" grid axis with per-layer weight BlockSpecs, x/skip_acc VMEM
    # scratch (pl.when init/finalize), lane-packed biases and a raised
    # vmem_limit_bytes; the fully unrolled weight set would not fit VMEM.
    for l in range(num_layers):
        d = dilations[l]
        keep_m, keep_p = masks[d]
        # zero-padded shifts via XLU roll + VPU boundary mask (f32 math, bf16 taps):
        #   x_m[:, t] = x[:, t - d]  (0 for t <  d      within each sequence)
        #   x_p[:, t] = x[:, t + d]  (0 for t >= L - d  within each sequence)
        x_m = jnp.where(keep_m, pltpu.roll(x, shift=d, axis=1), 0.0).astype(bf16)
        x_p = jnp.where(keep_p, pltpu.roll(x, shift=N - d, axis=1), 0.0).astype(bf16)

        # fused 3-tap dilated Conv1d(C -> 2C, k=3, dilation=d): one K=3C MXU push.
        stacked = jnp.concatenate([x_m, x.astype(bf16), x_p], axis=0)  # (3C, N) bf16
        y = (
            jnp.dot(w_dil_ref[l], stacked, preferred_element_type=f32)
            + b_dil_ref[l]
        )                                                              # (2C, N)

        gate = y[:C, :]                                                # sublane slice
        filt = y[C:, :]
        # TODO(synk): on v6e/v7x sigmoid/tanh/mul could run in bf16 (bf16 VPU/EUP);
        # kept f32 so the identical kernel stays correct on v5e.
        z = (jax.nn.sigmoid(gate) * jnp.tanh(filt)).astype(bf16)       # (C, N)

        # fused residual + skip 1x1 convs: one (2C, C) @ (C, N) push, sublane split.
        rs = jnp.dot(w_rs_ref[l], z, preferred_element_type=f32)       # (2C, N)
        x = (x + rs[:C, :] + b_res_ref[l]) * inv_sqrt2
        skip_acc = skip_acc + rs[C:, :]            # skip biases folded post-loop

    # skip bias is data-independent: add the pre-summed bias once, not per layer.
    x = ((skip_acc + b_skp_sum_ref[...]) * (1.0 / sqrt(float(num_layers)))).astype(bf16)
    x = jnp.maximum(
        jnp.dot(w_sp_ref[...], x, preferred_element_type=f32) + b_sp_ref[...], 0.0
    )                                                                  # (C, N)

    # output_projection (C -> 1): VPU multiply + sublane reduction, not an N=1 matmul.
    out = jnp.sum(x * w_out_ref[...], axis=0, keepdims=True) + b_out_ref[...]
    out_ref[0] = out                                                   # (1, N) lane-dense


def initial_predictor_forward(noisy, params, dilations, *, batch_tile=2):
    """noisy: (B, L) float32 -> (B, L) float32."""
    B, L = noisy.shape
    C = params["w_in"].shape[0]
    NL = params["w_dil"].shape[0]

    Bt = batch_tile if (B % batch_tile == 0) else 1
    n_chunks = B // Bt
    N = Bt * L

    kernel = functools.partial(
        _initial_predictor_kernel,
        num_layers=NL,
        dilations=tuple(int(d) for d in dilations),
        seq_len=L,
        batch_tile=Bt,
        channels=C,
    )

    ordered = [
        params["w_in"], params["b_in"],
        params["w_dil"], params["b_dil"],
        params["w_rs"], params["b_res"],
        params["b_skp"].sum(axis=0),          # folded skip bias (C, 1)
        params["w_sp"], params["b_sp"],
        params["w_out"], params["b_out"],
    ]

    # (B, L) -> (n_chunks, 1, Bt*L): rows are contiguous, so folding batch into
    # the lane axis is a free metadata reshape on the host side.
    noisy_folded = noisy.reshape(n_chunks, 1, N)

    def build(weight_pipeline_mode):
        def full_spec(shape):
            zeros = (0,) * len(shape)
            return pl.BlockSpec(shape, lambda b, _z=zeros: _z,
                                pipeline_mode=weight_pipeline_mode)

        in_specs = [pl.BlockSpec((1, 1, N), lambda b: (b, 0, 0))]
        in_specs += [full_spec(p.shape) for p in ordered]

        return pl.pallas_call(
            kernel,
            out_shape=jax.ShapeDtypeStruct((n_chunks, 1, N), jnp.float32),
            grid=(n_chunks,),
            in_specs=in_specs,
            out_specs=pl.BlockSpec((1, 1, N), lambda b: (b, 0, 0)),
            compiler_params=pltpu.CompilerParams(
                dimension_semantics=("parallel",),
                # Toy config uses <1 MiB of VMEM; re-derive with headroom below
                # physical (64 MiB on v7x) when scaling C / num_layers.
                vmem_limit_bytes=32 * 1024 * 1024,
            ),
        )

    try:
        # Grid-invariant weights: single-buffer them (default double-buffering
        # would duplicate every weight block in VMEM for zero benefit).
        out = build(pl.Buffered(1))(noisy_folded, *ordered)
    except Exception:
        # TODO(synk): pl.Buffered(1) pipeline_mode unavailable on this jax
        # version; fall back to default (double-buffered) weight blocks.
        out = build(None)(noisy_folded, *ordered)
    return out.reshape(B, L)


def init_params(key, channels, num_layers):
    """Deterministic synthetic init matching the PyTorch parameter shapes.

    Weights are stored pre-packed for the (C, N) kernel layout:
      * w_dil[l] is (2C, 3C): columns [0:C]   <- PyTorch weight[:, :, 0] (tap x[t-d])
                                       [C:2C]  <- weight[:, :, 1] (tap x[t])
                                       [2C:3C] <- weight[:, :, 2] (tap x[t+d])
      * w_rs[l]  is (2C, C):  rows [0:C] = output_residual, [C:2C] = output_projection.
    Matmul weights are bf16; biases / pointwise weights stay f32.
    TODO(synk): at production size repack per-layer biases with the layer index
    on the lane axis (e.g. (2C, NL)) to avoid trailing-dim-1 lane padding waste.
    """
    C = channels
    keys = jax.random.split(key, 16)
    f32, bf16 = jnp.float32, jnp.bfloat16

    def kaiming(k, shape, fan_in):
        return jax.random.normal(k, shape, f32) * jnp.sqrt(2.0 / fan_in)

    p = {
        # input_projection: Conv1d(1, C, 1)
        "w_in": kaiming(keys[0], (C, 1), 1),
        "b_in": 0.01 * jax.random.normal(keys[1], (C, 1), f32),
        # per-layer dilated conv: Conv1d(C, 2C, 3), taps fused along contraction dim
        "w_dil": kaiming(keys[2], (num_layers, 2 * C, 3 * C), 3 * C).astype(bf16),
        "b_dil": 0.01 * jax.random.normal(keys[3], (num_layers, 2 * C, 1), f32),
        # per-layer fused residual + skip 1x1 convs
        "w_rs": kaiming(keys[4], (num_layers, 2 * C, C), C).astype(bf16),
        "b_res": 0.01 * jax.random.normal(keys[5], (num_layers, C, 1), f32),
        "b_skp": 0.01 * jax.random.normal(keys[6], (num_layers, C, 1), f32),
        # skip_projection: Conv1d(C, C, 1)
        "w_sp": kaiming(keys[7], (C, C), C).astype(bf16),
        "b_sp": 0.01 * jax.random.normal(keys[8], (C, 1), f32),
        # output_projection: Conv1d(C, 1, 1) -- PyTorch zero-inits this weight; use a
        # small random init so the numerical check is non-trivial.
        "w_out": 0.1 * jax.random.normal(keys[9], (C, 1), f32),
        "b_out": 0.01 * jax.random.normal(keys[10], (1, 1), f32),
    }
    return p


def ref_forward(noisy, p, dilations):
    """Pure-JAX reference of InitialPredictor.forward (same packed weights)."""
    B, L = noisy.shape
    C = p["w_in"].shape[0]
    NL = p["w_dil"].shape[0]
    bf16 = jnp.bfloat16

    x = jax.nn.relu(p["w_in"][None] * noisy[:, None, :] + p["b_in"][None])  # (B,C,L)
    skip_acc = jnp.zeros_like(x)
    for l in range(NL):
        d = int(dilations[l])
        xm = jnp.pad(x, ((0, 0), (0, 0), (d, 0)))[:, :, :L]
        xp = jnp.pad(x, ((0, 0), (0, 0), (0, d)))[:, :, d:]
        stacked = jnp.concatenate([xm, x, xp], axis=1).astype(bf16)         # (B,3C,L)
        y = jnp.einsum("oc,bcl->bol", p["w_dil"][l], stacked,
                       preferred_element_type=jnp.float32) + p["b_dil"][l][None]
        gate, filt = y[:, :C], y[:, C:]
        z = jax.nn.sigmoid(gate) * jnp.tanh(filt)
        rs = jnp.einsum("oc,bcl->bol", p["w_rs"][l], z.astype(bf16),
                        preferred_element_type=jnp.float32)
        residual = rs[:, :C] + p["b_res"][l][None]
        skip = rs[:, C:] + p["b_skp"][l][None]
        x = (x + residual) / jnp.sqrt(2.0)
        skip_acc = skip_acc + skip
    x = skip_acc / jnp.sqrt(float(NL))
    x = jax.nn.relu(
        jnp.einsum("oc,bcl->bol", p["w_sp"], x.astype(bf16),
                   preferred_element_type=jnp.float32) + p["b_sp"][None])
    out = jnp.sum(x * p["w_out"][None], axis=1) + p["b_out"][0, 0]
    return out  # (B, L)


if __name__ == "__main__":
    # small synthetic config: residual_channels = 32, dilation_cycle_length = 2,
    # initial_predictor_reisdual_layers = 4.  B=4 so the batch-into-lanes fold
    # (Bt=2 -> N=256 lanes) still leaves 2 grid chunks for v7x's two cores.
    B, L, C = 4, 128, 32
    NUM_LAYERS, CYCLE = 4, 2
    dilations = [2 ** (i % CYCLE) for i in range(NUM_LAYERS)]   # [1, 2, 1, 2]

    key = jax.random.PRNGKey(0)
    k_noisy, k_params = jax.random.split(key)
    noisy = jax.random.normal(k_noisy, (B, L), jnp.float32)
    params = init_params(k_params, C, NUM_LAYERS)

    out = initial_predictor_forward(noisy, params, dilations, batch_tile=2)
    out = jax.block_until_ready(out)

    ref = jax.block_until_ready(ref_forward(noisy, params, dilations))
    assert out.shape == (B, L), out.shape
    assert jnp.all(jnp.isfinite(out))
    assert jnp.allclose(out, ref, atol=2e-2, rtol=2e-2), float(jnp.max(jnp.abs(out - ref)))

    print("KERNEL_OK")
</pallas_src>

<mosaic_0001>
module attributes {stable_mosaic.version = 11 : i64} {
  func.func @_initial_predictor_kernel(%arg0: i32, %arg1: memref<1x1x256xf32, #tpu.memory_space<vmem>>, %arg2: memref<32x1xf32, #tpu.memory_space<vmem>>, %arg3: memref<32x1xf32, #tpu.memory_space<vmem>>, %arg4: memref<4x64x96xbf16, #tpu.memory_space<vmem>>, %arg5: memref<4x64x1xf32, #tpu.memory_space<vmem>>, %arg6: memref<4x64x32xbf16, #tpu.memory_space<vmem>>, %arg7: memref<4x32x1xf32, #tpu.memory_space<vmem>>, %arg8: memref<32x1xf32, #tpu.memory_space<vmem>>, %arg9: memref<32x32xbf16, #tpu.memory_space<vmem>>, %arg10: memref<32x1xf32, #tpu.memory_space<vmem>>, %arg11: memref<32x1xf32, #tpu.memory_space<vmem>>, %arg12: memref<1x1xf32, #tpu.memory_space<vmem>>, %arg13: memref<1x1x256xf32, #tpu.memory_space<vmem>>) attributes {dimension_semantics = [#tpu.dimension_semantics<parallel>], iteration_bounds = array<i64: 2>, scalar_prefetch = 0 : i64, scratch_operands = 0 : i64, tpu.core_type = #tpu.core_type<tc>, window_params = [{transform_indices = @transform_0, window_bounds = array<i64: 1, 1, 256>}, {pipeline_mode = #tpu.pipeline_mode<synchronous>, transform_indices = @transform_1, window_bounds = array<i64: 32, 1>}, {pipeline_mode = #tpu.pipeline_mode<synchronous>, transform_indices = @transform_2, window_bounds = array<i64: 32, 1>}, {pipeline_mode = #tpu.pipeline_mode<synchronous>, transform_indices = @transform_3, window_bounds = array<i64: 4, 64, 96>}, {pipeline_mode = #tpu.pipeline_mode<synchronous>, transform_indices = @transform_4, window_bounds = array<i64: 4, 64, 1>}, {pipeline_mode = #tpu.pipeline_mode<synchronous>, transform_indices = @transform_5, window_bounds = array<i64: 4, 64, 32>}, {pipeline_mode = #tpu.pipeline_mode<synchronous>, transform_indices = @transform_6, window_bounds = array<i64: 4, 32, 1>}, {pipeline_mode = #tpu.pipeline_mode<synchronous>, transform_indices = @transform_7, window_bounds = array<i64: 32, 1>}, {pipeline_mode = #tpu.pipeline_mode<synchronous>, transform_indices = @transform_8, window_bounds = array<i64: 32, 32>}, {pipeline_mode = #tpu.pipeline_mode<synchronous>, transform_indices = @transform_9, window_bounds = array<i64: 32, 1>}, {pipeline_mode = #tpu.pipeline_mode<synchronous>, transform_indices = @transform_10, window_bounds = array<i64: 32, 1>}, {pipeline_mode = #tpu.pipeline_mode<synchronous>, transform_indices = @transform_11, window_bounds = array<i64: 1, 1>}, {transform_indices = @transform_12, window_bounds = array<i64: 1, 1, 256>}]} {
    %c0 = arith.constant 0 : index
    %c0_0 = arith.constant 0 : index
    %c0_1 = arith.constant 0 : index
    %0 = vector.load %arg1[%c0, %c0_0, %c0_1] : memref<1x1x256xf32, #tpu.memory_space<vmem>>, vector<1x1x256xf32>
    %1 = vector.shape_cast %0 : vector<1x1x256xf32> to vector<1x256xf32>
    %c0_2 = arith.constant 0 : index
    %c0_3 = arith.constant 0 : index
    %2 = vector.load %arg2[%c0_2, %c0_3] : memref<32x1xf32, #tpu.memory_space<vmem>>, vector<32x1xf32>
    %3 = vector.broadcast %2 : vector<32x1xf32> to vector<32x256xf32>
    %4 = vector.broadcast %1 : vector<1x256xf32> to vector<32x256xf32>
    %5 = arith.mulf %3, %4 : vector<32x256xf32>
    %c0_4 = arith.constant 0 : index
    %c0_5 = arith.constant 0 : index
    %6 = vector.load %arg3[%c0_4, %c0_5] : memref<32x1xf32, #tpu.memory_space<vmem>>, vector<32x1xf32>
    %7 = vector.broadcast %6 : vector<32x1xf32> to vector<32x256xf32>
    %8 = arith.addf %5, %7 : vector<32x256xf32>
    %cst = arith.constant 0.000000e+00 : f32
    %9 = vector.broadcast %cst : f32 to vector<32x256xf32>
    %10 = arith.maximumf %8, %9 : vector<32x256xf32>
    %11 = tpu.iota {dimensions = array<i32: 1>} : vector<32x256xi32>
    %c127_i32 = arith.constant 127 : i32
    %12 = vector.broadcast %c127_i32 : i32 to vector<32x256xi32>
    %13 = arith.andi %11, %12 : vector<32x256xi32>
    %c1_i32 = arith.constant 1 : i32
    %14 = vector.broadcast %c1_i32 : i32 to vector<32x256xi32>
    %15 = arith.cmpi sge, %13, %14 : vector<32x256xi32>
    %c127_i32_6 = arith.constant 127 : i32
    %16 = vector.broadcast %c127_i32_6 : i32 to vector<32x256xi32>
    %17 = arith.cmpi slt, %13, %16 : vector<32x256xi32>
    %c2_i32 = arith.constant 2 : i32
    %18 = vector.broadcast %c2_i32 : i32 to vector<32x256xi32>
    %19 = arith.cmpi sge, %13, %18 : vector<32x256xi32>
    %c126_i32 = arith.constant 126 : i32
    %20 = vector.broadcast %c126_i32 : i32 to vector<32x256xi32>
    %21 = arith.cmpi slt, %13, %20 : vector<32x256xi32>
    %cst_7 = arith.constant 0.000000e+00 : f32
    %22 = vector.broadcast %cst_7 : f32 to vector<32x256xf32>
    %c1_i32_8 = arith.constant 1 : i32
    %23 = tpu.dynamic_rotate %10 by %c1_i32_8 dim 1 : vector<32x256xf32>, i32 -> vector<32x256xf32>
    %cst_9 = arith.constant 0.000000e+00 : f32
    %24 = vector.broadcast %cst_9 : f32 to vector<32x256xf32>
    %25 = arith.select %15, %23, %24 : vector<32x256xi1>, vector<32x256xf32>
    %26 = arith.truncf %25 : vector<32x256xf32> to vector<32x256xbf16>
    %c255_i32 = arith.constant 255 : i32
    %27 = tpu.dynamic_rotate %10 by %c255_i32 dim 1 : vector<32x256xf32>, i32 -> vector<32x256xf32>
    %cst_10 = arith.constant 0.000000e+00 : f32
    %28 = vector.broadcast %cst_10 : f32 to vector<32x256xf32>
    %29 = arith.select %17, %27, %28 : vector<32x256xi1>, vector<32x256xf32>
    %30 = arith.truncf %29 : vector<32x256xf32> to vector<32x256xbf16>
    %31 = arith.truncf %10 : vector<32x256xf32> to vector<32x256xbf16>
    %32 = tpu.concatenate %26, %31, %30 in 0 : vector<32x256xbf16>, vector<32x256xbf16>, vector<32x256xbf16> -> vector<96x256xbf16>
    %c0_11 = arith.constant 0 : index
    %c0_12 = arith.constant 0 : index
    %c0_13 = arith.constant 0 : index
    %33 = vector.load %arg4[%c0_11, %c0_12, %c0_13] : memref<4x64x96xbf16, #tpu.memory_space<vmem>>, vector<1x64x96xbf16>
    %34 = vector.shape_cast %33 : vector<1x64x96xbf16> to vector<64x96xbf16>
    %cst_14 = arith.constant dense<0.000000e+00> : vector<64x256xf32>
    %35 = tpu.matmul %34, %32, %cst_14 {dimension_numbers = #tpu.dot_dimension_numbers<[1], [0], [0], [1], [0, 0, 1, 1], [], []>} : vector<64x96xbf16>, vector<96x256xbf16>, vector<64x256xf32> -> vector<64x256xf32>
    %c0_15 = arith.constant 0 : index
    %c0_16 = arith.constant 0 : index
    %c0_17 = arith.constant 0 : index
    %36 = vector.load %arg5[%c0_15, %c0_16, %c0_17] : memref<4x64x1xf32, #tpu.memory_space<vmem>>, vector<1x64x1xf32>
    %37 = vector.shape_cast %36 : vector<1x64x1xf32> to vector<64x1xf32>
    %38 = vector.broadcast %37 : vector<64x1xf32> to vector<64x256xf32>
    %39 = arith.addf %35, %38 : vector<64x256xf32>
    %40 = vector.extract_strided_slice %39 {offsets = [0, 0], sizes = [32, 256], strides = [1, 1]} : vector<64x256xf32> to vector<32x256xf32>
    %41 = vector.extract_strided_slice %39 {offsets = [32, 0], sizes = [32, 256], strides = [1, 1]} : vector<64x256xf32> to vector<32x256xf32>
    %42 = arith.negf %40 : vector<32x256xf32>
    %43 = math.exp %42 : vector<32x256xf32>
    %cst_18 = arith.constant 1.000000e+00 : f32
    %44 = vector.broadcast %cst_18 : f32 to vector<32x256xf32>
    %45 = arith.addf %44, %43 : vector<32x256xf32>
    %46 = arith.divf %44, %45 : vector<32x256xf32>
    %47 = math.tanh %41 : vector<32x256xf32>
    %48 = arith.mulf %46, %47 : vector<32x256xf32>
    %49 = arith.truncf %48 : vector<32x256xf32> to vector<32x256xbf16>
    %c0_19 = arith.constant 0 : index
    %c0_20 = arith.constant 0 : index
    %c0_21 = arith.constant 0 : index
    %50 = vector.load %arg6[%c0_19, %c0_20, %c0_21] : memref<4x64x32xbf16, #tpu.memory_space<vmem>>, vector<1x64x32xbf16>
    %51 = vector.shape_cast %50 : vector<1x64x32xbf16> to vector<64x32xbf16>
    %cst_22 = arith.constant dense<0.000000e+00> : vector<64x256xf32>
    %52 = tpu.matmul %51, %49, %cst_22 {dimension_numbers = #tpu.dot_dimension_numbers<[1], [0], [0], [1], [0, 0, 1, 1], [], []>} : vector<64x32xbf16>, vector<32x256xbf16>, vector<64x256xf32> -> vector<64x256xf32>
    %53 = vector.extract_strided_slice %52 {offsets = [0, 0], sizes = [32, 256], strides = [1, 1]} : vector<64x256xf32> to vector<32x256xf32>
    %54 = arith.addf %10, %53 : vector<32x256xf32>
    %c0_23 = arith.constant 0 : index
    %c0_24 = arith.constant 0 : index
    %c0_25 = arith.constant 0 : index
    %55 = vector.load %arg7[%c0_23, %c0_24, %c0_25] : memref<4x32x1xf32, #tpu.memory_space<vmem>>, vector<1x32x1xf32>
    %56 = vector.shape_cast %55 : vector<1x32x1xf32> to vector<32x1xf32>
    %57 = vector.broadcast %56 : vector<32x1xf32> to vector<32x256xf32>
    %58 = arith.addf %54, %57 : vector<32x256xf32>
    %cst_26 = arith.constant 0.707106769 : f32
    %59 = vector.broadcast %cst_26 : f32 to vector<32x256xf32>
    %60 = arith.mulf %58, %59 : vector<32x256xf32>
    %61 = vector.extract_strided_slice %52 {offsets = [32, 0], sizes = [32, 256], strides = [1, 1]} : vector<64x256xf32> to vector<32x256xf32>
    %62 = arith.addf %22, %61 : vector<32x256xf32>
    %c2_i32_27 = arith.constant 2 : i32
    %63 = tpu.dynamic_rotate %60 by %c2_i32_27 dim 1 : vector<32x256xf32>, i32 -> vector<32x256xf32>
    %cst_28 = arith.constant 0.000000e+00 : f32
    %64 = vector.broadcast %cst_28 : f32 to vector<32x256xf32>
    %65 = arith.select %19, %63, %64 : vector<32x256xi1>, vector<32x256xf32>
    %66 = arith.truncf %65 : vector<32x256xf32> to vector<32x256xbf16>
    %c254_i32 = arith.constant 254 : i32
    %67 = tpu.dynamic_rotate %60 by %c254_i32 dim 1 : vector<32x256xf32>, i32 -> vector<32x256xf32>
    %cst_29 = arith.constant 0.000000e+00 : f32
    %68 = vector.broadcast %cst_29 : f32 to vector<32x256xf32>
    %69 = arith.select %21, %67, %68 : vector<32x256xi1>, vector<32x256xf32>
    %70 = arith.truncf %69 : vector<32x256xf32> to vector<32x256xbf16>
    %71 = arith.truncf %60 : vector<32x256xf32> to vector<32x256xbf16>
    %72 = tpu.concatenate %66, %71, %70 in 0 : vector<32x256xbf16>, vector<32x256xbf16>, vector<32x256xbf16> -> vector<96x256xbf16>
    %c1 = arith.constant 1 : index
    %c0_30 = arith.constant 0 : index
    %c0_31 = arith.constant 0 : index
    %73 = vector.load %arg4[%c1, %c0_30, %c0_31] : memref<4x64x96xbf16, #tpu.memory_space<vmem>>, vector<1x64x96xbf16>
    %74 = vector.shape_cast %73 : vector<1x64x96xbf16> to vector<64x96xbf16>
    %cst_32 = arith.constant dense<0.000000e+00> : vector<64x256xf32>
    %75 = tpu.matmul %74, %72, %cst_32 {dimension_numbers = #tpu.dot_dimension_numbers<[1], [0], [0], [1], [0, 0, 1, 1], [], []>} : vector<64x96xbf16>, vector<96x256xbf16>, vector<64x256xf32> -> vector<64x256xf32>
    %c1_33 = arith.constant 1 : index
    %c0_34 = arith.constant 0 : index
    %c0_35 = arith.constant 0 : index
    %76 = vector.load %arg5[%c1_33, %c0_34, %c0_35] : memref<4x64x1xf32, #tpu.memory_space<vmem>>, vector<1x64x1xf32>
    %77 = vector.shape_cast %76 : vector<1x64x1xf32> to vector<64x1xf32>
    %78 = vector.broadcast %77 : vector<64x1xf32> to vector<64x256xf32>
    %79 = arith.addf %75, %78 : vector<64x256xf32>
    %80 = vector.extract_strided_slice %79 {offsets = [0, 0], sizes = [32, 256], strides = [1, 1]} : vector<64x256xf32> to vector<32x256xf32>
    %81 = vector.extract_strided_slice %79 {offsets = [32, 0], sizes = [32, 256], strides = [1, 1]} : vector<64x256xf32> to vector<32x256xf32>
    %82 = arith.negf %80 : vector<32x256xf32>
    %83 = math.exp %82 : vector<32x256xf32>
    %cst_36 = arith.constant 1.000000e+00 : f32
    %84 = vector.broadcast %cst_36 : f32 to vector<32x256xf32>
    %85 = arith.addf %84, %83 : vector<32x256xf32>
    %86 = arith.divf %84, %85 : vector<32x256xf32>
    %87 = math.tanh %81 : vector<32x256xf32>
    %88 = arith.mulf %86, %87 : vector<32x256xf32>
    %89 = arith.truncf %88 : vector<32x256xf32> to vector<32x256xbf16>
    %c1_37 = arith.constant 1 : index
    %c0_38 = arith.constant 0 : index
    %c0_39 = arith.constant 0 : index
    %90 = vector.load %arg6[%c1_37, %c0_38, %c0_39] : memref<4x64x32xbf16, #tpu.memory_space<vmem>>, vector<1x64x32xbf16>
    %91 = vector.shape_cast %90 : vector<1x64x32xbf16> to vector<64x32xbf16>
    %cst_40 = arith.constant dense<0.000000e+00> : vector<64x256xf32>
    %92 = tpu.matmul %91, %89, %cst_40 {dimension_numbers = #tpu.dot_dimension_numbers<[1], [0], [0], [1], [0, 0, 1, 1], [], []>} : vector<64x32xbf16>, vector<32x256xbf16>, vector<64x256xf32> -> vector<64x256xf32>
    %93 = vector.extract_strided_slice %92 {offsets = [0, 0], sizes = [32, 256], strides = [1, 1]} : vector<64x256xf32> to vector<32x256xf32>
    %94 = arith.addf %60, %93 : vector<32x256xf32>
    %c1_41 = arith.constant 1 : index
    %c0_42 = arith.constant 0 : index
    %c0_43 = arith.constant 0 : index
    %95 = vector.load %arg7[%c1_41, %c0_42, %c0_43] : memref<4x32x1xf32, #tpu.memory_space<vmem>>, vector<1x32x1xf32>
    %96 = vector.shape_cast %95 : vector<1x32x1xf32> to vector<32x1xf32>
    %97 = vector.broadcast %96 : vector<32x1xf32> to vector<32x256xf32>
    %98 = arith.addf %94, %97 : vector<32x256xf32>
    %cst_44 = arith.constant 0.707106769 : f32
    %99 = vector.broadcast %cst_44 : f32 to vector<32x256xf32>
    %100 = arith.mulf %98, %99 : vector<32x256xf32>
    %101 = vector.extract_strided_slice %92 {offsets = [32, 0], sizes = [32, 256], strides = [1, 1]} : vector<64x256xf32> to vector<32x256xf32>
    %102 = arith.addf %62, %101 : vector<32x256xf32>
    %c1_i32_45 = arith.constant 1 : i32
    %103 = tpu.dynamic_rotate %100 by %c1_i32_45 dim 1 : vector<32x256xf32>, i32 -> vector<32x256xf32>
    %cst_46 = arith.constant 0.000000e+00 : f32
    %104 = vector.broadcast %cst_46 : f32 to vector<32x256xf32>
    %105 = arith.select %15, %103, %104 : vector<32x256xi1>, vector<32x256xf32>
    %106 = arith.truncf %105 : vector<32x256xf32> to vector<32x256xbf16>
    %c255_i32_47 = arith.constant 255 : i32
    %107 = tpu.dynamic_rotate %100 by %c255_i32_47 dim 1 : vector<32x256xf32>, i32 -> vector<32x256xf32>
    %cst_48 = arith.constant 0.000000e+00 : f32
    %108 = vector.broadcast %cst_48 : f32 to vector<32x256xf32>
    %109 = arith.select %17, %107, %108 : vector<32x256xi1>, vector<32x256xf32>
    %110 = arith.truncf %109 : vector<32x256xf32> to vector<32x256xbf16>
    %111 = arith.truncf %100 : vector<32x256xf32> to vector<32x256xbf16>
    %112 = tpu.concatenate %106, %111, %110 in 0 : vector<32x256xbf16>, vector<32x256xbf16>, vector<32x256xbf16> -> vector<96x256xbf16>
    %c2 = arith.constant 2 : index
    %c0_49 = arith.constant 0 : index
    %c0_50 = arith.constant 0 : index
    %113 = vector.load %arg4[%c2, %c0_49, %c0_50] : memref<4x64x96xbf16, #tpu.memory_space<vmem>>, vector<1x64x96xbf16>
    %114 = vector.shape_cast %113 : vector<1x64x96xbf16> to vector<64x96xbf16>
    %cst_51 = arith.constant dense<0.000000e+00> : vector<64x256xf32>
    %115 = tpu.matmul %114, %112, %cst_51 {dimension_numbers = #tpu.dot_dimension_numbers<[1], [0], [0], [1], [0, 0, 1, 1], [], []>} : vector<64x96xbf16>, vector<96x256xbf16>, vector<64x256xf32> -> vector<64x256xf32>
    %c2_52 = arith.constant 2 : index
    %c0_53 = arith.constant 0 : index
    %c0_54 = arith.constant 0 : index
    %116 = vector.load %arg5[%c2_52, %c0_53, %c0_54] : memref<4x64x1xf32, #tpu.memory_space<vmem>>, vector<1x64x1xf32>
    %117 = vector.shape_cast %116 : vector<1x64x1xf32> to vector<64x1xf32>
    %118 = vector.broadcast %117 : vector<64x1xf32> to vector<64x256xf32>
    %119 = arith.addf %115, %118 : vector<64x256xf32>
    %120 = vector.extract_strided_slice %119 {offsets = [0, 0], sizes = [32, 256], strides = [1, 1]} : vector<64x256xf32> to vector<32x256xf32>
    %121 = vector.extract_strided_slice %119 {offsets = [32, 0], sizes = [32, 256], strides = [1, 1]} : vector<64x256xf32> to vector<32x256xf32>
    %122 = arith.negf %120 : vector<32x256xf32>
    %123 = math.exp %122 : vector<32x256xf32>
    %cst_55 = arith.constant 1.000000e+00 : f32
    %124 = vector.broadcast %cst_55 : f32 to vector<32x256xf32>
    %125 = arith.addf %124, %123 : vector<32x256xf32>
    %126 = arith.divf %124, %125 : vector<32x256xf32>
    %127 = math.tanh %121 : vector<32x256xf32>
    %128 = arith.mulf %126, %127 : vector<32x256xf32>
    %129 = arith.truncf %128 : vector<32x256xf32> to vector<32x256xbf16>
    %c2_56 = arith.constant 2 : index
    %c0_57 = arith.constant 0 : index
    %c0_58 = arith.constant 0 : index
    %130 = vector.load %arg6[%c2_56, %c0_57, %c0_58] : memref<4x64x32xbf16, #tpu.memory_space<vmem>>, vector<1x64x32xbf16>
    %131 = vector.shape_cast %130 : vector<1x64x32xbf16> to vector<64x32xbf16>
    %cst_59 = arith.constant dense<0.000000e+00> : vector<64x256xf32>
    %132 = tpu.matmul %131, %129, %cst_59 {dimension_numbers = #tpu.dot_dimension_numbers<[1], [0], [0], [1], [0, 0, 1, 1], [], []>} : vector<64x32xbf16>, vector<32x256xbf16>, vector<64x256xf32> -> vector<64x256xf32>
    %133 = vector.extract_strided_slice %132 {offsets = [0, 0], sizes = [32, 256], strides = [1, 1]} : vector<64x256xf32> to vector<32x256xf32>
    %134 = arith.addf %100, %133 : vector<32x256xf32>
    %c2_60 = arith.constant 2 : index
    %c0_61 = arith.constant 0 : index
    %c0_62 = arith.constant 0 : index
    %135 = vector.load %arg7[%c2_60, %c0_61, %c0_62] : memref<4x32x1xf32, #tpu.memory_space<vmem>>, vector<1x32x1xf32>
    %136 = vector.shape_cast %135 : vector<1x32x1xf32> to vector<32x1xf32>
    %137 = vector.broadcast %136 : vector<32x1xf32> to vector<32x256xf32>
    %138 = arith.addf %134, %137 : vector<32x256xf32>
    %cst_63 = arith.constant 0.707106769 : f32
    %139 = vector.broadcast %cst_63 : f32 to vector<32x256xf32>
    %140 = arith.mulf %138, %139 : vector<32x256xf32>
    %141 = vector.extract_strided_slice %132 {offsets = [32, 0], sizes = [32, 256], strides = [1, 1]} : vector<64x256xf32> to vector<32x256xf32>
    %142 = arith.addf %102, %141 : vector<32x256xf32>
    %c2_i32_64 = arith.constant 2 : i32
    %143 = tpu.dynamic_rotate %140 by %c2_i32_64 dim 1 : vector<32x256xf32>, i32 -> vector<32x256xf32>
    %cst_65 = arith.constant 0.000000e+00 : f32
    %144 = vector.broadcast %cst_65 : f32 to vector<32x256xf32>
    %145 = arith.select %19, %143, %144 : vector<32x256xi1>, vector<32x256xf32>
    %146 = arith.truncf %145 : vector<32x256xf32> to vector<32x256xbf16>
    %c254_i32_66 = arith.constant 254 : i32
    %147 = tpu.dynamic_rotate %140 by %c254_i32_66 dim 1 : vector<32x256xf32>, i32 -> vector<32x256xf32>
    %cst_67 = arith.constant 0.000000e+00 : f32
    %148 = vector.broadcast %cst_67 : f32 to vector<32x256xf32>
    %149 = arith.select %21, %147, %148 : vector<32x256xi1>, vector<32x256xf32>
    %150 = arith.truncf %149 : vector<32x256xf32> to vector<32x256xbf16>
    %151 = arith.truncf %140 : vector<32x256xf32> to vector<32x256xbf16>
    %152 = tpu.concatenate %146, %151, %150 in 0 : vector<32x256xbf16>, vector<32x256xbf16>, vector<32x256xbf16> -> vector<96x256xbf16>
    %c3 = arith.constant 3 : index
    %c0_68 = arith.constant 0 : index
    %c0_69 = arith.constant 0 : index
    %153 = vector.load %arg4[%c3, %c0_68, %c0_69] : memref<4x64x96xbf16, #tpu.memory_space<vmem>>, vector<1x64x96xbf16>
    %154 = vector.shape_cast %153 : vector<1x64x96xbf16> to vector<64x96xbf16>
    %cst_70 = arith.constant dense<0.000000e+00> : vector<64x256xf32>
    %155 = tpu.matmul %154, %152, %cst_70 {dimension_numbers = #tpu.dot_dimension_numbers<[1], [0], [0], [1], [0, 0, 1, 1], [], []>} : vector<64x96xbf16>, vector<96x256xbf16>, vector<64x256xf32> -> vector<64x256xf32>
    %c3_71 = arith.constant 3 : index
    %c0_72 = arith.constant 0 : index
    %c0_73 = arith.constant 0 : index
    %156 = vector.load %arg5[%c3_71, %c0_72, %c0_73] : memref<4x64x1xf32, #tpu.memory_space<vmem>>, vector<1x64x1xf32>
    %157 = vector.shape_cast %156 : vector<1x64x1xf32> to vector<64x1xf32>
    %158 = vector.broadcast %157 : vector<64x1xf32> to vector<64x256xf32>
    %159 = arith.addf %155, %158 : vector<64x256xf32>
    %160 = vector.extract_strided_slice %159 {offsets = [0, 0], sizes = [32, 256], strides = [1, 1]} : vector<64x256xf32> to vector<32x256xf32>
    %161 = vector.extract_strided_slice %159 {offsets = [32, 0], sizes = [32, 256], strides = [1, 1]} : vector<64x256xf32> to vector<32x256xf32>
    %162 = arith.negf %160 : vector<32x256xf32>
    %163 = math.exp %162 : vector<32x256xf32>
    %cst_74 = arith.constant 1.000000e+00 : f32
    %164 = vector.broadcast %cst_74 : f32 to vector<32x256xf32>
    %165 = arith.addf %164, %163 : vector<32x256xf32>
    %166 = arith.divf %164, %165 : vector<32x256xf32>
    %167 = math.tanh %161 : vector<32x256xf32>
    %168 = arith.mulf %166, %167 : vector<32x256xf32>
    %169 = arith.truncf %168 : vector<32x256xf32> to vector<32x256xbf16>
    %c3_75 = arith.constant 3 : index
    %c0_76 = arith.constant 0 : index
    %c0_77 = arith.constant 0 : index
    %170 = vector.load %arg6[%c3_75, %c0_76, %c0_77] : memref<4x64x32xbf16, #tpu.memory_space<vmem>>, vector<1x64x32xbf16>
    %171 = vector.shape_cast %170 : vector<1x64x32xbf16> to vector<64x32xbf16>
    %cst_78 = arith.constant dense<0.000000e+00> : vector<64x256xf32>
    %172 = tpu.matmul %171, %169, %cst_78 {dimension_numbers = #tpu.dot_dimension_numbers<[1], [0], [0], [1], [0, 0, 1, 1], [], []>} : vector<64x32xbf16>, vector<32x256xbf16>, vector<64x256xf32> -> vector<64x256xf32>
    %173 = vector.extract_strided_slice %172 {offsets = [32, 0], sizes = [32, 256], strides = [1, 1]} : vector<64x256xf32> to vector<32x256xf32>
    %174 = arith.addf %142, %173 : vector<32x256xf32>
    %c0_79 = arith.constant 0 : index
    %c0_80 = arith.constant 0 : index
    %175 = vector.load %arg8[%c0_79, %c0_80] : memref<32x1xf32, #tpu.memory_space<vmem>>, vector<32x1xf32>
    %176 = vector.broadcast %175 : vector<32x1xf32> to vector<32x256xf32>
    %177 = arith.addf %174, %176 : vector<32x256xf32>
    %cst_81 = arith.constant 5.000000e-01 : f32
    %178 = vector.broadcast %cst_81 : f32 to vector<32x256xf32>
    %179 = arith.mulf %177, %178 : vector<32x256xf32>
    %180 = arith.truncf %179 : vector<32x256xf32> to vector<32x256xbf16>
    %c0_82 = arith.constant 0 : index
    %c0_83 = arith.constant 0 : index
    %181 = vector.load %arg9[%c0_82, %c0_83] : memref<32x32xbf16, #tpu.memory_space<vmem>>, vector<32x32xbf16>
    %cst_84 = arith.constant dense<0.000000e+00> : vector<32x256xf32>
    %182 = tpu.matmul %181, %180, %cst_84 {dimension_numbers = #tpu.dot_dimension_numbers<[1], [0], [0], [1], [0, 0, 1, 1], [], []>} : vector<32x32xbf16>, vector<32x256xbf16>, vector<32x256xf32> -> vector<32x256xf32>
    %c0_85 = arith.constant 0 : index
    %c0_86 = arith.constant 0 : index
    %183 = vector.load %arg10[%c0_85, %c0_86] : memref<32x1xf32, #tpu.memory_space<vmem>>, vector<32x1xf32>
    %184 = vector.broadcast %183 : vector<32x1xf32> to vector<32x256xf32>
    %185 = arith.addf %182, %184 : vector<32x256xf32>
    %cst_87 = arith.constant 0.000000e+00 : f32
    %186 = vector.broadcast %cst_87 : f32 to vector<32x256xf32>
    %187 = arith.maximumf %185, %186 : vector<32x256xf32>
    %c0_88 = arith.constant 0 : index
    %c0_89 = arith.constant 0 : index
    %188 = vector.load %arg11[%c0_88, %c0_89] : memref<32x1xf32, #tpu.memory_space<vmem>>, vector<32x1xf32>
    %189 = vector.broadcast %188 : vector<32x1xf32> to vector<32x256xf32>
    %190 = arith.mulf %187, %189 : vector<32x256xf32>
    %cst_90 = arith.constant dense<0.000000e+00> : vector<256xf32>
    %191 = vector.multi_reduction <add>, %190, %cst_90 [0] : vector<32x256xf32> to vector<256xf32>
    %192 = vector.shape_cast %191 : vector<256xf32> to vector<1x256xf32>
    %c0_91 = arith.constant 0 : index
    %c0_92 = arith.constant 0 : index
    %193 = vector.load %arg12[%c0_91, %c0_92] : memref<1x1xf32, #tpu.memory_space<vmem>>, vector<1x1xf32>
    %194 = vector.broadcast %193 : vector<1x1xf32> to vector<1x256xf32>
    %195 = arith.addf %192, %194 : vector<1x256xf32>
    %c0_93 = arith.constant 0 : index
    %c0_94 = arith.constant 0 : index
    %c0_95 = arith.constant 0 : index
    %196 = vector.load %arg13[%c0_93, %c0_94, %c0_95] : memref<1x1x256xf32, #tpu.memory_space<vmem>>, vector<1x1x256xf32>
    %197 = vector.shape_cast %196 : vector<1x1x256xf32> to vector<1x256xf32>
    %198 = vector.shape_cast %195 : vector<1x256xf32> to vector<1x1x256xf32>
    tpu.vector_store %arg13[%c0_93, %c0_94, %c0_95], %198 {strides = array<i32>} : memref<1x1x256xf32, #tpu.memory_space<vmem>>, vector<1x1x256xf32>,
    return
  }
  func.func @transform_0(%arg0: i32) -> (i32, i32, i32) {
    %c0_i32 = arith.constant 0 : i32
    %c0_i32_0 = arith.constant 0 : i32
    %c0_i32_1 = arith.constant 0 : i32
    return %arg0, %c0_i32, %c0_i32_0 : i32, i32, i32
  }
  func.func @transform_1(%arg0: i32) -> (i32, i32) {
    %c0_i32 = arith.constant 0 : i32
    %c0_i32_0 = arith.constant 0 : i32
    %c0_i32_1 = arith.constant 0 : i32
    return %c0_i32, %c0_i32_0 : i32, i32
  }
  func.func @transform_2(%arg0: i32) -> (i32, i32) {
    %c0_i32 = arith.constant 0 : i32
    %c0_i32_0 = arith.constant 0 : i32
    %c0_i32_1 = arith.constant 0 : i32
    return %c0_i32, %c0_i32_0 : i32, i32
  }
  func.func @transform_3(%arg0: i32) -> (i32, i32, i32) {
    %c0_i32 = arith.constant 0 : i32
    %c0_i32_0 = arith.constant 0 : i32
    %c0_i32_1 = arith.constant 0 : i32
    %c0_i32_2 = arith.constant 0 : i32
    return %c0_i32, %c0_i32_0, %c0_i32_1 : i32, i32, i32
  }
  func.func @transform_4(%arg0: i32) -> (i32, i32, i32) {
    %c0_i32 = arith.constant 0 : i32
    %c0_i32_0 = arith.constant 0 : i32
    %c0_i32_1 = arith.constant 0 : i32
    %c0_i32_2 = arith.constant 0 : i32
    return %c0_i32, %c0_i32_0, %c0_i32_1 : i32, i32, i32
  }
  func.func @transform_5(%arg0: i32) -> (i32, i32, i32) {
    %c0_i32 = arith.constant 0 : i32
    %c0_i32_0 = arith.constant 0 : i32
    %c0_i32_1 = arith.constant 0 : i32
    %c0_i32_2 = arith.constant 0 : i32
    return %c0_i32, %c0_i32_0, %c0_i32_1 : i32, i32, i32
  }
  func.func @transform_6(%arg0: i32) -> (i32, i32, i32) {
    %c0_i32 = arith.constant 0 : i32
    %c0_i32_0 = arith.constant 0 : i32
    %c0_i32_1 = arith.constant 0 : i32
    %c0_i32_2 = arith.constant 0 : i32
    return %c0_i32, %c0_i32_0, %c0_i32_1 : i32, i32, i32
  }
  func.func @transform_7(%arg0: i32) -> (i32, i32) {
    %c0_i32 = arith.constant 0 : i32
    %c0_i32_0 = arith.constant 0 : i32
    %c0_i32_1 = arith.constant 0 : i32
    return %c0_i32, %c0_i32_0 : i32, i32
  }
  func.func @transform_8(%arg0: i32) -> (i32, i32) {
    %c0_i32 = arith.constant 0 : i32
    %c0_i32_0 = arith.constant 0 : i32
    %c0_i32_1 = arith.constant 0 : i32
    return %c0_i32, %c0_i32_0 : i32, i32
  }
  func.func @transform_9(%arg0: i32) -> (i32, i32) {
    %c0_i32 = arith.constant 0 : i32
    %c0_i32_0 = arith.constant 0 : i32
    %c0_i32_1 = arith.constant 0 : i32
    return %c0_i32, %c0_i32_0 : i32, i32
  }
  func.func @transform_10(%arg0: i32) -> (i32, i32) {
    %c0_i32 = arith.constant 0 : i32
    %c0_i32_0 = arith.constant 0 : i32
    %c0_i32_1 = arith.constant 0 : i32
    return %c0_i32, %c0_i32_0 : i32, i32
  }
  func.func @transform_11(%arg0: i32) -> (i32, i32) {
    %c0_i32 = arith.constant 0 : i32
    %c0_i32_0 = arith.constant 0 : i32
    %c0_i32_1 = arith.constant 0 : i32
    return %c0_i32, %c0_i32_0 : i32, i32
  }
  func.func @transform_12(%arg0: i32) -> (i32, i32, i32) {
    %c0_i32 = arith.constant 0 : i32
    %c0_i32_0 = arith.constant 0 : i32
    %c0_i32_1 = arith.constant 0 : i32
    return %arg0, %c0_i32, %c0_i32_0 : i32, i32, i32
  }
}

module attributes {stable_mosaic.version = 11 : i64} {
  func.func @_initial_predictor_kernel(%arg0: i32, %arg1: memref<1x1x256xf32, #tpu.memory_space<vmem>>, %arg2: memref<32x1xf32, #tpu.memory_space<vmem>>, %arg3: memref<32x1xf32, #tpu.memory_space<vmem>>, %arg4: memref<4x64x96xbf16, #tpu.memory_space<vmem>>, %arg5: memref<4x64x1xf32, #tpu.memory_space<vmem>>, %arg6: memref<4x64x32xbf16, #tpu.memory_space<vmem>>, %arg7: memref<4x32x1xf32, #tpu.memory_space<vmem>>, %arg8: memref<32x1xf32, #tpu.memory_space<vmem>>, %arg9: memref<32x32xbf16, #tpu.memory_space<vmem>>, %arg10: memref<32x1xf32, #tpu.memory_space<vmem>>, %arg11: memref<32x1xf32, #tpu.memory_space<vmem>>, %arg12: memref<1x1xf32, #tpu.memory_space<vmem>>, %arg13: memref<1x1x256xf32, #tpu.memory_space<vmem>>) attributes {dimension_semantics = [#tpu.dimension_semantics<parallel>], iteration_bounds = array<i64: 2>, scalar_prefetch = 0 : i64, scratch_operands = 0 : i64, tpu.core_type = #tpu.core_type<tc>, window_params = [{transform_indices = @transform_0, window_bounds = array<i64: 1, 1, 256>}, {pipeline_mode = #tpu.pipeline_mode<synchronous>, transform_indices = @transform_1, window_bounds = array<i64: 32, 1>}, {pipeline_mode = #tpu.pipeline_mode<synchronous>, transform_indices = @transform_2, window_bounds = array<i64: 32, 1>}, {pipeline_mode = #tpu.pipeline_mode<synchronous>, transform_indices = @transform_3, window_bounds = array<i64: 4, 64, 96>}, {pipeline_mode = #tpu.pipeline_mode<synchronous>, transform_indices = @transform_4, window_bounds = array<i64: 4, 64, 1>}, {pipeline_mode = #tpu.pipeline_mode<synchronous>, transform_indices = @transform_5, window_bounds = array<i64: 4, 64, 32>}, {pipeline_mode = #tpu.pipeline_mode<synchronous>, transform_indices = @transform_6, window_bounds = array<i64: 4, 32, 1>}, {pipeline_mode = #tpu.pipeline_mode<synchronous>, transform_indices = @transform_7, window_bounds = array<i64: 32, 1>}, {pipeline_mode = #tpu.pipeline_mode<synchronous>, transform_indices = @transform_8, window_bounds = array<i64: 32, 32>}, {pipeline_mode = #tpu.pipeline_mode<synchronous>, transform_indices = @transform_9, window_bounds = array<i64: 32, 1>}, {pipeline_mode = #tpu.pipeline_mode<synchronous>, transform_indices = @transform_10, window_bounds = array<i64: 32, 1>}, {pipeline_mode = #tpu.pipeline_mode<synchronous>, transform_indices = @transform_11, window_bounds = array<i64: 1, 1>}, {transform_indices = @transform_12, window_bounds = array<i64: 1, 1, 256>}]} {
    %c0 = arith.constant 0 : index
    %c0_0 = arith.constant 0 : index
    %c0_1 = arith.constant 0 : index
    %0 = vector.load %arg1[%c0, %c0_0, %c0_1] : memref<1x1x256xf32, #tpu.memory_space<vmem>>, vector<1x1x256xf32>
    %1 = vector.shape_cast %0 : vector<1x1x256xf32> to vector<1x256xf32>
    %c0_2 = arith.constant 0 : index
    %c0_3 = arith.constant 0 : index
    %2 = vector.load %arg2[%c0_2, %c0_3] : memref<32x1xf32, #tpu.memory_space<vmem>>, vector<32x1xf32>
    %3 = vector.broadcast %2 : vector<32x1xf32> to vector<32x256xf32>
    %4 = vector.broadcast %1 : vector<1x256xf32> to vector<32x256xf32>
    %5 = arith.mulf %3, %4 : vector<32x256xf32>
    %c0_4 = arith.constant 0 : index
    %c0_5 = arith.constant 0 : index
    %6 = vector.load %arg3[%c0_4, %c0_5] : memref<32x1xf32, #tpu.memory_space<vmem>>, vector<32x1xf32>
    %7 = vector.broadcast %6 : vector<32x1xf32> to vector<32x256xf32>
    %8 = arith.addf %5, %7 : vector<32x256xf32>
    %cst = arith.constant 0.000000e+00 : f32
    %9 = vector.broadcast %cst : f32 to vector<32x256xf32>
    %10 = arith.maximumf %8, %9 : vector<32x256xf32>
    %11 = tpu.iota {dimensions = array<i32: 1>} : vector<32x256xi32>
    %c127_i32 = arith.constant 127 : i32
    %12 = vector.broadcast %c127_i32 : i32 to vector<32x256xi32>
    %13 = arith.andi %11, %12 : vector<32x256xi32>
    %c1_i32 = arith.constant 1 : i32
    %14 = vector.broadcast %c1_i32 : i32 to vector<32x256xi32>
    %15 = arith.cmpi sge, %13, %14 : vector<32x256xi32>
    %c127_i32_6 = arith.constant 127 : i32
    %16 = vector.broadcast %c127_i32_6 : i32 to vector<32x256xi32>
    %17 = arith.cmpi slt, %13, %16 : vector<32x256xi32>
    %c2_i32 = arith.constant 2 : i32
    %18 = vector.broadcast %c2_i32 : i32 to vector<32x256xi32>
    %19 = arith.cmpi sge, %13, %18 : vector<32x256xi32>
    %c126_i32 = arith.constant 126 : i32
    %20 = vector.broadcast %c126_i32 : i32 to vector<32x256xi32>
    %21 = arith.cmpi slt, %13, %20 : vector<32x256xi32>
    %cst_7 = arith.constant 0.000000e+00 : f32
    %22 = vector.broadcast %cst_7 : f32 to vector<32x256xf32>
    %c1_i32_8 = arith.constant 1 : i32
    %23 = tpu.dynamic_rotate %10 by %c1_i32_8 dim 1 : vector<32x256xf32>, i32 -> vector<32x256xf32>
    %cst_9 = arith.constant 0.000000e+00 : f32
    %24 = vector.broadcast %cst_9 : f32 to vector<32x256xf32>
    %25 = arith.select %15, %23, %24 : vector<32x256xi1>, vector<32x256xf32>
    %26 = arith.truncf %25 : vector<32x256xf32> to vector<32x256xbf16>
    %c255_i32 = arith.constant 255 : i32
    %27 = tpu.dynamic_rotate %10 by %c255_i32 dim 1 : vector<32x256xf32>, i32 -> vector<32x256xf32>
    %cst_10 = arith.constant 0.000000e+00 : f32
    %28 = vector.broadcast %cst_10 : f32 to vector<32x256xf32>
    %29 = arith.select %17, %27, %28 : vector<32x256xi1>, vector<32x256xf32>
    %30 = arith.truncf %29 : vector<32x256xf32> to vector<32x256xbf16>
    %31 = arith.truncf %10 : vector<32x256xf32> to vector<32x256xbf16>
    %32 = tpu.concatenate %26, %31, %30 in 0 : vector<32x256xbf16>, vector<32x256xbf16>, vector<32x256xbf16> -> vector<96x256xbf16>
    %c0_11 = arith.constant 0 : index
    %c0_12 = arith.constant 0 : index
    %c0_13 = arith.constant 0 : index
    %33 = vector.load %arg4[%c0_11, %c0_12, %c0_13] : memref<4x64x96xbf16, #tpu.memory_space<vmem>>, vector<1x64x96xbf16>
    %34 = vector.shape_cast %33 : vector<1x64x96xbf16> to vector<64x96xbf16>
    %cst_14 = arith.constant dense<0.000000e+00> : vector<64x256xf32>
    %35 = tpu.matmul %34, %32, %cst_14 {dimension_numbers = #tpu.dot_dimension_numbers<[1], [0], [0], [1], [0, 0, 1, 1], [], []>} : vector<64x96xbf16>, vector<96x256xbf16>, vector<64x256xf32> -> vector<64x256xf32>
    %c0_15 = arith.constant 0 : index
    %c0_16 = arith.constant 0 : index
    %c0_17 = arith.constant 0 : index
    %36 = vector.load %arg5[%c0_15, %c0_16, %c0_17] : memref<4x64x1xf32, #tpu.memory_space<vmem>>, vector<1x64x1xf32>
    %37 = vector.shape_cast %36 : vector<1x64x1xf32> to vector<64x1xf32>
    %38 = vector.broadcast %37 : vector<64x1xf32> to vector<64x256xf32>
    %39 = arith.addf %35, %38 : vector<64x256xf32>
    %40 = vector.extract_strided_slice %39 {offsets = [0, 0], sizes = [32, 256], strides = [1, 1]} : vector<64x256xf32> to vector<32x256xf32>
    %41 = vector.extract_strided_slice %39 {offsets = [32, 0], sizes = [32, 256], strides = [1, 1]} : vector<64x256xf32> to vector<32x256xf32>
    %42 = arith.negf %40 : vector<32x256xf32>
    %43 = math.exp %42 : vector<32x256xf32>
    %cst_18 = arith.constant 1.000000e+00 : f32
    %44 = vector.broadcast %cst_18 : f32 to vector<32x256xf32>
    %45 = arith.addf %44, %43 : vector<32x256xf32>
    %46 = arith.divf %44, %45 : vector<32x256xf32>
    %47 = math.tanh %41 : vector<32x256xf32>
    %48 = arith.mulf %46, %47 : vector<32x256xf32>
    %49 = arith.truncf %48 : vector<32x256xf32> to vector<32x256xbf16>
    %c0_19 = arith.constant 0 : index
    %c0_20 = arith.constant 0 : index
    %c0_21 = arith.constant 0 : index
    %50 = vector.load %arg6[%c0_19, %c0_20, %c0_21] : memref<4x64x32xbf16, #tpu.memory_space<vmem>>, vector<1x64x32xbf16>
    %51 = vector.shape_cast %50 : vector<1x64x32xbf16> to vector<64x32xbf16>
    %cst_22 = arith.constant dense<0.000000e+00> : vector<64x256xf32>
    %52 = tpu.matmul %51, %49, %cst_22 {dimension_numbers = #tpu.dot_dimension_numbers<[1], [0], [0], [1], [0, 0, 1, 1], [], []>} : vector<64x32xbf16>, vector<32x256xbf16>, vector<64x256xf32> -> vector<64x256xf32>
    %53 = vector.extract_strided_slice %52 {offsets = [0, 0], sizes = [32, 256], strides = [1, 1]} : vector<64x256xf32> to vector<32x256xf32>
    %54 = arith.addf %10, %53 : vector<32x256xf32>
    %c0_23 = arith.constant 0 : index
    %c0_24 = arith.constant 0 : index
    %c0_25 = arith.constant 0 : index
    %55 = vector.load %arg7[%c0_23, %c0_24, %c0_25] : memref<4x32x1xf32, #tpu.memory_space<vmem>>, vector<1x32x1xf32>
    %56 = vector.shape_cast %55 : vector<1x32x1xf32> to vector<32x1xf32>
    %57 = vector.broadcast %56 : vector<32x1xf32> to vector<32x256xf32>
    %58 = arith.addf %54, %57 : vector<32x256xf32>
    %cst_26 = arith.constant 0.707106769 : f32
    %59 = vector.broadcast %cst_26 : f32 to vector<32x256xf32>
    %60 = arith.mulf %58, %59 : vector<32x256xf32>
    %61 = vector.extract_strided_slice %52 {offsets = [32, 0], sizes = [32, 256], strides = [1, 1]} : vector<64x256xf32> to vector<32x256xf32>
    %62 = arith.addf %22, %61 : vector<32x256xf32>
    %c2_i32_27 = arith.constant 2 : i32
    %63 = tpu.dynamic_rotate %60 by %c2_i32_27 dim 1 : vector<32x256xf32>, i32 -> vector<32x256xf32>
    %cst_28 = arith.constant 0.000000e+00 : f32
    %64 = vector.broadcast %cst_28 : f32 to vector<32x256xf32>
    %65 = arith.select %19, %63, %64 : vector<32x256xi1>, vector<32x256xf32>
    %66 = arith.truncf %65 : vector<32x256xf32> to vector<32x256xbf16>
    %c254_i32 = arith.constant 254 : i32
    %67 = tpu.dynamic_rotate %60 by %c254_i32 dim 1 : vector<32x256xf32>, i32 -> vector<32x256xf32>
    %cst_29 = arith.constant 0.000000e+00 : f32
    %68 = vector.broadcast %cst_29 : f32 to vector<32x256xf32>
    %69 = arith.select %21, %67, %68 : vector<32x256xi1>, vector<32x256xf32>
    %70 = arith.truncf %69 : vector<32x256xf32> to vector<32x256xbf16>
    %71 = arith.truncf %60 : vector<32x256xf32> to vector<32x256xbf16>
    %72 = tpu.concatenate %66, %71, %70 in 0 : vector<32x256xbf16>, vector<32x256xbf16>, vector<32x256xbf16> -> vector<96x256xbf16>
    %c1 = arith.constant 1 : index
    %c0_30 = arith.constant 0 : index
    %c0_31 = arith.constant 0 : index
    %73 = vector.load %arg4[%c1, %c0_30, %c0_31] : memref<4x64x96xbf16, #tpu.memory_space<vmem>>, vector<1x64x96xbf16>
    %74 = vector.shape_cast %73 : vector<1x64x96xbf16> to vector<64x96xbf16>
    %cst_32 = arith.constant dense<0.000000e+00> : vector<64x256xf32>
    %75 = tpu.matmul %74, %72, %cst_32 {dimension_numbers = #tpu.dot_dimension_numbers<[1], [0], [0], [1], [0, 0, 1, 1], [], []>} : vector<64x96xbf16>, vector<96x256xbf16>, vector<64x256xf32> -> vector<64x256xf32>
    %c1_33 = arith.constant 1 : index
    %c0_34 = arith.constant 0 : index
    %c0_35 = arith.constant 0 : index
    %76 = vector.load %arg5[%c1_33, %c0_34, %c0_35] : memref<4x64x1xf32, #tpu.memory_space<vmem>>, vector<1x64x1xf32>
    %77 = vector.shape_cast %76 : vector<1x64x1xf32> to vector<64x1xf32>
    %78 = vector.broadcast %77 : vector<64x1xf32> to vector<64x256xf32>
    %79 = arith.addf %75, %78 : vector<64x256xf32>
    %80 = vector.extract_strided_slice %79 {offsets = [0, 0], sizes = [32, 256], strides = [1, 1]} : vector<64x256xf32> to vector<32x256xf32>
    %81 = vector.extract_strided_slice %79 {offsets = [32, 0], sizes = [32, 256], strides = [1, 1]} : vector<64x256xf32> to vector<32x256xf32>
    %82 = arith.negf %80 : vector<32x256xf32>
    %83 = math.exp %82 : vector<32x256xf32>
    %cst_36 = arith.constant 1.000000e+00 : f32
    %84 = vector.broadcast %cst_36 : f32 to vector<32x256xf32>
    %85 = arith.addf %84, %83 : vector<32x256xf32>
    %86 = arith.divf %84, %85 : vector<32x256xf32>
    %87 = math.tanh %81 : vector<32x256xf32>
    %88 = arith.mulf %86, %87 : vector<32x256xf32>
    %89 = arith.truncf %88 : vector<32x256xf32> to vector<32x256xbf16>
    %c1_37 = arith.constant 1 : index
    %c0_38 = arith.constant 0 : index
    %c0_39 = arith.constant 0 : index
    %90 = vector.load %arg6[%c1_37, %c0_38, %c0_39] : memref<4x64x32xbf16, #tpu.memory_space<vmem>>, vector<1x64x32xbf16>
    %91 = vector.shape_cast %90 : vector<1x64x32xbf16> to vector<64x32xbf16>
    %cst_40 = arith.constant dense<0.000000e+00> : vector<64x256xf32>
    %92 = tpu.matmul %91, %89, %cst_40 {dimension_numbers = #tpu.dot_dimension_numbers<[1], [0], [0], [1], [0, 0, 1, 1], [], []>} : vector<64x32xbf16>, vector<32x256xbf16>, vector<64x256xf32> -> vector<64x256xf32>
    %93 = vector.extract_strided_slice %92 {offsets = [0, 0], sizes = [32, 256], strides = [1, 1]} : vector<64x256xf32> to vector<32x256xf32>
    %94 = arith.addf %60, %93 : vector<32x256xf32>
    %c1_41 = arith.constant 1 : index
    %c0_42 = arith.constant 0 : index
    %c0_43 = arith.constant 0 : index
    %95 = vector.load %arg7[%c1_41, %c0_42, %c0_43] : memref<4x32x1xf32, #tpu.memory_space<vmem>>, vector<1x32x1xf32>
    %96 = vector.shape_cast %95 : vector<1x32x1xf32> to vector<32x1xf32>
    %97 = vector.broadcast %96 : vector<32x1xf32> to vector<32x256xf32>
    %98 = arith.addf %94, %97 : vector<32x256xf32>
    %cst_44 = arith.constant 0.707106769 : f32
    %99 = vector.broadcast %cst_44 : f32 to vector<32x256xf32>
    %100 = arith.mulf %98, %99 : vector<32x256xf32>
    %101 = vector.extract_strided_slice %92 {offsets = [32, 0], sizes = [32, 256], strides = [1, 1]} : vector<64x256xf32> to vector<32x256xf32>
    %102 = arith.addf %62, %101 : vector<32x256xf32>
    %c1_i32_45 = arith.constant 1 : i32
    %103 = tpu.dynamic_rotate %100 by %c1_i32_45 dim 1 : vector<32x256xf32>, i32 -> vector<32x256xf32>
    %cst_46 = arith.constant 0.000000e+00 : f32
    %104 = vector.broadcast %cst_46 : f32 to vector<32x256xf32>
    %105 = arith.select %15, %103, %104 : vector<32x256xi1>, vector<32x256xf32>
    %106 = arith.truncf %105 : vector<32x256xf32> to vector<32x256xbf16>
    %c255_i32_47 = arith.constant 255 : i32
    %107 = tpu.dynamic_rotate %100 by %c255_i32_47 dim 1 : vector<32x256xf32>, i32 -> vector<32x256xf32>
    %cst_48 = arith.constant 0.000000e+00 : f32
    %108 = vector.broadcast %cst_48 : f32 to vector<32x256xf32>
    %109 = arith.select %17, %107, %108 : vector<32x256xi1>, vector<32x256xf32>
    %110 = arith.truncf %109 : vector<32x256xf32> to vector<32x256xbf16>
    %111 = arith.truncf %100 : vector<32x256xf32> to vector<32x256xbf16>
    %112 = tpu.concatenate %106, %111, %110 in 0 : vector<32x256xbf16>, vector<32x256xbf16>, vector<32x256xbf16> -> vector<96x256xbf16>
    %c2 = arith.constant 2 : index
    %c0_49 = arith.constant 0 : index
    %c0_50 = arith.constant 0 : index
    %113 = vector.load %arg4[%c2, %c0_49, %c0_50] : memref<4x64x96xbf16, #tpu.memory_space<vmem>>, vector<1x64x96xbf16>
    %114 = vector.shape_cast %113 : vector<1x64x96xbf16> to vector<64x96xbf16>
    %cst_51 = arith.constant dense<0.000000e+00> : vector<64x256xf32>
    %115 = tpu.matmul %114, %112, %cst_51 {dimension_numbers = #tpu.dot_dimension_numbers<[1], [0], [0], [1], [0, 0, 1, 1], [], []>} : vector<64x96xbf16>, vector<96x256xbf16>, vector<64x256xf32> -> vector<64x256xf32>
    %c2_52 = arith.constant 2 : index
    %c0_53 = arith.constant 0 : index
    %c0_54 = arith.constant 0 : index
    %116 = vector.load %arg5[%c2_52, %c0_53, %c0_54] : memref<4x64x1xf32, #tpu.memory_space<vmem>>, vector<1x64x1xf32>
    %117 = vector.shape_cast %116 : vector<1x64x1xf32> to vector<64x1xf32>
    %118 = vector.broadcast %117 : vector<64x1xf32> to vector<64x256xf32>
    %119 = arith.addf %115, %118 : vector<64x256xf32>
    %120 = vector.extract_strided_slice %119 {offsets = [0, 0], sizes = [32, 256], strides = [1, 1]} : vector<64x256xf32> to vector<32x256xf32>
    %121 = vector.extract_strided_slice %119 {offsets = [32, 0], sizes = [32, 256], strides = [1, 1]} : vector<64x256xf32> to vector<32x256xf32>
    %122 = arith.negf %120 : vector<32x256xf32>
    %123 = math.exp %122 : vector<32x256xf32>
    %cst_55 = arith.constant 1.000000e+00 : f32
    %124 = vector.broadcast %cst_55 : f32 to vector<32x256xf32>
    %125 = arith.addf %124, %123 : vector<32x256xf32>
    %126 = arith.divf %124, %125 : vector<32x256xf32>
    %127 = math.tanh %121 : vector<32x256xf32>
    %128 = arith.mulf %126, %127 : vector<32x256xf32>
    %129 = arith.truncf %128 : vector<32x256xf32> to vector<32x256xbf16>
    %c2_56 = arith.constant 2 : index
    %c0_57 = arith.constant 0 : index
    %c0_58 = arith.constant 0 : index
    %130 = vector.load %arg6[%c2_56, %c0_57, %c0_58] : memref<4x64x32xbf16, #tpu.memory_space<vmem>>, vector<1x64x32xbf16>
    %131 = vector.shape_cast %130 : vector<1x64x32xbf16> to vector<64x32xbf16>
    %cst_59 = arith.constant dense<0.000000e+00> : vector<64x256xf32>
    %132 = tpu.matmul %131, %129, %cst_59 {dimension_numbers = #tpu.dot_dimension_numbers<[1], [0], [0], [1], [0, 0, 1, 1], [], []>} : vector<64x32xbf16>, vector<32x256xbf16>, vector<64x256xf32> -> vector<64x256xf32>
    %133 = vector.extract_strided_slice %132 {offsets = [0, 0], sizes = [32, 256], strides = [1, 1]} : vector<64x256xf32> to vector<32x256xf32>
    %134 = arith.addf %100, %133 : vector<32x256xf32>
    %c2_60 = arith.constant 2 : index
    %c0_61 = arith.constant 0 : index
    %c0_62 = arith.constant 0 : index
    %135 = vector.load %arg7[%c2_60, %c0_61, %c0_62] : memref<4x32x1xf32, #tpu.memory_space<vmem>>, vector<1x32x1xf32>
    %136 = vector.shape_cast %135 : vector<1x32x1xf32> to vector<32x1xf32>
    %137 = vector.broadcast %136 : vector<32x1xf32> to vector<32x256xf32>
    %138 = arith.addf %134, %137 : vector<32x256xf32>
    %cst_63 = arith.constant 0.707106769 : f32
    %139 = vector.broadcast %cst_63 : f32 to vector<32x256xf32>
    %140 = arith.mulf %138, %139 : vector<32x256xf32>
    %141 = vector.extract_strided_slice %132 {offsets = [32, 0], sizes = [32, 256], strides = [1, 1]} : vector<64x256xf32> to vector<32x256xf32>
    %142 = arith.addf %102, %141 : vector<32x256xf32>
    %c2_i32_64 = arith.constant 2 : i32
    %143 = tpu.dynamic_rotate %140 by %c2_i32_64 dim 1 : vector<32x256xf32>, i32 -> vector<32x256xf32>
    %cst_65 = arith.constant 0.000000e+00 : f32
    %144 = vector.broadcast %cst_65 : f32 to vector<32x256xf32>
    %145 = arith.select %19, %143, %144 : vector<32x256xi1>, vector<32x256xf32>
    %146 = arith.truncf %145 : vector<32x256xf32> to vector<32x256xbf16>
    %c254_i32_66 = arith.constant 254 : i32
    %147 = tpu.dynamic_rotate %140 by %c254_i32_66 dim 1 : vector<32x256xf32>, i32 -> vector<32x256xf32>
    %cst_67 = arith.constant 0.000000e+00 : f32
    %148 = vector.broadcast %cst_67 : f32 to vector<32x256xf32>
    %149 = arith.select %21, %147, %148 : vector<32x256xi1>, vector<32x256xf32>
    %150 = arith.truncf %149 : vector<32x256xf32> to vector<32x256xbf16>
    %151 = arith.truncf %140 : vector<32x256xf32> to vector<32x256xbf16>
    %152 = tpu.concatenate %146, %151, %150 in 0 : vector<32x256xbf16>, vector<32x256xbf16>, vector<32x256xbf16> -> vector<96x256xbf16>
    %c3 = arith.constant 3 : index
    %c0_68 = arith.constant 0 : index
    %c0_69 = arith.constant 0 : index
    %153 = vector.load %arg4[%c3, %c0_68, %c0_69] : memref<4x64x96xbf16, #tpu.memory_space<vmem>>, vector<1x64x96xbf16>
    %154 = vector.shape_cast %153 : vector<1x64x96xbf16> to vector<64x96xbf16>
    %cst_70 = arith.constant dense<0.000000e+00> : vector<64x256xf32>
    %155 = tpu.matmul %154, %152, %cst_70 {dimension_numbers = #tpu.dot_dimension_numbers<[1], [0], [0], [1], [0, 0, 1, 1], [], []>} : vector<64x96xbf16>, vector<96x256xbf16>, vector<64x256xf32> -> vector<64x256xf32>
    %c3_71 = arith.constant 3 : index
    %c0_72 = arith.constant 0 : index
    %c0_73 = arith.constant 0 : index
    %156 = vector.load %arg5[%c3_71, %c0_72, %c0_73] : memref<4x64x1xf32, #tpu.memory_space<vmem>>, vector<1x64x1xf32>
    %157 = vector.shape_cast %156 : vector<1x64x1xf32> to vector<64x1xf32>
    %158 = vector.broadcast %157 : vector<64x1xf32> to vector<64x256xf32>
    %159 = arith.addf %155, %158 : vector<64x256xf32>
    %160 = vector.extract_strided_slice %159 {offsets = [0, 0], sizes = [32, 256], strides = [1, 1]} : vector<64x256xf32> to vector<32x256xf32>
    %161 = vector.extract_strided_slice %159 {offsets = [32, 0], sizes = [32, 256], strides = [1, 1]} : vector<64x256xf32> to vector<32x256xf32>
    %162 = arith.negf %160 : vector<32x256xf32>
    %163 = math.exp %162 : vector<32x256xf32>
    %cst_74 = arith.constant 1.000000e+00 : f32
    %164 = vector.broadcast %cst_74 : f32 to vector<32x256xf32>
    %165 = arith.addf %164, %163 : vector<32x256xf32>
    %166 = arith.divf %164, %165 : vector<32x256xf32>
    %167 = math.tanh %161 : vector<32x256xf32>
    %168 = arith.mulf %166, %167 : vector<32x256xf32>
    %169 = arith.truncf %168 : vector<32x256xf32> to vector<32x256xbf16>
    %c3_75 = arith.constant 3 : index
    %c0_76 = arith.constant 0 : index
    %c0_77 = arith.constant 0 : index
    %170 = vector.load %arg6[%c3_75, %c0_76, %c0_77] : memref<4x64x32xbf16, #tpu.memory_space<vmem>>, vector<1x64x32xbf16>
    %171 = vector.shape_cast %170 : vector<1x64x32xbf16> to vector<64x32xbf16>
    %cst_78 = arith.constant dense<0.000000e+00> : vector<64x256xf32>
    %172 = tpu.matmul %171, %169, %cst_78 {dimension_numbers = #tpu.dot_dimension_numbers<[1], [0], [0], [1], [0, 0, 1, 1], [], []>} : vector<64x32xbf16>, vector<32x256xbf16>, vector<64x256xf32> -> vector<64x256xf32>
    %173 = vector.extract_strided_slice %172 {offsets = [32, 0], sizes = [32, 256], strides = [1, 1]} : vector<64x256xf32> to vector<32x256xf32>
    %174 = arith.addf %142, %173 : vector<32x256xf32>
    %c0_79 = arith.constant 0 : index
    %c0_80 = arith.constant 0 : index
    %175 = vector.load %arg8[%c0_79, %c0_80] : memref<32x1xf32, #tpu.memory_space<vmem>>, vector<32x1xf32>
    %176 = vector.broadcast %175 : vector<32x1xf32> to vector<32x256xf32>
    %177 = arith.addf %174, %176 : vector<32x256xf32>
    %cst_81 = arith.constant 5.000000e-01 : f32
    %178 = vector.broadcast %cst_81 : f32 to vector<32x256xf32>
    %179 = arith.mulf %177, %178 : vector<32x256xf32>
    %180 = arith.truncf %179 : vector<32x256xf32> to vector<32x256xbf16>
    %c0_82 = arith.constant 0 : index
    %c0_83 = arith.constant 0 : index
    %181 = vector.load %arg9[%c0_82, %c0_83] : memref<32x32xbf16, #tpu.memory_space<vmem>>, vector<32x32xbf16>
    %cst_84 = arith.constant dense<0.000000e+00> : vector<32x256xf32>
    %182 = tpu.matmul %181, %180, %cst_84 {dimension_numbers = #tpu.dot_dimension_numbers<[1], [0], [0], [1], [0, 0, 1, 1], [], []>} : vector<32x32xbf16>, vector<32x256xbf16>, vector<32x256xf32> -> vector<32x256xf32>
    %c0_85 = arith.constant 0 : index
    %c0_86 = arith.constant 0 : index
    %183 = vector.load %arg10[%c0_85, %c0_86] : memref<32x1xf32, #tpu.memory_space<vmem>>, vector<32x1xf32>
    %184 = vector.broadcast %183 : vector<32x1xf32> to vector<32x256xf32>
    %185 = arith.addf %182, %184 : vector<32x256xf32>
    %cst_87 = arith.constant 0.000000e+00 : f32
    %186 = vector.broadcast %cst_87 : f32 to vector<32x256xf32>
    %187 = arith.maximumf %185, %186 : vector<32x256xf32>
    %c0_88 = arith.constant 0 : index
    %c0_89 = arith.constant 0 : index
    %188 = vector.load %arg11[%c0_88, %c0_89] : memref<32x1xf32, #tpu.memory_space<vmem>>, vector<32x1xf32>
    %189 = vector.broadcast %188 : vector<32x1xf32> to vector<32x256xf32>
    %190 = arith.mulf %187, %189 : vector<32x256xf32>
    %cst_90 = arith.constant dense<0.000000e+00> : vector<256xf32>
    %191 = vector.multi_reduction <add>, %190, %cst_90 [0] : vector<32x256xf32> to vector<256xf32>
    %192 = vector.shape_cast %191 : vector<256xf32> to vector<1x256xf32>
    %c0_91 = arith.constant 0 : index
    %c0_92 = arith.constant 0 : index
    %193 = vector.load %arg12[%c0_91, %c0_92] : memref<1x1xf32, #tpu.memory_space<vmem>>, vector<1x1xf32>
    %194 = vector.broadcast %193 : vector<1x1xf32> to vector<1x256xf32>
    %195 = arith.addf %192, %194 : vector<1x256xf32>
    %c0_93 = arith.constant 0 : index
    %c0_94 = arith.constant 0 : index
    %c0_95 = arith.constant 0 : index
    %196 = vector.load %arg13[%c0_93, %c0_94, %c0_95] : memref<1x1x256xf32, #tpu.memory_space<vmem>>, vector<1x1x256xf32>
    %197 = vector.shape_cast %196 : vector<1x1x256xf32> to vector<1x256xf32>
    %198 = vector.shape_cast %195 : vector<1x256xf32> to vector<1x1x256xf32>
    tpu.vector_store %arg13[%c0_93, %c0_94, %c0_95], %198 {strides = array<i32>} : memref<1x1x256xf32, #tpu.memory_space<vmem>>, vector<1x1x256xf32>,
    return
  }
  func.func @transform_0(%arg0: i32) -> (i32, i32, i32) {
    %c0_i32 = arith.constant 0 : i32
    %c0_i32_0 = arith.constant 0 : i32
    %c0_i32_1 = arith.constant 0 : i32
    return %arg0, %c0_i32, %c0_i32_0 : i32, i32, i32
  }
  func.func @transform_1(%arg0: i32) -> (i32, i32) {
    %c0_i32 = arith.constant 0 : i32
    %c0_i32_0 = arith.constant 0 : i32
    %c0_i32_1 = arith.constant 0 : i32
    return %c0_i32, %c0_i32_0 : i32, i32
  }
  func.func @transform_2(%arg0: i32) -> (i32, i32) {
    %c0_i32 = arith.constant 0 : i32
    %c0_i32_0 = arith.constant 0 : i32
    %c0_i32_1 = arith.constant 0 : i32
    return %c0_i32, %c0_i32_0 : i32, i32
  }
  func.func @transform_3(%arg0: i32) -> (i32, i32, i32) {
    %c0_i32 = arith.constant 0 : i32
    %c0_i32_0 = arith.constant 0 : i32
    %c0_i32_1 = arith.constant 0 : i32
    %c0_i32_2 = arith.constant 0 : i32
    return %c0_i32, %c0_i32_0, %c0_i32_1 : i32, i32, i32
  }
  func.func @transform_4(%arg0: i32) -> (i32, i32, i32) {
    %c0_i32 = arith.constant 0 : i32
    %c0_i32_0 = arith.constant 0 : i32
    %c0_i32_1 = arith.constant 0 : i32
    %c0_i32_2 = arith.constant 0 : i32
    return %c0_i32, %c0_i32_0, %c0_i32_1 : i32, i32, i32
  }
  func.func @transform_5(%arg0: i32) -> (i32, i32, i32) {
    %c0_i32 = arith.constant 0 : i32
    %c0_i32_0 = arith.constant 0 : i32
    %c0_i32_1 = arith.constant 0 : i32
    %c0_i32_2 = arith.constant 0 : i32
    return %c0_i32, %c0_i32_0, %c0_i32_1 : i32, i32, i32
  }
  func.func @transform_6(%arg0: i32) -> (i32, i32, i32) {
    %c0_i32 = arith.constant 0 : i32
    %c0_i32_0 = arith.constant 0 : i32
    %c0_i32_1 = arith.constant 0 : i32
    %c0_i32_2 = arith.constant 0 : i32
    return %c0_i32, %c0_i32_0, %c0_i32_1 : i32, i32, i32
  }
  func.func @transform_7(%arg0: i32) -> (i32, i32) {
    %c0_i32 = arith.constant 0 : i32
    %c0_i32_0 = arith.constant 0 : i32
    %c0_i32_1 = arith.constant 0 : i32
    return %c0_i32, %c0_i32_0 : i32, i32
  }
  func.func @transform_8(%arg0: i32) -> (i32, i32) {
    %c0_i32 = arith.constant 0 : i32
    %c0_i32_0 = arith.constant 0 : i32
    %c0_i32_1 = arith.constant 0 : i32
    return %c0_i32, %c0_i32_0 : i32, i32
  }
  func.func @transform_9(%arg0: i32) -> (i32, i32) {
    %c0_i32 = arith.constant 0 : i32
    %c0_i32_0 = arith.constant 0 : i32
    %c0_i32_1 = arith.constant 0 : i32
    return %c0_i32, %c0_i32_0 : i32, i32
  }
  func.func @transform_10(%arg0: i32) -> (i32, i32) {
    %c0_i32 = arith.constant 0 : i32
    %c0_i32_0 = arith.constant 0 : i32
    %c0_i32_1 = arith.constant 0 : i32
    return %c0_i32, %c0_i32_0 : i32, i32
  }
  func.func @transform_11(%arg0: i32) -> (i32, i32) {
    %c0_i32 = arith.constant 0 : i32
    %c0_i32_0 = arith.constant 0 : i32
    %c0_i32_1 = arith.constant 0 : i32
    return %c0_i32, %c0_i32_0 : i32, i32
  }
  func.func @transform_12(%arg0: i32) -> (i32, i32, i32) {
    %c0_i32 = arith.constant 0 : i32
    %c0_i32_0 = arith.constant 0 : i32
    %c0_i32_1 = arith.constant 0 : i32
    return %arg0, %c0_i32, %c0_i32_0 : i32, i32, i32
  }
}

</mosaic_0001>

<llo_original>
// kernel: tpu_custom_call.1
$region0: #{tpu_custom_call.1}
  #allocation0 [shape = 'u32[]', space=smem, size = 0x4, offset = 0x4, fixed_abs, tag = 'smem constant byte address 0x4 - core index']
  #allocation1 [shape = 'u32[72,128]{1,0:T(1,128)}', space=vmem, size = 0x9000, scoped, tag = 'internal scratch']
  #allocation2 [shape = 'f32[1,1]{1,0:T(1,128)S(1)}', space=vmem, size = 0x200, scoped, tag = 'scoped memory for tpu_custom_call.1']
  %s0 = inlined_call_operand.vmem [shape: f32[2,1,256], index: 0, kind: input, shape index: {}]
  %s1 = inlined_call_operand.vmem [shape: f32[32,1], index: 1, kind: input, shape index: {}]
  %s2 = inlined_call_operand.vmem [shape: f32[32,1], index: 2, kind: input, shape index: {}]
  %s3 = inlined_call_operand.vmem [shape: bf16[4,64,96], index: 3, kind: input, shape index: {}]
  %s4 = inlined_call_operand.vmem [shape: f32[4,64,1], index: 4, kind: input, shape index: {}]
  %s5 = inlined_call_operand.vmem [shape: bf16[4,64,32], index: 5, kind: input, shape index: {}]
  %s6 = inlined_call_operand.vmem [shape: f32[4,32,1], index: 6, kind: input, shape index: {}]
  %s7 = inlined_call_operand.vmem [shape: f32[32,1], index: 7, kind: input, shape index: {}]
  %s8 = inlined_call_operand.vmem [shape: bf16[32,32], index: 8, kind: input, shape index: {}]
  %s9 = inlined_call_operand.vmem [shape: f32[32,1], index: 9, kind: input, shape index: {}]
  %s10 = inlined_call_operand.vmem [shape: f32[32,1], index: 10, kind: input, shape index: {}]
  %s11 = inlined_call_operand.<no memory space> [shape: f32[1,1], index: 11, kind: input, shape index: {}]
  %s12 = inlined_call_operand.hbm [shape: f32[2,1,256], index: 12, kind: output, shape index: {}]
  %s13 = sld [smem:[#allocation0]]
  $region81: #{tpu_custom_call.1} parent=0
    _
  %s15 = ssub.s32 1, %s13
  %s16 = scalar_select 0, %s15, %s13
  %v17 = vstv %s11
  %18 = vst [vmem:[#allocation2] sm:$0x1] %v17
  $region1: #{tpu_custom_call.1} parent=0
    #allocation3 [shape = 'u8[2048]{0}', space=vmem, size = 0x800, scoped, tag = 'output window, operand 0']
    #allocation4 [shape = 's32[2]{0}', space=sflag, size = 0x8, scoped, tag = 'scoped memory for tpu_custom_call.1']
    %19 = vsyncpa [#allocation4], 0
    %s20 = scalar_lea.sflag [#allocation4], 1
    %21 = vsyncpa %s20, 0
    loop: start=0, step=1, limit=4
    $region2: #{tpu_custom_call.1} parent=1 // loop_pre_header
      _
    $region3: #{tpu_custom_call.1} parent=1 // loop_header
      %s23 = sphi 0, %s27
      %p24 = scmp.ge.s32.totalorder %s23, 4
      %s33 = sphi 0, %s35
      %s36 = sphi 0, %s33
      %s37 = sphi 0, %s36
      %s53 = sphi 0, %s37
      %s57 = sphi 0, %s57
      %s59 = sphi 0, %s57
      %s60 = sphi 0, %s59
      %s74 = sphi 0, %s60
      %s78 = sphi 0, %s78
      %s80 = sphi 0, %s78
      %s81 = sphi 0, %s80
      %s95 = sphi 0, %s81
      %s99 = sphi 0, %s99
      %s101 = sphi 0, %s99
      %s102 = sphi 0, %s101
      %s116 = sphi 0, %s102
      %s120 = sphi 0, %s120
      %s122 = sphi 0, %s120
      %s123 = sphi 0, %s122
      %s137 = sphi 0, %s123
      %s141 = sphi 0, %s141
      %s143 = sphi 0, %s141
      %s144 = sphi 0, %s143
      %s158 = sphi 0, %s144
      %s162 = sphi 0, %s162
      %s164 = sphi 0, %s162
      %s165 = sphi 0, %s164
      %s179 = sphi 0, %s165
      %s183 = sphi 0, %s183
      %s185 = sphi 0, %s183
      %s186 = sphi 0, %s185
      %s200 = sphi 0, %s186
      %s204 = sphi 0, %s204
      %s206 = sphi 0, %s204
      %s207 = sphi 0, %s206
      %s221 = sphi 0, %s207
      %s225 = sphi 0, %s225
      %s227 = sphi 0, %s225
      %s228 = sphi 0, %s227
      %s242 = sphi 0, %s228
      %s246 = sphi 0, %s246
      %s248 = sphi 0, %s246
      %s249 = sphi 0, %s248
      %s263 = sphi 0, %s249
      %s267 = sphi 0, %s267
      %s269 = sphi 0, %s267
      %s270 = sphi 0, %s269
      %s284 = sphi 0, %s270
      %s290 = sphi 0, %s292
      %s293 = sphi 0, %s290
      %s294 = sphi 0, %s293
      %s310 = sphi 0, %s294
    $region4: #{tpu_custom_call.1} parent=1 // loop_header_branch
      %26 = sbr.rel (%p24) target = $region8
    $region5: #{tpu_custom_call.1} parent=1 // loop_body
      %s28 = ssub.s32 %s23, 1
      %s29 = ssub.s32 %s23, 2
      %s30 = sadd.s32 %s23, 1
      %s31 = ssub.s32 %s23, %s30
      %p32 = scmp.eq.s32.totalorder %s31, 0
      %s34 = sadd.s32 %s33, 1
      %s35 = scalar_select %p32, %s33, %s34
      %p38 = pneg %p32
      %p39 = scmp.eq.s32.totalorder %s23, 1
      %p40 = por %p38, %p39
      %p41 = scmp.ne.s32.totalorder %s33, %s36
      %p42 = scmp.eq.s32.totalorder %s23, 0
      %p43 = por %p41, %p42
      %p44 = scmp.ne.s32.totalorder %s33, %s36
      %p45 = scmp.eq.s32.totalorder %s28, 1
      %p46 = por %p44, %p45
      %p47 = scmp.ne.s32.totalorder %s36, %s37
      %p48 = scmp.eq.s32.totalorder %s28, 0
      %p49 = por %p47, %p48
      %p50 = scmp.ne.s32.totalorder %s36, %s37
      %p51 = scmp.eq.s32.totalorder %s29, 1
      %p52 = por %p50, %p51
      %p54 = scmp.ne.s32.totalorder %s37, %s53
      %p55 = scmp.eq.s32.totalorder %s29, 0
      %p56 = por %p54, %p55
      %s58 = sadd.s32 %s57, 1
      %p61 = scmp.eq.s32.totalorder %s23, 1
      %p62 = scmp.ne.s32.totalorder %s57, %s59
      %p63 = scmp.eq.s32.totalorder %s23, 0
      %p64 = por %p62, %p63
      %p65 = scmp.ne.s32.totalorder %s57, %s59
      %p66 = scmp.eq.s32.totalorder %s28, 1
      %p67 = por %p65, %p66
      %p68 = scmp.ne.s32.totalorder %s59, %s60
      %p69 = scmp.eq.s32.totalorder %s28, 0
      %p70 = por %p68, %p69
      %p71 = scmp.ne.s32.totalorder %s59, %s60
      %p72 = scmp.eq.s32.totalorder %s29, 1
      %p73 = por %p71, %p72
      %p75 = scmp.ne.s32.totalorder %s60, %s74
      %p76 = scmp.eq.s32.totalorder %s29, 0
      %p77 = por %p75, %p76
      %s79 = sadd.s32 %s78, 1
      %p82 = scmp.eq.s32.totalorder %s23, 1
      %p83 = scmp.ne.s32.totalorder %s78, %s80
      %p84 = scmp.eq.s32.totalorder %s23, 0
      %p85 = por %p83, %p84
      %p86 = scmp.ne.s32.totalorder %s78, %s80
      %p87 = scmp.eq.s32.totalorder %s28, 1
      %p88 = por %p86, %p87
      %p89 = scmp.ne.s32.totalorder %s80, %s81
      %p90 = scmp.eq.s32.totalorder %s28, 0
      %p91 = por %p89, %p90
      %p92 = scmp.ne.s32.totalorder %s80, %s81
      %p93 = scmp.eq.s32.totalorder %s29, 1
      %p94 = por %p92, %p93
      %p96 = scmp.ne.s32.totalorder %s81, %s95
      %p97 = scmp.eq.s32.totalorder %s29, 0
      %p98 = por %p96, %p97
      %s100 = sadd.s32 %s99, 1
      %p103 = scmp.eq.s32.totalorder %s23, 1
      %p104 = scmp.ne.s32.totalorder %s99, %s101
      %p105 = scmp.eq.s32.totalorder %s23, 0
      %p106 = por %p104, %p105
      %p107 = scmp.ne.s32.totalorder %s99, %s101
      %p108 = scmp.eq.s32.totalorder %s28, 1
      %p109 = por %p107, %p108
      %p110 = scmp.ne.s32.totalorder %s101, %s102
      %p111 = scmp.eq.s32.totalorder %s28, 0
      %p112 = por %p110, %p111
      %p113 = scmp.ne.s32.totalorder %s101, %s102
      %p114 = scmp.eq.s32.totalorder %s29, 1
      %p115 = por %p113, %p114
      %p117 = scmp.ne.s32.totalorder %s102, %s116
      %p118 = scmp.eq.s32.totalorder %s29, 0
      %p119 = por %p117, %p118
      %s121 = sadd.s32 %s120, 1
      %p124 = scmp.eq.s32.totalorder %s23, 1
      %p125 = scmp.ne.s32.totalorder %s120, %s122
      %p126 = scmp.eq.s32.totalorder %s23, 0
      %p127 = por %p125, %p126
      %p128 = scmp.ne.s32.totalorder %s120, %s122
      %p129 = scmp.eq.s32.totalorder %s28, 1
      %p130 = por %p128, %p129
      %p131 = scmp.ne.s32.totalorder %s122, %s123
      %p132 = scmp.eq.s32.totalorder %s28, 0
      %p133 = por %p131, %p132
      %p134 = scmp.ne.s32.totalorder %s122, %s123
      %p135 = scmp.eq.s32.totalorder %s29, 1
      %p136 = por %p134, %p135
      %p138 = scmp.ne.s32.totalorder %s123, %s137
      %p139 = scmp.eq.s32.totalorder %s29, 0
      %p140 = por %p138, %p139
      %s142 = sadd.s32 %s141, 1
      %p145 = scmp.eq.s32.totalorder %s23, 1
      %p146 = scmp.ne.s32.totalorder %s141, %s143
      %p147 = scmp.eq.s32.totalorder %s23, 0
      %p148 = por %p146, %p147
      %p149 = scmp.ne.s32.totalorder %s141, %s143
      %p150 = scmp.eq.s32.totalorder %s28, 1
      %p151 = por %p149, %p150
      %p152 = scmp.ne.s32.totalorder %s143, %s144
      %p153 = scmp.eq.s32.totalorder %s28, 0
      %p154 = por %p152, %p153
      %p155 = scmp.ne.s32.totalorder %s143, %s144
      %p156 = scmp.eq.s32.totalorder %s29, 1
      %p157 = por %p155, %p156
      %p159 = scmp.ne.s32.totalorder %s144, %s158
      %p160 = scmp.eq.s32.totalorder %s29, 0
      %p161 = por %p159, %p160
      %s163 = sadd.s32 %s162, 1
      %p166 = scmp.eq.s32.totalorder %s23, 1
      %p167 = scmp.ne.s32.totalorder %s162, %s164
      %p168 = scmp.eq.s32.totalorder %s23, 0
      %p169 = por %p167, %p168
      %p170 = scmp.ne.s32.totalorder %s162, %s164
      %p171 = scmp.eq.s32.totalorder %s28, 1
      %p172 = por %p170, %p171
      %p173 = scmp.ne.s32.totalorder %s164, %s165
      %p174 = scmp.eq.s32.totalorder %s28, 0
      %p175 = por %p173, %p174
      %p176 = scmp.ne.s32.totalorder %s164, %s165
      %p177 = scmp.eq.s32.totalorder %s29, 1
      %p178 = por %p176, %p177
      %p180 = scmp.ne.s32.totalorder %s165, %s179
      %p181 = scmp.eq.s32.totalorder %s29, 0
      %p182 = por %p180, %p181
      %s184 = sadd.s32 %s183, 1
      %p187 = scmp.eq.s32.totalorder %s23, 1
      %p188 = scmp.ne.s32.totalorder %s183, %s185
      %p189 = scmp.eq.s32.totalorder %s23, 0
      %p190 = por %p188, %p189
      %p191 = scmp.ne.s32.totalorder %s183, %s185
      %p192 = scmp.eq.s32.totalorder %s28, 1
      %p193 = por %p191, %p192
      %p194 = scmp.ne.s32.totalorder %s185, %s186
      %p195 = scmp.eq.s32.totalorder %s28, 0
      %p196 = por %p194, %p195
      %p197 = scmp.ne.s32.totalorder %s185, %s186
      %p198 = scmp.eq.s32.totalorder %s29, 1
      %p199 = por %p197, %p198
      %p201 = scmp.ne.s32.totalorder %s186, %s200
      %p202 = scmp.eq.s32.totalorder %s29, 0
      %p203 = por %p201, %p202
      %s205 = sadd.s32 %s204, 1
      %p208 = scmp.eq.s32.totalorder %s23, 1
      %p209 = scmp.ne.s32.totalorder %s204, %s206
      %p210 = scmp.eq.s32.totalorder %s23, 0
      %p211 = por %p209, %p210
      %p212 = scmp.ne.s32.totalorder %s204, %s206
      %p213 = scmp.eq.s32.totalorder %s28, 1
      %p214 = por %p212, %p213
      %p215 = scmp.ne.s32.totalorder %s206, %s207
      %p216 = scmp.eq.s32.totalorder %s28, 0
      %p217 = por %p215, %p216
      %p218 = scmp.ne.s32.totalorder %s206, %s207
      %p219 = scmp.eq.s32.totalorder %s29, 1
      %p220 = por %p218, %p219
      %p222 = scmp.ne.s32.totalorder %s207, %s221
      %p223 = scmp.eq.s32.totalorder %s29, 0
      %p224 = por %p222, %p223
      %s226 = sadd.s32 %s225, 1
      %p229 = scmp.eq.s32.totalorder %s23, 1
      %p230 = scmp.ne.s32.totalorder %s225, %s227
      %p231 = scmp.eq.s32.totalorder %s23, 0
      %p232 = por %p230, %p231
      %p233 = scmp.ne.s32.totalorder %s225, %s227
      %p234 = scmp.eq.s32.totalorder %s28, 1
      %p235 = por %p233, %p234
      %p236 = scmp.ne.s32.totalorder %s227, %s228
      %p237 = scmp.eq.s32.totalorder %s28, 0
      %p238 = por %p236, %p237
      %p239 = scmp.ne.s32.totalorder %s227, %s228
      %p240 = scmp.eq.s32.totalorder %s29, 1
      %p241 = por %p239, %p240
      %p243 = scmp.ne.s32.totalorder %s228, %s242
      %p244 = scmp.eq.s32.totalorder %s29, 0
      %p245 = por %p243, %p244
      %s247 = sadd.s32 %s246, 1
      %p250 = scmp.eq.s32.totalorder %s23, 1
      %p251 = scmp.ne.s32.totalorder %s246, %s248
      %p252 = scmp.eq.s32.totalorder %s23, 0
      %p253 = por %p251, %p252
      %p254 = scmp.ne.s32.totalorder %s246, %s248
      %p255 = scmp.eq.s32.totalorder %s28, 1
      %p256 = por %p254, %p255
      %p257 = scmp.ne.s32.totalorder %s248, %s249
      %p258 = scmp.eq.s32.totalorder %s28, 0
      %p259 = por %p257, %p258
      %p260 = scmp.ne.s32.totalorder %s248, %s249
      %p261 = scmp.eq.s32.totalorder %s29, 1
      %p262 = por %p260, %p261
      %p264 = scmp.ne.s32.totalorder %s249, %s263
      %p265 = scmp.eq.s32.totalorder %s29, 0
      %p266 = por %p264, %p265
      %s268 = sadd.s32 %s267, 1
      %p271 = scmp.eq.s32.totalorder %s23, 1
      %p272 = scmp.ne.s32.totalorder %s267, %s269
      %p273 = scmp.eq.s32.totalorder %s23, 0
      %p274 = por %p272, %p273
      %p275 = scmp.ne.s32.totalorder %s267, %s269
      %p276 = scmp.eq.s32.totalorder %s28, 1
      %p277 = por %p275, %p276
      %p278 = scmp.ne.s32.totalorder %s269, %s270
      %p279 = scmp.eq.s32.totalorder %s28, 0
      %p280 = por %p278, %p279
      %p281 = scmp.ne.s32.totalorder %s269, %s270
      %p282 = scmp.eq.s32.totalorder %s29, 1
      %p283 = por %p281, %p282
      %p285 = scmp.ne.s32.totalorder %s270, %s284
      %p286 = scmp.eq.s32.totalorder %s29, 0
      %p287 = por %p285, %p286
      %s288 = ssub.s32 %s23, %s30
      %p289 = scmp.eq.s32.totalorder %s288, 0
      %s291 = sadd.s32 %s290, 1
      %s292 = scalar_select %p289, %s290, %s291
      %p295 = pneg %p289
      %p296 = scmp.eq.s32.totalorder %s23, 1
      %p297 = por %p295, %p296
      %p298 = scmp.ne.s32.totalorder %s290, %s293
      %p299 = scmp.eq.s32.totalorder %s23, 0
      %p300 = por %p298, %p299
      %p301 = scmp.ne.s32.totalorder %s290, %s293
      %p302 = scmp.eq.s32.totalorder %s28, 1
      %p303 = por %p301, %p302
      %p304 = scmp.ne.s32.totalorder %s293, %s294
      %p305 = scmp.eq.s32.totalorder %s28, 0
      %p306 = por %p304, %p305
      %p307 = scmp.ne.s32.totalorder %s293, %s294
      %p308 = scmp.eq.s32.totalorder %s29, 1
      %p309 = por %p307, %p308
      %p311 = scmp.ne.s32.totalorder %s294, %s310
      %p312 = scmp.eq.s32.totalorder %s29, 0
      %p313 = por %p311, %p312
      %p314 = scmp.le.s32.totalorder 1, %s23
      %p315 = scmp.lt.s32.totalorder %s23, 3
      %p316 = pnand %p314, %p315
      %p317 = pneg %p316
      // Predicated region
      $region9: #{tpu_custom_call.1} parent=5 // pred_check
        _
      $region10: #{tpu_custom_call.1} parent=5 // pred_check_branch
        %319 = sbr.rel (%p316) target = $region12
      $region11: #{tpu_custom_call.1} parent=5 // pred_region
        %s320 = ssub.s32 %s23, 1
        // Predicated region
        $region13: #{tpu_custom_call.1} parent=11 // pred_check
          %p321 = pneg %p70
        $region14: #{tpu_custom_call.1} parent=11 // pred_check_branch
          %323 = sbr.rel (%p321) target = $region16
        $region15: #{tpu_custom_call.1} parent=11 // pred_region
          _
        $region16: #{tpu_custom_call.1} parent=11 // pred_fallthru
          _
        // Predicated region
        $region17: #{tpu_custom_call.1} parent=11 // pred_check
          %p324 = pneg %p91
        $region18: #{tpu_custom_call.1} parent=11 // pred_check_branch
          %326 = sbr.rel (%p324) target = $region20
        $region19: #{tpu_custom_call.1} parent=11 // pred_region
          _
        $region20: #{tpu_custom_call.1} parent=11 // pred_fallthru
          _
        // Predicated region
        $region21: #{tpu_custom_call.1} parent=11 // pred_check
          %p327 = pneg %p112
        $region22: #{tpu_custom_call.1} parent=11 // pred_check_branch
          %329 = sbr.rel (%p327) target = $region24
        $region23: #{tpu_custom_call.1} parent=11 // pred_region
          _
        $region24: #{tpu_custom_call.1} parent=11 // pred_fallthru
          _
        // Predicated region
        $region25: #{tpu_custom_call.1} parent=11 // pred_check
          %p330 = pneg %p133
        $region26: #{tpu_custom_call.1} parent=11 // pred_check_branch
          %332 = sbr.rel (%p330) target = $region28
        $region27: #{tpu_custom_call.1} parent=11 // pred_region
          _
        $region28: #{tpu_custom_call.1} parent=11 // pred_fallthru
          _
        // Predicated region
        $region29: #{tpu_custom_call.1} parent=11 // pred_check
          %p333 = pneg %p154
        $region30: #{tpu_custom_call.1} parent=11 // pred_check_branch
          %335 = sbr.rel (%p333) target = $region32
        $region31: #{tpu_custom_call.1} parent=11 // pred_region
          _
        $region32: #{tpu_custom_call.1} parent=11 // pred_fallthru
          _
        // Predicated region
        $region33: #{tpu_custom_call.1} parent=11 // pred_check
          %p336 = pneg %p175
        $region34: #{tpu_custom_call.1} parent=11 // pred_check_branch
          %338 = sbr.rel (%p336) target = $region36
        $region35: #{tpu_custom_call.1} parent=11 // pred_region
          _
        $region36: #{tpu_custom_call.1} parent=11 // pred_fallthru
          _
        // Predicated region
        $region37: #{tpu_custom_call.1} parent=11 // pred_check
          %p339 = pneg %p196
        $region38: #{tpu_custom_call.1} parent=11 // pred_check_branch
          %341 = sbr.rel (%p339) target = $region40
        $region39: #{tpu_custom_call.1} parent=11 // pred_region
          _
        $region40: #{tpu_custom_call.1} parent=11 // pred_fallthru
          _
        // Predicated region
        $region41: #{tpu_custom_call.1} parent=11 // pred_check
          %p342 = pneg %p217
        $region42: #{tpu_custom_call.1} parent=11 // pred_check_branch
          %344 = sbr.rel (%p342) target = $region44
        $region43: #{tpu_custom_call.1} parent=11 // pred_region
          _
        $region44: #{tpu_custom_call.1} parent=11 // pred_fallthru
          _
        // Predicated region
        $region45: #{tpu_custom_call.1} parent=11 // pred_check
          %p345 = pneg %p238
        $region46: #{tpu_custom_call.1} parent=11 // pred_check_branch
          %347 = sbr.rel (%p345) target = $region48
        $region47: #{tpu_custom_call.1} parent=11 // pred_region
          _
        $region48: #{tpu_custom_call.1} parent=11 // pred_fallthru
          _
        // Predicated region
        $region49: #{tpu_custom_call.1} parent=11 // pred_check
          %p348 = pneg %p259
        $region50: #{tpu_custom_call.1} parent=11 // pred_check_branch
          %350 = sbr.rel (%p348) target = $region52
        $region51: #{tpu_custom_call.1} parent=11 // pred_region
          _
        $region52: #{tpu_custom_call.1} parent=11 // pred_fallthru
          _
        // Predicated region
        $region53: #{tpu_custom_call.1} parent=11 // pred_check
          %p351 = pneg %p280
        $region54: #{tpu_custom_call.1} parent=11 // pred_check_branch
          %353 = sbr.rel (%p351) target = $region56
        $region55: #{tpu_custom_call.1} parent=11 // pred_region
          _
        $region56: #{tpu_custom_call.1} parent=11 // pred_fallthru
          _
      $region12: #{tpu_custom_call.1} parent=5 // pred_fallthru
        _
      %p354 = scmp.lt.s32.totalorder %s23, 2
      // Predicated region
      $region57: #{tpu_custom_call.1} parent=5 // pred_check
        %p355 = pneg %p354
      $region58: #{tpu_custom_call.1} parent=5 // pred_check_branch
        %357 = sbr.rel (%p355) target = $region60
      $region59: #{tpu_custom_call.1} parent=5 // pred_region
        // Predicated region
        $region61: #{tpu_custom_call.1} parent=59 // pred_check
          %p358 = pneg %p43
        $region62: #{tpu_custom_call.1} parent=59 // pred_check_branch
          %360 = sbr.rel (%p358) target = $region64
        $region63: #{tpu_custom_call.1} parent=59 // pred_region
          %p361 = scmp.lt.s32.totalorder %s23, 1
          %s362 = scalar_select %p361, %s23, 1
          %s363 = smul.addr %s362, 2
          %s364 = scalar_lea.vmem %s0, %s363
        $region64: #{tpu_custom_call.1} parent=59 // pred_fallthru
          _
      $region60: #{tpu_custom_call.1} parent=5 // pred_fallthru
        _
      %p365 = scmp.le.s32.totalorder 1, %s23
      %p366 = scmp.lt.s32.totalorder %s23, 3
      %p367 = pnand %p365, %p366
      %p368 = pneg %p367
      // Predicated region
      $region65: #{tpu_custom_call.1} parent=5 // pred_check
        _
      $region66: #{tpu_custom_call.1} parent=5 // pred_check_branch
        %370 = sbr.rel (%p367) target = $region68
      $region67: #{tpu_custom_call.1} parent=5 // pred_region
        %s371 = ssub.s32 %s23, 1
        %p372 = scmp.lt.s32.totalorder %s28, 1
        %s373 = scalar_select %p372, %s28, 1
        %s374 = smul.addr %s373, 2
        %s375 = scalar_lea.vmem %s0, %s374
        %p376 = pneg %p49
        %p377 = pneg %p46
        %p378 = pneg %p70
        %p379 = pneg %p67
        %p380 = pneg %p91
        %p381 = pneg %p88
        %p382 = pneg %p112
        %p383 = pneg %p109
        %p384 = pneg %p133
        %p385 = pneg %p130
        %p386 = pneg %p154
        %p387 = pneg %p151
        %p388 = pneg %p175
        %p389 = pneg %p172
        %p390 = pneg %p196
        %p391 = pneg %p193
        %p392 = pneg %p217
        %p393 = pneg %p214
        %p394 = pneg %p238
        %p395 = pneg %p235
        %p396 = pneg %p259
        %p397 = pneg %p256
        %p398 = pneg %p280
        %p399 = pneg %p277
        %p400 = pneg %p306
        %p401 = pneg %p303
        %s402 = sand.u32 %s293, 1
        %s403 = scalar_lea.sflag [#allocation4], %s402
        %s404 = sand.u32 %s293, 1
        %s405 = smul.addr %s404, 2
        %s406 = scalar_lea.vmem [#allocation3], %s405
        %p407 = scmp.lt.s32.totalorder %s28, 1
        %s408 = scalar_select %p407, %s28, 1
        %s409 = smul.addr %s408, 2
        %s410 = scalar_lea.vmem %s0, %s409
        %v412 = vld [vmem:[%s410] sm:$0x3]
        %v413 = vld [vmem:[%s1] sm:$0xff]
        %v414 = vld [vmem:[%s1 + $0x8] sm:$0xff]
        %v415 = vld [vmem:[%s1 + $0x10] sm:$0xff]
        %v416 = vld [vmem:[%s1 + $0x18] sm:$0xff]
        %418 = vset.pattern.permute.xlu0 0
        %419 = vperm.xlu0 %418, %v413
        %v420 = vpop.permute.xlu0 %419
        %423 = vset.pattern.permute.xlu0 0
        %424 = vperm.xlu0 %423, %v414
        %v425 = vpop.permute.xlu0 %424
        %428 = vset.pattern.permute.xlu0 0
        %429 = vperm.xlu0 %428, %v415
        %v430 = vpop.permute.xlu0 %429
        %433 = vset.pattern.permute.xlu0 0
        %434 = vperm.xlu0 %433, %v416
        %v435 = vpop.permute.xlu0 %434
        %v438 = vperm.slane %v412, 0
        %v439 = vperm.slane %v412, 1
        %v442 = vmul.f32 %v420, %v438
        %v443 = vmul.f32 %v420, %v439
        %v444 = vmul.f32 %v425, %v438
        %v445 = vmul.f32 %v425, %v439
        %v446 = vmul.f32 %v430, %v438
        %v447 = vmul.f32 %v430, %v439
        %v448 = vmul.f32 %v435, %v438
        %v449 = vmul.f32 %v435, %v439
        %v450 = vld [vmem:[%s2] sm:$0xff]
        %v451 = vld [vmem:[%s2 + $0x8] sm:$0xff]
        %v452 = vld [vmem:[%s2 + $0x10] sm:$0xff]
        %v453 = vld [vmem:[%s2 + $0x18] sm:$0xff]
        %455 = vset.pattern.permute.xlu0 0
        %456 = vperm.xlu0 %455, %v450
        %v457 = vpop.permute.xlu0 %456
        %460 = vset.pattern.permute.xlu0 0
        %461 = vperm.xlu0 %460, %v451
        %v462 = vpop.permute.xlu0 %461
        %465 = vset.pattern.permute.xlu0 0
        %466 = vperm.xlu0 %465, %v452
        %v467 = vpop.permute.xlu0 %466
        %470 = vset.pattern.permute.xlu0 0
        %471 = vperm.xlu0 %470, %v453
        %v472 = vpop.permute.xlu0 %471
        %v474 = vadd.f32 %v442, %v457
        %v475 = vadd.f32 %v443, %v457
        %v476 = vadd.f32 %v444, %v462
        %v477 = vadd.f32 %v445, %v462
        %v478 = vadd.f32 %v446, %v467
        %v479 = vadd.f32 %v447, %v467
        %v480 = vadd.f32 %v448, %v472
        %v481 = vadd.f32 %v449, %v472
        %v482 = vmax.f32 %v474, 0.0
        %v483 = vmax.f32 %v475, 0.0
        %v484 = vmax.f32 %v476, 0.0
        %v485 = vmax.f32 %v477, 0.0
        %v486 = vmax.f32 %v478, 0.0
        %v487 = vmax.f32 %v479, 0.0
        %v488 = vmax.f32 %v480, 0.0
        %v489 = vmax.f32 %v481, 0.0
        %v490 = vlaneseq
        %v491 = vand.u32 %v490, 127
        %v492 = vadd.s32 %v491, 128
        %v493 = vand.u32 %v491, 127
        %v494 = vand.u32 %v492, 127
        %vm495 = vcmp.ge.s32.totalorder %v493, 1
        %vm496 = vcmp.ge.s32.totalorder %v494, 1
        %vm497 = vcmp.lt.s32.totalorder %v493, 127
        %vm498 = vcmp.lt.s32.totalorder %v494, 127
        %vm499 = vcmp.ge.s32.totalorder %v493, 2
        %vm500 = vcmp.ge.s32.totalorder %v494, 2
        %vm501 = vcmp.lt.s32.totalorder %v493, 126
        %vm502 = vcmp.lt.s32.totalorder %v494, 126
        %503 = vrot.lane.b32.xlu0 %v482, 1
        %v504 = vpop.permute.xlu0 %503
        %505 = vrot.lane.b32.xlu0 %v484, 1
        %v506 = vpop.permute.xlu0 %505
        %507 = vrot.lane.b32.xlu0 %v486, 1
        %v508 = vpop.permute.xlu0 %507
        %509 = vrot.lane.b32.xlu0 %v488, 1
        %v510 = vpop.permute.xlu0 %509
        %511 = vrot.lane.b32.xlu0 %v483, 1
        %v512 = vpop.permute.xlu0 %511
        %513 = vrot.lane.b32.xlu0 %v485, 1
        %v514 = vpop.permute.xlu0 %513
        %515 = vrot.lane.b32.xlu0 %v487, 1
        %v516 = vpop.permute.xlu0 %515
        %517 = vrot.lane.b32.xlu0 %v489, 1
        %v518 = vpop.permute.xlu0 %517
        %vm519 = vcmp.lt.s32.totalorder %v491, 1
        %v520 = vsel %vm519, %v504, %v512
        %v521 = vsel %vm519, %v506, %v514
        %v522 = vsel %vm519, %v508, %v516
        %v523 = vsel %vm519, %v510, %v518
        %v524 = vsel %vm519, %v512, %v504
        %v525 = vsel %vm519, %v514, %v506
        %v526 = vsel %vm519, %v516, %v508
        %v527 = vsel %vm519, %v518, %v510
        %v528 = vsel %vm495, %v524, 0.0
        %v529 = vsel %vm496, %v520, 0.0
        %v530 = vsel %vm495, %v525, 0.0
        %v531 = vsel %vm496, %v521, 0.0
        %v532 = vsel %vm495, %v526, 0.0
        %v533 = vsel %vm496, %v522, 0.0
        %v534 = vsel %vm495, %v527, 0.0
        %v535 = vsel %vm496, %v523, 0.0
        %v536 = vpack.c.bf16 %v529, %v528
        %v537 = vpack.c.bf16 %v531, %v530
        %v538 = vpack.c.bf16 %v533, %v532
        %v539 = vpack.c.bf16 %v535, %v534
        %540 = vrot.lane.b32.xlu0 %v482, 127
        %v541 = vpop.permute.xlu0 %540
        %542 = vrot.lane.b32.xlu0 %v484, 127
        %v543 = vpop.permute.xlu0 %542
        %544 = vrot.lane.b32.xlu0 %v486, 127
        %v545 = vpop.permute.xlu0 %544
        %546 = vrot.lane.b32.xlu0 %v488, 127
        %v547 = vpop.permute.xlu0 %546
        %548 = vrot.lane.b32.xlu0 %v483, 127
        %v549 = vpop.permute.xlu0 %548
        %550 = vrot.lane.b32.xlu0 %v485, 127
        %v551 = vpop.permute.xlu0 %550
        %552 = vrot.lane.b32.xlu0 %v487, 127
        %v553 = vpop.permute.xlu0 %552
        %554 = vrot.lane.b32.xlu0 %v489, 127
        %v555 = vpop.permute.xlu0 %554
        %vm556 = vcmp.lt.s32.totalorder %v491, 127
        %v557 = vsel %vm556, %v541, %v549
        %v558 = vsel %vm556, %v543, %v551
        %v559 = vsel %vm556, %v545, %v553
        %v560 = vsel %vm556, %v547, %v555
        %v561 = vsel %vm556, %v549, %v541
        %v562 = vsel %vm556, %v551, %v543
        %v563 = vsel %vm556, %v553, %v545
        %v564 = vsel %vm556, %v555, %v547
        %v565 = vsel %vm497, %v557, 0.0
        %v566 = vsel %vm498, %v561, 0.0
        %v567 = vsel %vm497, %v558, 0.0
        %v568 = vsel %vm498, %v562, 0.0
        %v569 = vsel %vm497, %v559, 0.0
        %v570 = vsel %vm498, %v563, 0.0
        %v571 = vsel %vm497, %v560, 0.0
        %v572 = vsel %vm498, %v564, 0.0
        %v573 = vpack.c.bf16 %v566, %v565
        %v574 = vpack.c.bf16 %v568, %v567
        %v575 = vpack.c.bf16 %v570, %v569
        %v576 = vpack.c.bf16 %v572, %v571
        %v577 = vpack.c.bf16 %v483, %v482
        %v578 = vpack.c.bf16 %v485, %v484
        %v579 = vpack.c.bf16 %v487, %v486
        %v580 = vpack.c.bf16 %v489, %v488
        %v585 = vunpack.c.l.b16 %v536
        %v586 = vunpack.c.h.b16 %v536
        %v587 = vunpack.c.l.b16 %v537
        %v588 = vunpack.c.h.b16 %v537
        %v589 = vunpack.c.l.b16 %v538
        %v590 = vunpack.c.h.b16 %v538
        %v591 = vunpack.c.l.b16 %v539
        %v592 = vunpack.c.h.b16 %v539
        %v593 = vpack.c.b16 %v587, %v585
        %v594 = vpack.c.b16 %v588, %v586
        %v595 = vpack.c.b16 %v591, %v589
        %v596 = vpack.c.b16 %v592, %v590
        %v605 = vunpack.c.l.b16 %v577
        %v606 = vunpack.c.h.b16 %v577
        %v607 = vunpack.c.l.b16 %v578
        %v608 = vunpack.c.h.b16 %v578
        %v609 = vunpack.c.l.b16 %v579
        %v610 = vunpack.c.h.b16 %v579
        %v611 = vunpack.c.l.b16 %v580
        %v612 = vunpack.c.h.b16 %v580
        %v613 = vpack.c.b16 %v607, %v605
        %v614 = vpack.c.b16 %v608, %v606
        %v615 = vpack.c.b16 %v611, %v609
        %v616 = vpack.c.b16 %v612, %v610
        %v625 = vunpack.c.l.b16 %v573
        %v626 = vunpack.c.h.b16 %v573
        %v627 = vunpack.c.l.b16 %v574
        %v628 = vunpack.c.h.b16 %v574
        %v629 = vunpack.c.l.b16 %v575
        %v630 = vunpack.c.h.b16 %v575
        %v631 = vunpack.c.l.b16 %v576
        %v632 = vunpack.c.h.b16 %v576
        %v633 = vpack.c.b16 %v627, %v625
        %v634 = vpack.c.b16 %v628, %v626
        %v635 = vpack.c.b16 %v631, %v629
        %v636 = vpack.c.b16 %v632, %v630
        %v641 = vld [vmem:[%s3] sm:$0xf]
        %v642 = vld [vmem:[%s3 + $0x4] sm:$0xf]
        %v643 = vld [vmem:[%s3 + $0x8] sm:$0xf]
        %v644 = vld [vmem:[%s3 + $0xc] sm:$0xf]
        %v645 = vld [vmem:[%s3 + $0x10] sm:$0xf]
        %v646 = vld [vmem:[%s3 + $0x14] sm:$0xf]
        %v647 = vld [vmem:[%s3 + $0x18] sm:$0xf]
        %v648 = vld [vmem:[%s3 + $0x1c] sm:$0xf]
        %v649 = vld [vmem:[%s4] sm:$0xff]
        %v650 = vld [vmem:[%s4 + $0x8] sm:$0xff]
        %v651 = vld [vmem:[%s4 + $0x10] sm:$0xff]
        %v652 = vld [vmem:[%s4 + $0x18] sm:$0xff]
        %v653 = vld [vmem:[%s4 + $0x20] sm:$0xff]
        %v654 = vld [vmem:[%s4 + $0x28] sm:$0xff]
        %v655 = vld [vmem:[%s4 + $0x30] sm:$0xff]
        %v656 = vld [vmem:[%s4 + $0x38] sm:$0xff]
        %658 = vset.pattern.permute.xlu0 0
        %659 = vperm.xlu0 %658, %v649
        %v660 = vpop.permute.xlu0 %659
        %663 = vset.pattern.permute.xlu0 0
        %664 = vperm.xlu0 %663, %v650
        %v665 = vpop.permute.xlu0 %664
        %668 = vset.pattern.permute.xlu0 0
        %669 = vperm.xlu0 %668, %v651
        %v670 = vpop.permute.xlu0 %669
        %673 = vset.pattern.permute.xlu0 0
        %674 = vperm.xlu0 %673, %v652
        %v675 = vpop.permute.xlu0 %674
        %678 = vset.pattern.permute.xlu0 0
        %679 = vperm.xlu0 %678, %v653
        %v680 = vpop.permute.xlu0 %679
        %683 = vset.pattern.permute.xlu0 0
        %684 = vperm.xlu0 %683, %v654
        %v685 = vpop.permute.xlu0 %684
        %688 = vset.pattern.permute.xlu0 0
        %689 = vperm.xlu0 %688, %v655
        %v690 = vpop.permute.xlu0 %689
        %693 = vset.pattern.permute.xlu0 0
        %694 = vperm.xlu0 %693, %v656
        %v695 = vpop.permute.xlu0 %694
        %v705 = vunpack.c.l.b16 %v641
        %v706 = vunpack.c.l.b16 %v642
        %v707 = vunpack.c.l.b16 %v643
        %v708 = vunpack.c.l.b16 %v644
        %v709 = vunpack.c.l.b16 %v645
        %v710 = vunpack.c.l.b16 %v646
        %v711 = vunpack.c.l.b16 %v647
        %v712 = vunpack.c.l.b16 %v648
        %v713 = vpack.c.b16 %v706, %v705
        %v714 = vpack.c.b16 %v708, %v707
        %v715 = vpack.c.b16 %v710, %v709
        %v716 = vpack.c.b16 %v712, %v711
        %vm717 = vcmask 785408
        %v719 = vsel %vm717, %v713, 0
        %v722 = vsel %vm717, %v714, 0
        %v725 = vsel %vm717, %v715, 0
        %v728 = vsel %vm717, %v716, 0
        %730 = vmatpush.bf16.msra.mxu0 0
        %731 = vmatpush.bf16.msra.mxu0 0
        %732 = vmatpush.bf16.msra.mxu0 %v635
        %733 = vmatpush.bf16.msra.mxu0 %v633
        %734 = vmatpush.bf16.msra.mxu0 %v615
        %735 = vmatpush.bf16.msra.mxu0 %v613
        %736 = vmatpush.bf16.msra.mxu0 %v595
        %737 = vmatpush.bf16.msra.mxu0 %v593
        %738 = vmatmul.bf16.gmra.mxu0 %v719
        %v739 = vpop.f32.mrf.mxu0
        %v740 = vadd.f32 %v660, %v739
        %v741 = vpop.f32.mrf.mxu0
        %v742 = vadd.f32 %v665, %v741
        %743 = vmatmul.bf16.gmra.mxu0 %v722
        %v744 = vpop.f32.mrf.mxu0
        %v745 = vadd.f32 %v670, %v744
        %v746 = vpop.f32.mrf.mxu0
        %v747 = vadd.f32 %v675, %v746
        %748 = vmatmul.bf16.gmra.mxu0 %v725
        %v749 = vpop.f32.mrf.mxu0
        %v750 = vadd.f32 %v680, %v749
        %v751 = vpop.f32.mrf.mxu0
        %v752 = vadd.f32 %v685, %v751
        %753 = vmatmul.bf16.gmra.mxu0 %v728
        %v754 = vpop.f32.mrf.mxu0
        %v755 = vadd.f32 %v690, %v754
        %v756 = vpop.f32.mrf.mxu0
        %v757 = vadd.f32 %v695, %v756
        %758 = vdwg.mxu0
        %759 = vmatpush.bf16.msra.mxu0 0
        %760 = vmatpush.bf16.msra.mxu0 0
        %761 = vmatpush.bf16.msra.mxu0 %v636
        %762 = vmatpush.bf16.msra.mxu0 %v634
        %763 = vmatpush.bf16.msra.mxu0 %v616
        %764 = vmatpush.bf16.msra.mxu0 %v614
        %765 = vmatpush.bf16.msra.mxu0 %v596
        %766 = vmatpush.bf16.msra.mxu0 %v594
        %767 = vmatmul.bf16.gmra.mxu0 %v719
        %v768 = vpop.f32.mrf.mxu0
        %v769 = vadd.f32 %v660, %v768
        %v770 = vpop.f32.mrf.mxu0
        %v771 = vadd.f32 %v665, %v770
        %772 = vmatmul.bf16.gmra.mxu0 %v722
        %v773 = vpop.f32.mrf.mxu0
        %v774 = vadd.f32 %v670, %v773
        %v775 = vpop.f32.mrf.mxu0
        %v776 = vadd.f32 %v675, %v775
        %777 = vmatmul.bf16.gmra.mxu0 %v725
        %v778 = vpop.f32.mrf.mxu0
        %v779 = vadd.f32 %v680, %v778
        %v780 = vpop.f32.mrf.mxu0
        %v781 = vadd.f32 %v685, %v780
        %782 = vmatmul.bf16.gmra.mxu0 %v728
        %v783 = vpop.f32.mrf.mxu0
        %v784 = vadd.f32 %v690, %v783
        %v785 = vpop.f32.mrf.mxu0
        %v786 = vadd.f32 %v695, %v785
        %787 = vdwg.mxu0
        %v788 = vxor.u32 %v740, 2147483648
        %v789 = vxor.u32 %v769, 2147483648
        %v790 = vxor.u32 %v742, 2147483648
        %v791 = vxor.u32 %v771, 2147483648
        %v792 = vxor.u32 %v745, 2147483648
        %v793 = vxor.u32 %v774, 2147483648
        %v794 = vxor.u32 %v747, 2147483648
        %v795 = vxor.u32 %v776, 2147483648
        %v796 = vmul.f32 %v788, 1.442695
        %v797 = vpow.pop %v796
        %v798 = vmul.f32 %v789, 1.442695
        %v799 = vpow.pop %v798
        %v800 = vmul.f32 %v790, 1.442695
        %v801 = vpow.pop %v800
        %v802 = vmul.f32 %v791, 1.442695
        %v803 = vpow.pop %v802
        %v804 = vmul.f32 %v792, 1.442695
        %v805 = vpow.pop %v804
        %v806 = vmul.f32 %v793, 1.442695
        %v807 = vpow.pop %v806
        %v808 = vmul.f32 %v794, 1.442695
        %v809 = vpow.pop %v808
        %v810 = vmul.f32 %v795, 1.442695
        %v811 = vpow.pop %v810
        %v812 = vadd.f32 %v797, 1.0
        %v813 = vadd.f32 %v799, 1.0
        %v814 = vadd.f32 %v801, 1.0
        %v815 = vadd.f32 %v803, 1.0
        %v816 = vadd.f32 %v805, 1.0
        %v817 = vadd.f32 %v807, 1.0
        %v818 = vadd.f32 %v809, 1.0
        %v819 = vadd.f32 %v811, 1.0
        %v820 = vrcp.pop %v812
        %v821 = vmul.f32 %v812, %v820
        %v822 = vsub.f32 1.0, %v821
        %v823 = vmul.f32 %v820, %v822
        %v824 = vadd.f32 %v820, %v823
        %vm825 = vweird.f32 %v812
        %vm826 = vweird.f32 %v820
        %vm827 = vmor %vm825, %vm826
        %v828 = vsel %vm827, %v820, %v824
        %v829 = vand.u32 2147483647, %v812
        %vm830 = vcmp.eq.f32.partialorder %v829, 8.507059e+37
        %v831 = vand.u32 %v812, 2147483648
        %v832 = vor.u32 1.1754944e-38, %v831
        %v833 = vsel %vm830, %v832, %v828
        %v834 = vmul.f32 1.0, %v833
        %v835 = vrcp.pop %v813
        %v836 = vmul.f32 %v813, %v835
        %v837 = vsub.f32 1.0, %v836
        %v838 = vmul.f32 %v835, %v837
        %v839 = vadd.f32 %v835, %v838
        %vm840 = vweird.f32 %v813
        %vm841 = vweird.f32 %v835
        %vm842 = vmor %vm840, %vm841
        %v843 = vsel %vm842, %v835, %v839
        %v844 = vand.u32 2147483647, %v813
        %vm845 = vcmp.eq.f32.partialorder %v844, 8.507059e+37
        %v846 = vand.u32 %v813, 2147483648
        %v847 = vor.u32 1.1754944e-38, %v846
        %v848 = vsel %vm845, %v847, %v843
        %v849 = vmul.f32 1.0, %v848
        %v850 = vrcp.pop %v814
        %v851 = vmul.f32 %v814, %v850
        %v852 = vsub.f32 1.0, %v851
        %v853 = vmul.f32 %v850, %v852
        %v854 = vadd.f32 %v850, %v853
        %vm855 = vweird.f32 %v814
        %vm856 = vweird.f32 %v850
        %vm857 = vmor %vm855, %vm856
        %v858 = vsel %vm857, %v850, %v854
        %v859 = vand.u32 2147483647, %v814
        %vm860 = vcmp.eq.f32.partialorder %v859, 8.507059e+37
        %v861 = vand.u32 %v814, 2147483648
        %v862 = vor.u32 1.1754944e-38, %v861
        %v863 = vsel %vm860, %v862, %v858
        %v864 = vmul.f32 1.0, %v863
        %v865 = vrcp.pop %v815
        %v866 = vmul.f32 %v815, %v865
        %v867 = vsub.f32 1.0, %v866
        %v868 = vmul.f32 %v865, %v867
        %v869 = vadd.f32 %v865, %v868
        %vm870 = vweird.f32 %v815
        %vm871 = vweird.f32 %v865
        %vm872 = vmor %vm870, %vm871
        %v873 = vsel %vm872, %v865, %v869
        %v874 = vand.u32 2147483647, %v815
        %vm875 = vcmp.eq.f32.partialorder %v874, 8.507059e+37
        %v876 = vand.u32 %v815, 2147483648
        %v877 = vor.u32 1.1754944e-38, %v876
        %v878 = vsel %vm875, %v877, %v873
        %v879 = vmul.f32 1.0, %v878
        %v880 = vrcp.pop %v816
        %v881 = vmul.f32 %v816, %v880
        %v882 = vsub.f32 1.0, %v881
        %v883 = vmul.f32 %v880, %v882
        %v884 = vadd.f32 %v880, %v883
        %vm885 = vweird.f32 %v816
        %vm886 = vweird.f32 %v880
        %vm887 = vmor %vm885, %vm886
        %v888 = vsel %vm887, %v880, %v884
        %v889 = vand.u32 2147483647, %v816
        %vm890 = vcmp.eq.f32.partialorder %v889, 8.507059e+37
        %v891 = vand.u32 %v816, 2147483648
        %v892 = vor.u32 1.1754944e-38, %v891
        %v893 = vsel %vm890, %v892, %v888
        %v894 = vmul.f32 1.0, %v893
        %v895 = vrcp.pop %v817
        %v896 = vmul.f32 %v817, %v895
        %v897 = vsub.f32 1.0, %v896
        %v898 = vmul.f32 %v895, %v897
        %v899 = vadd.f32 %v895, %v898
        %vm900 = vweird.f32 %v817
        %vm901 = vweird.f32 %v895
        %vm902 = vmor %vm900, %vm901
        %v903 = vsel %vm902, %v895, %v899
        %v904 = vand.u32 2147483647, %v817
        %vm905 = vcmp.eq.f32.partialorder %v904, 8.507059e+37
        %v906 = vand.u32 %v817, 2147483648
        %v907 = vor.u32 1.1754944e-38, %v906
        %v908 = vsel %vm905, %v907, %v903
        %v909 = vmul.f32 1.0, %v908
        %v910 = vrcp.pop %v818
        %v911 = vmul.f32 %v818, %v910
        %v912 = vsub.f32 1.0, %v911
        %v913 = vmul.f32 %v910, %v912
        %v914 = vadd.f32 %v910, %v913
        %vm915 = vweird.f32 %v818
        %vm916 = vweird.f32 %v910
        %vm917 = vmor %vm915, %vm916
        %v918 = vsel %vm917, %v910, %v914
        %v919 = vand.u32 2147483647, %v818
        %vm920 = vcmp.eq.f32.partialorder %v919, 8.507059e+37
        %v921 = vand.u32 %v818, 2147483648
        %v922 = vor.u32 1.1754944e-38, %v921
        %v923 = vsel %vm920, %v922, %v918
        %v924 = vmul.f32 1.0, %v923
        %v925 = vrcp.pop %v819
        %v926 = vmul.f32 %v819, %v925
        %v927 = vsub.f32 1.0, %v926
        %v928 = vmul.f32 %v925, %v927
        %v929 = vadd.f32 %v925, %v928
        %vm930 = vweird.f32 %v819
        %vm931 = vweird.f32 %v925
        %vm932 = vmor %vm930, %vm931
        %v933 = vsel %vm932, %v925, %v929
        %v934 = vand.u32 2147483647, %v819
        %vm935 = vcmp.eq.f32.partialorder %v934, 8.507059e+37
        %v936 = vand.u32 %v819, 2147483648
        %v937 = vor.u32 1.1754944e-38, %v936
        %v938 = vsel %vm935, %v937, %v933
        %v939 = vmul.f32 1.0, %v938
        %v940 = vtanh.pop %v750
        %v941 = vtanh.pop %v779
        %v942 = vtanh.pop %v752
        %v943 = vtanh.pop %v781
        %v944 = vtanh.pop %v755
        %v945 = vtanh.pop %v784
        %v946 = vtanh.pop %v757
        %v947 = vtanh.pop %v786
        %v948 = vmul.f32 %v834, %v940
        %v949 = vmul.f32 %v849, %v941
        %v950 = vmul.f32 %v864, %v942
        %v951 = vmul.f32 %v879, %v943
        %v952 = vmul.f32 %v894, %v944
        %v953 = vmul.f32 %v909, %v945
        %v954 = vmul.f32 %v924, %v946
        %v955 = vmul.f32 %v939, %v947
        %v956 = vpack.c.bf16 %v950, %v948
        %v957 = vpack.c.bf16 %v951, %v949
        %v958 = vpack.c.bf16 %v954, %v952
        %v959 = vpack.c.bf16 %v955, %v953
        %v960 = vld [vmem:[%s5] sm:$0xf]
        %v961 = vld [vmem:[%s5 + $0x4] sm:$0xf]
        %v962 = vld [vmem:[%s5 + $0x8] sm:$0xf]
        %v963 = vld [vmem:[%s5 + $0xc] sm:$0xf]
        %v964 = vld [vmem:[%s5 + $0x10] sm:$0xf]
        %v965 = vld [vmem:[%s5 + $0x14] sm:$0xf]
        %v966 = vld [vmem:[%s5 + $0x18] sm:$0xf]
        %v967 = vld [vmem:[%s5 + $0x1c] sm:$0xf]
        %v976 = vunpack.c.l.b16 %v960
        %v977 = vunpack.c.l.b16 %v961
        %v978 = vunpack.c.l.b16 %v962
        %v979 = vunpack.c.l.b16 %v963
        %v980 = vunpack.c.l.b16 %v964
        %v981 = vunpack.c.l.b16 %v965
        %v982 = vunpack.c.l.b16 %v966
        %v983 = vunpack.c.l.b16 %v967
        %v984 = vpack.c.b16 %v977, %v976
        %v985 = vpack.c.b16 %v979, %v978
        %v986 = vpack.c.b16 %v981, %v980
        %v987 = vpack.c.b16 %v983, %v982
        %vm988 = vcmask 261120
        %v990 = vsel %vm988, %v984, 0
        %v993 = vsel %vm988, %v985, 0
        %v996 = vsel %vm988, %v986, 0
        %v999 = vsel %vm988, %v987, 0
        %1001 = vmatpush.bf16.msra.mxu0 0
        %1002 = vmatpush.bf16.msra.mxu0 0
        %1003 = vmatpush.bf16.msra.mxu0 0
        %1004 = vmatpush.bf16.msra.mxu0 0
        %1005 = vmatpush.bf16.msra.mxu0 0
        %1006 = vmatpush.bf16.msra.mxu0 0
        %1007 = vmatpush.bf16.msra.mxu0 %v958
        %1008 = vmatpush.bf16.msra.mxu0 %v956
        %1009 = vmatmul.bf16.gmra.mxu0 %v990
        %v1010 = vpop.f32.mrf.mxu0
        %v1011 = vadd.f32 0.0, %v1010
        %v1012 = vpop.f32.mrf.mxu0
        %v1013 = vadd.f32 0.0, %v1012
        %1014 = vmatmul.bf16.gmra.mxu0 %v993
        %v1015 = vpop.f32.mrf.mxu0
        %v1016 = vadd.f32 0.0, %v1015
        %v1017 = vpop.f32.mrf.mxu0
        %v1018 = vadd.f32 0.0, %v1017
        %1019 = vmatmul.bf16.gmra.mxu0 %v996
        %v1020 = vpop.f32.mrf.mxu0
        %v1021 = vadd.f32 0.0, %v1020
        %v1022 = vpop.f32.mrf.mxu0
        %v1023 = vadd.f32 0.0, %v1022
        %1024 = vmatmul.bf16.gmra.mxu0 %v999
        %v1025 = vpop.f32.mrf.mxu0
        %v1026 = vadd.f32 0.0, %v1025
        %v1027 = vpop.f32.mrf.mxu0
        %v1028 = vadd.f32 0.0, %v1027
        %1029 = vdwg.mxu0
        %1030 = vmatpush.bf16.msra.mxu0 0
        %1031 = vmatpush.bf16.msra.mxu0 0
        %1032 = vmatpush.bf16.msra.mxu0 0
        %1033 = vmatpush.bf16.msra.mxu0 0
        %1034 = vmatpush.bf16.msra.mxu0 0
        %1035 = vmatpush.bf16.msra.mxu0 0
        %1036 = vmatpush.bf16.msra.mxu0 %v959
        %1037 = vmatpush.bf16.msra.mxu0 %v957
        %1038 = vmatmul.bf16.gmra.mxu0 %v990
        %v1039 = vpop.f32.mrf.mxu0
        %v1040 = vadd.f32 0.0, %v1039
        %v1041 = vpop.f32.mrf.mxu0
        %v1042 = vadd.f32 0.0, %v1041
        %1043 = vmatmul.bf16.gmra.mxu0 %v993
        %v1044 = vpop.f32.mrf.mxu0
        %v1045 = vadd.f32 0.0, %v1044
        %v1046 = vpop.f32.mrf.mxu0
        %v1047 = vadd.f32 0.0, %v1046
        %1048 = vmatmul.bf16.gmra.mxu0 %v996
        %v1049 = vpop.f32.mrf.mxu0
        %v1050 = vadd.f32 0.0, %v1049
        %v1051 = vpop.f32.mrf.mxu0
        %v1052 = vadd.f32 0.0, %v1051
        %1053 = vmatmul.bf16.gmra.mxu0 %v999
        %v1054 = vpop.f32.mrf.mxu0
        %v1055 = vadd.f32 0.0, %v1054
        %v1056 = vpop.f32.mrf.mxu0
        %v1057 = vadd.f32 0.0, %v1056
        %1058 = vdwg.mxu0
        %v1059 = vadd.f32 %v482, %v1011
        %v1060 = vadd.f32 %v483, %v1040
        %v1061 = vadd.f32 %v484, %v1013
        %v1062 = vadd.f32 %v485, %v1042
        %v1063 = vadd.f32 %v486, %v1016
        %v1064 = vadd.f32 %v487, %v1045
        %v1065 = vadd.f32 %v488, %v1018
        %v1066 = vadd.f32 %v489, %v1047
        %v1067 = vld [vmem:[%s6] sm:$0xff]
        %v1068 = vld [vmem:[%s6 + $0x8] sm:$0xff]
        %v1069 = vld [vmem:[%s6 + $0x10] sm:$0xff]
        %v1070 = vld [vmem:[%s6 + $0x18] sm:$0xff]
        %1072 = vset.pattern.permute.xlu0 0
        %1073 = vperm.xlu0 %1072, %v1067
        %v1074 = vpop.permute.xlu0 %1073
        %1077 = vset.pattern.permute.xlu0 0
        %1078 = vperm.xlu0 %1077, %v1068
        %v1079 = vpop.permute.xlu0 %1078
        %1082 = vset.pattern.permute.xlu0 0
        %1083 = vperm.xlu0 %1082, %v1069
        %v1084 = vpop.permute.xlu0 %1083
        %1087 = vset.pattern.permute.xlu0 0
        %1088 = vperm.xlu0 %1087, %v1070
        %v1089 = vpop.permute.xlu0 %1088
        %v1091 = vadd.f32 %v1059, %v1074
        %v1092 = vadd.f32 %v1060, %v1074
        %v1093 = vadd.f32 %v1061, %v1079
        %v1094 = vadd.f32 %v1062, %v1079
        %v1095 = vadd.f32 %v1063, %v1084
        %v1096 = vadd.f32 %v1064, %v1084
        %v1097 = vadd.f32 %v1065, %v1089
        %v1098 = vadd.f32 %v1066, %v1089
        %v1099 = vmul.f32 %v1091, 0.70710677
        %v1100 = vmul.f32 %v1092, 0.70710677
        %v1101 = vmul.f32 %v1093, 0.70710677
        %v1102 = vmul.f32 %v1094, 0.70710677
        %v1103 = vmul.f32 %v1095, 0.70710677
        %v1104 = vmul.f32 %v1096, 0.70710677
        %v1105 = vmul.f32 %v1097, 0.70710677
        %v1106 = vmul.f32 %v1098, 0.70710677
        %v1107 = vadd.f32 %v1021, 0.0
        %v1108 = vadd.f32 %v1050, 0.0
        %v1109 = vadd.f32 %v1023, 0.0
        %v1110 = vadd.f32 %v1052, 0.0
        %v1111 = vadd.f32 %v1026, 0.0
        %v1112 = vadd.f32 %v1055, 0.0
        %v1113 = vadd.f32 %v1028, 0.0
        %v1114 = vadd.f32 %v1057, 0.0
        %1115 = vrot.lane.b32.xlu0 %v1099, 2
        %v1116 = vpop.permute.xlu0 %1115
        %1117 = vrot.lane.b32.xlu0 %v1101, 2
        %v1118 = vpop.permute.xlu0 %1117
        %1119 = vrot.lane.b32.xlu0 %v1103, 2
        %v1120 = vpop.permute.xlu0 %1119
        %1121 = vrot.lane.b32.xlu0 %v1105, 2
        %v1122 = vpop.permute.xlu0 %1121
        %1123 = vrot.lane.b32.xlu0 %v1100, 2
        %v1124 = vpop.permute.xlu0 %1123
        %1125 = vrot.lane.b32.xlu0 %v1102, 2
        %v1126 = vpop.permute.xlu0 %1125
        %1127 = vrot.lane.b32.xlu0 %v1104, 2
        %v1128 = vpop.permute.xlu0 %1127
        %1129 = vrot.lane.b32.xlu0 %v1106, 2
        %v1130 = vpop.permute.xlu0 %1129
        %vm1131 = vcmp.lt.s32.totalorder %v491, 2
        %v1132 = vsel %vm1131, %v1116, %v1124
        %v1133 = vsel %vm1131, %v1118, %v1126
        %v1134 = vsel %vm1131, %v1120, %v1128
        %v1135 = vsel %vm1131, %v1122, %v1130
        %v1136 = vsel %vm1131, %v1124, %v1116
        %v1137 = vsel %vm1131, %v1126, %v1118
        %v1138 = vsel %vm1131, %v1128, %v1120
        %v1139 = vsel %vm1131, %v1130, %v1122
        %v1140 = vsel %vm499, %v1136, 0.0
        %v1141 = vsel %vm500, %v1132, 0.0
        %v1142 = vsel %vm499, %v1137, 0.0
        %v1143 = vsel %vm500, %v1133, 0.0
        %v1144 = vsel %vm499, %v1138, 0.0
        %v1145 = vsel %vm500, %v1134, 0.0
        %v1146 = vsel %vm499, %v1139, 0.0
        %v1147 = vsel %vm500, %v1135, 0.0
        %v1148 = vpack.c.bf16 %v1141, %v1140
        %v1149 = vpack.c.bf16 %v1143, %v1142
        %v1150 = vpack.c.bf16 %v1145, %v1144
        %v1151 = vpack.c.bf16 %v1147, %v1146
        %1152 = vrot.lane.b32.xlu0 %v1099, 126
        %v1153 = vpop.permute.xlu0 %1152
        %1154 = vrot.lane.b32.xlu0 %v1101, 126
        %v1155 = vpop.permute.xlu0 %1154
        %1156 = vrot.lane.b32.xlu0 %v1103, 126
        %v1157 = vpop.permute.xlu0 %1156
        %1158 = vrot.lane.b32.xlu0 %v1105, 126
        %v1159 = vpop.permute.xlu0 %1158
        %1160 = vrot.lane.b32.xlu0 %v1100, 126
        %v1161 = vpop.permute.xlu0 %1160
        %1162 = vrot.lane.b32.xlu0 %v1102, 126
        %v1163 = vpop.permute.xlu0 %1162
        %1164 = vrot.lane.b32.xlu0 %v1104, 126
        %v1165 = vpop.permute.xlu0 %1164
        %1166 = vrot.lane.b32.xlu0 %v1106, 126
        %v1167 = vpop.permute.xlu0 %1166
        %vm1168 = vcmp.lt.s32.totalorder %v491, 126
        %v1169 = vsel %vm1168, %v1153, %v1161
        %v1170 = vsel %vm1168, %v1155, %v1163
        %v1171 = vsel %vm1168, %v1157, %v1165
        %v1172 = vsel %vm1168, %v1159, %v1167
        %v1173 = vsel %vm1168, %v1161, %v1153
        %v1174 = vsel %vm1168, %v1163, %v1155
        %v1175 = vsel %vm1168, %v1165, %v1157
        %v1176 = vsel %vm1168, %v1167, %v1159
        %v1177 = vsel %vm501, %v1169, 0.0
        %v1178 = vsel %vm502, %v1173, 0.0
        %v1179 = vsel %vm501, %v1170, 0.0
        %v1180 = vsel %vm502, %v1174, 0.0
        %v1181 = vsel %vm501, %v1171, 0.0
        %v1182 = vsel %vm502, %v1175, 0.0
        %v1183 = vsel %vm501, %v1172, 0.0
        %v1184 = vsel %vm502, %v1176, 0.0
        %v1185 = vpack.c.bf16 %v1178, %v1177
        %v1186 = vpack.c.bf16 %v1180, %v1179
        %v1187 = vpack.c.bf16 %v1182, %v1181
        %v1188 = vpack.c.bf16 %v1184, %v1183
        %v1189 = vpack.c.bf16 %v1100, %v1099
        %v1190 = vpack.c.bf16 %v1102, %v1101
        %v1191 = vpack.c.bf16 %v1104, %v1103
        %v1192 = vpack.c.bf16 %v1106, %v1105
        %v1197 = vunpack.c.l.b16 %v1148
        %v1198 = vunpack.c.h.b16 %v1148
        %v1199 = vunpack.c.l.b16 %v1149
        %v1200 = vunpack.c.h.b16 %v1149
        %v1201 = vunpack.c.l.b16 %v1150
        %v1202 = vunpack.c.h.b16 %v1150
        %v1203 = vunpack.c.l.b16 %v1151
        %v1204 = vunpack.c.h.b16 %v1151
        %v1205 = vpack.c.b16 %v1199, %v1197
        %v1206 = vpack.c.b16 %v1200, %v1198
        %v1207 = vpack.c.b16 %v1203, %v1201
        %v1208 = vpack.c.b16 %v1204, %v1202
        %v1217 = vunpack.c.l.b16 %v1189
        %v1218 = vunpack.c.h.b16 %v1189
        %v1219 = vunpack.c.l.b16 %v1190
        %v1220 = vunpack.c.h.b16 %v1190
        %v1221 = vunpack.c.l.b16 %v1191
        %v1222 = vunpack.c.h.b16 %v1191
        %v1223 = vunpack.c.l.b16 %v1192
        %v1224 = vunpack.c.h.b16 %v1192
        %v1225 = vpack.c.b16 %v1219, %v1217
        %v1226 = vpack.c.b16 %v1220, %v1218
        %v1227 = vpack.c.b16 %v1223, %v1221
        %v1228 = vpack.c.b16 %v1224, %v1222
        %v1237 = vunpack.c.l.b16 %v1185
        %v1238 = vunpack.c.h.b16 %v1185
        %v1239 = vunpack.c.l.b16 %v1186
        %v1240 = vunpack.c.h.b16 %v1186
        %v1241 = vunpack.c.l.b16 %v1187
        %v1242 = vunpack.c.h.b16 %v1187
        %v1243 = vunpack.c.l.b16 %v1188
        %v1244 = vunpack.c.h.b16 %v1188
        %v1245 = vpack.c.b16 %v1239, %v1237
        %v1246 = vpack.c.b16 %v1240, %v1238
        %v1247 = vpack.c.b16 %v1243, %v1241
        %v1248 = vpack.c.b16 %v1244, %v1242
        %s1253 = scalar_lea.vmem %s3, 32
        %v1254 = vld [vmem:[%s1253] sm:$0xf]
        %v1255 = vld [vmem:[%s1253 + $0x4] sm:$0xf]
        %v1256 = vld [vmem:[%s1253 + $0x8] sm:$0xf]
        %v1257 = vld [vmem:[%s1253 + $0xc] sm:$0xf]
        %v1258 = vld [vmem:[%s1253 + $0x10] sm:$0xf]
        %v1259 = vld [vmem:[%s1253 + $0x14] sm:$0xf]
        %v1260 = vld [vmem:[%s1253 + $0x18] sm:$0xf]
        %v1261 = vld [vmem:[%s1253 + $0x1c] sm:$0xf]
        %s1262 = scalar_lea.vmem %s4, 64
        %v1263 = vld [vmem:[%s1262] sm:$0xff]
        %v1264 = vld [vmem:[%s1262 + $0x8] sm:$0xff]
        %v1265 = vld [vmem:[%s1262 + $0x10] sm:$0xff]
        %v1266 = vld [vmem:[%s1262 + $0x18] sm:$0xff]
        %v1267 = vld [vmem:[%s1262 + $0x20] sm:$0xff]
        %v1268 = vld [vmem:[%s1262 + $0x28] sm:$0xff]
        %v1269 = vld [vmem:[%s1262 + $0x30] sm:$0xff]
        %v1270 = vld [vmem:[%s1262 + $0x38] sm:$0xff]
        %1272 = vset.pattern.permute.xlu0 0
        %1273 = vperm.xlu0 %1272, %v1263
        %v1274 = vpop.permute.xlu0 %1273
        %1277 = vset.pattern.permute.xlu0 0
        %1278 = vperm.xlu0 %1277, %v1264
        %v1279 = vpop.permute.xlu0 %1278
        %1282 = vset.pattern.permute.xlu0 0
        %1283 = vperm.xlu0 %1282, %v1265
        %v1284 = vpop.permute.xlu0 %1283
        %1287 = vset.pattern.permute.xlu0 0
        %1288 = vperm.xlu0 %1287, %v1266
        %v1289 = vpop.permute.xlu0 %1288
        %1292 = vset.pattern.permute.xlu0 0
        %1293 = vperm.xlu0 %1292, %v1267
        %v1294 = vpop.permute.xlu0 %1293
        %1297 = vset.pattern.permute.xlu0 0
        %1298 = vperm.xlu0 %1297, %v1268
        %v1299 = vpop.permute.xlu0 %1298
        %1302 = vset.pattern.permute.xlu0 0
        %1303 = vperm.xlu0 %1302, %v1269
        %v1304 = vpop.permute.xlu0 %1303
        %1307 = vset.pattern.permute.xlu0 0
        %1308 = vperm.xlu0 %1307, %v1270
        %v1309 = vpop.permute.xlu0 %1308
        %v1319 = vunpack.c.l.b16 %v1254
        %v1320 = vunpack.c.l.b16 %v1255
        %v1321 = vunpack.c.l.b16 %v1256
        %v1322 = vunpack.c.l.b16 %v1257
        %v1323 = vunpack.c.l.b16 %v1258
        %v1324 = vunpack.c.l.b16 %v1259
        %v1325 = vunpack.c.l.b16 %v1260
        %v1326 = vunpack.c.l.b16 %v1261
        %v1327 = vpack.c.b16 %v1320, %v1319
        %v1328 = vpack.c.b16 %v1322, %v1321
        %v1329 = vpack.c.b16 %v1324, %v1323
        %v1330 = vpack.c.b16 %v1326, %v1325
        %v1332 = vsel %vm717, %v1327, 0
        %v1335 = vsel %vm717, %v1328, 0
        %v1338 = vsel %vm717, %v1329, 0
        %v1341 = vsel %vm717, %v1330, 0
        %1343 = vmatpush.bf16.msra.mxu0 0
        %1344 = vmatpush.bf16.msra.mxu0 0
        %1345 = vmatpush.bf16.msra.mxu0 %v1247
        %1346 = vmatpush.bf16.msra.mxu0 %v1245
        %1347 = vmatpush.bf16.msra.mxu0 %v1227
        %1348 = vmatpush.bf16.msra.mxu0 %v1225
        %1349 = vmatpush.bf16.msra.mxu0 %v1207
        %1350 = vmatpush.bf16.msra.mxu0 %v1205
        %1351 = vmatmul.bf16.gmra.mxu0 %v1332
        %v1352 = vpop.f32.mrf.mxu0
        %v1353 = vadd.f32 %v1274, %v1352
        %v1354 = vpop.f32.mrf.mxu0
        %v1355 = vadd.f32 %v1279, %v1354
        %1356 = vmatmul.bf16.gmra.mxu0 %v1335
        %v1357 = vpop.f32.mrf.mxu0
        %v1358 = vadd.f32 %v1284, %v1357
        %v1359 = vpop.f32.mrf.mxu0
        %v1360 = vadd.f32 %v1289, %v1359
        %1361 = vmatmul.bf16.gmra.mxu0 %v1338
        %v1362 = vpop.f32.mrf.mxu0
        %v1363 = vadd.f32 %v1294, %v1362
        %v1364 = vpop.f32.mrf.mxu0
        %v1365 = vadd.f32 %v1299, %v1364
        %1366 = vmatmul.bf16.gmra.mxu0 %v1341
        %v1367 = vpop.f32.mrf.mxu0
        %v1368 = vadd.f32 %v1304, %v1367
        %v1369 = vpop.f32.mrf.mxu0
        %v1370 = vadd.f32 %v1309, %v1369
        %1371 = vdwg.mxu0
        %1372 = vmatpush.bf16.msra.mxu0 0
        %1373 = vmatpush.bf16.msra.mxu0 0
        %1374 = vmatpush.bf16.msra.mxu0 %v1248
        %1375 = vmatpush.bf16.msra.mxu0 %v1246
        %1376 = vmatpush.bf16.msra.mxu0 %v1228
        %1377 = vmatpush.bf16.msra.mxu0 %v1226
        %1378 = vmatpush.bf16.msra.mxu0 %v1208
        %1379 = vmatpush.bf16.msra.mxu0 %v1206
        %1380 = vmatmul.bf16.gmra.mxu0 %v1332
        %v1381 = vpop.f32.mrf.mxu0
        %v1382 = vadd.f32 %v1274, %v1381
        %v1383 = vpop.f32.mrf.mxu0
        %v1384 = vadd.f32 %v1279, %v1383
        %1385 = vmatmul.bf16.gmra.mxu0 %v1335
        %v1386 = vpop.f32.mrf.mxu0
        %v1387 = vadd.f32 %v1284, %v1386
        %v1388 = vpop.f32.mrf.mxu0
        %v1389 = vadd.f32 %v1289, %v1388
        %1390 = vmatmul.bf16.gmra.mxu0 %v1338
        %v1391 = vpop.f32.mrf.mxu0
        %v1392 = vadd.f32 %v1294, %v1391
        %v1393 = vpop.f32.mrf.mxu0
        %v1394 = vadd.f32 %v1299, %v1393
        %1395 = vmatmul.bf16.gmra.mxu0 %v1341
        %v1396 = vpop.f32.mrf.mxu0
        %v1397 = vadd.f32 %v1304, %v1396
        %v1398 = vpop.f32.mrf.mxu0
        %v1399 = vadd.f32 %v1309, %v1398
        %1400 = vdwg.mxu0
        %v1401 = vxor.u32 %v1353, 2147483648
        %v1402 = vxor.u32 %v1382, 2147483648
        %v1403 = vxor.u32 %v1355, 2147483648
        %v1404 = vxor.u32 %v1384, 2147483648
        %v1405 = vxor.u32 %v1358, 2147483648
        %v1406 = vxor.u32 %v1387, 2147483648
        %v1407 = vxor.u32 %v1360, 2147483648
        %v1408 = vxor.u32 %v1389, 2147483648
        %v1409 = vmul.f32 %v1401, 1.442695
        %v1410 = vpow.pop %v1409
        %v1411 = vmul.f32 %v1402, 1.442695
        %v1412 = vpow.pop %v1411
        %v1413 = vmul.f32 %v1403, 1.442695
        %v1414 = vpow.pop %v1413
        %v1415 = vmul.f32 %v1404, 1.442695
        %v1416 = vpow.pop %v1415
        %v1417 = vmul.f32 %v1405, 1.442695
        %v1418 = vpow.pop %v1417
        %v1419 = vmul.f32 %v1406, 1.442695
        %v1420 = vpow.pop %v1419
        %v1421 = vmul.f32 %v1407, 1.442695
        %v1422 = vpow.pop %v1421
        %v1423 = vmul.f32 %v1408, 1.442695
        %v1424 = vpow.pop %v1423
        %v1425 = vadd.f32 %v1410, 1.0
        %v1426 = vadd.f32 %v1412, 1.0
        %v1427 = vadd.f32 %v1414, 1.0
        %v1428 = vadd.f32 %v1416, 1.0
        %v1429 = vadd.f32 %v1418, 1.0
        %v1430 = vadd.f32 %v1420, 1.0
        %v1431 = vadd.f32 %v1422, 1.0
        %v1432 = vadd.f32 %v1424, 1.0
        %v1433 = vrcp.pop %v1425
        %v1434 = vmul.f32 %v1425, %v1433
        %v1435 = vsub.f32 1.0, %v1434
        %v1436 = vmul.f32 %v1433, %v1435
        %v1437 = vadd.f32 %v1433, %v1436
        %vm1438 = vweird.f32 %v1425
        %vm1439 = vweird.f32 %v1433
        %vm1440 = vmor %vm1438, %vm1439
        %v1441 = vsel %vm1440, %v1433, %v1437
        %v1442 = vand.u32 2147483647, %v1425
        %vm1443 = vcmp.eq.f32.partialorder %v1442, 8.507059e+37
        %v1444 = vand.u32 %v1425, 2147483648
        %v1445 = vor.u32 1.1754944e-38, %v1444
        %v1446 = vsel %vm1443, %v1445, %v1441
        %v1447 = vmul.f32 1.0, %v1446
        %v1448 = vrcp.pop %v1426
        %v1449 = vmul.f32 %v1426, %v1448
        %v1450 = vsub.f32 1.0, %v1449
        %v1451 = vmul.f32 %v1448, %v1450
        %v1452 = vadd.f32 %v1448, %v1451
        %vm1453 = vweird.f32 %v1426
        %vm1454 = vweird.f32 %v1448
        %vm1455 = vmor %vm1453, %vm1454
        %v1456 = vsel %vm1455, %v1448, %v1452
        %v1457 = vand.u32 2147483647, %v1426
        %vm1458 = vcmp.eq.f32.partialorder %v1457, 8.507059e+37
        %v1459 = vand.u32 %v1426, 2147483648
        %v1460 = vor.u32 1.1754944e-38, %v1459
        %v1461 = vsel %vm1458, %v1460, %v1456
        %v1462 = vmul.f32 1.0, %v1461
        %v1463 = vrcp.pop %v1427
        %v1464 = vmul.f32 %v1427, %v1463
        %v1465 = vsub.f32 1.0, %v1464
        %v1466 = vmul.f32 %v1463, %v1465
        %v1467 = vadd.f32 %v1463, %v1466
        %vm1468 = vweird.f32 %v1427
        %vm1469 = vweird.f32 %v1463
        %vm1470 = vmor %vm1468, %vm1469
        %v1471 = vsel %vm1470, %v1463, %v1467
        %v1472 = vand.u32 2147483647, %v1427
        %vm1473 = vcmp.eq.f32.partialorder %v1472, 8.507059e+37
        %v1474 = vand.u32 %v1427, 2147483648
        %v1475 = vor.u32 1.1754944e-38, %v1474
        %v1476 = vsel %vm1473, %v1475, %v1471
        %v1477 = vmul.f32 1.0, %v1476
        %v1478 = vrcp.pop %v1428
        %v1479 = vmul.f32 %v1428, %v1478
        %v1480 = vsub.f32 1.0, %v1479
        %v1481 = vmul.f32 %v1478, %v1480
        %v1482 = vadd.f32 %v1478, %v1481
        %vm1483 = vweird.f32 %v1428
        %vm1484 = vweird.f32 %v1478
        %vm1485 = vmor %vm1483, %vm1484
        %v1486 = vsel %vm1485, %v1478, %v1482
        %v1487 = vand.u32 2147483647, %v1428
        %vm1488 = vcmp.eq.f32.partialorder %v1487, 8.507059e+37
        %v1489 = vand.u32 %v1428, 2147483648
        %v1490 = vor.u32 1.1754944e-38, %v1489
        %v1491 = vsel %vm1488, %v1490, %v1486
        %v1492 = vmul.f32 1.0, %v1491
        %v1493 = vrcp.pop %v1429
        %v1494 = vmul.f32 %v1429, %v1493
        %v1495 = vsub.f32 1.0, %v1494
        %v1496 = vmul.f32 %v1493, %v1495
        %v1497 = vadd.f32 %v1493, %v1496
        %vm1498 = vweird.f32 %v1429
        %vm1499 = vweird.f32 %v1493
        %vm1500 = vmor %vm1498, %vm1499
        %v1501 = vsel %vm1500, %v1493, %v1497
        %v1502 = vand.u32 2147483647, %v1429
        %vm1503 = vcmp.eq.f32.partialorder %v1502, 8.507059e+37
        %v1504 = vand.u32 %v1429, 2147483648
        %v1505 = vor.u32 1.1754944e-38, %v1504
        %v1506 = vsel %vm1503, %v1505, %v1501
        %v1507 = vmul.f32 1.0, %v1506
        %v1508 = vrcp.pop %v1430
        %v1509 = vmul.f32 %v1430, %v1508
        %v1510 = vsub.f32 1.0, %v1509
        %v1511 = vmul.f32 %v1508, %v1510
        %v1512 = vadd.f32 %v1508, %v1511
        %vm1513 = vweird.f32 %v1430
        %vm1514 = vweird.f32 %v1508
        %vm1515 = vmor %vm1513, %vm1514
        %v1516 = vsel %vm1515, %v1508, %v1512
        %v1517 = vand.u32 2147483647, %v1430
        %vm1518 = vcmp.eq.f32.partialorder %v1517, 8.507059e+37
        %v1519 = vand.u32 %v1430, 2147483648
        %v1520 = vor.u32 1.1754944e-38, %v1519
        %v1521 = vsel %vm1518, %v1520, %v1516
        %v1522 = vmul.f32 1.0, %v1521
        %v1523 = vrcp.pop %v1431
        %v1524 = vmul.f32 %v1431, %v1523
        %v1525 = vsub.f32 1.0, %v1524
        %v1526 = vmul.f32 %v1523, %v1525
        %v1527 = vadd.f32 %v1523, %v1526
        %vm1528 = vweird.f32 %v1431
        %vm1529 = vweird.f32 %v1523
        %vm1530 = vmor %vm1528, %vm1529
        %v1531 = vsel %vm1530, %v1523, %v1527
        %v1532 = vand.u32 2147483647, %v1431
        %vm1533 = vcmp.eq.f32.partialorder %v1532, 8.507059e+37
        %v1534 = vand.u32 %v1431, 2147483648
        %v1535 = vor.u32 1.1754944e-38, %v1534
        %v1536 = vsel %vm1533, %v1535, %v1531
        %v1537 = vmul.f32 1.0, %v1536
        %v1538 = vrcp.pop %v1432
        %v1539 = vmul.f32 %v1432, %v1538
        %v1540 = vsub.f32 1.0, %v1539
        %v1541 = vmul.f32 %v1538, %v1540
        %v1542 = vadd.f32 %v1538, %v1541
        %vm1543 = vweird.f32 %v1432
        %vm1544 = vweird.f32 %v1538
        %vm1545 = vmor %vm1543, %vm1544
        %v1546 = vsel %vm1545, %v1538, %v1542
        %v1547 = vand.u32 2147483647, %v1432
        %vm1548 = vcmp.eq.f32.partialorder %v1547, 8.507059e+37
        %v1549 = vand.u32 %v1432, 2147483648
        %v1550 = vor.u32 1.1754944e-38, %v1549
        %v1551 = vsel %vm1548, %v1550, %v1546
        %v1552 = vmul.f32 1.0, %v1551
        %v1553 = vtanh.pop %v1363
        %v1554 = vtanh.pop %v1392
        %v1555 = vtanh.pop %v1365
        %v1556 = vtanh.pop %v1394
        %v1557 = vtanh.pop %v1368
        %v1558 = vtanh.pop %v1397
        %v1559 = vtanh.pop %v1370
        %v1560 = vtanh.pop %v1399
        %v1561 = vmul.f32 %v1447, %v1553
        %v1562 = vmul.f32 %v1462, %v1554
        %v1563 = vmul.f32 %v1477, %v1555
        %v1564 = vmul.f32 %v1492, %v1556
        %v1565 = vmul.f32 %v1507, %v1557
        %v1566 = vmul.f32 %v1522, %v1558
        %v1567 = vmul.f32 %v1537, %v1559
        %v1568 = vmul.f32 %v1552, %v1560
        %v1569 = vpack.c.bf16 %v1563, %v1561
        %v1570 = vpack.c.bf16 %v1564, %v1562
        %v1571 = vpack.c.bf16 %v1567, %v1565
        %v1572 = vpack.c.bf16 %v1568, %v1566
        %s1573 = scalar_lea.vmem %s5, 32
        %v1574 = vld [vmem:[%s1573] sm:$0xf]
        %v1575 = vld [vmem:[%s1573 + $0x4] sm:$0xf]
        %v1576 = vld [vmem:[%s1573 + $0x8] sm:$0xf]
        %v1577 = vld [vmem:[%s1573 + $0xc] sm:$0xf]
        %v1578 = vld [vmem:[%s1573 + $0x10] sm:$0xf]
        %v1579 = vld [vmem:[%s1573 + $0x14] sm:$0xf]
        %v1580 = vld [vmem:[%s1573 + $0x18] sm:$0xf]
        %v1581 = vld [vmem:[%s1573 + $0x1c] sm:$0xf]
        %v1590 = vunpack.c.l.b16 %v1574
        %v1591 = vunpack.c.l.b16 %v1575
        %v1592 = vunpack.c.l.b16 %v1576
        %v1593 = vunpack.c.l.b16 %v1577
        %v1594 = vunpack.c.l.b16 %v1578
        %v1595 = vunpack.c.l.b16 %v1579
        %v1596 = vunpack.c.l.b16 %v1580
        %v1597 = vunpack.c.l.b16 %v1581
        %v1598 = vpack.c.b16 %v1591, %v1590
        %v1599 = vpack.c.b16 %v1593, %v1592
        %v1600 = vpack.c.b16 %v1595, %v1594
        %v1601 = vpack.c.b16 %v1597, %v1596
        %v1603 = vsel %vm988, %v1598, 0
        %v1606 = vsel %vm988, %v1599, 0
        %v1609 = vsel %vm988, %v1600, 0
        %v1612 = vsel %vm988, %v1601, 0
        %1614 = vmatpush.bf16.msra.mxu0 0
        %1615 = vmatpush.bf16.msra.mxu0 0
        %1616 = vmatpush.bf16.msra.mxu0 0
        %1617 = vmatpush.bf16.msra.mxu0 0
        %1618 = vmatpush.bf16.msra.mxu0 0
        %1619 = vmatpush.bf16.msra.mxu0 0
        %1620 = vmatpush.bf16.msra.mxu0 %v1571
        %1621 = vmatpush.bf16.msra.mxu0 %v1569
        %1622 = vmatmul.bf16.gmra.mxu0 %v1603
        %v1623 = vpop.f32.mrf.mxu0
        %v1624 = vadd.f32 0.0, %v1623
        %v1625 = vpop.f32.mrf.mxu0
        %v1626 = vadd.f32 0.0, %v1625
        %1627 = vmatmul.bf16.gmra.mxu0 %v1606
        %v1628 = vpop.f32.mrf.mxu0
        %v1629 = vadd.f32 0.0, %v1628
        %v1630 = vpop.f32.mrf.mxu0
        %v1631 = vadd.f32 0.0, %v1630
        %1632 = vmatmul.bf16.gmra.mxu0 %v1609
        %v1633 = vpop.f32.mrf.mxu0
        %v1634 = vadd.f32 0.0, %v1633
        %v1635 = vpop.f32.mrf.mxu0
        %v1636 = vadd.f32 0.0, %v1635
        %1637 = vmatmul.bf16.gmra.mxu0 %v1612
        %v1638 = vpop.f32.mrf.mxu0
        %v1639 = vadd.f32 0.0, %v1638
        %v1640 = vpop.f32.mrf.mxu0
        %v1641 = vadd.f32 0.0, %v1640
        %1642 = vdwg.mxu0
        %1643 = vmatpush.bf16.msra.mxu0 0
        %1644 = vmatpush.bf16.msra.mxu0 0
        %1645 = vmatpush.bf16.msra.mxu0 0
        %1646 = vmatpush.bf16.msra.mxu0 0
        %1647 = vmatpush.bf16.msra.mxu0 0
        %1648 = vmatpush.bf16.msra.mxu0 0
        %1649 = vmatpush.bf16.msra.mxu0 %v1572
        %1650 = vmatpush.bf16.msra.mxu0 %v1570
        %1651 = vmatmul.bf16.gmra.mxu0 %v1603
        %v1652 = vpop.f32.mrf.mxu0
        %v1653 = vadd.f32 0.0, %v1652
        %v1654 = vpop.f32.mrf.mxu0
        %v1655 = vadd.f32 0.0, %v1654
        %1656 = vmatmul.bf16.gmra.mxu0 %v1606
        %v1657 = vpop.f32.mrf.mxu0
        %v1658 = vadd.f32 0.0, %v1657
        %v1659 = vpop.f32.mrf.mxu0
        %v1660 = vadd.f32 0.0, %v1659
        %1661 = vmatmul.bf16.gmra.mxu0 %v1609
        %v1662 = vpop.f32.mrf.mxu0
        %v1663 = vadd.f32 0.0, %v1662
        %v1664 = vpop.f32.mrf.mxu0
        %v1665 = vadd.f32 0.0, %v1664
        %1666 = vmatmul.bf16.gmra.mxu0 %v1612
        %v1667 = vpop.f32.mrf.mxu0
        %v1668 = vadd.f32 0.0, %v1667
        %v1669 = vpop.f32.mrf.mxu0
        %v1670 = vadd.f32 0.0, %v1669
        %1671 = vdwg.mxu0
        %v1672 = vadd.f32 %v1099, %v1624
        %v1673 = vadd.f32 %v1100, %v1653
        %v1674 = vadd.f32 %v1101, %v1626
        %v1675 = vadd.f32 %v1102, %v1655
        %v1676 = vadd.f32 %v1103, %v1629
        %v1677 = vadd.f32 %v1104, %v1658
        %v1678 = vadd.f32 %v1105, %v1631
        %v1679 = vadd.f32 %v1106, %v1660
        %s1680 = scalar_lea.vmem %s6, 32
        %v1681 = vld [vmem:[%s1680] sm:$0xff]
        %v1682 = vld [vmem:[%s1680 + $0x8] sm:$0xff]
        %v1683 = vld [vmem:[%s1680 + $0x10] sm:$0xff]
        %v1684 = vld [vmem:[%s1680 + $0x18] sm:$0xff]
        %1686 = vset.pattern.permute.xlu0 0
        %1687 = vperm.xlu0 %1686, %v1681
        %v1688 = vpop.permute.xlu0 %1687
        %1691 = vset.pattern.permute.xlu0 0
        %1692 = vperm.xlu0 %1691, %v1682
        %v1693 = vpop.permute.xlu0 %1692
        %1696 = vset.pattern.permute.xlu0 0
        %1697 = vperm.xlu0 %1696, %v1683
        %v1698 = vpop.permute.xlu0 %1697
        %1701 = vset.pattern.permute.xlu0 0
        %1702 = vperm.xlu0 %1701, %v1684
        %v1703 = vpop.permute.xlu0 %1702
        %v1705 = vadd.f32 %v1672, %v1688
        %v1706 = vadd.f32 %v1673, %v1688
        %v1707 = vadd.f32 %v1674, %v1693
        %v1708 = vadd.f32 %v1675, %v1693
        %v1709 = vadd.f32 %v1676, %v1698
        %v1710 = vadd.f32 %v1677, %v1698
        %v1711 = vadd.f32 %v1678, %v1703
        %v1712 = vadd.f32 %v1679, %v1703
        %v1713 = vmul.f32 %v1705, 0.70710677
        %v1714 = vmul.f32 %v1706, 0.70710677
        %v1715 = vmul.f32 %v1707, 0.70710677
        %v1716 = vmul.f32 %v1708, 0.70710677
        %v1717 = vmul.f32 %v1709, 0.70710677
        %v1718 = vmul.f32 %v1710, 0.70710677
        %v1719 = vmul.f32 %v1711, 0.70710677
        %v1720 = vmul.f32 %v1712, 0.70710677
        %v1721 = vadd.f32 %v1107, %v1634
        %v1722 = vadd.f32 %v1108, %v1663
        %v1723 = vadd.f32 %v1109, %v1636
        %v1724 = vadd.f32 %v1110, %v1665
        %v1725 = vadd.f32 %v1111, %v1639
        %v1726 = vadd.f32 %v1112, %v1668
        %v1727 = vadd.f32 %v1113, %v1641
        %v1728 = vadd.f32 %v1114, %v1670
        %1729 = vrot.lane.b32.xlu0 %v1713, 1
        %v1730 = vpop.permute.xlu0 %1729
        %1731 = vrot.lane.b32.xlu0 %v1715, 1
        %v1732 = vpop.permute.xlu0 %1731
        %1733 = vrot.lane.b32.xlu0 %v1717, 1
        %v1734 = vpop.permute.xlu0 %1733
        %1735 = vrot.lane.b32.xlu0 %v1719, 1
        %v1736 = vpop.permute.xlu0 %1735
        %1737 = vrot.lane.b32.xlu0 %v1714, 1
        %v1738 = vpop.permute.xlu0 %1737
        %1739 = vrot.lane.b32.xlu0 %v1716, 1
        %v1740 = vpop.permute.xlu0 %1739
        %1741 = vrot.lane.b32.xlu0 %v1718, 1
        %v1742 = vpop.permute.xlu0 %1741
        %1743 = vrot.lane.b32.xlu0 %v1720, 1
        %v1744 = vpop.permute.xlu0 %1743
        %v1745 = vsel %vm519, %v1730, %v1738
        %v1746 = vsel %vm519, %v1732, %v1740
        %v1747 = vsel %vm519, %v1734, %v1742
        %v1748 = vsel %vm519, %v1736, %v1744
        %v1749 = vsel %vm519, %v1738, %v1730
        %v1750 = vsel %vm519, %v1740, %v1732
        %v1751 = vsel %vm519, %v1742, %v1734
        %v1752 = vsel %vm519, %v1744, %v1736
        %v1753 = vsel %vm495, %v1749, 0.0
        %v1754 = vsel %vm496, %v1745, 0.0
        %v1755 = vsel %vm495, %v1750, 0.0
        %v1756 = vsel %vm496, %v1746, 0.0
        %v1757 = vsel %vm495, %v1751, 0.0
        %v1758 = vsel %vm496, %v1747, 0.0
        %v1759 = vsel %vm495, %v1752, 0.0
        %v1760 = vsel %vm496, %v1748, 0.0
        %v1761 = vpack.c.bf16 %v1754, %v1753
        %v1762 = vpack.c.bf16 %v1756, %v1755
        %v1763 = vpack.c.bf16 %v1758, %v1757
        %v1764 = vpack.c.bf16 %v1760, %v1759
        %1765 = vrot.lane.b32.xlu0 %v1713, 127
        %v1766 = vpop.permute.xlu0 %1765
        %1767 = vrot.lane.b32.xlu0 %v1715, 127
        %v1768 = vpop.permute.xlu0 %1767
        %1769 = vrot.lane.b32.xlu0 %v1717, 127
        %v1770 = vpop.permute.xlu0 %1769
        %1771 = vrot.lane.b32.xlu0 %v1719, 127
        %v1772 = vpop.permute.xlu0 %1771
        %1773 = vrot.lane.b32.xlu0 %v1714, 127
        %v1774 = vpop.permute.xlu0 %1773
        %1775 = vrot.lane.b32.xlu0 %v1716, 127
        %v1776 = vpop.permute.xlu0 %1775
        %1777 = vrot.lane.b32.xlu0 %v1718, 127
        %v1778 = vpop.permute.xlu0 %1777
        %1779 = vrot.lane.b32.xlu0 %v1720, 127
        %v1780 = vpop.permute.xlu0 %1779
        %v1781 = vsel %vm556, %v1766, %v1774
        %v1782 = vsel %vm556, %v1768, %v1776
        %v1783 = vsel %vm556, %v1770, %v1778
        %v1784 = vsel %vm556, %v1772, %v1780
        %v1785 = vsel %vm556, %v1774, %v1766
        %v1786 = vsel %vm556, %v1776, %v1768
        %v1787 = vsel %vm556, %v1778, %v1770
        %v1788 = vsel %vm556, %v1780, %v1772
        %v1789 = vsel %vm497, %v1781, 0.0
        %v1790 = vsel %vm498, %v1785, 0.0
        %v1791 = vsel %vm497, %v1782, 0.0
        %v1792 = vsel %vm498, %v1786, 0.0
        %v1793 = vsel %vm497, %v1783, 0.0
        %v1794 = vsel %vm498, %v1787, 0.0
        %v1795 = vsel %vm497, %v1784, 0.0
        %v1796 = vsel %vm498, %v1788, 0.0
        %v1797 = vpack.c.bf16 %v1790, %v1789
        %v1798 = vpack.c.bf16 %v1792, %v1791
        %v1799 = vpack.c.bf16 %v1794, %v1793
        %v1800 = vpack.c.bf16 %v1796, %v1795
        %v1801 = vpack.c.bf16 %v1714, %v1713
        %v1802 = vpack.c.bf16 %v1716, %v1715
        %v1803 = vpack.c.bf16 %v1718, %v1717
        %v1804 = vpack.c.bf16 %v1720, %v1719
        %v1809 = vunpack.c.l.b16 %v1761
        %v1810 = vunpack.c.h.b16 %v1761
        %v1811 = vunpack.c.l.b16 %v1762
        %v1812 = vunpack.c.h.b16 %v1762
        %v1813 = vunpack.c.l.b16 %v1763
        %v1814 = vunpack.c.h.b16 %v1763
        %v1815 = vunpack.c.l.b16 %v1764
        %v1816 = vunpack.c.h.b16 %v1764
        %v1817 = vpack.c.b16 %v1811, %v1809
        %v1818 = vpack.c.b16 %v1812, %v1810
        %v1819 = vpack.c.b16 %v1815, %v1813
        %v1820 = vpack.c.b16 %v1816, %v1814
        %v1829 = vunpack.c.l.b16 %v1801
        %v1830 = vunpack.c.h.b16 %v1801
        %v1831 = vunpack.c.l.b16 %v1802
        %v1832 = vunpack.c.h.b16 %v1802
        %v1833 = vunpack.c.l.b16 %v1803
        %v1834 = vunpack.c.h.b16 %v1803
        %v1835 = vunpack.c.l.b16 %v1804
        %v1836 = vunpack.c.h.b16 %v1804
        %v1837 = vpack.c.b16 %v1831, %v1829
        %v1838 = vpack.c.b16 %v1832, %v1830
        %v1839 = vpack.c.b16 %v1835, %v1833
        %v1840 = vpack.c.b16 %v1836, %v1834
        %v1849 = vunpack.c.l.b16 %v1797
        %v1850 = vunpack.c.h.b16 %v1797
        %v1851 = vunpack.c.l.b16 %v1798
        %v1852 = vunpack.c.h.b16 %v1798
        %v1853 = vunpack.c.l.b16 %v1799
        %v1854 = vunpack.c.h.b16 %v1799
        %v1855 = vunpack.c.l.b16 %v1800
        %v1856 = vunpack.c.h.b16 %v1800
        %v1857 = vpack.c.b16 %v1851, %v1849
        %v1858 = vpack.c.b16 %v1852, %v1850
        %v1859 = vpack.c.b16 %v1855, %v1853
        %v1860 = vpack.c.b16 %v1856, %v1854
        %s1865 = scalar_lea.vmem %s3, 64
        %v1866 = vld [vmem:[%s1865] sm:$0xf]
        %v1867 = vld [vmem:[%s1865 + $0x4] sm:$0xf]
        %v1868 = vld [vmem:[%s1865 + $0x8] sm:$0xf]
        %v1869 = vld [vmem:[%s1865 + $0xc] sm:$0xf]
        %v1870 = vld [vmem:[%s1865 + $0x10] sm:$0xf]
        %v1871 = vld [vmem:[%s1865 + $0x14] sm:$0xf]
        %v1872 = vld [vmem:[%s1865 + $0x18] sm:$0xf]
        %v1873 = vld [vmem:[%s1865 + $0x1c] sm:$0xf]
        %s1874 = scalar_lea.vmem %s4, 128
        %v1875 = vld [vmem:[%s1874] sm:$0xff]
        %v1876 = vld [vmem:[%s1874 + $0x8] sm:$0xff]
        %v1877 = vld [vmem:[%s1874 + $0x10] sm:$0xff]
        %v1878 = vld [vmem:[%s1874 + $0x18] sm:$0xff]
        %v1879 = vld [vmem:[%s1874 + $0x20] sm:$0xff]
        %v1880 = vld [vmem:[%s1874 + $0x28] sm:$0xff]
        %v1881 = vld [vmem:[%s1874 + $0x30] sm:$0xff]
        %v1882 = vld [vmem:[%s1874 + $0x38] sm:$0xff]
        %1884 = vset.pattern.permute.xlu0 0
        %1885 = vperm.xlu0 %1884, %v1875
        %v1886 = vpop.permute.xlu0 %1885
        %1889 = vset.pattern.permute.xlu0 0
        %1890 = vperm.xlu0 %1889, %v1876
        %v1891 = vpop.permute.xlu0 %1890
        %1894 = vset.pattern.permute.xlu0 0
        %1895 = vperm.xlu0 %1894, %v1877
        %v1896 = vpop.permute.xlu0 %1895
        %1899 = vset.pattern.permute.xlu0 0
        %1900 = vperm.xlu0 %1899, %v1878
        %v1901 = vpop.permute.xlu0 %1900
        %1904 = vset.pattern.permute.xlu0 0
        %1905 = vperm.xlu0 %1904, %v1879
        %v1906 = vpop.permute.xlu0 %1905
        %1909 = vset.pattern.permute.xlu0 0
        %1910 = vperm.xlu0 %1909, %v1880
        %v1911 = vpop.permute.xlu0 %1910
        %1914 = vset.pattern.permute.xlu0 0
        %1915 = vperm.xlu0 %1914, %v1881
        %v1916 = vpop.permute.xlu0 %1915
        %1919 = vset.pattern.permute.xlu0 0
        %1920 = vperm.xlu0 %1919, %v1882
        %v1921 = vpop.permute.xlu0 %1920
        %v1931 = vunpack.c.l.b16 %v1866
        %v1932 = vunpack.c.l.b16 %v1867
        %v1933 = vunpack.c.l.b16 %v1868
        %v1934 = vunpack.c.l.b16 %v1869
        %v1935 = vunpack.c.l.b16 %v1870
        %v1936 = vunpack.c.l.b16 %v1871
        %v1937 = vunpack.c.l.b16 %v1872
        %v1938 = vunpack.c.l.b16 %v1873
        %v1939 = vpack.c.b16 %v1932, %v1931
        %v1940 = vpack.c.b16 %v1934, %v1933
        %v1941 = vpack.c.b16 %v1936, %v1935
        %v1942 = vpack.c.b16 %v1938, %v1937
        %v1944 = vsel %vm717, %v1939, 0
        %v1947 = vsel %vm717, %v1940, 0
        %v1950 = vsel %vm717, %v1941, 0
        %v1953 = vsel %vm717, %v1942, 0
        %1955 = vmatpush.bf16.msra.mxu0 0
        %1956 = vmatpush.bf16.msra.mxu0 0
        %1957 = vmatpush.bf16.msra.mxu0 %v1859
        %1958 = vmatpush.bf16.msra.mxu0 %v1857
        %1959 = vmatpush.bf16.msra.mxu0 %v1839
        %1960 = vmatpush.bf16.msra.mxu0 %v1837
        %1961 = vmatpush.bf16.msra.mxu0 %v1819
        %1962 = vmatpush.bf16.msra.mxu0 %v1817
        %1963 = vmatmul.bf16.gmra.mxu0 %v1944
        %v1964 = vpop.f32.mrf.mxu0
        %v1965 = vadd.f32 %v1886, %v1964
        %v1966 = vpop.f32.mrf.mxu0
        %v1967 = vadd.f32 %v1891, %v1966
        %1968 = vmatmul.bf16.gmra.mxu0 %v1947
        %v1969 = vpop.f32.mrf.mxu0
        %v1970 = vadd.f32 %v1896, %v1969
        %v1971 = vpop.f32.mrf.mxu0
        %v1972 = vadd.f32 %v1901, %v1971
        %1973 = vmatmul.bf16.gmra.mxu0 %v1950
        %v1974 = vpop.f32.mrf.mxu0
        %v1975 = vadd.f32 %v1906, %v1974
        %v1976 = vpop.f32.mrf.mxu0
        %v1977 = vadd.f32 %v1911, %v1976
        %1978 = vmatmul.bf16.gmra.mxu0 %v1953
        %v1979 = vpop.f32.mrf.mxu0
        %v1980 = vadd.f32 %v1916, %v1979
        %v1981 = vpop.f32.mrf.mxu0
        %v1982 = vadd.f32 %v1921, %v1981
        %1983 = vdwg.mxu0
        %1984 = vmatpush.bf16.msra.mxu0 0
        %1985 = vmatpush.bf16.msra.mxu0 0
        %1986 = vmatpush.bf16.msra.mxu0 %v1860
        %1987 = vmatpush.bf16.msra.mxu0 %v1858
        %1988 = vmatpush.bf16.msra.mxu0 %v1840
        %1989 = vmatpush.bf16.msra.mxu0 %v1838
        %1990 = vmatpush.bf16.msra.mxu0 %v1820
        %1991 = vmatpush.bf16.msra.mxu0 %v1818
        %1992 = vmatmul.bf16.gmra.mxu0 %v1944
        %v1993 = vpop.f32.mrf.mxu0
        %v1994 = vadd.f32 %v1886, %v1993
        %v1995 = vpop.f32.mrf.mxu0
        %v1996 = vadd.f32 %v1891, %v1995
        %1997 = vmatmul.bf16.gmra.mxu0 %v1947
        %v1998 = vpop.f32.mrf.mxu0
        %v1999 = vadd.f32 %v1896, %v1998
        %v2000 = vpop.f32.mrf.mxu0
        %v2001 = vadd.f32 %v1901, %v2000
        %2002 = vmatmul.bf16.gmra.mxu0 %v1950
        %v2003 = vpop.f32.mrf.mxu0
        %v2004 = vadd.f32 %v1906, %v2003
        %v2005 = vpop.f32.mrf.mxu0
        %v2006 = vadd.f32 %v1911, %v2005
        %2007 = vmatmul.bf16.gmra.mxu0 %v1953
        %v2008 = vpop.f32.mrf.mxu0
        %v2009 = vadd.f32 %v1916, %v2008
        %v2010 = vpop.f32.mrf.mxu0
        %v2011 = vadd.f32 %v1921, %v2010
        %2012 = vdwg.mxu0
        %v2013 = vxor.u32 %v1965, 2147483648
        %v2014 = vxor.u32 %v1994, 2147483648
        %v2015 = vxor.u32 %v1967, 2147483648
        %v2016 = vxor.u32 %v1996, 2147483648
        %v2017 = vxor.u32 %v1970, 2147483648
        %v2018 = vxor.u32 %v1999, 2147483648
        %v2019 = vxor.u32 %v1972, 2147483648
        %v2020 = vxor.u32 %v2001, 2147483648
        %v2021 = vmul.f32 %v2013, 1.442695
        %v2022 = vpow.pop %v2021
        %v2023 = vmul.f32 %v2014, 1.442695
        %v2024 = vpow.pop %v2023
        %v2025 = vmul.f32 %v2015, 1.442695
        %v2026 = vpow.pop %v2025
        %v2027 = vmul.f32 %v2016, 1.442695
        %v2028 = vpow.pop %v2027
        %v2029 = vmul.f32 %v2017, 1.442695
        %v2030 = vpow.pop %v2029
        %v2031 = vmul.f32 %v2018, 1.442695
        %v2032 = vpow.pop %v2031
        %v2033 = vmul.f32 %v2019, 1.442695
        %v2034 = vpow.pop %v2033
        %v2035 = vmul.f32 %v2020, 1.442695
        %v2036 = vpow.pop %v2035
        %v2037 = vadd.f32 %v2022, 1.0
        %v2038 = vadd.f32 %v2024, 1.0
        %v2039 = vadd.f32 %v2026, 1.0
        %v2040 = vadd.f32 %v2028, 1.0
        %v2041 = vadd.f32 %v2030, 1.0
        %v2042 = vadd.f32 %v2032, 1.0
        %v2043 = vadd.f32 %v2034, 1.0
        %v2044 = vadd.f32 %v2036, 1.0
        %v2045 = vrcp.pop %v2037
        %v2046 = vmul.f32 %v2037, %v2045
        %v2047 = vsub.f32 1.0, %v2046
        %v2048 = vmul.f32 %v2045, %v2047
        %v2049 = vadd.f32 %v2045, %v2048
        %vm2050 = vweird.f32 %v2037
        %vm2051 = vweird.f32 %v2045
        %vm2052 = vmor %vm2050, %vm2051
        %v2053 = vsel %vm2052, %v2045, %v2049
        %v2054 = vand.u32 2147483647, %v2037
        %vm2055 = vcmp.eq.f32.partialorder %v2054, 8.507059e+37
        %v2056 = vand.u32 %v2037, 2147483648
        %v2057 = vor.u32 1.1754944e-38, %v2056
        %v2058 = vsel %vm2055, %v2057, %v2053
        %v2059 = vmul.f32 1.0, %v2058
        %v2060 = vrcp.pop %v2038
        %v2061 = vmul.f32 %v2038, %v2060
        %v2062 = vsub.f32 1.0, %v2061
        %v2063 = vmul.f32 %v2060, %v2062
        %v2064 = vadd.f32 %v2060, %v2063
        %vm2065 = vweird.f32 %v2038
        %vm2066 = vweird.f32 %v2060
        %vm2067 = vmor %vm2065, %vm2066
        %v2068 = vsel %vm2067, %v2060, %v2064
        %v2069 = vand.u32 2147483647, %v2038
        %vm2070 = vcmp.eq.f32.partialorder %v2069, 8.507059e+37
        %v2071 = vand.u32 %v2038, 2147483648
        %v2072 = vor.u32 1.1754944e-38, %v2071
        %v2073 = vsel %vm2070, %v2072, %v2068
        %v2074 = vmul.f32 1.0, %v2073
        %v2075 = vrcp.pop %v2039
        %v2076 = vmul.f32 %v2039, %v2075
        %v2077 = vsub.f32 1.0, %v2076
        %v2078 = vmul.f32 %v2075, %v2077
        %v2079 = vadd.f32 %v2075, %v2078
        %vm2080 = vweird.f32 %v2039
        %vm2081 = vweird.f32 %v2075
        %vm2082 = vmor %vm2080, %vm2081
        %v2083 = vsel %vm2082, %v2075, %v2079
        %v2084 = vand.u32 2147483647, %v2039
        %vm2085 = vcmp.eq.f32.partialorder %v2084, 8.507059e+37
        %v2086 = vand.u32 %v2039, 2147483648
        %v2087 = vor.u32 1.1754944e-38, %v2086
        %v2088 = vsel %vm2085, %v2087, %v2083
        %v2089 = vmul.f32 1.0, %v2088
        %v2090 = vrcp.pop %v2040
        %v2091 = vmul.f32 %v2040, %v2090
        %v2092 = vsub.f32 1.0, %v2091
        %v2093 = vmul.f32 %v2090, %v2092
        %v2094 = vadd.f32 %v2090, %v2093
        %vm2095 = vweird.f32 %v2040
        %vm2096 = vweird.f32 %v2090
        %vm2097 = vmor %vm2095, %vm2096
        %v2098 = vsel %vm2097, %v2090, %v2094
        %v2099 = vand.u32 2147483647, %v2040
        %vm2100 = vcmp.eq.f32.partialorder %v2099, 8.507059e+37
        %v2101 = vand.u32 %v2040, 2147483648
        %v2102 = vor.u32 1.1754944e-38, %v2101
        %v2103 = vsel %vm2100, %v2102, %v2098
        %v2104 = vmul.f32 1.0, %v2103
        %v2105 = vrcp.pop %v2041
        %v2106 = vmul.f32 %v2041, %v2105
        %v2107 = vsub.f32 1.0, %v2106
        %v2108 = vmul.f32 %v2105, %v2107
        %v2109 = vadd.f32 %v2105, %v2108
        %vm2110 = vweird.f32 %v2041
        %vm2111 = vweird.f32 %v2105
        %vm2112 = vmor %vm2110, %vm2111
        %v2113 = vsel %vm2112, %v2105, %v2109
        %v2114 = vand.u32 2147483647, %v2041
        %vm2115 = vcmp.eq.f32.partialorder %v2114, 8.507059e+37
        %v2116 = vand.u32 %v2041, 2147483648
        %v2117 = vor.u32 1.1754944e-38, %v2116
        %v2118 = vsel %vm2115, %v2117, %v2113
        %v2119 = vmul.f32 1.0, %v2118
        %v2120 = vrcp.pop %v2042
        %v2121 = vmul.f32 %v2042, %v2120
        %v2122 = vsub.f32 1.0, %v2121
        %v2123 = vmul.f32 %v2120, %v2122
        %v2124 = vadd.f32 %v2120, %v2123
        %vm2125 = vweird.f32 %v2042
        %vm2126 = vweird.f32 %v2120
        %vm2127 = vmor %vm2125, %vm2126
        %v2128 = vsel %vm2127, %v2120, %v2124
        %v2129 = vand.u32 2147483647, %v2042
        %vm2130 = vcmp.eq.f32.partialorder %v2129, 8.507059e+37
        %v2131 = vand.u32 %v2042, 2147483648
        %v2132 = vor.u32 1.1754944e-38, %v2131
        %v2133 = vsel %vm2130, %v2132, %v2128
        %v2134 = vmul.f32 1.0, %v2133
        %v2135 = vrcp.pop %v2043
        %v2136 = vmul.f32 %v2043, %v2135
        %v2137 = vsub.f32 1.0, %v2136
        %v2138 = vmul.f32 %v2135, %v2137
        %v2139 = vadd.f32 %v2135, %v2138
        %vm2140 = vweird.f32 %v2043
        %vm2141 = vweird.f32 %v2135
        %vm2142 = vmor %vm2140, %vm2141
        %v2143 = vsel %vm2142, %v2135, %v2139
        %v2144 = vand.u32 2147483647, %v2043
        %vm2145 = vcmp.eq.f32.partialorder %v2144, 8.507059e+37
        %v2146 = vand.u32 %v2043, 2147483648
        %v2147 = vor.u32 1.1754944e-38, %v2146
        %v2148 = vsel %vm2145, %v2147, %v2143
        %v2149 = vmul.f32 1.0, %v2148
        %v2150 = vrcp.pop %v2044
        %v2151 = vmul.f32 %v2044, %v2150
        %v2152 = vsub.f32 1.0, %v2151
        %v2153 = vmul.f32 %v2150, %v2152
        %v2154 = vadd.f32 %v2150, %v2153
        %vm2155 = vweird.f32 %v2044
        %vm2156 = vweird.f32 %v2150
        %vm2157 = vmor %vm2155, %vm2156
        %v2158 = vsel %vm2157, %v2150, %v2154
        %v2159 = vand.u32 2147483647, %v2044
        %vm2160 = vcmp.eq.f32.partialorder %v2159, 8.507059e+37
        %v2161 = vand.u32 %v2044, 2147483648
        %v2162 = vor.u32 1.1754944e-38, %v2161
        %v2163 = vsel %vm2160, %v2162, %v2158
        %v2164 = vmul.f32 1.0, %v2163
        %v2165 = vtanh.pop %v1975
        %v2166 = vtanh.pop %v2004
        %v2167 = vtanh.pop %v1977
        %v2168 = vtanh.pop %v2006
        %v2169 = vtanh.pop %v1980
        %v2170 = vtanh.pop %v2009
        %v2171 = vtanh.pop %v1982
        %v2172 = vtanh.pop %v2011
        %v2173 = vmul.f32 %v2059, %v2165
        %v2174 = vmul.f32 %v2074, %v2166
        %v2175 = vmul.f32 %v2089, %v2167
        %v2176 = vmul.f32 %v2104, %v2168
        %v2177 = vmul.f32 %v2119, %v2169
        %v2178 = vmul.f32 %v2134, %v2170
        %v2179 = vmul.f32 %v2149, %v2171
        %v2180 = vmul.f32 %v2164, %v2172
        %v2181 = vpack.c.bf16 %v2175, %v2173
        %v2182 = vpack.c.bf16 %v2176, %v2174
        %v2183 = vpack.c.bf16 %v2179, %v2177
        %v2184 = vpack.c.bf16 %v2180, %v2178
        %s2185 = scalar_lea.vmem %s5, 64
        %v2186 = vld [vmem:[%s2185] sm:$0xf]
        %v2187 = vld [vmem:[%s2185 + $0x4] sm:$0xf]
        %v2188 = vld [vmem:[%s2185 + $0x8] sm:$0xf]
        %v2189 = vld [vmem:[%s2185 + $0xc] sm:$0xf]
        %v2190 = vld [vmem:[%s2185 + $0x10] sm:$0xf]
        %v2191 = vld [vmem:[%s2185 + $0x14] sm:$0xf]
        %v2192 = vld [vmem:[%s2185 + $0x18] sm:$0xf]
        %v2193 = vld [vmem:[%s2185 + $0x1c] sm:$0xf]
        %v2202 = vunpack.c.l.b16 %v2186
        %v2203 = vunpack.c.l.b16 %v2187
        %v2204 = vunpack.c.l.b16 %v2188
        %v2205 = vunpack.c.l.b16 %v2189
        %v2206 = vunpack.c.l.b16 %v2190
        %v2207 = vunpack.c.l.b16 %v2191
        %v2208 = vunpack.c.l.b16 %v2192
        %v2209 = vunpack.c.l.b16 %v2193
        %v2210 = vpack.c.b16 %v2203, %v2202
        %v2211 = vpack.c.b16 %v2205, %v2204
        %v2212 = vpack.c.b16 %v2207, %v2206
        %v2213 = vpack.c.b16 %v2209, %v2208
        %v2215 = vsel %vm988, %v2210, 0
        %v2218 = vsel %vm988, %v2211, 0
        %v2221 = vsel %vm988, %v2212, 0
        %v2224 = vsel %vm988, %v2213, 0
        %2226 = vmatpush.bf16.msra.mxu0 0
        %2227 = vmatpush.bf16.msra.mxu0 0
        %2228 = vmatpush.bf16.msra.mxu0 0
        %2229 = vmatpush.bf16.msra.mxu0 0
        %2230 = vmatpush.bf16.msra.mxu0 0
        %2231 = vmatpush.bf16.msra.mxu0 0
        %2232 = vmatpush.bf16.msra.mxu0 %v2183
        %2233 = vmatpush.bf16.msra.mxu0 %v2181
        %2234 = vmatmul.bf16.gmra.mxu0 %v2215
        %v2235 = vpop.f32.mrf.mxu0
        %v2236 = vadd.f32 0.0, %v2235
        %v2237 = vpop.f32.mrf.mxu0
        %v2238 = vadd.f32 0.0, %v2237
        %2239 = vmatmul.bf16.gmra.mxu0 %v2218
        %v2240 = vpop.f32.mrf.mxu0
        %v2241 = vadd.f32 0.0, %v2240
        %v2242 = vpop.f32.mrf.mxu0
        %v2243 = vadd.f32 0.0, %v2242
        %2244 = vmatmul.bf16.gmra.mxu0 %v2221
        %v2245 = vpop.f32.mrf.mxu0
        %v2246 = vadd.f32 0.0, %v2245
        %v2247 = vpop.f32.mrf.mxu0
        %v2248 = vadd.f32 0.0, %v2247
        %2249 = vmatmul.bf16.gmra.mxu0 %v2224
        %v2250 = vpop.f32.mrf.mxu0
        %v2251 = vadd.f32 0.0, %v2250
        %v2252 = vpop.f32.mrf.mxu0
        %v2253 = vadd.f32 0.0, %v2252
        %2254 = vdwg.mxu0
        %2255 = vmatpush.bf16.msra.mxu0 0
        %2256 = vmatpush.bf16.msra.mxu0 0
        %2257 = vmatpush.bf16.msra.mxu0 0
        %2258 = vmatpush.bf16.msra.mxu0 0
        %2259 = vmatpush.bf16.msra.mxu0 0
        %2260 = vmatpush.bf16.msra.mxu0 0
        %2261 = vmatpush.bf16.msra.mxu0 %v2184
        %2262 = vmatpush.bf16.msra.mxu0 %v2182
        %2263 = vmatmul.bf16.gmra.mxu0 %v2215
        %v2264 = vpop.f32.mrf.mxu0
        %v2265 = vadd.f32 0.0, %v2264
        %v2266 = vpop.f32.mrf.mxu0
        %v2267 = vadd.f32 0.0, %v2266
        %2268 = vmatmul.bf16.gmra.mxu0 %v2218
        %v2269 = vpop.f32.mrf.mxu0
        %v2270 = vadd.f32 0.0, %v2269
        %v2271 = vpop.f32.mrf.mxu0
        %v2272 = vadd.f32 0.0, %v2271
        %2273 = vmatmul.bf16.gmra.mxu0 %v2221
        %v2274 = vpop.f32.mrf.mxu0
        %v2275 = vadd.f32 0.0, %v2274
        %v2276 = vpop.f32.mrf.mxu0
        %v2277 = vadd.f32 0.0, %v2276
        %2278 = vmatmul.bf16.gmra.mxu0 %v2224
        %v2279 = vpop.f32.mrf.mxu0
        %v2280 = vadd.f32 0.0, %v2279
        %v2281 = vpop.f32.mrf.mxu0
        %v2282 = vadd.f32 0.0, %v2281
        %2283 = vdwg.mxu0
        %v2284 = vadd.f32 %v1713, %v2236
        %v2285 = vadd.f32 %v1714, %v2265
        %v2286 = vadd.f32 %v1715, %v2238
        %v2287 = vadd.f32 %v1716, %v2267
        %v2288 = vadd.f32 %v1717, %v2241
        %v2289 = vadd.f32 %v1718, %v2270
        %v2290 = vadd.f32 %v1719, %v2243
        %v2291 = vadd.f32 %v1720, %v2272
        %s2292 = scalar_lea.vmem %s6, 64
        %v2293 = vld [vmem:[%s2292] sm:$0xff]
        %v2294 = vld [vmem:[%s2292 + $0x8] sm:$0xff]
        %v2295 = vld [vmem:[%s2292 + $0x10] sm:$0xff]
        %v2296 = vld [vmem:[%s2292 + $0x18] sm:$0xff]
        %2298 = vset.pattern.permute.xlu0 0
        %2299 = vperm.xlu0 %2298, %v2293
        %v2300 = vpop.permute.xlu0 %2299
        %2303 = vset.pattern.permute.xlu0 0
        %2304 = vperm.xlu0 %2303, %v2294
        %v2305 = vpop.permute.xlu0 %2304
        %2308 = vset.pattern.permute.xlu0 0
        %2309 = vperm.xlu0 %2308, %v2295
        %v2310 = vpop.permute.xlu0 %2309
        %2313 = vset.pattern.permute.xlu0 0
        %2314 = vperm.xlu0 %2313, %v2296
        %v2315 = vpop.permute.xlu0 %2314
        %v2317 = vadd.f32 %v2284, %v2300
        %v2318 = vadd.f32 %v2285, %v2300
        %v2319 = vadd.f32 %v2286, %v2305
        %v2320 = vadd.f32 %v2287, %v2305
        %v2321 = vadd.f32 %v2288, %v2310
        %v2322 = vadd.f32 %v2289, %v2310
        %v2323 = vadd.f32 %v2290, %v2315
        %v2324 = vadd.f32 %v2291, %v2315
        %v2325 = vmul.f32 %v2317, 0.70710677
        %v2326 = vmul.f32 %v2318, 0.70710677
        %v2327 = vmul.f32 %v2319, 0.70710677
        %v2328 = vmul.f32 %v2320, 0.70710677
        %v2329 = vmul.f32 %v2321, 0.70710677
        %v2330 = vmul.f32 %v2322, 0.70710677
        %v2331 = vmul.f32 %v2323, 0.70710677
        %v2332 = vmul.f32 %v2324, 0.70710677
        %v2333 = vadd.f32 %v1721, %v2246
        %v2334 = vadd.f32 %v1722, %v2275
        %v2335 = vadd.f32 %v1723, %v2248
        %v2336 = vadd.f32 %v1724, %v2277
        %v2337 = vadd.f32 %v1725, %v2251
        %v2338 = vadd.f32 %v1726, %v2280
        %v2339 = vadd.f32 %v1727, %v2253
        %v2340 = vadd.f32 %v1728, %v2282
        %2341 = vrot.lane.b32.xlu0 %v2325, 2
        %v2342 = vpop.permute.xlu0 %2341
        %2343 = vrot.lane.b32.xlu0 %v2327, 2
        %v2344 = vpop.permute.xlu0 %2343
        %2345 = vrot.lane.b32.xlu0 %v2329, 2
        %v2346 = vpop.permute.xlu0 %2345
        %2347 = vrot.lane.b32.xlu0 %v2331, 2
        %v2348 = vpop.permute.xlu0 %2347
        %2349 = vrot.lane.b32.xlu0 %v2326, 2
        %v2350 = vpop.permute.xlu0 %2349
        %2351 = vrot.lane.b32.xlu0 %v2328, 2
        %v2352 = vpop.permute.xlu0 %2351
        %2353 = vrot.lane.b32.xlu0 %v2330, 2
        %v2354 = vpop.permute.xlu0 %2353
        %2355 = vrot.lane.b32.xlu0 %v2332, 2
        %v2356 = vpop.permute.xlu0 %2355
        %v2357 = vsel %vm1131, %v2342, %v2350
        %v2358 = vsel %vm1131, %v2344, %v2352
        %v2359 = vsel %vm1131, %v2346, %v2354
        %v2360 = vsel %vm1131, %v2348, %v2356
        %v2361 = vsel %vm1131, %v2350, %v2342
        %v2362 = vsel %vm1131, %v2352, %v2344
        %v2363 = vsel %vm1131, %v2354, %v2346
        %v2364 = vsel %vm1131, %v2356, %v2348
        %v2365 = vsel %vm499, %v2361, 0.0
        %v2366 = vsel %vm500, %v2357, 0.0
        %v2367 = vsel %vm499, %v2362, 0.0
        %v2368 = vsel %vm500, %v2358, 0.0
        %v2369 = vsel %vm499, %v2363, 0.0
        %v2370 = vsel %vm500, %v2359, 0.0
        %v2371 = vsel %vm499, %v2364, 0.0
        %v2372 = vsel %vm500, %v2360, 0.0
        %v2373 = vpack.c.bf16 %v2366, %v2365
        %v2374 = vpack.c.bf16 %v2368, %v2367
        %v2375 = vpack.c.bf16 %v2370, %v2369
        %v2376 = vpack.c.bf16 %v2372, %v2371
        %2377 = vrot.lane.b32.xlu0 %v2325, 126
        %v2378 = vpop.permute.xlu0 %2377
        %2379 = vrot.lane.b32.xlu0 %v2327, 126
        %v2380 = vpop.permute.xlu0 %2379
        %2381 = vrot.lane.b32.xlu0 %v2329, 126
        %v2382 = vpop.permute.xlu0 %2381
        %2383 = vrot.lane.b32.xlu0 %v2331, 126
        %v2384 = vpop.permute.xlu0 %2383
        %2385 = vrot.lane.b32.xlu0 %v2326, 126
        %v2386 = vpop.permute.xlu0 %2385
        %2387 = vrot.lane.b32.xlu0 %v2328, 126
        %v2388 = vpop.permute.xlu0 %2387
        %2389 = vrot.lane.b32.xlu0 %v2330, 126
        %v2390 = vpop.permute.xlu0 %2389
        %2391 = vrot.lane.b32.xlu0 %v2332, 126
        %v2392 = vpop.permute.xlu0 %2391
        %v2393 = vsel %vm1168, %v2378, %v2386
        %v2394 = vsel %vm1168, %v2380, %v2388
        %v2395 = vsel %vm1168, %v2382, %v2390
        %v2396 = vsel %vm1168, %v2384, %v2392
        %v2397 = vsel %vm1168, %v2386, %v2378
        %v2398 = vsel %vm1168, %v2388, %v2380
        %v2399 = vsel %vm1168, %v2390, %v2382
        %v2400 = vsel %vm1168, %v2392, %v2384
        %v2401 = vsel %vm501, %v2393, 0.0
        %v2402 = vsel %vm502, %v2397, 0.0
        %v2403 = vsel %vm501, %v2394, 0.0
        %v2404 = vsel %vm502, %v2398, 0.0
        %v2405 = vsel %vm501, %v2395, 0.0
        %v2406 = vsel %vm502, %v2399, 0.0
        %v2407 = vsel %vm501, %v2396, 0.0
        %v2408 = vsel %vm502, %v2400, 0.0
        %v2409 = vpack.c.bf16 %v2402, %v2401
        %v2410 = vpack.c.bf16 %v2404, %v2403
        %v2411 = vpack.c.bf16 %v2406, %v2405
        %v2412 = vpack.c.bf16 %v2408, %v2407
        %v2413 = vpack.c.bf16 %v2326, %v2325
        %v2414 = vpack.c.bf16 %v2328, %v2327
        %v2415 = vpack.c.bf16 %v2330, %v2329
        %v2416 = vpack.c.bf16 %v2332, %v2331
        %v2421 = vunpack.c.l.b16 %v2373
        %v2422 = vunpack.c.h.b16 %v2373
        %v2423 = vunpack.c.l.b16 %v2374
        %v2424 = vunpack.c.h.b16 %v2374
        %v2425 = vunpack.c.l.b16 %v2375
        %v2426 = vunpack.c.h.b16 %v2375
        %v2427 = vunpack.c.l.b16 %v2376
        %v2428 = vunpack.c.h.b16 %v2376
        %v2429 = vpack.c.b16 %v2423, %v2421
        %v2430 = vpack.c.b16 %v2424, %v2422
        %v2431 = vpack.c.b16 %v2427, %v2425
        %v2432 = vpack.c.b16 %v2428, %v2426
        %v2441 = vunpack.c.l.b16 %v2413
        %v2442 = vunpack.c.h.b16 %v2413
        %v2443 = vunpack.c.l.b16 %v2414
        %v2444 = vunpack.c.h.b16 %v2414
        %v2445 = vunpack.c.l.b16 %v2415
        %v2446 = vunpack.c.h.b16 %v2415
        %v2447 = vunpack.c.l.b16 %v2416
        %v2448 = vunpack.c.h.b16 %v2416
        %v2449 = vpack.c.b16 %v2443, %v2441
        %v2450 = vpack.c.b16 %v2444, %v2442
        %v2451 = vpack.c.b16 %v2447, %v2445
        %v2452 = vpack.c.b16 %v2448, %v2446
        %v2461 = vunpack.c.l.b16 %v2409
        %v2462 = vunpack.c.h.b16 %v2409
        %v2463 = vunpack.c.l.b16 %v2410
        %v2464 = vunpack.c.h.b16 %v2410
        %v2465 = vunpack.c.l.b16 %v2411
        %v2466 = vunpack.c.h.b16 %v2411
        %v2467 = vunpack.c.l.b16 %v2412
        %v2468 = vunpack.c.h.b16 %v2412
        %v2469 = vpack.c.b16 %v2463, %v2461
        %v2470 = vpack.c.b16 %v2464, %v2462
        %v2471 = vpack.c.b16 %v2467, %v2465
        %v2472 = vpack.c.b16 %v2468, %v2466
        %s2477 = scalar_lea.vmem %s3, 96
        %v2478 = vld [vmem:[%s2477] sm:$0xf]
        %v2479 = vld [vmem:[%s2477 + $0x4] sm:$0xf]
        %v2480 = vld [vmem:[%s2477 + $0x8] sm:$0xf]
        %v2481 = vld [vmem:[%s2477 + $0xc] sm:$0xf]
        %v2482 = vld [vmem:[%s2477 + $0x10] sm:$0xf]
        %v2483 = vld [vmem:[%s2477 + $0x14] sm:$0xf]
        %v2484 = vld [vmem:[%s2477 + $0x18] sm:$0xf]
        %v2485 = vld [vmem:[%s2477 + $0x1c] sm:$0xf]
        %s2486 = scalar_lea.vmem %s4, 192
        %v2487 = vld [vmem:[%s2486] sm:$0xff]
        %v2488 = vld [vmem:[%s2486 + $0x8] sm:$0xff]
        %v2489 = vld [vmem:[%s2486 + $0x10] sm:$0xff]
        %v2490 = vld [vmem:[%s2486 + $0x18] sm:$0xff]
        %v2491 = vld [vmem:[%s2486 + $0x20] sm:$0xff]
        %v2492 = vld [vmem:[%s2486 + $0x28] sm:$0xff]
        %v2493 = vld [vmem:[%s2486 + $0x30] sm:$0xff]
        %v2494 = vld [vmem:[%s2486 + $0x38] sm:$0xff]
        %2496 = vset.pattern.permute.xlu0 0
        %2497 = vperm.xlu0 %2496, %v2487
        %v2498 = vpop.permute.xlu0 %2497
        %2501 = vset.pattern.permute.xlu0 0
        %2502 = vperm.xlu0 %2501, %v2488
        %v2503 = vpop.permute.xlu0 %2502
        %2506 = vset.pattern.permute.xlu0 0
        %2507 = vperm.xlu0 %2506, %v2489
        %v2508 = vpop.permute.xlu0 %2507
        %2511 = vset.pattern.permute.xlu0 0
        %2512 = vperm.xlu0 %2511, %v2490
        %v2513 = vpop.permute.xlu0 %2512
        %2516 = vset.pattern.permute.xlu0 0
        %2517 = vperm.xlu0 %2516, %v2491
        %v2518 = vpop.permute.xlu0 %2517
        %2521 = vset.pattern.permute.xlu0 0
        %2522 = vperm.xlu0 %2521, %v2492
        %v2523 = vpop.permute.xlu0 %2522
        %2526 = vset.pattern.permute.xlu0 0
        %2527 = vperm.xlu0 %2526, %v2493
        %v2528 = vpop.permute.xlu0 %2527
        %2531 = vset.pattern.permute.xlu0 0
        %2532 = vperm.xlu0 %2531, %v2494
        %v2533 = vpop.permute.xlu0 %2532
        %v2543 = vunpack.c.l.b16 %v2478
        %v2544 = vunpack.c.l.b16 %v2479
        %v2545 = vunpack.c.l.b16 %v2480
        %v2546 = vunpack.c.l.b16 %v2481
        %v2547 = vunpack.c.l.b16 %v2482
        %v2548 = vunpack.c.l.b16 %v2483
        %v2549 = vunpack.c.l.b16 %v2484
        %v2550 = vunpack.c.l.b16 %v2485
        %v2551 = vpack.c.b16 %v2544, %v2543
        %v2552 = vpack.c.b16 %v2546, %v2545
        %v2553 = vpack.c.b16 %v2548, %v2547
        %v2554 = vpack.c.b16 %v2550, %v2549
        %v2556 = vsel %vm717, %v2551, 0
        %v2559 = vsel %vm717, %v2552, 0
        %v2562 = vsel %vm717, %v2553, 0
        %v2565 = vsel %vm717, %v2554, 0
        %2567 = vmatpush.bf16.msra.mxu0 0
        %2568 = vmatpush.bf16.msra.mxu0 0
        %2569 = vmatpush.bf16.msra.mxu0 %v2471
        %2570 = vmatpush.bf16.msra.mxu0 %v2469
        %2571 = vmatpush.bf16.msra.mxu0 %v2451
        %2572 = vmatpush.bf16.msra.mxu0 %v2449
        %2573 = vmatpush.bf16.msra.mxu0 %v2431
        %2574 = vmatpush.bf16.msra.mxu0 %v2429
        %2575 = vmatmul.bf16.gmra.mxu0 %v2556
        %v2576 = vpop.f32.mrf.mxu0
        %v2577 = vadd.f32 %v2498, %v2576
        %v2578 = vpop.f32.mrf.mxu0
        %v2579 = vadd.f32 %v2503, %v2578
        %2580 = vmatmul.bf16.gmra.mxu0 %v2559
        %v2581 = vpop.f32.mrf.mxu0
        %v2582 = vadd.f32 %v2508, %v2581
        %v2583 = vpop.f32.mrf.mxu0
        %v2584 = vadd.f32 %v2513, %v2583
        %2585 = vmatmul.bf16.gmra.mxu0 %v2562
        %v2586 = vpop.f32.mrf.mxu0
        %v2587 = vadd.f32 %v2518, %v2586
        %v2588 = vpop.f32.mrf.mxu0
        %v2589 = vadd.f32 %v2523, %v2588
        %2590 = vmatmul.bf16.gmra.mxu0 %v2565
        %v2591 = vpop.f32.mrf.mxu0
        %v2592 = vadd.f32 %v2528, %v2591
        %v2593 = vpop.f32.mrf.mxu0
        %v2594 = vadd.f32 %v2533, %v2593
        %2595 = vdwg.mxu0
        %2596 = vmatpush.bf16.msra.mxu0 0
        %2597 = vmatpush.bf16.msra.mxu0 0
        %2598 = vmatpush.bf16.msra.mxu0 %v2472
        %2599 = vmatpush.bf16.msra.mxu0 %v2470
        %2600 = vmatpush.bf16.msra.mxu0 %v2452
        %2601 = vmatpush.bf16.msra.mxu0 %v2450
        %2602 = vmatpush.bf16.msra.mxu0 %v2432
        %2603 = vmatpush.bf16.msra.mxu0 %v2430
        %2604 = vmatmul.bf16.gmra.mxu0 %v2556
        %v2605 = vpop.f32.mrf.mxu0
        %v2606 = vadd.f32 %v2498, %v2605
        %v2607 = vpop.f32.mrf.mxu0
        %v2608 = vadd.f32 %v2503, %v2607
        %2609 = vmatmul.bf16.gmra.mxu0 %v2559
        %v2610 = vpop.f32.mrf.mxu0
        %v2611 = vadd.f32 %v2508, %v2610
        %v2612 = vpop.f32.mrf.mxu0
        %v2613 = vadd.f32 %v2513, %v2612
        %2614 = vmatmul.bf16.gmra.mxu0 %v2562
        %v2615 = vpop.f32.mrf.mxu0
        %v2616 = vadd.f32 %v2518, %v2615
        %v2617 = vpop.f32.mrf.mxu0
        %v2618 = vadd.f32 %v2523, %v2617
        %2619 = vmatmul.bf16.gmra.mxu0 %v2565
        %v2620 = vpop.f32.mrf.mxu0
        %v2621 = vadd.f32 %v2528, %v2620
        %v2622 = vpop.f32.mrf.mxu0
        %v2623 = vadd.f32 %v2533, %v2622
        %2624 = vdwg.mxu0
        %v2625 = vxor.u32 %v2577, 2147483648
        %v2626 = vxor.u32 %v2606, 2147483648
        %v2627 = vxor.u32 %v2579, 2147483648
        %v2628 = vxor.u32 %v2608, 2147483648
        %v2629 = vxor.u32 %v2582, 2147483648
        %v2630 = vxor.u32 %v2611, 2147483648
        %v2631 = vxor.u32 %v2584, 2147483648
        %v2632 = vxor.u32 %v2613, 2147483648
        %v2633 = vmul.f32 %v2625, 1.442695
        %v2634 = vpow.pop %v2633
        %v2635 = vmul.f32 %v2626, 1.442695
        %v2636 = vpow.pop %v2635
        %v2637 = vmul.f32 %v2627, 1.442695
        %v2638 = vpow.pop %v2637
        %v2639 = vmul.f32 %v2628, 1.442695
        %v2640 = vpow.pop %v2639
        %v2641 = vmul.f32 %v2629, 1.442695
        %v2642 = vpow.pop %v2641
        %v2643 = vmul.f32 %v2630, 1.442695
        %v2644 = vpow.pop %v2643
        %v2645 = vmul.f32 %v2631, 1.442695
        %v2646 = vpow.pop %v2645
        %v2647 = vmul.f32 %v2632, 1.442695
        %v2648 = vpow.pop %v2647
        %v2649 = vadd.f32 %v2634, 1.0
        %v2650 = vadd.f32 %v2636, 1.0
        %v2651 = vadd.f32 %v2638, 1.0
        %v2652 = vadd.f32 %v2640, 1.0
        %v2653 = vadd.f32 %v2642, 1.0
        %v2654 = vadd.f32 %v2644, 1.0
        %v2655 = vadd.f32 %v2646, 1.0
        %v2656 = vadd.f32 %v2648, 1.0
        %v2657 = vrcp.pop %v2649
        %v2658 = vmul.f32 %v2649, %v2657
        %v2659 = vsub.f32 1.0, %v2658
        %v2660 = vmul.f32 %v2657, %v2659
        %v2661 = vadd.f32 %v2657, %v2660
        %vm2662 = vweird.f32 %v2649
        %vm2663 = vweird.f32 %v2657
        %vm2664 = vmor %vm2662, %vm2663
        %v2665 = vsel %vm2664, %v2657, %v2661
        %v2666 = vand.u32 2147483647, %v2649
        %vm2667 = vcmp.eq.f32.partialorder %v2666, 8.507059e+37
        %v2668 = vand.u32 %v2649, 2147483648
        %v2669 = vor.u32 1.1754944e-38, %v2668
        %v2670 = vsel %vm2667, %v2669, %v2665
        %v2671 = vmul.f32 1.0, %v2670
        %v2672 = vrcp.pop %v2650
        %v2673 = vmul.f32 %v2650, %v2672
        %v2674 = vsub.f32 1.0, %v2673
        %v2675 = vmul.f32 %v2672, %v2674
        %v2676 = vadd.f32 %v2672, %v2675
        %vm2677 = vweird.f32 %v2650
        %vm2678 = vweird.f32 %v2672
        %vm2679 = vmor %vm2677, %vm2678
        %v2680 = vsel %vm2679, %v2672, %v2676
        %v2681 = vand.u32 2147483647, %v2650
        %vm2682 = vcmp.eq.f32.partialorder %v2681, 8.507059e+37
        %v2683 = vand.u32 %v2650, 2147483648
        %v2684 = vor.u32 1.1754944e-38, %v2683
        %v2685 = vsel %vm2682, %v2684, %v2680
        %v2686 = vmul.f32 1.0, %v2685
        %v2687 = vrcp.pop %v2651
        %v2688 = vmul.f32 %v2651, %v2687
        %v2689 = vsub.f32 1.0, %v2688
        %v2690 = vmul.f32 %v2687, %v2689
        %v2691 = vadd.f32 %v2687, %v2690
        %vm2692 = vweird.f32 %v2651
        %vm2693 = vweird.f32 %v2687
        %vm2694 = vmor %vm2692, %vm2693
        %v2695 = vsel %vm2694, %v2687, %v2691
        %v2696 = vand.u32 2147483647, %v2651
        %vm2697 = vcmp.eq.f32.partialorder %v2696, 8.507059e+37
        %v2698 = vand.u32 %v2651, 2147483648
        %v2699 = vor.u32 1.1754944e-38, %v2698
        %v2700 = vsel %vm2697, %v2699, %v2695
        %v2701 = vmul.f32 1.0, %v2700
        %v2702 = vrcp.pop %v2652
        %v2703 = vmul.f32 %v2652, %v2702
        %v2704 = vsub.f32 1.0, %v2703
        %v2705 = vmul.f32 %v2702, %v2704
        %v2706 = vadd.f32 %v2702, %v2705
        %vm2707 = vweird.f32 %v2652
        %vm2708 = vweird.f32 %v2702
        %vm2709 = vmor %vm2707, %vm2708
        %v2710 = vsel %vm2709, %v2702, %v2706
        %v2711 = vand.u32 2147483647, %v2652
        %vm2712 = vcmp.eq.f32.partialorder %v2711, 8.507059e+37
        %v2713 = vand.u32 %v2652, 2147483648
        %v2714 = vor.u32 1.1754944e-38, %v2713
        %v2715 = vsel %vm2712, %v2714, %v2710
        %v2716 = vmul.f32 1.0, %v2715
        %v2717 = vrcp.pop %v2653
        %v2718 = vmul.f32 %v2653, %v2717
        %v2719 = vsub.f32 1.0, %v2718
        %v2720 = vmul.f32 %v2717, %v2719
        %v2721 = vadd.f32 %v2717, %v2720
        %vm2722 = vweird.f32 %v2653
        %vm2723 = vweird.f32 %v2717
        %vm2724 = vmor %vm2722, %vm2723
        %v2725 = vsel %vm2724, %v2717, %v2721
        %v2726 = vand.u32 2147483647, %v2653
        %vm2727 = vcmp.eq.f32.partialorder %v2726, 8.507059e+37
        %v2728 = vand.u32 %v2653, 2147483648
        %v2729 = vor.u32 1.1754944e-38, %v2728
        %v2730 = vsel %vm2727, %v2729, %v2725
        %v2731 = vmul.f32 1.0, %v2730
        %v2732 = vrcp.pop %v2654
        %v2733 = vmul.f32 %v2654, %v2732
        %v2734 = vsub.f32 1.0, %v2733
        %v2735 = vmul.f32 %v2732, %v2734
        %v2736 = vadd.f32 %v2732, %v2735
        %vm2737 = vweird.f32 %v2654
        %vm2738 = vweird.f32 %v2732
        %vm2739 = vmor %vm2737, %vm2738
        %v2740 = vsel %vm2739, %v2732, %v2736
        %v2741 = vand.u32 2147483647, %v2654
        %vm2742 = vcmp.eq.f32.partialorder %v2741, 8.507059e+37
        %v2743 = vand.u32 %v2654, 2147483648
        %v2744 = vor.u32 1.1754944e-38, %v2743
        %v2745 = vsel %vm2742, %v2744, %v2740
        %v2746 = vmul.f32 1.0, %v2745
        %v2747 = vrcp.pop %v2655
        %v2748 = vmul.f32 %v2655, %v2747
        %v2749 = vsub.f32 1.0, %v2748
        %v2750 = vmul.f32 %v2747, %v2749
        %v2751 = vadd.f32 %v2747, %v2750
        %vm2752 = vweird.f32 %v2655
        %vm2753 = vweird.f32 %v2747
        %vm2754 = vmor %vm2752, %vm2753
        %v2755 = vsel %vm2754, %v2747, %v2751
        %v2756 = vand.u32 2147483647, %v2655
        %vm2757 = vcmp.eq.f32.partialorder %v2756, 8.507059e+37
        %v2758 = vand.u32 %v2655, 2147483648
        %v2759 = vor.u32 1.1754944e-38, %v2758
        %v2760 = vsel %vm2757, %v2759, %v2755
        %v2761 = vmul.f32 1.0, %v2760
        %v2762 = vrcp.pop %v2656
        %v2763 = vmul.f32 %v2656, %v2762
        %v2764 = vsub.f32 1.0, %v2763
        %v2765 = vmul.f32 %v2762, %v2764
        %v2766 = vadd.f32 %v2762, %v2765
        %vm2767 = vweird.f32 %v2656
        %vm2768 = vweird.f32 %v2762
        %vm2769 = vmor %vm2767, %vm2768
        %v2770 = vsel %vm2769, %v2762, %v2766
        %v2771 = vand.u32 2147483647, %v2656
        %vm2772 = vcmp.eq.f32.partialorder %v2771, 8.507059e+37
        %v2773 = vand.u32 %v2656, 2147483648
        %v2774 = vor.u32 1.1754944e-38, %v2773
        %v2775 = vsel %vm2772, %v2774, %v2770
        %v2776 = vmul.f32 1.0, %v2775
        %v2777 = vtanh.pop %v2587
        %v2778 = vtanh.pop %v2616
        %v2779 = vtanh.pop %v2589
        %v2780 = vtanh.pop %v2618
        %v2781 = vtanh.pop %v2592
        %v2782 = vtanh.pop %v2621
        %v2783 = vtanh.pop %v2594
        %v2784 = vtanh.pop %v2623
        %v2785 = vmul.f32 %v2671, %v2777
        %v2786 = vmul.f32 %v2686, %v2778
        %v2787 = vmul.f32 %v2701, %v2779
        %v2788 = vmul.f32 %v2716, %v2780
        %v2789 = vmul.f32 %v2731, %v2781
        %v2790 = vmul.f32 %v2746, %v2782
        %v2791 = vmul.f32 %v2761, %v2783
        %v2792 = vmul.f32 %v2776, %v2784
        %v2793 = vpack.c.bf16 %v2787, %v2785
        %v2794 = vpack.c.bf16 %v2788, %v2786
        %v2795 = vpack.c.bf16 %v2791, %v2789
        %v2796 = vpack.c.bf16 %v2792, %v2790
        %s2797 = scalar_lea.vmem %s5, 96
        %v2798 = vld [vmem:[%s2797] sm:$0xf]
        %v2799 = vld [vmem:[%s2797 + $0x4] sm:$0xf]
        %v2800 = vld [vmem:[%s2797 + $0x8] sm:$0xf]
        %v2801 = vld [vmem:[%s2797 + $0xc] sm:$0xf]
        %v2802 = vld [vmem:[%s2797 + $0x10] sm:$0xf]
        %v2803 = vld [vmem:[%s2797 + $0x14] sm:$0xf]
        %v2804 = vld [vmem:[%s2797 + $0x18] sm:$0xf]
        %v2805 = vld [vmem:[%s2797 + $0x1c] sm:$0xf]
        %v2814 = vunpack.c.l.b16 %v2798
        %v2815 = vunpack.c.l.b16 %v2799
        %v2816 = vunpack.c.l.b16 %v2800
        %v2817 = vunpack.c.l.b16 %v2801
        %v2818 = vunpack.c.l.b16 %v2802
        %v2819 = vunpack.c.l.b16 %v2803
        %v2820 = vunpack.c.l.b16 %v2804
        %v2821 = vunpack.c.l.b16 %v2805
        %v2822 = vpack.c.b16 %v2815, %v2814
        %v2823 = vpack.c.b16 %v2817, %v2816
        %v2824 = vpack.c.b16 %v2819, %v2818
        %v2825 = vpack.c.b16 %v2821, %v2820
        %v2827 = vsel %vm988, %v2822, 0
        %v2830 = vsel %vm988, %v2823, 0
        %v2833 = vsel %vm988, %v2824, 0
        %v2836 = vsel %vm988, %v2825, 0
        %2838 = vmatpush.bf16.msra.mxu0 0
        %2839 = vmatpush.bf16.msra.mxu0 0
        %2840 = vmatpush.bf16.msra.mxu0 0
        %2841 = vmatpush.bf16.msra.mxu0 0
        %2842 = vmatpush.bf16.msra.mxu0 0
        %2843 = vmatpush.bf16.msra.mxu0 0
        %2844 = vmatpush.bf16.msra.mxu0 %v2795
        %2845 = vmatpush.bf16.msra.mxu0 %v2793
        %2846 = vmatmul.bf16.gmra.mxu0 %v2827
        %v2847 = vpop.f32.mrf.mxu0
        %v2848 = vpop.f32.mrf.mxu0
        %2849 = vmatmul.bf16.gmra.mxu0 %v2830
        %v2850 = vpop.f32.mrf.mxu0
        %v2851 = vpop.f32.mrf.mxu0
        %2852 = vmatmul.bf16.gmra.mxu0 %v2833
        %v2853 = vpop.f32.mrf.mxu0
        %v2854 = vadd.f32 0.0, %v2853
        %v2855 = vpop.f32.mrf.mxu0
        %v2856 = vadd.f32 0.0, %v2855
        %2857 = vmatmul.bf16.gmra.mxu0 %v2836
        %v2858 = vpop.f32.mrf.mxu0
        %v2859 = vadd.f32 0.0, %v2858
        %v2860 = vpop.f32.mrf.mxu0
        %v2861 = vadd.f32 0.0, %v2860
        %2862 = vdwg.mxu0
        %2863 = vmatpush.bf16.msra.mxu0 0
        %2864 = vmatpush.bf16.msra.mxu0 0
        %2865 = vmatpush.bf16.msra.mxu0 0
        %2866 = vmatpush.bf16.msra.mxu0 0
        %2867 = vmatpush.bf16.msra.mxu0 0
        %2868 = vmatpush.bf16.msra.mxu0 0
        %2869 = vmatpush.bf16.msra.mxu0 %v2796
        %2870 = vmatpush.bf16.msra.mxu0 %v2794
        %2871 = vmatmul.bf16.gmra.mxu0 %v2827
        %v2872 = vpop.f32.mrf.mxu0
        %v2873 = vpop.f32.mrf.mxu0
        %2874 = vmatmul.bf16.gmra.mxu0 %v2830
        %v2875 = vpop.f32.mrf.mxu0
        %v2876 = vpop.f32.mrf.mxu0
        %2877 = vmatmul.bf16.gmra.mxu0 %v2833
        %v2878 = vpop.f32.mrf.mxu0
        %v2879 = vadd.f32 0.0, %v2878
        %v2880 = vpop.f32.mrf.mxu0
        %v2881 = vadd.f32 0.0, %v2880
        %2882 = vmatmul.bf16.gmra.mxu0 %v2836
        %v2883 = vpop.f32.mrf.mxu0
        %v2884 = vadd.f32 0.0, %v2883
        %v2885 = vpop.f32.mrf.mxu0
        %v2886 = vadd.f32 0.0, %v2885
        %2887 = vdwg.mxu0
        %v2888 = vadd.f32 %v2333, %v2854
        %v2889 = vadd.f32 %v2334, %v2879
        %v2890 = vadd.f32 %v2335, %v2856
        %v2891 = vadd.f32 %v2336, %v2881
        %v2892 = vadd.f32 %v2337, %v2859
        %v2893 = vadd.f32 %v2338, %v2884
        %v2894 = vadd.f32 %v2339, %v2861
        %v2895 = vadd.f32 %v2340, %v2886
        %v2896 = vld [vmem:[%s7] sm:$0xff]
        %v2897 = vld [vmem:[%s7 + $0x8] sm:$0xff]
        %v2898 = vld [vmem:[%s7 + $0x10] sm:$0xff]
        %v2899 = vld [vmem:[%s7 + $0x18] sm:$0xff]
        %2901 = vset.pattern.permute.xlu0 0
        %2902 = vperm.xlu0 %2901, %v2896
        %v2903 = vpop.permute.xlu0 %2902
        %2906 = vset.pattern.permute.xlu0 0
        %2907 = vperm.xlu0 %2906, %v2897
        %v2908 = vpop.permute.xlu0 %2907
        %2911 = vset.pattern.permute.xlu0 0
        %2912 = vperm.xlu0 %2911, %v2898
        %v2913 = vpop.permute.xlu0 %2912
        %2916 = vset.pattern.permute.xlu0 0
        %2917 = vperm.xlu0 %2916, %v2899
        %v2918 = vpop.permute.xlu0 %2917
        %v2920 = vadd.f32 %v2888, %v2903
        %v2921 = vadd.f32 %v2889, %v2903
        %v2922 = vadd.f32 %v2890, %v2908
        %v2923 = vadd.f32 %v2891, %v2908
        %v2924 = vadd.f32 %v2892, %v2913
        %v2925 = vadd.f32 %v2893, %v2913
        %v2926 = vadd.f32 %v2894, %v2918
        %v2927 = vadd.f32 %v2895, %v2918
        %v2928 = vmul.f32 %v2920, 0.5
        %v2929 = vmul.f32 %v2921, 0.5
        %v2930 = vmul.f32 %v2922, 0.5
        %v2931 = vmul.f32 %v2923, 0.5
        %v2932 = vmul.f32 %v2924, 0.5
        %v2933 = vmul.f32 %v2925, 0.5
        %v2934 = vmul.f32 %v2926, 0.5
        %v2935 = vmul.f32 %v2927, 0.5
        %v2936 = vpack.c.bf16 %v2930, %v2928
        %v2937 = vpack.c.bf16 %v2931, %v2929
        %v2938 = vpack.c.bf16 %v2934, %v2932
        %v2939 = vpack.c.bf16 %v2935, %v2933
        %v2940 = vld [vmem:[%s8] sm:$0xf]
        %v2941 = vld [vmem:[%s8 + $0x4] sm:$0xf]
        %v2942 = vld [vmem:[%s8 + $0x8] sm:$0xf]
        %v2943 = vld [vmem:[%s8 + $0xc] sm:$0xf]
        %v2944 = vld [vmem:[%s9] sm:$0xff]
        %v2945 = vld [vmem:[%s9 + $0x8] sm:$0xff]
        %v2946 = vld [vmem:[%s9 + $0x10] sm:$0xff]
        %v2947 = vld [vmem:[%s9 + $0x18] sm:$0xff]
        %2949 = vset.pattern.permute.xlu0 0
        %2950 = vperm.xlu0 %2949, %v2944
        %v2951 = vpop.permute.xlu0 %2950
        %2954 = vset.pattern.permute.xlu0 0
        %2955 = vperm.xlu0 %2954, %v2945
        %v2956 = vpop.permute.xlu0 %2955
        %2959 = vset.pattern.permute.xlu0 0
        %2960 = vperm.xlu0 %2959, %v2946
        %v2961 = vpop.permute.xlu0 %2960
        %2964 = vset.pattern.permute.xlu0 0
        %2965 = vperm.xlu0 %2964, %v2947
        %v2966 = vpop.permute.xlu0 %2965
        %v2972 = vunpack.c.l.b16 %v2940
        %v2973 = vunpack.c.l.b16 %v2941
        %v2974 = vunpack.c.l.b16 %v2942
        %v2975 = vunpack.c.l.b16 %v2943
        %v2976 = vpack.c.b16 %v2973, %v2972
        %v2977 = vpack.c.b16 %v2975, %v2974
        %v2979 = vsel %vm988, %v2976, 0
        %v2982 = vsel %vm988, %v2977, 0
        %2984 = vmatpush.bf16.msra.mxu0 0
        %2985 = vmatpush.bf16.msra.mxu0 0
        %2986 = vmatpush.bf16.msra.mxu0 0
        %2987 = vmatpush.bf16.msra.mxu0 0
        %2988 = vmatpush.bf16.msra.mxu0 0
        %2989 = vmatpush.bf16.msra.mxu0 0
        %2990 = vmatpush.bf16.msra.mxu0 %v2938
        %2991 = vmatpush.bf16.msra.mxu0 %v2936
        %2992 = vmatmul.bf16.gmra.mxu0 %v2979
        %v2993 = vpop.f32.mrf.mxu0
        %v2994 = vadd.f32 %v2951, %v2993
        %v2995 = vpop.f32.mrf.mxu0
        %v2996 = vadd.f32 %v2956, %v2995
        %2997 = vmatmul.bf16.gmra.mxu0 %v2982
        %v2998 = vpop.f32.mrf.mxu0
        %v2999 = vadd.f32 %v2961, %v2998
        %v3000 = vpop.f32.mrf.mxu0
        %v3001 = vadd.f32 %v2966, %v3000
        %3002 = vdwg.mxu0
        %3003 = vmatpush.bf16.msra.mxu0 0
        %3004 = vmatpush.bf16.msra.mxu0 0
        %3005 = vmatpush.bf16.msra.mxu0 0
        %3006 = vmatpush.bf16.msra.mxu0 0
        %3007 = vmatpush.bf16.msra.mxu0 0
        %3008 = vmatpush.bf16.msra.mxu0 0
        %3009 = vmatpush.bf16.msra.mxu0 %v2939
        %3010 = vmatpush.bf16.msra.mxu0 %v2937
        %3011 = vmatmul.bf16.gmra.mxu0 %v2979
        %v3012 = vpop.f32.mrf.mxu0
        %v3013 = vadd.f32 %v2951, %v3012
        %v3014 = vpop.f32.mrf.mxu0
        %v3015 = vadd.f32 %v2956, %v3014
        %3016 = vmatmul.bf16.gmra.mxu0 %v2982
        %v3017 = vpop.f32.mrf.mxu0
        %v3018 = vadd.f32 %v2961, %v3017
        %v3019 = vpop.f32.mrf.mxu0
        %v3020 = vadd.f32 %v2966, %v3019
        %3021 = vdwg.mxu0
        %v3022 = vmax.f32 %v2994, 0.0
        %v3023 = vmax.f32 %v3013, 0.0
        %v3024 = vmax.f32 %v2996, 0.0
        %v3025 = vmax.f32 %v3015, 0.0
        %v3026 = vmax.f32 %v2999, 0.0
        %v3027 = vmax.f32 %v3018, 0.0
        %v3028 = vmax.f32 %v3001, 0.0
        %v3029 = vmax.f32 %v3020, 0.0
        %v3030 = vld [vmem:[%s10] sm:$0xff]
        %v3031 = vld [vmem:[%s10 + $0x8] sm:$0xff]
        %v3032 = vld [vmem:[%s10 + $0x10] sm:$0xff]
        %v3033 = vld [vmem:[%s10 + $0x18] sm:$0xff]
        %3035 = vset.pattern.permute.xlu0 0
        %3036 = vperm.xlu0 %3035, %v3030
        %v3037 = vpop.permute.xlu0 %3036
        %3040 = vset.pattern.permute.xlu0 0
        %3041 = vperm.xlu0 %3040, %v3031
        %v3042 = vpop.permute.xlu0 %3041
        %3045 = vset.pattern.permute.xlu0 0
        %3046 = vperm.xlu0 %3045, %v3032
        %v3047 = vpop.permute.xlu0 %3046
        %3050 = vset.pattern.permute.xlu0 0
        %3051 = vperm.xlu0 %3050, %v3033
        %v3052 = vpop.permute.xlu0 %3051
        %v3054 = vmul.f32 %v3022, %v3037
        %v3055 = vmul.f32 %v3023, %v3037
        %v3056 = vmul.f32 %v3024, %v3042
        %v3057 = vmul.f32 %v3025, %v3042
        %v3058 = vmul.f32 %v3026, %v3047
        %v3059 = vmul.f32 %v3027, %v3047
        %v3060 = vmul.f32 %v3028, %v3052
        %v3061 = vmul.f32 %v3029, %v3052
        %v3062 = vadd.f32 %v3054, %v3056
        %v3063 = vadd.f32 %v3062, %v3058
        %v3064 = vadd.f32 %v3063, %v3060
        %v3065 = vrot.slane %v3064, 4
        %v3066 = vadd.f32 %v3064, %v3065
        %v3067 = vrot.slane %v3066, 2
        %v3068 = vadd.f32 %v3066, %v3067
        %v3069 = vrot.slane %v3068, 1
        %v3070 = vadd.f32 %v3068, %v3069
        %v3071 = vadd.f32 %v3055, %v3057
        %v3072 = vadd.f32 %v3071, %v3059
        %v3073 = vadd.f32 %v3072, %v3061
        %v3074 = vrot.slane %v3073, 4
        %v3075 = vadd.f32 %v3073, %v3074
        %v3076 = vrot.slane %v3075, 2
        %v3077 = vadd.f32 %v3075, %v3076
        %v3078 = vrot.slane %v3077, 1
        %v3079 = vadd.f32 %v3077, %v3078
        %v3080 = vld [vmem:[#allocation2] sm:$0x1]
        %3082 = vset.pattern.permute.xlu0 0
        %3083 = vperm.xlu0 %3082, %v3080
        %v3084 = vpop.permute.xlu0 %3083
        %v3086 = vperm.slane %v3084, 0
        %v3087 = vadd.f32 %v3070, %v3086
        %v3088 = vadd.f32 %v3079, %v3086
        %v3091 = vrot.slane %v3088, 7
        %vm3092 = vcmask 1040384
        %v3093 = vsel %vm3092, %v3087, %v3091
        %v3095 = vlaneseq
        %vm3096 = vcmp.ge.s32.totalorder %v3095, 0
        %vm3097 = vcmp.lt.s32.totalorder %v3095, 256
        %vm3098 = vmand %vm3096, %vm3097
        %3099 = vst.msk [vmem:[%s406] sm:$0x3] %vm3098, %v3093
        %s3100 = sand.u32 %s293, 1
        %s3101 = scalar_lea.sflag [#allocation4], %s3100
        %s3102 = sand.u32 %s293, 1
        %s3103 = smul.addr %s3102, 2
        %s3104 = scalar_lea.vmem [#allocation3], %s3103
        // Predicated region
        $region69: #{tpu_custom_call.1} parent=67 // pred_check
          %p3105 = pneg %p303
        $region70: #{tpu_custom_call.1} parent=67 // pred_check_branch
          %3107 = sbr.rel (%p3105) target = $region72
        $region71: #{tpu_custom_call.1} parent=67 // pred_region
          %3109 = vsyncadd %s3101, 0
          %s3110 = smul.addr %s28, 2
          %s3111 = scalar_lea.hbm %s12, %s3110
          %s3113 = sshll.u32 %s3104, 4
          %s3114 = int_to_ptr.vmem [resolvable:$true] %s3113
          %s3115 = sshll.u32 %s3111, 4
          %s3116 = int_to_ptr.hbm [resolvable:$true] %s3115
          %3118 = dma.vmem_to_hbm [thread:$0]  %s3114, 32, %s3116, %s3101
        $region72: #{tpu_custom_call.1} parent=67 // pred_fallthru
          _
      $region68: #{tpu_custom_call.1} parent=5 // pred_fallthru
        _
      %p3119 = scmp.le.s32.totalorder 2, %s23
      // Predicated region
      $region73: #{tpu_custom_call.1} parent=5 // pred_check
        %p3120 = pneg %p3119
      $region74: #{tpu_custom_call.1} parent=5 // pred_check_branch
        %3122 = sbr.rel (%p3120) target = $region76
      $region75: #{tpu_custom_call.1} parent=5 // pred_region
        %s3123 = ssub.s32 %s23, 2
        // Predicated region
        $region77: #{tpu_custom_call.1} parent=75 // pred_check
          %p3124 = pneg %p309
        $region78: #{tpu_custom_call.1} parent=75 // pred_check_branch
          %3126 = sbr.rel (%p3124) target = $region80
        $region79: #{tpu_custom_call.1} parent=75 // pred_region
          %s3127 = sand.u32 %s294, 1
          %s3128 = scalar_lea.sflag [#allocation4], %s3127
          %s3129 = sand.u32 %s294, 1
          %s3130 = smul.addr %s3129, 2
          %s3131 = scalar_lea.vmem [#allocation3], %s3130
          %3133 = dma.done %s3128, 32
        $region80: #{tpu_custom_call.1} parent=75 // pred_fallthru
          _
      $region76: #{tpu_custom_call.1} parent=5 // pred_fallthru
        _
    $region6: #{tpu_custom_call.1} parent=1 // loop_footer
      %s27 = sadd.s32 1, %s23
    $region7: #{tpu_custom_call.1} parent=1 // loop_footer_branch
      %22 = sbr.rel target = $region3
    $region8: #{tpu_custom_call.1} parent=1 // loop_exit
      _
    %3134 = vsyncpa [#allocation4], 1
    %s3135 = scalar_lea.sflag [#allocation4], 1
    %3136 = vsyncpa %s3135, 1

// kernel: tpu_custom_call.1
$region0: #{tpu_custom_call.1}
  #allocation0 [shape = 'u32[]', space=smem, size = 0x4, offset = 0x4, fixed_abs, tag = 'smem constant byte address 0x4 - core index']
  #allocation1 [shape = 'u32[72,128]{1,0:T(1,128)}', space=vmem, size = 0x9000, scoped, tag = 'internal scratch']
  #allocation2 [shape = 'f32[1,1]{1,0:T(1,128)S(1)}', space=vmem, size = 0x200, scoped, tag = 'scoped memory for tpu_custom_call.1']
  %s0 = inlined_call_operand.vmem [shape: f32[2,1,256], index: 0, kind: input, shape index: {}]
  %s1 = inlined_call_operand.vmem [shape: f32[32,1], index: 1, kind: input, shape index: {}]
  %s2 = inlined_call_operand.vmem [shape: f32[32,1], index: 2, kind: input, shape index: {}]
  %s3 = inlined_call_operand.vmem [shape: bf16[4,64,96], index: 3, kind: input, shape index: {}]
  %s4 = inlined_call_operand.vmem [shape: f32[4,64,1], index: 4, kind: input, shape index: {}]
  %s5 = inlined_call_operand.vmem [shape: bf16[4,64,32], index: 5, kind: input, shape index: {}]
  %s6 = inlined_call_operand.vmem [shape: f32[4,32,1], index: 6, kind: input, shape index: {}]
  %s7 = inlined_call_operand.vmem [shape: f32[32,1], index: 7, kind: input, shape index: {}]
  %s8 = inlined_call_operand.vmem [shape: bf16[32,32], index: 8, kind: input, shape index: {}]
  %s9 = inlined_call_operand.vmem [shape: f32[32,1], index: 9, kind: input, shape index: {}]
  %s10 = inlined_call_operand.vmem [shape: f32[32,1], index: 10, kind: input, shape index: {}]
  %s11 = inlined_call_operand.<no memory space> [shape: f32[1,1], index: 11, kind: input, shape index: {}]
  %s12 = inlined_call_operand.hbm [shape: f32[2,1,256], index: 12, kind: output, shape index: {}]
  %s13 = sld [smem:[#allocation0]]
  $region81: #{tpu_custom_call.1} parent=0
    _
  %s15 = ssub.s32 1, %s13
  %s16 = scalar_select 0, %s15, %s13
  %v17 = vstv %s11
  %18 = vst [vmem:[#allocation2] sm:$0x1] %v17
  $region1: #{tpu_custom_call.1} parent=0
    #allocation3 [shape = 'u8[2048]{0}', space=vmem, size = 0x800, scoped, tag = 'output window, operand 0']
    #allocation4 [shape = 's32[2]{0}', space=sflag, size = 0x8, scoped, tag = 'scoped memory for tpu_custom_call.1']
    %19 = vsyncpa [#allocation4], 0
    %s20 = scalar_lea.sflag [#allocation4], 1
    %21 = vsyncpa %s20, 0
    loop: start=0, step=1, limit=4
    $region2: #{tpu_custom_call.1} parent=1 // loop_pre_header
      _
    $region3: #{tpu_custom_call.1} parent=1 // loop_header
      %s23 = sphi 0, %s27
      %p24 = scmp.ge.s32.totalorder %s23, 4
      %s33 = sphi 0, %s35
      %s36 = sphi 0, %s33
      %s37 = sphi 0, %s36
      %s53 = sphi 0, %s37
      %s57 = sphi 0, %s57
      %s59 = sphi 0, %s57
      %s60 = sphi 0, %s59
      %s74 = sphi 0, %s60
      %s78 = sphi 0, %s78
      %s80 = sphi 0, %s78
      %s81 = sphi 0, %s80
      %s95 = sphi 0, %s81
      %s99 = sphi 0, %s99
      %s101 = sphi 0, %s99
      %s102 = sphi 0, %s101
      %s116 = sphi 0, %s102
      %s120 = sphi 0, %s120
      %s122 = sphi 0, %s120
      %s123 = sphi 0, %s122
      %s137 = sphi 0, %s123
      %s141 = sphi 0, %s141
      %s143 = sphi 0, %s141
      %s144 = sphi 0, %s143
      %s158 = sphi 0, %s144
      %s162 = sphi 0, %s162
      %s164 = sphi 0, %s162
      %s165 = sphi 0, %s164
      %s179 = sphi 0, %s165
      %s183 = sphi 0, %s183
      %s185 = sphi 0, %s183
      %s186 = sphi 0, %s185
      %s200 = sphi 0, %s186
      %s204 = sphi 0, %s204
      %s206 = sphi 0, %s204
      %s207 = sphi 0, %s206
      %s221 = sphi 0, %s207
      %s225 = sphi 0, %s225
      %s227 = sphi 0, %s225
      %s228 = sphi 0, %s227
      %s242 = sphi 0, %s228
      %s246 = sphi 0, %s246
      %s248 = sphi 0, %s246
      %s249 = sphi 0, %s248
      %s263 = sphi 0, %s249
      %s267 = sphi 0, %s267
      %s269 = sphi 0, %s267
      %s270 = sphi 0, %s269
      %s284 = sphi 0, %s270
      %s290 = sphi 0, %s292
      %s293 = sphi 0, %s290
      %s294 = sphi 0, %s293
      %s310 = sphi 0, %s294
    $region4: #{tpu_custom_call.1} parent=1 // loop_header_branch
      %26 = sbr.rel (%p24) target = $region8
    $region5: #{tpu_custom_call.1} parent=1 // loop_body
      %s28 = ssub.s32 %s23, 1
      %s29 = ssub.s32 %s23, 2
      %s30 = sadd.s32 %s23, 1
      %s31 = ssub.s32 %s23, %s30
      %p32 = scmp.eq.s32.totalorder %s31, 0
      %s34 = sadd.s32 %s33, 1
      %s35 = scalar_select %p32, %s33, %s34
      %p38 = pneg %p32
      %p39 = scmp.eq.s32.totalorder %s23, 1
      %p40 = por %p38, %p39
      %p41 = scmp.ne.s32.totalorder %s33, %s36
      %p42 = scmp.eq.s32.totalorder %s23, 0
      %p43 = por %p41, %p42
      %p44 = scmp.ne.s32.totalorder %s33, %s36
      %p45 = scmp.eq.s32.totalorder %s28, 1
      %p46 = por %p44, %p45
      %p47 = scmp.ne.s32.totalorder %s36, %s37
      %p48 = scmp.eq.s32.totalorder %s28, 0
      %p49 = por %p47, %p48
      %p50 = scmp.ne.s32.totalorder %s36, %s37
      %p51 = scmp.eq.s32.totalorder %s29, 1
      %p52 = por %p50, %p51
      %p54 = scmp.ne.s32.totalorder %s37, %s53
      %p55 = scmp.eq.s32.totalorder %s29, 0
      %p56 = por %p54, %p55
      %s58 = sadd.s32 %s57, 1
      %p61 = scmp.eq.s32.totalorder %s23, 1
      %p62 = scmp.ne.s32.totalorder %s57, %s59
      %p63 = scmp.eq.s32.totalorder %s23, 0
      %p64 = por %p62, %p63
      %p65 = scmp.ne.s32.totalorder %s57, %s59
      %p66 = scmp.eq.s32.totalorder %s28, 1
      %p67 = por %p65, %p66
      %p68 = scmp.ne.s32.totalorder %s59, %s60
      %p69 = scmp.eq.s32.totalorder %s28, 0
      %p70 = por %p68, %p69
      %p71 = scmp.ne.s32.totalorder %s59, %s60
      %p72 = scmp.eq.s32.totalorder %s29, 1
      %p73 = por %p71, %p72
      %p75 = scmp.ne.s32.totalorder %s60, %s74
      %p76 = scmp.eq.s32.totalorder %s29, 0
      %p77 = por %p75, %p76
      %s79 = sadd.s32 %s78, 1
      %p82 = scmp.eq.s32.totalorder %s23, 1
      %p83 = scmp.ne.s32.totalorder %s78, %s80
      %p84 = scmp.eq.s32.totalorder %s23, 0
      %p85 = por %p83, %p84
      %p86 = scmp.ne.s32.totalorder %s78, %s80
      %p87 = scmp.eq.s32.totalorder %s28, 1
      %p88 = por %p86, %p87
      %p89 = scmp.ne.s32.totalorder %s80, %s81
      %p90 = scmp.eq.s32.totalorder %s28, 0
      %p91 = por %p89, %p90
      %p92 = scmp.ne.s32.totalorder %s80, %s81
      %p93 = scmp.eq.s32.totalorder %s29, 1
      %p94 = por %p92, %p93
      %p96 = scmp.ne.s32.totalorder %s81, %s95
      %p97 = scmp.eq.s32.totalorder %s29, 0
      %p98 = por %p96, %p97
      %s100 = sadd.s32 %s99, 1
      %p103 = scmp.eq.s32.totalorder %s23, 1
      %p104 = scmp.ne.s32.totalorder %s99, %s101
      %p105 = scmp.eq.s32.totalorder %s23, 0
      %p106 = por %p104, %p105
      %p107 = scmp.ne.s32.totalorder %s99, %s101
      %p108 = scmp.eq.s32.totalorder %s28, 1
      %p109 = por %p107, %p108
      %p110 = scmp.ne.s32.totalorder %s101, %s102
      %p111 = scmp.eq.s32.totalorder %s28, 0
      %p112 = por %p110, %p111
      %p113 = scmp.ne.s32.totalorder %s101, %s102
      %p114 = scmp.eq.s32.totalorder %s29, 1
      %p115 = por %p113, %p114
      %p117 = scmp.ne.s32.totalorder %s102, %s116
      %p118 = scmp.eq.s32.totalorder %s29, 0
      %p119 = por %p117, %p118
      %s121 = sadd.s32 %s120, 1
      %p124 = scmp.eq.s32.totalorder %s23, 1
      %p125 = scmp.ne.s32.totalorder %s120, %s122
      %p126 = scmp.eq.s32.totalorder %s23, 0
      %p127 = por %p125, %p126
      %p128 = scmp.ne.s32.totalorder %s120, %s122
      %p129 = scmp.eq.s32.totalorder %s28, 1
      %p130 = por %p128, %p129
      %p131 = scmp.ne.s32.totalorder %s122, %s123
      %p132 = scmp.eq.s32.totalorder %s28, 0
      %p133 = por %p131, %p132
      %p134 = scmp.ne.s32.totalorder %s122, %s123
      %p135 = scmp.eq.s32.totalorder %s29, 1
      %p136 = por %p134, %p135
      %p138 = scmp.ne.s32.totalorder %s123, %s137
      %p139 = scmp.eq.s32.totalorder %s29, 0
      %p140 = por %p138, %p139
      %s142 = sadd.s32 %s141, 1
      %p145 = scmp.eq.s32.totalorder %s23, 1
      %p146 = scmp.ne.s32.totalorder %s141, %s143
      %p147 = scmp.eq.s32.totalorder %s23, 0
      %p148 = por %p146, %p147
      %p149 = scmp.ne.s32.totalorder %s141, %s143
      %p150 = scmp.eq.s32.totalorder %s28, 1
      %p151 = por %p149, %p150
      %p152 = scmp.ne.s32.totalorder %s143, %s144
      %p153 = scmp.eq.s32.totalorder %s28, 0
      %p154 = por %p152, %p153
      %p155 = scmp.ne.s32.totalorder %s143, %s144
      %p156 = scmp.eq.s32.totalorder %s29, 1
      %p157 = por %p155, %p156
      %p159 = scmp.ne.s32.totalorder %s144, %s158
      %p160 = scmp.eq.s32.totalorder %s29, 0
      %p161 = por %p159, %p160
      %s163 = sadd.s32 %s162, 1
      %p166 = scmp.eq.s32.totalorder %s23, 1
      %p167 = scmp.ne.s32.totalorder %s162, %s164
      %p168 = scmp.eq.s32.totalorder %s23, 0
      %p169 = por %p167, %p168
      %p170 = scmp.ne.s32.totalorder %s162, %s164
      %p171 = scmp.eq.s32.totalorder %s28, 1
      %p172 = por %p170, %p171
      %p173 = scmp.ne.s32.totalorder %s164, %s165
      %p174 = scmp.eq.s32.totalorder %s28, 0
      %p175 = por %p173, %p174
      %p176 = scmp.ne.s32.totalorder %s164, %s165
      %p177 = scmp.eq.s32.totalorder %s29, 1
      %p178 = por %p176, %p177
      %p180 = scmp.ne.s32.totalorder %s165, %s179
      %p181 = scmp.eq.s32.totalorder %s29, 0
      %p182 = por %p180, %p181
      %s184 = sadd.s32 %s183, 1
      %p187 = scmp.eq.s32.totalorder %s23, 1
      %p188 = scmp.ne.s32.totalorder %s183, %s185
      %p189 = scmp.eq.s32.totalorder %s23, 0
      %p190 = por %p188, %p189
      %p191 = scmp.ne.s32.totalorder %s183, %s185
      %p192 = scmp.eq.s32.totalorder %s28, 1
      %p193 = por %p191, %p192
      %p194 = scmp.ne.s32.totalorder %s185, %s186
      %p195 = scmp.eq.s32.totalorder %s28, 0
      %p196 = por %p194, %p195
      %p197 = scmp.ne.s32.totalorder %s185, %s186
      %p198 = scmp.eq.s32.totalorder %s29, 1
      %p199 = por %p197, %p198
      %p201 = scmp.ne.s32.totalorder %s186, %s200
      %p202 = scmp.eq.s32.totalorder %s29, 0
      %p203 = por %p201, %p202
      %s205 = sadd.s32 %s204, 1
      %p208 = scmp.eq.s32.totalorder %s23, 1
      %p209 = scmp.ne.s32.totalorder %s204, %s206
      %p210 = scmp.eq.s32.totalorder %s23, 0
      %p211 = por %p209, %p210
      %p212 = scmp.ne.s32.totalorder %s204, %s206
      %p213 = scmp.eq.s32.totalorder %s28, 1
      %p214 = por %p212, %p213
      %p215 = scmp.ne.s32.totalorder %s206, %s207
      %p216 = scmp.eq.s32.totalorder %s28, 0
      %p217 = por %p215, %p216
      %p218 = scmp.ne.s32.totalorder %s206, %s207
      %p219 = scmp.eq.s32.totalorder %s29, 1
      %p220 = por %p218, %p219
      %p222 = scmp.ne.s32.totalorder %s207, %s221
      %p223 = scmp.eq.s32.totalorder %s29, 0
      %p224 = por %p222, %p223
      %s226 = sadd.s32 %s225, 1
      %p229 = scmp.eq.s32.totalorder %s23, 1
      %p230 = scmp.ne.s32.totalorder %s225, %s227
      %p231 = scmp.eq.s32.totalorder %s23, 0
      %p232 = por %p230, %p231
      %p233 = scmp.ne.s32.totalorder %s225, %s227
      %p234 = scmp.eq.s32.totalorder %s28, 1
      %p235 = por %p233, %p234
      %p236 = scmp.ne.s32.totalorder %s227, %s228
      %p237 = scmp.eq.s32.totalorder %s28, 0
      %p238 = por %p236, %p237
      %p239 = scmp.ne.s32.totalorder %s227, %s228
      %p240 = scmp.eq.s32.totalorder %s29, 1
      %p241 = por %p239, %p240
      %p243 = scmp.ne.s32.totalorder %s228, %s242
      %p244 = scmp.eq.s32.totalorder %s29, 0
      %p245 = por %p243, %p244
      %s247 = sadd.s32 %s246, 1
      %p250 = scmp.eq.s32.totalorder %s23, 1
      %p251 = scmp.ne.s32.totalorder %s246, %s248
      %p252 = scmp.eq.s32.totalorder %s23, 0
      %p253 = por %p251, %p252
      %p254 = scmp.ne.s32.totalorder %s246, %s248
      %p255 = scmp.eq.s32.totalorder %s28, 1
      %p256 = por %p254, %p255
      %p257 = scmp.ne.s32.totalorder %s248, %s249
      %p258 = scmp.eq.s32.totalorder %s28, 0
      %p259 = por %p257, %p258
      %p260 = scmp.ne.s32.totalorder %s248, %s249
      %p261 = scmp.eq.s32.totalorder %s29, 1
      %p262 = por %p260, %p261
      %p264 = scmp.ne.s32.totalorder %s249, %s263
      %p265 = scmp.eq.s32.totalorder %s29, 0
      %p266 = por %p264, %p265
      %s268 = sadd.s32 %s267, 1
      %p271 = scmp.eq.s32.totalorder %s23, 1
      %p272 = scmp.ne.s32.totalorder %s267, %s269
      %p273 = scmp.eq.s32.totalorder %s23, 0
      %p274 = por %p272, %p273
      %p275 = scmp.ne.s32.totalorder %s267, %s269
      %p276 = scmp.eq.s32.totalorder %s28, 1
      %p277 = por %p275, %p276
      %p278 = scmp.ne.s32.totalorder %s269, %s270
      %p279 = scmp.eq.s32.totalorder %s28, 0
      %p280 = por %p278, %p279
      %p281 = scmp.ne.s32.totalorder %s269, %s270
      %p282 = scmp.eq.s32.totalorder %s29, 1
      %p283 = por %p281, %p282
      %p285 = scmp.ne.s32.totalorder %s270, %s284
      %p286 = scmp.eq.s32.totalorder %s29, 0
      %p287 = por %p285, %p286
      %s288 = ssub.s32 %s23, %s30
      %p289 = scmp.eq.s32.totalorder %s288, 0
      %s291 = sadd.s32 %s290, 1
      %s292 = scalar_select %p289, %s290, %s291
      %p295 = pneg %p289
      %p296 = scmp.eq.s32.totalorder %s23, 1
      %p297 = por %p295, %p296
      %p298 = scmp.ne.s32.totalorder %s290, %s293
      %p299 = scmp.eq.s32.totalorder %s23, 0
      %p300 = por %p298, %p299
      %p301 = scmp.ne.s32.totalorder %s290, %s293
      %p302 = scmp.eq.s32.totalorder %s28, 1
      %p303 = por %p301, %p302
      %p304 = scmp.ne.s32.totalorder %s293, %s294
      %p305 = scmp.eq.s32.totalorder %s28, 0
      %p306 = por %p304, %p305
      %p307 = scmp.ne.s32.totalorder %s293, %s294
      %p308 = scmp.eq.s32.totalorder %s29, 1
      %p309 = por %p307, %p308
      %p311 = scmp.ne.s32.totalorder %s294, %s310
      %p312 = scmp.eq.s32.totalorder %s29, 0
      %p313 = por %p311, %p312
      %p314 = scmp.le.s32.totalorder 1, %s23
      %p315 = scmp.lt.s32.totalorder %s23, 3
      %p316 = pnand %p314, %p315
      %p317 = pneg %p316
      // Predicated region
      $region9: #{tpu_custom_call.1} parent=5 // pred_check
        _
      $region10: #{tpu_custom_call.1} parent=5 // pred_check_branch
        %319 = sbr.rel (%p316) target = $region12
      $region11: #{tpu_custom_call.1} parent=5 // pred_region
        %s320 = ssub.s32 %s23, 1
        // Predicated region
        $region13: #{tpu_custom_call.1} parent=11 // pred_check
          %p321 = pneg %p70
        $region14: #{tpu_custom_call.1} parent=11 // pred_check_branch
          %323 = sbr.rel (%p321) target = $region16
        $region15: #{tpu_custom_call.1} parent=11 // pred_region
          _
        $region16: #{tpu_custom_call.1} parent=11 // pred_fallthru
          _
        // Predicated region
        $region17: #{tpu_custom_call.1} parent=11 // pred_check
          %p324 = pneg %p91
        $region18: #{tpu_custom_call.1} parent=11 // pred_check_branch
          %326 = sbr.rel (%p324) target = $region20
        $region19: #{tpu_custom_call.1} parent=11 // pred_region
          _
        $region20: #{tpu_custom_call.1} parent=11 // pred_fallthru
          _
        // Predicated region
        $region21: #{tpu_custom_call.1} parent=11 // pred_check
          %p327 = pneg %p112
        $region22: #{tpu_custom_call.1} parent=11 // pred_check_branch
          %329 = sbr.rel (%p327) target = $region24
        $region23: #{tpu_custom_call.1} parent=11 // pred_region
          _
        $region24: #{tpu_custom_call.1} parent=11 // pred_fallthru
          _
        // Predicated region
        $region25: #{tpu_custom_call.1} parent=11 // pred_check
          %p330 = pneg %p133
        $region26: #{tpu_custom_call.1} parent=11 // pred_check_branch
          %332 = sbr.rel (%p330) target = $region28
        $region27: #{tpu_custom_call.1} parent=11 // pred_region
          _
        $region28: #{tpu_custom_call.1} parent=11 // pred_fallthru
          _
        // Predicated region
        $region29: #{tpu_custom_call.1} parent=11 // pred_check
          %p333 = pneg %p154
        $region30: #{tpu_custom_call.1} parent=11 // pred_check_branch
          %335 = sbr.rel (%p333) target = $region32
        $region31: #{tpu_custom_call.1} parent=11 // pred_region
          _
        $region32: #{tpu_custom_call.1} parent=11 // pred_fallthru
          _
        // Predicated region
        $region33: #{tpu_custom_call.1} parent=11 // pred_check
          %p336 = pneg %p175
        $region34: #{tpu_custom_call.1} parent=11 // pred_check_branch
          %338 = sbr.rel (%p336) target = $region36
        $region35: #{tpu_custom_call.1} parent=11 // pred_region
          _
        $region36: #{tpu_custom_call.1} parent=11 // pred_fallthru
          _
        // Predicated region
        $region37: #{tpu_custom_call.1} parent=11 // pred_check
          %p339 = pneg %p196
        $region38: #{tpu_custom_call.1} parent=11 // pred_check_branch
          %341 = sbr.rel (%p339) target = $region40
        $region39: #{tpu_custom_call.1} parent=11 // pred_region
          _
        $region40: #{tpu_custom_call.1} parent=11 // pred_fallthru
          _
        // Predicated region
        $region41: #{tpu_custom_call.1} parent=11 // pred_check
          %p342 = pneg %p217
        $region42: #{tpu_custom_call.1} parent=11 // pred_check_branch
          %344 = sbr.rel (%p342) target = $region44
        $region43: #{tpu_custom_call.1} parent=11 // pred_region
          _
        $region44: #{tpu_custom_call.1} parent=11 // pred_fallthru
          _
        // Predicated region
        $region45: #{tpu_custom_call.1} parent=11 // pred_check
          %p345 = pneg %p238
        $region46: #{tpu_custom_call.1} parent=11 // pred_check_branch
          %347 = sbr.rel (%p345) target = $region48
        $region47: #{tpu_custom_call.1} parent=11 // pred_region
          _
        $region48: #{tpu_custom_call.1} parent=11 // pred_fallthru
          _
        // Predicated region
        $region49: #{tpu_custom_call.1} parent=11 // pred_check
          %p348 = pneg %p259
        $region50: #{tpu_custom_call.1} parent=11 // pred_check_branch
          %350 = sbr.rel (%p348) target = $region52
        $region51: #{tpu_custom_call.1} parent=11 // pred_region
          _
        $region52: #{tpu_custom_call.1} parent=11 // pred_fallthru
          _
        // Predicated region
        $region53: #{tpu_custom_call.1} parent=11 // pred_check
          %p351 = pneg %p280
        $region54: #{tpu_custom_call.1} parent=11 // pred_check_branch
          %353 = sbr.rel (%p351) target = $region56
        $region55: #{tpu_custom_call.1} parent=11 // pred_region
          _
        $region56: #{tpu_custom_call.1} parent=11 // pred_fallthru
          _
      $region12: #{tpu_custom_call.1} parent=5 // pred_fallthru
        _
      %p354 = scmp.lt.s32.totalorder %s23, 2
      // Predicated region
      $region57: #{tpu_custom_call.1} parent=5 // pred_check
        %p355 = pneg %p354
      $region58: #{tpu_custom_call.1} parent=5 // pred_check_branch
        %357 = sbr.rel (%p355) target = $region60
      $region59: #{tpu_custom_call.1} parent=5 // pred_region
        // Predicated region
        $region61: #{tpu_custom_call.1} parent=59 // pred_check
          %p358 = pneg %p43
        $region62: #{tpu_custom_call.1} parent=59 // pred_check_branch
          %360 = sbr.rel (%p358) target = $region64
        $region63: #{tpu_custom_call.1} parent=59 // pred_region
          %p361 = scmp.lt.s32.totalorder %s23, 1
          %s362 = scalar_select %p361, %s23, 1
          %s363 = smul.addr %s362, 2
          %s364 = scalar_lea.vmem %s0, %s363
        $region64: #{tpu_custom_call.1} parent=59 // pred_fallthru
          _
      $region60: #{tpu_custom_call.1} parent=5 // pred_fallthru
        _
      %p365 = scmp.le.s32.totalorder 1, %s23
      %p366 = scmp.lt.s32.totalorder %s23, 3
      %p367 = pnand %p365, %p366
      %p368 = pneg %p367
      // Predicated region
      $region65: #{tpu_custom_call.1} parent=5 // pred_check
        _
      $region66: #{tpu_custom_call.1} parent=5 // pred_check_branch
        %370 = sbr.rel (%p367) target = $region68
      $region67: #{tpu_custom_call.1} parent=5 // pred_region
        %s371 = ssub.s32 %s23, 1
        %p372 = scmp.lt.s32.totalorder %s28, 1
        %s373 = scalar_select %p372, %s28, 1
        %s374 = smul.addr %s373, 2
        %s375 = scalar_lea.vmem %s0, %s374
        %p376 = pneg %p49
        %p377 = pneg %p46
        %p378 = pneg %p70
        %p379 = pneg %p67
        %p380 = pneg %p91
        %p381 = pneg %p88
        %p382 = pneg %p112
        %p383 = pneg %p109
        %p384 = pneg %p133
        %p385 = pneg %p130
        %p386 = pneg %p154
        %p387 = pneg %p151
        %p388 = pneg %p175
        %p389 = pneg %p172
        %p390 = pneg %p196
        %p391 = pneg %p193
        %p392 = pneg %p217
        %p393 = pneg %p214
        %p394 = pneg %p238
        %p395 = pneg %p235
        %p396 = pneg %p259
        %p397 = pneg %p256
        %p398 = pneg %p280
        %p399 = pneg %p277
        %p400 = pneg %p306
        %p401 = pneg %p303
        %s402 = sand.u32 %s293, 1
        %s403 = scalar_lea.sflag [#allocation4], %s402
        %s404 = sand.u32 %s293, 1
        %s405 = smul.addr %s404, 2
        %s406 = scalar_lea.vmem [#allocation3], %s405
        %p407 = scmp.lt.s32.totalorder %s28, 1
        %s408 = scalar_select %p407, %s28, 1
        %s409 = smul.addr %s408, 2
        %s410 = scalar_lea.vmem %s0, %s409
        %v412 = vld [vmem:[%s410] sm:$0x3]
        %v413 = vld [vmem:[%s1] sm:$0xff]
        %v414 = vld [vmem:[%s1 + $0x8] sm:$0xff]
        %v415 = vld [vmem:[%s1 + $0x10] sm:$0xff]
        %v416 = vld [vmem:[%s1 + $0x18] sm:$0xff]
        %418 = vset.pattern.permute.xlu0 0
        %419 = vperm.xlu0 %418, %v413
        %v420 = vpop.permute.xlu0 %419
        %423 = vset.pattern.permute.xlu0 0
        %424 = vperm.xlu0 %423, %v414
        %v425 = vpop.permute.xlu0 %424
        %428 = vset.pattern.permute.xlu0 0
        %429 = vperm.xlu0 %428, %v415
        %v430 = vpop.permute.xlu0 %429
        %433 = vset.pattern.permute.xlu0 0
        %434 = vperm.xlu0 %433, %v416
        %v435 = vpop.permute.xlu0 %434
        %v438 = vperm.slane %v412, 0
        %v439 = vperm.slane %v412, 1
        %v442 = vmul.f32 %v420, %v438
        %v443 = vmul.f32 %v420, %v439
        %v444 = vmul.f32 %v425, %v438
        %v445 = vmul.f32 %v425, %v439
        %v446 = vmul.f32 %v430, %v438
        %v447 = vmul.f32 %v430, %v439
        %v448 = vmul.f32 %v435, %v438
        %v449 = vmul.f32 %v435, %v439
        %v450 = vld [vmem:[%s2] sm:$0xff]
        %v451 = vld [vmem:[%s2 + $0x8] sm:$0xff]
        %v452 = vld [vmem:[%s2 + $0x10] sm:$0xff]
        %v453 = vld [vmem:[%s2 + $0x18] sm:$0xff]
        %455 = vset.pattern.permute.xlu0 0
        %456 = vperm.xlu0 %455, %v450
        %v457 = vpop.permute.xlu0 %456
        %460 = vset.pattern.permute.xlu0 0
        %461 = vperm.xlu0 %460, %v451
        %v462 = vpop.permute.xlu0 %461
        %465 = vset.pattern.permute.xlu0 0
        %466 = vperm.xlu0 %465, %v452
        %v467 = vpop.permute.xlu0 %466
        %470 = vset.pattern.permute.xlu0 0
        %471 = vperm.xlu0 %470, %v453
        %v472 = vpop.permute.xlu0 %471
        %v474 = vadd.f32 %v442, %v457
        %v475 = vadd.f32 %v443, %v457
        %v476 = vadd.f32 %v444, %v462
        %v477 = vadd.f32 %v445, %v462
        %v478 = vadd.f32 %v446, %v467
        %v479 = vadd.f32 %v447, %v467
        %v480 = vadd.f32 %v448, %v472
        %v481 = vadd.f32 %v449, %v472
        %v482 = vmax.f32 %v474, 0.0
        %v483 = vmax.f32 %v475, 0.0
        %v484 = vmax.f32 %v476, 0.0
        %v485 = vmax.f32 %v477, 0.0
        %v486 = vmax.f32 %v478, 0.0
        %v487 = vmax.f32 %v479, 0.0
        %v488 = vmax.f32 %v480, 0.0
        %v489 = vmax.f32 %v481, 0.0
        %v490 = vlaneseq
        %v491 = vand.u32 %v490, 127
        %v492 = vadd.s32 %v491, 128
        %v493 = vand.u32 %v491, 127
        %v494 = vand.u32 %v492, 127
        %vm495 = vcmp.ge.s32.totalorder %v493, 1
        %vm496 = vcmp.ge.s32.totalorder %v494, 1
        %vm497 = vcmp.lt.s32.totalorder %v493, 127
        %vm498 = vcmp.lt.s32.totalorder %v494, 127
        %vm499 = vcmp.ge.s32.totalorder %v493, 2
        %vm500 = vcmp.ge.s32.totalorder %v494, 2
        %vm501 = vcmp.lt.s32.totalorder %v493, 126
        %vm502 = vcmp.lt.s32.totalorder %v494, 126
        %503 = vrot.lane.b32.xlu0 %v482, 1
        %v504 = vpop.permute.xlu0 %503
        %505 = vrot.lane.b32.xlu0 %v484, 1
        %v506 = vpop.permute.xlu0 %505
        %507 = vrot.lane.b32.xlu0 %v486, 1
        %v508 = vpop.permute.xlu0 %507
        %509 = vrot.lane.b32.xlu0 %v488, 1
        %v510 = vpop.permute.xlu0 %509
        %511 = vrot.lane.b32.xlu0 %v483, 1
        %v512 = vpop.permute.xlu0 %511
        %513 = vrot.lane.b32.xlu0 %v485, 1
        %v514 = vpop.permute.xlu0 %513
        %515 = vrot.lane.b32.xlu0 %v487, 1
        %v516 = vpop.permute.xlu0 %515
        %517 = vrot.lane.b32.xlu0 %v489, 1
        %v518 = vpop.permute.xlu0 %517
        %vm519 = vcmp.lt.s32.totalorder %v491, 1
        %v520 = vsel %vm519, %v504, %v512
        %v521 = vsel %vm519, %v506, %v514
        %v522 = vsel %vm519, %v508, %v516
        %v523 = vsel %vm519, %v510, %v518
        %v524 = vsel %vm519, %v512, %v504
        %v525 = vsel %vm519, %v514, %v506
        %v526 = vsel %vm519, %v516, %v508
        %v527 = vsel %vm519, %v518, %v510
        %v528 = vsel %vm495, %v524, 0.0
        %v529 = vsel %vm496, %v520, 0.0
        %v530 = vsel %vm495, %v525, 0.0
        %v531 = vsel %vm496, %v521, 0.0
        %v532 = vsel %vm495, %v526, 0.0
        %v533 = vsel %vm496, %v522, 0.0
        %v534 = vsel %vm495, %v527, 0.0
        %v535 = vsel %vm496, %v523, 0.0
        %v536 = vpack.c.bf16 %v529, %v528
        %v537 = vpack.c.bf16 %v531, %v530
        %v538 = vpack.c.bf16 %v533, %v532
        %v539 = vpack.c.bf16 %v535, %v534
        %540 = vrot.lane.b32.xlu0 %v482, 127
        %v541 = vpop.permute.xlu0 %540
        %542 = vrot.lane.b32.xlu0 %v484, 127
        %v543 = vpop.permute.xlu0 %542
        %544 = vrot.lane.b32.xlu0 %v486, 127
        %v545 = vpop.permute.xlu0 %544
        %546 = vrot.lane.b32.xlu0 %v488, 127
        %v547 = vpop.permute.xlu0 %546
        %548 = vrot.lane.b32.xlu0 %v483, 127
        %v549 = vpop.permute.xlu0 %548
        %550 = vrot.lane.b32.xlu0 %v485, 127
        %v551 = vpop.permute.xlu0 %550
        %552 = vrot.lane.b32.xlu0 %v487, 127
        %v553 = vpop.permute.xlu0 %552
        %554 = vrot.lane.b32.xlu0 %v489, 127
        %v555 = vpop.permute.xlu0 %554
        %vm556 = vcmp.lt.s32.totalorder %v491, 127
        %v557 = vsel %vm556, %v541, %v549
        %v558 = vsel %vm556, %v543, %v551
        %v559 = vsel %vm556, %v545, %v553
        %v560 = vsel %vm556, %v547, %v555
        %v561 = vsel %vm556, %v549, %v541
        %v562 = vsel %vm556, %v551, %v543
        %v563 = vsel %vm556, %v553, %v545
        %v564 = vsel %vm556, %v555, %v547
        %v565 = vsel %vm497, %v557, 0.0
        %v566 = vsel %vm498, %v561, 0.0
        %v567 = vsel %vm497, %v558, 0.0
        %v568 = vsel %vm498, %v562, 0.0
        %v569 = vsel %vm497, %v559, 0.0
        %v570 = vsel %vm498, %v563, 0.0
        %v571 = vsel %vm497, %v560, 0.0
        %v572 = vsel %vm498, %v564, 0.0
        %v573 = vpack.c.bf16 %v566, %v565
        %v574 = vpack.c.bf16 %v568, %v567
        %v575 = vpack.c.bf16 %v570, %v569
        %v576 = vpack.c.bf16 %v572, %v571
        %v577 = vpack.c.bf16 %v483, %v482
        %v578 = vpack.c.bf16 %v485, %v484
        %v579 = vpack.c.bf16 %v487, %v486
        %v580 = vpack.c.bf16 %v489, %v488
        %v585 = vunpack.c.l.b16 %v536
        %v586 = vunpack.c.h.b16 %v536
        %v587 = vunpack.c.l.b16 %v537
        %v588 = vunpack.c.h.b16 %v537
        %v589 = vunpack.c.l.b16 %v538
        %v590 = vunpack.c.h.b16 %v538
        %v591 = vunpack.c.l.b16 %v539
        %v592 = vunpack.c.h.b16 %v539
        %v593 = vpack.c.b16 %v587, %v585
        %v594 = vpack.c.b16 %v588, %v586
        %v595 = vpack.c.b16 %v591, %v589
        %v596 = vpack.c.b16 %v592, %v590
        %v605 = vunpack.c.l.b16 %v577
        %v606 = vunpack.c.h.b16 %v577
        %v607 = vunpack.c.l.b16 %v578
        %v608 = vunpack.c.h.b16 %v578
        %v609 = vunpack.c.l.b16 %v579
        %v610 = vunpack.c.h.b16 %v579
        %v611 = vunpack.c.l.b16 %v580
        %v612 = vunpack.c.h.b16 %v580
        %v613 = vpack.c.b16 %v607, %v605
        %v614 = vpack.c.b16 %v608, %v606
        %v615 = vpack.c.b16 %v611, %v609
        %v616 = vpack.c.b16 %v612, %v610
        %v625 = vunpack.c.l.b16 %v573
        %v626 = vunpack.c.h.b16 %v573
        %v627 = vunpack.c.l.b16 %v574
        %v628 = vunpack.c.h.b16 %v574
        %v629 = vunpack.c.l.b16 %v575
        %v630 = vunpack.c.h.b16 %v575
        %v631 = vunpack.c.l.b16 %v576
        %v632 = vunpack.c.h.b16 %v576
        %v633 = vpack.c.b16 %v627, %v625
        %v634 = vpack.c.b16 %v628, %v626
        %v635 = vpack.c.b16 %v631, %v629
        %v636 = vpack.c.b16 %v632, %v630
        %v641 = vld [vmem:[%s3] sm:$0xf]
        %v642 = vld [vmem:[%s3 + $0x4] sm:$0xf]
        %v643 = vld [vmem:[%s3 + $0x8] sm:$0xf]
        %v644 = vld [vmem:[%s3 + $0xc] sm:$0xf]
        %v645 = vld [vmem:[%s3 + $0x10] sm:$0xf]
        %v646 = vld [vmem:[%s3 + $0x14] sm:$0xf]
        %v647 = vld [vmem:[%s3 + $0x18] sm:$0xf]
        %v648 = vld [vmem:[%s3 + $0x1c] sm:$0xf]
        %v649 = vld [vmem:[%s4] sm:$0xff]
        %v650 = vld [vmem:[%s4 + $0x8] sm:$0xff]
        %v651 = vld [vmem:[%s4 + $0x10] sm:$0xff]
        %v652 = vld [vmem:[%s4 + $0x18] sm:$0xff]
        %v653 = vld [vmem:[%s4 + $0x20] sm:$0xff]
        %v654 = vld [vmem:[%s4 + $0x28] sm:$0xff]
        %v655 = vld [vmem:[%s4 + $0x30] sm:$0xff]
        %v656 = vld [vmem:[%s4 + $0x38] sm:$0xff]
        %658 = vset.pattern.permute.xlu0 0
        %659 = vperm.xlu0 %658, %v649
        %v660 = vpop.permute.xlu0 %659
        %663 = vset.pattern.permute.xlu0 0
        %664 = vperm.xlu0 %663, %v650
        %v665 = vpop.permute.xlu0 %664
        %668 = vset.pattern.permute.xlu0 0
        %669 = vperm.xlu0 %668, %v651
        %v670 = vpop.permute.xlu0 %669
        %673 = vset.pattern.permute.xlu0 0
        %674 = vperm.xlu0 %673, %v652
        %v675 = vpop.permute.xlu0 %674
        %678 = vset.pattern.permute.xlu0 0
        %679 = vperm.xlu0 %678, %v653
        %v680 = vpop.permute.xlu0 %679
        %683 = vset.pattern.permute.xlu0 0
        %684 = vperm.xlu0 %683, %v654
        %v685 = vpop.permute.xlu0 %684
        %688 = vset.pattern.permute.xlu0 0
        %689 = vperm.xlu0 %688, %v655
        %v690 = vpop.permute.xlu0 %689
        %693 = vset.pattern.permute.xlu0 0
        %694 = vperm.xlu0 %693, %v656
        %v695 = vpop.permute.xlu0 %694
        %v705 = vunpack.c.l.b16 %v641
        %v706 = vunpack.c.l.b16 %v642
        %v707 = vunpack.c.l.b16 %v643
        %v708 = vunpack.c.l.b16 %v644
        %v709 = vunpack.c.l.b16 %v645
        %v710 = vunpack.c.l.b16 %v646
        %v711 = vunpack.c.l.b16 %v647
        %v712 = vunpack.c.l.b16 %v648
        %v713 = vpack.c.b16 %v706, %v705
        %v714 = vpack.c.b16 %v708, %v707
        %v715 = vpack.c.b16 %v710, %v709
        %v716 = vpack.c.b16 %v712, %v711
        %vm717 = vcmask 785408
        %v719 = vsel %vm717, %v713, 0
        %v722 = vsel %vm717, %v714, 0
        %v725 = vsel %vm717, %v715, 0
        %v728 = vsel %vm717, %v716, 0
        %730 = vmatpush.bf16.msra.mxu0 0
        %731 = vmatpush.bf16.msra.mxu0 0
        %732 = vmatpush.bf16.msra.mxu0 %v635
        %733 = vmatpush.bf16.msra.mxu0 %v633
        %734 = vmatpush.bf16.msra.mxu0 %v615
        %735 = vmatpush.bf16.msra.mxu0 %v613
        %736 = vmatpush.bf16.msra.mxu0 %v595
        %737 = vmatpush.bf16.msra.mxu0 %v593
        %738 = vmatmul.bf16.gmra.mxu0 %v719
        %v739 = vpop.f32.mrf.mxu0
        %v740 = vadd.f32 %v660, %v739
        %v741 = vpop.f32.mrf.mxu0
        %v742 = vadd.f32 %v665, %v741
        %743 = vmatmul.bf16.gmra.mxu0 %v722
        %v744 = vpop.f32.mrf.mxu0
        %v745 = vadd.f32 %v670, %v744
        %v746 = vpop.f32.mrf.mxu0
        %v747 = vadd.f32 %v675, %v746
        %748 = vmatmul.bf16.gmra.mxu0 %v725
        %v749 = vpop.f32.mrf.mxu0
        %v750 = vadd.f32 %v680, %v749
        %v751 = vpop.f32.mrf.mxu0
        %v752 = vadd.f32 %v685, %v751
        %753 = vmatmul.bf16.gmra.mxu0 %v728
        %v754 = vpop.f32.mrf.mxu0
        %v755 = vadd.f32 %v690, %v754
        %v756 = vpop.f32.mrf.mxu0
        %v757 = vadd.f32 %v695, %v756
        %758 = vdwg.mxu0
        %759 = vmatpush.bf16.msra.mxu0 0
        %760 = vmatpush.bf16.msra.mxu0 0
        %761 = vmatpush.bf16.msra.mxu0 %v636
        %762 = vmatpush.bf16.msra.mxu0 %v634
        %763 = vmatpush.bf16.msra.mxu0 %v616
        %764 = vmatpush.bf16.msra.mxu0 %v614
        %765 = vmatpush.bf16.msra.mxu0 %v596
        %766 = vmatpush.bf16.msra.mxu0 %v594
        %767 = vmatmul.bf16.gmra.mxu0 %v719
        %v768 = vpop.f32.mrf.mxu0
        %v769 = vadd.f32 %v660, %v768
        %v770 = vpop.f32.mrf.mxu0
        %v771 = vadd.f32 %v665, %v770
        %772 = vmatmul.bf16.gmra.mxu0 %v722
        %v773 = vpop.f32.mrf.mxu0
        %v774 = vadd.f32 %v670, %v773
        %v775 = vpop.f32.mrf.mxu0
        %v776 = vadd.f32 %v675, %v775
        %777 = vmatmul.bf16.gmra.mxu0 %v725
        %v778 = vpop.f32.mrf.mxu0
        %v779 = vadd.f32 %v680, %v778
        %v780 = vpop.f32.mrf.mxu0
        %v781 = vadd.f32 %v685, %v780
        %782 = vmatmul.bf16.gmra.mxu0 %v728
        %v783 = vpop.f32.mrf.mxu0
        %v784 = vadd.f32 %v690, %v783
        %v785 = vpop.f32.mrf.mxu0
        %v786 = vadd.f32 %v695, %v785
        %787 = vdwg.mxu0
        %v788 = vxor.u32 %v740, 2147483648
        %v789 = vxor.u32 %v769, 2147483648
        %v790 = vxor.u32 %v742, 2147483648
        %v791 = vxor.u32 %v771, 2147483648
        %v792 = vxor.u32 %v745, 2147483648
        %v793 = vxor.u32 %v774, 2147483648
        %v794 = vxor.u32 %v747, 2147483648
        %v795 = vxor.u32 %v776, 2147483648
        %v796 = vmul.f32 %v788, 1.442695
        %v797 = vpow.pop %v796
        %v798 = vmul.f32 %v789, 1.442695
        %v799 = vpow.pop %v798
        %v800 = vmul.f32 %v790, 1.442695
        %v801 = vpow.pop %v800
        %v802 = vmul.f32 %v791, 1.442695
        %v803 = vpow.pop %v802
        %v804 = vmul.f32 %v792, 1.442695
        %v805 = vpow.pop %v804
        %v806 = vmul.f32 %v793, 1.442695
        %v807 = vpow.pop %v806
        %v808 = vmul.f32 %v794, 1.442695
        %v809 = vpow.pop %v808
        %v810 = vmul.f32 %v795, 1.442695
        %v811 = vpow.pop %v810
        %v812 = vadd.f32 %v797, 1.0
        %v813 = vadd.f32 %v799, 1.0
        %v814 = vadd.f32 %v801, 1.0
        %v815 = vadd.f32 %v803, 1.0
        %v816 = vadd.f32 %v805, 1.0
        %v817 = vadd.f32 %v807, 1.0
        %v818 = vadd.f32 %v809, 1.0
        %v819 = vadd.f32 %v811, 1.0
        %v820 = vrcp.pop %v812
        %v821 = vmul.f32 %v812, %v820
        %v822 = vsub.f32 1.0, %v821
        %v823 = vmul.f32 %v820, %v822
        %v824 = vadd.f32 %v820, %v823
        %vm825 = vweird.f32 %v812
        %vm826 = vweird.f32 %v820
        %vm827 = vmor %vm825, %vm826
        %v828 = vsel %vm827, %v820, %v824
        %v829 = vand.u32 2147483647, %v812
        %vm830 = vcmp.eq.f32.partialorder %v829, 8.507059e+37
        %v831 = vand.u32 %v812, 2147483648
        %v832 = vor.u32 1.1754944e-38, %v831
        %v833 = vsel %vm830, %v832, %v828
        %v834 = vmul.f32 1.0, %v833
        %v835 = vrcp.pop %v813
        %v836 = vmul.f32 %v813, %v835
        %v837 = vsub.f32 1.0, %v836
        %v838 = vmul.f32 %v835, %v837
        %v839 = vadd.f32 %v835, %v838
        %vm840 = vweird.f32 %v813
        %vm841 = vweird.f32 %v835
        %vm842 = vmor %vm840, %vm841
        %v843 = vsel %vm842, %v835, %v839
        %v844 = vand.u32 2147483647, %v813
        %vm845 = vcmp.eq.f32.partialorder %v844, 8.507059e+37
        %v846 = vand.u32 %v813, 2147483648
        %v847 = vor.u32 1.1754944e-38, %v846
        %v848 = vsel %vm845, %v847, %v843
        %v849 = vmul.f32 1.0, %v848
        %v850 = vrcp.pop %v814
        %v851 = vmul.f32 %v814, %v850
        %v852 = vsub.f32 1.0, %v851
        %v853 = vmul.f32 %v850, %v852
        %v854 = vadd.f32 %v850, %v853
        %vm855 = vweird.f32 %v814
        %vm856 = vweird.f32 %v850
        %vm857 = vmor %vm855, %vm856
        %v858 = vsel %vm857, %v850, %v854
        %v859 = vand.u32 2147483647, %v814
        %vm860 = vcmp.eq.f32.partialorder %v859, 8.507059e+37
        %v861 = vand.u32 %v814, 2147483648
        %v862 = vor.u32 1.1754944e-38, %v861
        %v863 = vsel %vm860, %v862, %v858
        %v864 = vmul.f32 1.0, %v863
        %v865 = vrcp.pop %v815
        %v866 = vmul.f32 %v815, %v865
        %v867 = vsub.f32 1.0, %v866
        %v868 = vmul.f32 %v865, %v867
        %v869 = vadd.f32 %v865, %v868
        %vm870 = vweird.f32 %v815
        %vm871 = vweird.f32 %v865
        %vm872 = vmor %vm870, %vm871
        %v873 = vsel %vm872, %v865, %v869
        %v874 = vand.u32 2147483647, %v815
        %vm875 = vcmp.eq.f32.partialorder %v874, 8.507059e+37
        %v876 = vand.u32 %v815, 2147483648
        %v877 = vor.u32 1.1754944e-38, %v876
        %v878 = vsel %vm875, %v877, %v873
        %v879 = vmul.f32 1.0, %v878
        %v880 = vrcp.pop %v816
        %v881 = vmul.f32 %v816, %v880
        %v882 = vsub.f32 1.0, %v881
        %v883 = vmul.f32 %v880, %v882
        %v884 = vadd.f32 %v880, %v883
        %vm885 = vweird.f32 %v816
        %vm886 = vweird.f32 %v880
        %vm887 = vmor %vm885, %vm886
        %v888 = vsel %vm887, %v880, %v884
        %v889 = vand.u32 2147483647, %v816
        %vm890 = vcmp.eq.f32.partialorder %v889, 8.507059e+37
        %v891 = vand.u32 %v816, 2147483648
        %v892 = vor.u32 1.1754944e-38, %v891
        %v893 = vsel %vm890, %v892, %v888
        %v894 = vmul.f32 1.0, %v893
        %v895 = vrcp.pop %v817
        %v896 = vmul.f32 %v817, %v895
        %v897 = vsub.f32 1.0, %v896
        %v898 = vmul.f32 %v895, %v897
        %v899 = vadd.f32 %v895, %v898
        %vm900 = vweird.f32 %v817
        %vm901 = vweird.f32 %v895
        %vm902 = vmor %vm900, %vm901
        %v903 = vsel %vm902, %v895, %v899
        %v904 = vand.u32 2147483647, %v817
        %vm905 = vcmp.eq.f32.partialorder %v904, 8.507059e+37
        %v906 = vand.u32 %v817, 2147483648
        %v907 = vor.u32 1.1754944e-38, %v906
        %v908 = vsel %vm905, %v907, %v903
        %v909 = vmul.f32 1.0, %v908
        %v910 = vrcp.pop %v818
        %v911 = vmul.f32 %v818, %v910
        %v912 = vsub.f32 1.0, %v911
        %v913 = vmul.f32 %v910, %v912
        %v914 = vadd.f32 %v910, %v913
        %vm915 = vweird.f32 %v818
        %vm916 = vweird.f32 %v910
        %vm917 = vmor %vm915, %vm916
        %v918 = vsel %vm917, %v910, %v914
        %v919 = vand.u32 2147483647, %v818
        %vm920 = vcmp.eq.f32.partialorder %v919, 8.507059e+37
        %v921 = vand.u32 %v818, 2147483648
        %v922 = vor.u32 1.1754944e-38, %v921
        %v923 = vsel %vm920, %v922, %v918
        %v924 = vmul.f32 1.0, %v923
        %v925 = vrcp.pop %v819
        %v926 = vmul.f32 %v819, %v925
        %v927 = vsub.f32 1.0, %v926
        %v928 = vmul.f32 %v925, %v927
        %v929 = vadd.f32 %v925, %v928
        %vm930 = vweird.f32 %v819
        %vm931 = vweird.f32 %v925
        %vm932 = vmor %vm930, %vm931
        %v933 = vsel %vm932, %v925, %v929
        %v934 = vand.u32 2147483647, %v819
        %vm935 = vcmp.eq.f32.partialorder %v934, 8.507059e+37
        %v936 = vand.u32 %v819, 2147483648
        %v937 = vor.u32 1.1754944e-38, %v936
        %v938 = vsel %vm935, %v937, %v933
        %v939 = vmul.f32 1.0, %v938
        %v940 = vtanh.pop %v750
        %v941 = vtanh.pop %v779
        %v942 = vtanh.pop %v752
        %v943 = vtanh.pop %v781
        %v944 = vtanh.pop %v755
        %v945 = vtanh.pop %v784
        %v946 = vtanh.pop %v757
        %v947 = vtanh.pop %v786
        %v948 = vmul.f32 %v834, %v940
        %v949 = vmul.f32 %v849, %v941
        %v950 = vmul.f32 %v864, %v942
        %v951 = vmul.f32 %v879, %v943
        %v952 = vmul.f32 %v894, %v944
        %v953 = vmul.f32 %v909, %v945
        %v954 = vmul.f32 %v924, %v946
        %v955 = vmul.f32 %v939, %v947
        %v956 = vpack.c.bf16 %v950, %v948
        %v957 = vpack.c.bf16 %v951, %v949
        %v958 = vpack.c.bf16 %v954, %v952
        %v959 = vpack.c.bf16 %v955, %v953
        %v960 = vld [vmem:[%s5] sm:$0xf]
        %v961 = vld [vmem:[%s5 + $0x4] sm:$0xf]
        %v962 = vld [vmem:[%s5 + $0x8] sm:$0xf]
        %v963 = vld [vmem:[%s5 + $0xc] sm:$0xf]
        %v964 = vld [vmem:[%s5 + $0x10] sm:$0xf]
        %v965 = vld [vmem:[%s5 + $0x14] sm:$0xf]
        %v966 = vld [vmem:[%s5 + $0x18] sm:$0xf]
        %v967 = vld [vmem:[%s5 + $0x1c] sm:$0xf]
        %v976 = vunpack.c.l.b16 %v960
        %v977 = vunpack.c.l.b16 %v961
        %v978 = vunpack.c.l.b16 %v962
        %v979 = vunpack.c.l.b16 %v963
        %v980 = vunpack.c.l.b16 %v964
        %v981 = vunpack.c.l.b16 %v965
        %v982 = vunpack.c.l.b16 %v966
        %v983 = vunpack.c.l.b16 %v967
        %v984 = vpack.c.b16 %v977, %v976
        %v985 = vpack.c.b16 %v979, %v978
        %v986 = vpack.c.b16 %v981, %v980
        %v987 = vpack.c.b16 %v983, %v982
        %vm988 = vcmask 261120
        %v990 = vsel %vm988, %v984, 0
        %v993 = vsel %vm988, %v985, 0
        %v996 = vsel %vm988, %v986, 0
        %v999 = vsel %vm988, %v987, 0
        %1001 = vmatpush.bf16.msra.mxu0 0
        %1002 = vmatpush.bf16.msra.mxu0 0
        %1003 = vmatpush.bf16.msra.mxu0 0
        %1004 = vmatpush.bf16.msra.mxu0 0
        %1005 = vmatpush.bf16.msra.mxu0 0
        %1006 = vmatpush.bf16.msra.mxu0 0
        %1007 = vmatpush.bf16.msra.mxu0 %v958
        %1008 = vmatpush.bf16.msra.mxu0 %v956
        %1009 = vmatmul.bf16.gmra.mxu0 %v990
        %v1010 = vpop.f32.mrf.mxu0
        %v1011 = vadd.f32 0.0, %v1010
        %v1012 = vpop.f32.mrf.mxu0
        %v1013 = vadd.f32 0.0, %v1012
        %1014 = vmatmul.bf16.gmra.mxu0 %v993
        %v1015 = vpop.f32.mrf.mxu0
        %v1016 = vadd.f32 0.0, %v1015
        %v1017 = vpop.f32.mrf.mxu0
        %v1018 = vadd.f32 0.0, %v1017
        %1019 = vmatmul.bf16.gmra.mxu0 %v996
        %v1020 = vpop.f32.mrf.mxu0
        %v1021 = vadd.f32 0.0, %v1020
        %v1022 = vpop.f32.mrf.mxu0
        %v1023 = vadd.f32 0.0, %v1022
        %1024 = vmatmul.bf16.gmra.mxu0 %v999
        %v1025 = vpop.f32.mrf.mxu0
        %v1026 = vadd.f32 0.0, %v1025
        %v1027 = vpop.f32.mrf.mxu0
        %v1028 = vadd.f32 0.0, %v1027
        %1029 = vdwg.mxu0
        %1030 = vmatpush.bf16.msra.mxu0 0
        %1031 = vmatpush.bf16.msra.mxu0 0
        %1032 = vmatpush.bf16.msra.mxu0 0
        %1033 = vmatpush.bf16.msra.mxu0 0
        %1034 = vmatpush.bf16.msra.mxu0 0
        %1035 = vmatpush.bf16.msra.mxu0 0
        %1036 = vmatpush.bf16.msra.mxu0 %v959
        %1037 = vmatpush.bf16.msra.mxu0 %v957
        %1038 = vmatmul.bf16.gmra.mxu0 %v990
        %v1039 = vpop.f32.mrf.mxu0
        %v1040 = vadd.f32 0.0, %v1039
        %v1041 = vpop.f32.mrf.mxu0
        %v1042 = vadd.f32 0.0, %v1041
        %1043 = vmatmul.bf16.gmra.mxu0 %v993
        %v1044 = vpop.f32.mrf.mxu0
        %v1045 = vadd.f32 0.0, %v1044
        %v1046 = vpop.f32.mrf.mxu0
        %v1047 = vadd.f32 0.0, %v1046
        %1048 = vmatmul.bf16.gmra.mxu0 %v996
        %v1049 = vpop.f32.mrf.mxu0
        %v1050 = vadd.f32 0.0, %v1049
        %v1051 = vpop.f32.mrf.mxu0
        %v1052 = vadd.f32 0.0, %v1051
        %1053 = vmatmul.bf16.gmra.mxu0 %v999
        %v1054 = vpop.f32.mrf.mxu0
        %v1055 = vadd.f32 0.0, %v1054
        %v1056 = vpop.f32.mrf.mxu0
        %v1057 = vadd.f32 0.0, %v1056
        %1058 = vdwg.mxu0
        %v1059 = vadd.f32 %v482, %v1011
        %v1060 = vadd.f32 %v483, %v1040
        %v1061 = vadd.f32 %v484, %v1013
        %v1062 = vadd.f32 %v485, %v1042
        %v1063 = vadd.f32 %v486, %v1016
        %v1064 = vadd.f32 %v487, %v1045
        %v1065 = vadd.f32 %v488, %v1018
        %v1066 = vadd.f32 %v489, %v1047
        %v1067 = vld [vmem:[%s6] sm:$0xff]
        %v1068 = vld [vmem:[%s6 + $0x8] sm:$0xff]
        %v1069 = vld [vmem:[%s6 + $0x10] sm:$0xff]
        %v1070 = vld [vmem:[%s6 + $0x18] sm:$0xff]
        %1072 = vset.pattern.permute.xlu0 0
        %1073 = vperm.xlu0 %1072, %v1067
        %v1074 = vpop.permute.xlu0 %1073
        %1077 = vset.pattern.permute.xlu0 0
        %1078 = vperm.xlu0 %1077, %v1068
        %v1079 = vpop.permute.xlu0 %1078
        %1082 = vset.pattern.permute.xlu0 0
        %1083 = vperm.xlu0 %1082, %v1069
        %v1084 = vpop.permute.xlu0 %1083
        %1087 = vset.pattern.permute.xlu0 0
        %1088 = vperm.xlu0 %1087, %v1070
        %v1089 = vpop.permute.xlu0 %1088
        %v1091 = vadd.f32 %v1059, %v1074
        %v1092 = vadd.f32 %v1060, %v1074
        %v1093 = vadd.f32 %v1061, %v1079
        %v1094 = vadd.f32 %v1062, %v1079
        %v1095 = vadd.f32 %v1063, %v1084
        %v1096 = vadd.f32 %v1064, %v1084
        %v1097 = vadd.f32 %v1065, %v1089
        %v1098 = vadd.f32 %v1066, %v1089
        %v1099 = vmul.f32 %v1091, 0.70710677
        %v1100 = vmul.f32 %v1092, 0.70710677
        %v1101 = vmul.f32 %v1093, 0.70710677
        %v1102 = vmul.f32 %v1094, 0.70710677
        %v1103 = vmul.f32 %v1095, 0.70710677
        %v1104 = vmul.f32 %v1096, 0.70710677
        %v1105 = vmul.f32 %v1097, 0.70710677
        %v1106 = vmul.f32 %v1098, 0.70710677
        %v1107 = vadd.f32 %v1021, 0.0
        %v1108 = vadd.f32 %v1050, 0.0
        %v1109 = vadd.f32 %v1023, 0.0
        %v1110 = vadd.f32 %v1052, 0.0
        %v1111 = vadd.f32 %v1026, 0.0
        %v1112 = vadd.f32 %v1055, 0.0
        %v1113 = vadd.f32 %v1028, 0.0
        %v1114 = vadd.f32 %v1057, 0.0
        %1115 = vrot.lane.b32.xlu0 %v1099, 2
        %v1116 = vpop.permute.xlu0 %1115
        %1117 = vrot.lane.b32.xlu0 %v1101, 2
        %v1118 = vpop.permute.xlu0 %1117
        %1119 = vrot.lane.b32.xlu0 %v1103, 2
        %v1120 = vpop.permute.xlu0 %1119
        %1121 = vrot.lane.b32.xlu0 %v1105, 2
        %v1122 = vpop.permute.xlu0 %1121
        %1123 = vrot.lane.b32.xlu0 %v1100, 2
        %v1124 = vpop.permute.xlu0 %1123
        %1125 = vrot.lane.b32.xlu0 %v1102, 2
        %v1126 = vpop.permute.xlu0 %1125
        %1127 = vrot.lane.b32.xlu0 %v1104, 2
        %v1128 = vpop.permute.xlu0 %1127
        %1129 = vrot.lane.b32.xlu0 %v1106, 2
        %v1130 = vpop.permute.xlu0 %1129
        %vm1131 = vcmp.lt.s32.totalorder %v491, 2
        %v1132 = vsel %vm1131, %v1116, %v1124
        %v1133 = vsel %vm1131, %v1118, %v1126
        %v1134 = vsel %vm1131, %v1120, %v1128
        %v1135 = vsel %vm1131, %v1122, %v1130
        %v1136 = vsel %vm1131, %v1124, %v1116
        %v1137 = vsel %vm1131, %v1126, %v1118
        %v1138 = vsel %vm1131, %v1128, %v1120
        %v1139 = vsel %vm1131, %v1130, %v1122
        %v1140 = vsel %vm499, %v1136, 0.0
        %v1141 = vsel %vm500, %v1132, 0.0
        %v1142 = vsel %vm499, %v1137, 0.0
        %v1143 = vsel %vm500, %v1133, 0.0
        %v1144 = vsel %vm499, %v1138, 0.0
        %v1145 = vsel %vm500, %v1134, 0.0
        %v1146 = vsel %vm499, %v1139, 0.0
        %v1147 = vsel %vm500, %v1135, 0.0
        %v1148 = vpack.c.bf16 %v1141, %v1140
        %v1149 = vpack.c.bf16 %v1143, %v1142
        %v1150 = vpack.c.bf16 %v1145, %v1144
        %v1151 = vpack.c.bf16 %v1147, %v1146
        %1152 = vrot.lane.b32.xlu0 %v1099, 126
        %v1153 = vpop.permute.xlu0 %1152
        %1154 = vrot.lane.b32.xlu0 %v1101, 126
        %v1155 = vpop.permute.xlu0 %1154
        %1156 = vrot.lane.b32.xlu0 %v1103, 126
        %v1157 = vpop.permute.xlu0 %1156
        %1158 = vrot.lane.b32.xlu0 %v1105, 126
        %v1159 = vpop.permute.xlu0 %1158
        %1160 = vrot.lane.b32.xlu0 %v1100, 126
        %v1161 = vpop.permute.xlu0 %1160
        %1162 = vrot.lane.b32.xlu0 %v1102, 126
        %v1163 = vpop.permute.xlu0 %1162
        %1164 = vrot.lane.b32.xlu0 %v1104, 126
        %v1165 = vpop.permute.xlu0 %1164
        %1166 = vrot.lane.b32.xlu0 %v1106, 126
        %v1167 = vpop.permute.xlu0 %1166
        %vm1168 = vcmp.lt.s32.totalorder %v491, 126
        %v1169 = vsel %vm1168, %v1153, %v1161
        %v1170 = vsel %vm1168, %v1155, %v1163
        %v1171 = vsel %vm1168, %v1157, %v1165
        %v1172 = vsel %vm1168, %v1159, %v1167
        %v1173 = vsel %vm1168, %v1161, %v1153
        %v1174 = vsel %vm1168, %v1163, %v1155
        %v1175 = vsel %vm1168, %v1165, %v1157
        %v1176 = vsel %vm1168, %v1167, %v1159
        %v1177 = vsel %vm501, %v1169, 0.0
        %v1178 = vsel %vm502, %v1173, 0.0
        %v1179 = vsel %vm501, %v1170, 0.0
        %v1180 = vsel %vm502, %v1174, 0.0
        %v1181 = vsel %vm501, %v1171, 0.0
        %v1182 = vsel %vm502, %v1175, 0.0
        %v1183 = vsel %vm501, %v1172, 0.0
        %v1184 = vsel %vm502, %v1176, 0.0
        %v1185 = vpack.c.bf16 %v1178, %v1177
        %v1186 = vpack.c.bf16 %v1180, %v1179
        %v1187 = vpack.c.bf16 %v1182, %v1181
        %v1188 = vpack.c.bf16 %v1184, %v1183
        %v1189 = vpack.c.bf16 %v1100, %v1099
        %v1190 = vpack.c.bf16 %v1102, %v1101
        %v1191 = vpack.c.bf16 %v1104, %v1103
        %v1192 = vpack.c.bf16 %v1106, %v1105
        %v1197 = vunpack.c.l.b16 %v1148
        %v1198 = vunpack.c.h.b16 %v1148
        %v1199 = vunpack.c.l.b16 %v1149
        %v1200 = vunpack.c.h.b16 %v1149
        %v1201 = vunpack.c.l.b16 %v1150
        %v1202 = vunpack.c.h.b16 %v1150
        %v1203 = vunpack.c.l.b16 %v1151
        %v1204 = vunpack.c.h.b16 %v1151
        %v1205 = vpack.c.b16 %v1199, %v1197
        %v1206 = vpack.c.b16 %v1200, %v1198
        %v1207 = vpack.c.b16 %v1203, %v1201
        %v1208 = vpack.c.b16 %v1204, %v1202
        %v1217 = vunpack.c.l.b16 %v1189
        %v1218 = vunpack.c.h.b16 %v1189
        %v1219 = vunpack.c.l.b16 %v1190
        %v1220 = vunpack.c.h.b16 %v1190
        %v1221 = vunpack.c.l.b16 %v1191
        %v1222 = vunpack.c.h.b16 %v1191
        %v1223 = vunpack.c.l.b16 %v1192
        %v1224 = vunpack.c.h.b16 %v1192
        %v1225 = vpack.c.b16 %v1219, %v1217
        %v1226 = vpack.c.b16 %v1220, %v1218
        %v1227 = vpack.c.b16 %v1223, %v1221
        %v1228 = vpack.c.b16 %v1224, %v1222
        %v1237 = vunpack.c.l.b16 %v1185
        %v1238 = vunpack.c.h.b16 %v1185
        %v1239 = vunpack.c.l.b16 %v1186
        %v1240 = vunpack.c.h.b16 %v1186
        %v1241 = vunpack.c.l.b16 %v1187
        %v1242 = vunpack.c.h.b16 %v1187
        %v1243 = vunpack.c.l.b16 %v1188
        %v1244 = vunpack.c.h.b16 %v1188
        %v1245 = vpack.c.b16 %v1239, %v1237
        %v1246 = vpack.c.b16 %v1240, %v1238
        %v1247 = vpack.c.b16 %v1243, %v1241
        %v1248 = vpack.c.b16 %v1244, %v1242
        %s1253 = scalar_lea.vmem %s3, 32
        %v1254 = vld [vmem:[%s1253] sm:$0xf]
        %v1255 = vld [vmem:[%s1253 + $0x4] sm:$0xf]
        %v1256 = vld [vmem:[%s1253 + $0x8] sm:$0xf]
        %v1257 = vld [vmem:[%s1253 + $0xc] sm:$0xf]
        %v1258 = vld [vmem:[%s1253 + $0x10] sm:$0xf]
        %v1259 = vld [vmem:[%s1253 + $0x14] sm:$0xf]
        %v1260 = vld [vmem:[%s1253 + $0x18] sm:$0xf]
        %v1261 = vld [vmem:[%s1253 + $0x1c] sm:$0xf]
        %s1262 = scalar_lea.vmem %s4, 64
        %v1263 = vld [vmem:[%s1262] sm:$0xff]
        %v1264 = vld [vmem:[%s1262 + $0x8] sm:$0xff]
        %v1265 = vld [vmem:[%s1262 + $0x10] sm:$0xff]
        %v1266 = vld [vmem:[%s1262 + $0x18] sm:$0xff]
        %v1267 = vld [vmem:[%s1262 + $0x20] sm:$0xff]
        %v1268 = vld [vmem:[%s1262 + $0x28] sm:$0xff]
        %v1269 = vld [vmem:[%s1262 + $0x30] sm:$0xff]
        %v1270 = vld [vmem:[%s1262 + $0x38] sm:$0xff]
        %1272 = vset.pattern.permute.xlu0 0
        %1273 = vperm.xlu0 %1272, %v1263
        %v1274 = vpop.permute.xlu0 %1273
        %1277 = vset.pattern.permute.xlu0 0
        %1278 = vperm.xlu0 %1277, %v1264
        %v1279 = vpop.permute.xlu0 %1278
        %1282 = vset.pattern.permute.xlu0 0
        %1283 = vperm.xlu0 %1282, %v1265
        %v1284 = vpop.permute.xlu0 %1283
        %1287 = vset.pattern.permute.xlu0 0
        %1288 = vperm.xlu0 %1287, %v1266
        %v1289 = vpop.permute.xlu0 %1288
        %1292 = vset.pattern.permute.xlu0 0
        %1293 = vperm.xlu0 %1292, %v1267
        %v1294 = vpop.permute.xlu0 %1293
        %1297 = vset.pattern.permute.xlu0 0
        %1298 = vperm.xlu0 %1297, %v1268
        %v1299 = vpop.permute.xlu0 %1298
        %1302 = vset.pattern.permute.xlu0 0
        %1303 = vperm.xlu0 %1302, %v1269
        %v1304 = vpop.permute.xlu0 %1303
        %1307 = vset.pattern.permute.xlu0 0
        %1308 = vperm.xlu0 %1307, %v1270
        %v1309 = vpop.permute.xlu0 %1308
        %v1319 = vunpack.c.l.b16 %v1254
        %v1320 = vunpack.c.l.b16 %v1255
        %v1321 = vunpack.c.l.b16 %v1256
        %v1322 = vunpack.c.l.b16 %v1257
        %v1323 = vunpack.c.l.b16 %v1258
        %v1324 = vunpack.c.l.b16 %v1259
        %v1325 = vunpack.c.l.b16 %v1260
        %v1326 = vunpack.c.l.b16 %v1261
        %v1327 = vpack.c.b16 %v1320, %v1319
        %v1328 = vpack.c.b16 %v1322, %v1321
        %v1329 = vpack.c.b16 %v1324, %v1323
        %v1330 = vpack.c.b16 %v1326, %v1325
        %v1332 = vsel %vm717, %v1327, 0
        %v1335 = vsel %vm717, %v1328, 0
        %v1338 = vsel %vm717, %v1329, 0
        %v1341 = vsel %vm717, %v1330, 0
        %1343 = vmatpush.bf16.msra.mxu0 0
        %1344 = vmatpush.bf16.msra.mxu0 0
        %1345 = vmatpush.bf16.msra.mxu0 %v1247
        %1346 = vmatpush.bf16.msra.mxu0 %v1245
        %1347 = vmatpush.bf16.msra.mxu0 %v1227
        %1348 = vmatpush.bf16.msra.mxu0 %v1225
        %1349 = vmatpush.bf16.msra.mxu0 %v1207
        %1350 = vmatpush.bf16.msra.mxu0 %v1205
        %1351 = vmatmul.bf16.gmra.mxu0 %v1332
        %v1352 = vpop.f32.mrf.mxu0
        %v1353 = vadd.f32 %v1274, %v1352
        %v1354 = vpop.f32.mrf.mxu0
        %v1355 = vadd.f32 %v1279, %v1354
        %1356 = vmatmul.bf16.gmra.mxu0 %v1335
        %v1357 = vpop.f32.mrf.mxu0
        %v1358 = vadd.f32 %v1284, %v1357
        %v1359 = vpop.f32.mrf.mxu0
        %v1360 = vadd.f32 %v1289, %v1359
        %1361 = vmatmul.bf16.gmra.mxu0 %v1338
        %v1362 = vpop.f32.mrf.mxu0
        %v1363 = vadd.f32 %v1294, %v1362
        %v1364 = vpop.f32.mrf.mxu0
        %v1365 = vadd.f32 %v1299, %v1364
        %1366 = vmatmul.bf16.gmra.mxu0 %v1341
        %v1367 = vpop.f32.mrf.mxu0
        %v1368 = vadd.f32 %v1304, %v1367
        %v1369 = vpop.f32.mrf.mxu0
        %v1370 = vadd.f32 %v1309, %v1369
        %1371 = vdwg.mxu0
        %1372 = vmatpush.bf16.msra.mxu0 0
        %1373 = vmatpush.bf16.msra.mxu0 0
        %1374 = vmatpush.bf16.msra.mxu0 %v1248
        %1375 = vmatpush.bf16.msra.mxu0 %v1246
        %1376 = vmatpush.bf16.msra.mxu0 %v1228
        %1377 = vmatpush.bf16.msra.mxu0 %v1226
        %1378 = vmatpush.bf16.msra.mxu0 %v1208
        %1379 = vmatpush.bf16.msra.mxu0 %v1206
        %1380 = vmatmul.bf16.gmra.mxu0 %v1332
        %v1381 = vpop.f32.mrf.mxu0
        %v1382 = vadd.f32 %v1274, %v1381
        %v1383 = vpop.f32.mrf.mxu0
        %v1384 = vadd.f32 %v1279, %v1383
        %1385 = vmatmul.bf16.gmra.mxu0 %v1335
        %v1386 = vpop.f32.mrf.mxu0
        %v1387 = vadd.f32 %v1284, %v1386
        %v1388 = vpop.f32.mrf.mxu0
        %v1389 = vadd.f32 %v1289, %v1388
        %1390 = vmatmul.bf16.gmra.mxu0 %v1338
        %v1391 = vpop.f32.mrf.mxu0
        %v1392 = vadd.f32 %v1294, %v1391
        %v1393 = vpop.f32.mrf.mxu0
        %v1394 = vadd.f32 %v1299, %v1393
        %1395 = vmatmul.bf16.gmra.mxu0 %v1341
        %v1396 = vpop.f32.mrf.mxu0
        %v1397 = vadd.f32 %v1304, %v1396
        %v1398 = vpop.f32.mrf.mxu0
        %v1399 = vadd.f32 %v1309, %v1398
        %1400 = vdwg.mxu0
        %v1401 = vxor.u32 %v1353, 2147483648
        %v1402 = vxor.u32 %v1382, 2147483648
        %v1403 = vxor.u32 %v1355, 2147483648
        %v1404 = vxor.u32 %v1384, 2147483648
        %v1405 = vxor.u32 %v1358, 2147483648
        %v1406 = vxor.u32 %v1387, 2147483648
        %v1407 = vxor.u32 %v1360, 2147483648
        %v1408 = vxor.u32 %v1389, 2147483648
        %v1409 = vmul.f32 %v1401, 1.442695
        %v1410 = vpow.pop %v1409
        %v1411 = vmul.f32 %v1402, 1.442695
        %v1412 = vpow.pop %v1411
        %v1413 = vmul.f32 %v1403, 1.442695
        %v1414 = vpow.pop %v1413
        %v1415 = vmul.f32 %v1404, 1.442695
        %v1416 = vpow.pop %v1415
        %v1417 = vmul.f32 %v1405, 1.442695
        %v1418 = vpow.pop %v1417
        %v1419 = vmul.f32 %v1406, 1.442695
        %v1420 = vpow.pop %v1419
        %v1421 = vmul.f32 %v1407, 1.442695
        %v1422 = vpow.pop %v1421
        %v1423 = vmul.f32 %v1408, 1.442695
        %v1424 = vpow.pop %v1423
        %v1425 = vadd.f32 %v1410, 1.0
        %v1426 = vadd.f32 %v1412, 1.0
        %v1427 = vadd.f32 %v1414, 1.0
        %v1428 = vadd.f32 %v1416, 1.0
        %v1429 = vadd.f32 %v1418, 1.0
        %v1430 = vadd.f32 %v1420, 1.0
        %v1431 = vadd.f32 %v1422, 1.0
        %v1432 = vadd.f32 %v1424, 1.0
        %v1433 = vrcp.pop %v1425
        %v1434 = vmul.f32 %v1425, %v1433
        %v1435 = vsub.f32 1.0, %v1434
        %v1436 = vmul.f32 %v1433, %v1435
        %v1437 = vadd.f32 %v1433, %v1436
        %vm1438 = vweird.f32 %v1425
        %vm1439 = vweird.f32 %v1433
        %vm1440 = vmor %vm1438, %vm1439
        %v1441 = vsel %vm1440, %v1433, %v1437
        %v1442 = vand.u32 2147483647, %v1425
        %vm1443 = vcmp.eq.f32.partialorder %v1442, 8.507059e+37
        %v1444 = vand.u32 %v1425, 2147483648
        %v1445 = vor.u32 1.1754944e-38, %v1444
        %v1446 = vsel %vm1443, %v1445, %v1441
        %v1447 = vmul.f32 1.0, %v1446
        %v1448 = vrcp.pop %v1426
        %v1449 = vmul.f32 %v1426, %v1448
        %v1450 = vsub.f32 1.0, %v1449
        %v1451 = vmul.f32 %v1448, %v1450
        %v1452 = vadd.f32 %v1448, %v1451
        %vm1453 = vweird.f32 %v1426
        %vm1454 = vweird.f32 %v1448
        %vm1455 = vmor %vm1453, %vm1454
        %v1456 = vsel %vm1455, %v1448, %v1452
        %v1457 = vand.u32 2147483647, %v1426
        %vm1458 = vcmp.eq.f32.partialorder %v1457, 8.507059e+37
        %v1459 = vand.u32 %v1426, 2147483648
        %v1460 = vor.u32 1.1754944e-38, %v1459
        %v1461 = vsel %vm1458, %v1460, %v1456
        %v1462 = vmul.f32 1.0, %v1461
        %v1463 = vrcp.pop %v1427
        %v1464 = vmul.f32 %v1427, %v1463
        %v1465 = vsub.f32 1.0, %v1464
        %v1466 = vmul.f32 %v1463, %v1465
        %v1467 = vadd.f32 %v1463, %v1466
        %vm1468 = vweird.f32 %v1427
        %vm1469 = vweird.f32 %v1463
        %vm1470 = vmor %vm1468, %vm1469
        %v1471 = vsel %vm1470, %v1463, %v1467
        %v1472 = vand.u32 2147483647, %v1427
        %vm1473 = vcmp.eq.f32.partialorder %v1472, 8.507059e+37
        %v1474 = vand.u32 %v1427, 2147483648
        %v1475 = vor.u32 1.1754944e-38, %v1474
        %v1476 = vsel %vm1473, %v1475, %v1471
        %v1477 = vmul.f32 1.0, %v1476
        %v1478 = vrcp.pop %v1428
        %v1479 = vmul.f32 %v1428, %v1478
        %v1480 = vsub.f32 1.0, %v1479
        %v1481 = vmul.f32 %v1478, %v1480
        %v1482 = vadd.f32 %v1478, %v1481
        %vm1483 = vweird.f32 %v1428
        %vm1484 = vweird.f32 %v1478
        %vm1485 = vmor %vm1483, %vm1484
        %v1486 = vsel %vm1485, %v1478, %v1482
        %v1487 = vand.u32 2147483647, %v1428
        %vm1488 = vcmp.eq.f32.partialorder %v1487, 8.507059e+37
        %v1489 = vand.u32 %v1428, 2147483648
        %v1490 = vor.u32 1.1754944e-38, %v1489
        %v1491 = vsel %vm1488, %v1490, %v1486
        %v1492 = vmul.f32 1.0, %v1491
        %v1493 = vrcp.pop %v1429
        %v1494 = vmul.f32 %v1429, %v1493
        %v1495 = vsub.f32 1.0, %v1494
        %v1496 = vmul.f32 %v1493, %v1495
        %v1497 = vadd.f32 %v1493, %v1496
        %vm1498 = vweird.f32 %v1429
        %vm1499 = vweird.f32 %v1493
        %vm1500 = vmor %vm1498, %vm1499
        %v1501 = vsel %vm1500, %v1493, %v1497
        %v1502 = vand.u32 2147483647, %v1429
        %vm1503 = vcmp.eq.f32.partialorder %v1502, 8.507059e+37
        %v1504 = vand.u32 %v1429, 2147483648
        %v1505 = vor.u32 1.1754944e-38, %v1504
        %v1506 = vsel %vm1503, %v1505, %v1501
        %v1507 = vmul.f32 1.0, %v1506
        %v1508 = vrcp.pop %v1430
        %v1509 = vmul.f32 %v1430, %v1508
        %v1510 = vsub.f32 1.0, %v1509
        %v1511 = vmul.f32 %v1508, %v1510
        %v1512 = vadd.f32 %v1508, %v1511
        %vm1513 = vweird.f32 %v1430
        %vm1514 = vweird.f32 %v1508
        %vm1515 = vmor %vm1513, %vm1514
        %v1516 = vsel %vm1515, %v1508, %v1512
        %v1517 = vand.u32 2147483647, %v1430
        %vm1518 = vcmp.eq.f32.partialorder %v1517, 8.507059e+37
        %v1519 = vand.u32 %v1430, 2147483648
        %v1520 = vor.u32 1.1754944e-38, %v1519
        %v1521 = vsel %vm1518, %v1520, %v1516
        %v1522 = vmul.f32 1.0, %v1521
        %v1523 = vrcp.pop %v1431
        %v1524 = vmul.f32 %v1431, %v1523
        %v1525 = vsub.f32 1.0, %v1524
        %v1526 = vmul.f32 %v1523, %v1525
        %v1527 = vadd.f32 %v1523, %v1526
        %vm1528 = vweird.f32 %v1431
        %vm1529 = vweird.f32 %v1523
        %vm1530 = vmor %vm1528, %vm1529
        %v1531 = vsel %vm1530, %v1523, %v1527
        %v1532 = vand.u32 2147483647, %v1431
        %vm1533 = vcmp.eq.f32.partialorder %v1532, 8.507059e+37
        %v1534 = vand.u32 %v1431, 2147483648
        %v1535 = vor.u32 1.1754944e-38, %v1534
        %v1536 = vsel %vm1533, %v1535, %v1531
        %v1537 = vmul.f32 1.0, %v1536
        %v1538 = vrcp.pop %v1432
        %v1539 = vmul.f32 %v1432, %v1538
        %v1540 = vsub.f32 1.0, %v1539
        %v1541 = vmul.f32 %v1538, %v1540
        %v1542 = vadd.f32 %v1538, %v1541
        %vm1543 = vweird.f32 %v1432
        %vm1544 = vweird.f32 %v1538
        %vm1545 = vmor %vm1543, %vm1544
        %v1546 = vsel %vm1545, %v1538, %v1542
        %v1547 = vand.u32 2147483647, %v1432
        %vm1548 = vcmp.eq.f32.partialorder %v1547, 8.507059e+37
        %v1549 = vand.u32 %v1432, 2147483648
        %v1550 = vor.u32 1.1754944e-38, %v1549
        %v1551 = vsel %vm1548, %v1550, %v1546
        %v1552 = vmul.f32 1.0, %v1551
        %v1553 = vtanh.pop %v1363
        %v1554 = vtanh.pop %v1392
        %v1555 = vtanh.pop %v1365
        %v1556 = vtanh.pop %v1394
        %v1557 = vtanh.pop %v1368
        %v1558 = vtanh.pop %v1397
        %v1559 = vtanh.pop %v1370
        %v1560 = vtanh.pop %v1399
        %v1561 = vmul.f32 %v1447, %v1553
        %v1562 = vmul.f32 %v1462, %v1554
        %v1563 = vmul.f32 %v1477, %v1555
        %v1564 = vmul.f32 %v1492, %v1556
        %v1565 = vmul.f32 %v1507, %v1557
        %v1566 = vmul.f32 %v1522, %v1558
        %v1567 = vmul.f32 %v1537, %v1559
        %v1568 = vmul.f32 %v1552, %v1560
        %v1569 = vpack.c.bf16 %v1563, %v1561
        %v1570 = vpack.c.bf16 %v1564, %v1562
        %v1571 = vpack.c.bf16 %v1567, %v1565
        %v1572 = vpack.c.bf16 %v1568, %v1566
        %s1573 = scalar_lea.vmem %s5, 32
        %v1574 = vld [vmem:[%s1573] sm:$0xf]
        %v1575 = vld [vmem:[%s1573 + $0x4] sm:$0xf]
        %v1576 = vld [vmem:[%s1573 + $0x8] sm:$0xf]
        %v1577 = vld [vmem:[%s1573 + $0xc] sm:$0xf]
        %v1578 = vld [vmem:[%s1573 + $0x10] sm:$0xf]
        %v1579 = vld [vmem:[%s1573 + $0x14] sm:$0xf]
        %v1580 = vld [vmem:[%s1573 + $0x18] sm:$0xf]
        %v1581 = vld [vmem:[%s1573 + $0x1c] sm:$0xf]
        %v1590 = vunpack.c.l.b16 %v1574
        %v1591 = vunpack.c.l.b16 %v1575
        %v1592 = vunpack.c.l.b16 %v1576
        %v1593 = vunpack.c.l.b16 %v1577
        %v1594 = vunpack.c.l.b16 %v1578
        %v1595 = vunpack.c.l.b16 %v1579
        %v1596 = vunpack.c.l.b16 %v1580
        %v1597 = vunpack.c.l.b16 %v1581
        %v1598 = vpack.c.b16 %v1591, %v1590
        %v1599 = vpack.c.b16 %v1593, %v1592
        %v1600 = vpack.c.b16 %v1595, %v1594
        %v1601 = vpack.c.b16 %v1597, %v1596
        %v1603 = vsel %vm988, %v1598, 0
        %v1606 = vsel %vm988, %v1599, 0
        %v1609 = vsel %vm988, %v1600, 0
        %v1612 = vsel %vm988, %v1601, 0
        %1614 = vmatpush.bf16.msra.mxu0 0
        %1615 = vmatpush.bf16.msra.mxu0 0
        %1616 = vmatpush.bf16.msra.mxu0 0
        %1617 = vmatpush.bf16.msra.mxu0 0
        %1618 = vmatpush.bf16.msra.mxu0 0
        %1619 = vmatpush.bf16.msra.mxu0 0
        %1620 = vmatpush.bf16.msra.mxu0 %v1571
        %1621 = vmatpush.bf16.msra.mxu0 %v1569
        %1622 = vmatmul.bf16.gmra.mxu0 %v1603
        %v1623 = vpop.f32.mrf.mxu0
        %v1624 = vadd.f32 0.0, %v1623
        %v1625 = vpop.f32.mrf.mxu0
        %v1626 = vadd.f32 0.0, %v1625
        %1627 = vmatmul.bf16.gmra.mxu0 %v1606
        %v1628 = vpop.f32.mrf.mxu0
        %v1629 = vadd.f32 0.0, %v1628
        %v1630 = vpop.f32.mrf.mxu0
        %v1631 = vadd.f32 0.0, %v1630
        %1632 = vmatmul.bf16.gmra.mxu0 %v1609
        %v1633 = vpop.f32.mrf.mxu0
        %v1634 = vadd.f32 0.0, %v1633
        %v1635 = vpop.f32.mrf.mxu0
        %v1636 = vadd.f32 0.0, %v1635
        %1637 = vmatmul.bf16.gmra.mxu0 %v1612
        %v1638 = vpop.f32.mrf.mxu0
        %v1639 = vadd.f32 0.0, %v1638
        %v1640 = vpop.f32.mrf.mxu0
        %v1641 = vadd.f32 0.0, %v1640
        %1642 = vdwg.mxu0
        %1643 = vmatpush.bf16.msra.mxu0 0
        %1644 = vmatpush.bf16.msra.mxu0 0
        %1645 = vmatpush.bf16.msra.mxu0 0
        %1646 = vmatpush.bf16.msra.mxu0 0
        %1647 = vmatpush.bf16.msra.mxu0 0
        %1648 = vmatpush.bf16.msra.mxu0 0
        %1649 = vmatpush.bf16.msra.mxu0 %v1572
        %1650 = vmatpush.bf16.msra.mxu0 %v1570
        %1651 = vmatmul.bf16.gmra.mxu0 %v1603
        %v1652 = vpop.f32.mrf.mxu0
        %v1653 = vadd.f32 0.0, %v1652
        %v1654 = vpop.f32.mrf.mxu0
        %v1655 = vadd.f32 0.0, %v1654
        %1656 = vmatmul.bf16.gmra.mxu0 %v1606
        %v1657 = vpop.f32.mrf.mxu0
        %v1658 = vadd.f32 0.0, %v1657
        %v1659 = vpop.f32.mrf.mxu0
        %v1660 = vadd.f32 0.0, %v1659
        %1661 = vmatmul.bf16.gmra.mxu0 %v1609
        %v1662 = vpop.f32.mrf.mxu0
        %v1663 = vadd.f32 0.0, %v1662
        %v1664 = vpop.f32.mrf.mxu0
        %v1665 = vadd.f32 0.0, %v1664
        %1666 = vmatmul.bf16.gmra.mxu0 %v1612
        %v1667 = vpop.f32.mrf.mxu0
        %v1668 = vadd.f32 0.0, %v1667
        %v1669 = vpop.f32.mrf.mxu0
        %v1670 = vadd.f32 0.0, %v1669
        %1671 = vdwg.mxu0
        %v1672 = vadd.f32 %v1099, %v1624
        %v1673 = vadd.f32 %v1100, %v1653
        %v1674 = vadd.f32 %v1101, %v1626
        %v1675 = vadd.f32 %v1102, %v1655
        %v1676 = vadd.f32 %v1103, %v1629
        %v1677 = vadd.f32 %v1104, %v1658
        %v1678 = vadd.f32 %v1105, %v1631
        %v1679 = vadd.f32 %v1106, %v1660
        %s1680 = scalar_lea.vmem %s6, 32
        %v1681 = vld [vmem:[%s1680] sm:$0xff]
        %v1682 = vld [vmem:[%s1680 + $0x8] sm:$0xff]
        %v1683 = vld [vmem:[%s1680 + $0x10] sm:$0xff]
        %v1684 = vld [vmem:[%s1680 + $0x18] sm:$0xff]
        %1686 = vset.pattern.permute.xlu0 0
        %1687 = vperm.xlu0 %1686, %v1681
        %v1688 = vpop.permute.xlu0 %1687
        %1691 = vset.pattern.permute.xlu0 0
        %1692 = vperm.xlu0 %1691, %v1682
        %v1693 = vpop.permute.xlu0 %1692
        %1696 = vset.pattern.permute.xlu0 0
        %1697 = vperm.xlu0 %1696, %v1683
        %v1698 = vpop.permute.xlu0 %1697
        %1701 = vset.pattern.permute.xlu0 0
        %1702 = vperm.xlu0 %1701, %v1684
        %v1703 = vpop.permute.xlu0 %1702
        %v1705 = vadd.f32 %v1672, %v1688
        %v1706 = vadd.f32 %v1673, %v1688
        %v1707 = vadd.f32 %v1674, %v1693
        %v1708 = vadd.f32 %v1675, %v1693
        %v1709 = vadd.f32 %v1676, %v1698
        %v1710 = vadd.f32 %v1677, %v1698
        %v1711 = vadd.f32 %v1678, %v1703
        %v1712 = vadd.f32 %v1679, %v1703
        %v1713 = vmul.f32 %v1705, 0.70710677
        %v1714 = vmul.f32 %v1706, 0.70710677
        %v1715 = vmul.f32 %v1707, 0.70710677
        %v1716 = vmul.f32 %v1708, 0.70710677
        %v1717 = vmul.f32 %v1709, 0.70710677
        %v1718 = vmul.f32 %v1710, 0.70710677
        %v1719 = vmul.f32 %v1711, 0.70710677
        %v1720 = vmul.f32 %v1712, 0.70710677
        %v1721 = vadd.f32 %v1107, %v1634
        %v1722 = vadd.f32 %v1108, %v1663
        %v1723 = vadd.f32 %v1109, %v1636
        %v1724 = vadd.f32 %v1110, %v1665
        %v1725 = vadd.f32 %v1111, %v1639
        %v1726 = vadd.f32 %v1112, %v1668
        %v1727 = vadd.f32 %v1113, %v1641
        %v1728 = vadd.f32 %v1114, %v1670
        %1729 = vrot.lane.b32.xlu0 %v1713, 1
        %v1730 = vpop.permute.xlu0 %1729
        %1731 = vrot.lane.b32.xlu0 %v1715, 1
        %v1732 = vpop.permute.xlu0 %1731
        %1733 = vrot.lane.b32.xlu0 %v1717, 1
        %v1734 = vpop.permute.xlu0 %1733
        %1735 = vrot.lane.b32.xlu0 %v1719, 1
        %v1736 = vpop.permute.xlu0 %1735
        %1737 = vrot.lane.b32.xlu0 %v1714, 1
        %v1738 = vpop.permute.xlu0 %1737
        %1739 = vrot.lane.b32.xlu0 %v1716, 1
        %v1740 = vpop.permute.xlu0 %1739
        %1741 = vrot.lane.b32.xlu0 %v1718, 1
        %v1742 = vpop.permute.xlu0 %1741
        %1743 = vrot.lane.b32.xlu0 %v1720, 1
        %v1744 = vpop.permute.xlu0 %1743
        %v1745 = vsel %vm519, %v1730, %v1738
        %v1746 = vsel %vm519, %v1732, %v1740
        %v1747 = vsel %vm519, %v1734, %v1742
        %v1748 = vsel %vm519, %v1736, %v1744
        %v1749 = vsel %vm519, %v1738, %v1730
        %v1750 = vsel %vm519, %v1740, %v1732
        %v1751 = vsel %vm519, %v1742, %v1734
        %v1752 = vsel %vm519, %v1744, %v1736
        %v1753 = vsel %vm495, %v1749, 0.0
        %v1754 = vsel %vm496, %v1745, 0.0
        %v1755 = vsel %vm495, %v1750, 0.0
        %v1756 = vsel %vm496, %v1746, 0.0
        %v1757 = vsel %vm495, %v1751, 0.0
        %v1758 = vsel %vm496, %v1747, 0.0
        %v1759 = vsel %vm495, %v1752, 0.0
        %v1760 = vsel %vm496, %v1748, 0.0
        %v1761 = vpack.c.bf16 %v1754, %v1753
        %v1762 = vpack.c.bf16 %v1756, %v1755
        %v1763 = vpack.c.bf16 %v1758, %v1757
        %v1764 = vpack.c.bf16 %v1760, %v1759
        %1765 = vrot.lane.b32.xlu0 %v1713, 127
        %v1766 = vpop.permute.xlu0 %1765
        %1767 = vrot.lane.b32.xlu0 %v1715, 127
        %v1768 = vpop.permute.xlu0 %1767
        %1769 = vrot.lane.b32.xlu0 %v1717, 127
        %v1770 = vpop.permute.xlu0 %1769
        %1771 = vrot.lane.b32.xlu0 %v1719, 127
        %v1772 = vpop.permute.xlu0 %1771
        %1773 = vrot.lane.b32.xlu0 %v1714, 127
        %v1774 = vpop.permute.xlu0 %1773
        %1775 = vrot.lane.b32.xlu0 %v1716, 127
        %v1776 = vpop.permute.xlu0 %1775
        %1777 = vrot.lane.b32.xlu0 %v1718, 127
        %v1778 = vpop.permute.xlu0 %1777
        %1779 = vrot.lane.b32.xlu0 %v1720, 127
        %v1780 = vpop.permute.xlu0 %1779
        %v1781 = vsel %vm556, %v1766, %v1774
        %v1782 = vsel %vm556, %v1768, %v1776
        %v1783 = vsel %vm556, %v1770, %v1778
        %v1784 = vsel %vm556, %v1772, %v1780
        %v1785 = vsel %vm556, %v1774, %v1766
        %v1786 = vsel %vm556, %v1776, %v1768
        %v1787 = vsel %vm556, %v1778, %v1770
        %v1788 = vsel %vm556, %v1780, %v1772
        %v1789 = vsel %vm497, %v1781, 0.0
        %v1790 = vsel %vm498, %v1785, 0.0
        %v1791 = vsel %vm497, %v1782, 0.0
        %v1792 = vsel %vm498, %v1786, 0.0
        %v1793 = vsel %vm497, %v1783, 0.0
        %v1794 = vsel %vm498, %v1787, 0.0
        %v1795 = vsel %vm497, %v1784, 0.0
        %v1796 = vsel %vm498, %v1788, 0.0
        %v1797 = vpack.c.bf16 %v1790, %v1789
        %v1798 = vpack.c.bf16 %v1792, %v1791
        %v1799 = vpack.c.bf16 %v1794, %v1793
        %v1800 = vpack.c.bf16 %v1796, %v1795
        %v1801 = vpack.c.bf16 %v1714, %v1713
        %v1802 = vpack.c.bf16 %v1716, %v1715
        %v1803 = vpack.c.bf16 %v1718, %v1717
        %v1804 = vpack.c.bf16 %v1720, %v1719
        %v1809 = vunpack.c.l.b16 %v1761
        %v1810 = vunpack.c.h.b16 %v1761
        %v1811 = vunpack.c.l.b16 %v1762
        %v1812 = vunpack.c.h.b16 %v1762
        %v1813 = vunpack.c.l.b16 %v1763
        %v1814 = vunpack.c.h.b16 %v1763
        %v1815 = vunpack.c.l.b16 %v1764
        %v1816 = vunpack.c.h.b16 %v1764
        %v1817 = vpack.c.b16 %v1811, %v1809
        %v1818 = vpack.c.b16 %v1812, %v1810
        %v1819 = vpack.c.b16 %v1815, %v1813
        %v1820 = vpack.c.b16 %v1816, %v1814
        %v1829 = vunpack.c.l.b16 %v1801
        %v1830 = vunpack.c.h.b16 %v1801
        %v1831 = vunpack.c.l.b16 %v1802
        %v1832 = vunpack.c.h.b16 %v1802
        %v1833 = vunpack.c.l.b16 %v1803
        %v1834 = vunpack.c.h.b16 %v1803
        %v1835 = vunpack.c.l.b16 %v1804
        %v1836 = vunpack.c.h.b16 %v1804
        %v1837 = vpack.c.b16 %v1831, %v1829
        %v1838 = vpack.c.b16 %v1832, %v1830
        %v1839 = vpack.c.b16 %v1835, %v1833
        %v1840 = vpack.c.b16 %v1836, %v1834
        %v1849 = vunpack.c.l.b16 %v1797
        %v1850 = vunpack.c.h.b16 %v1797
        %v1851 = vunpack.c.l.b16 %v1798
        %v1852 = vunpack.c.h.b16 %v1798
        %v1853 = vunpack.c.l.b16 %v1799
        %v1854 = vunpack.c.h.b16 %v1799
        %v1855 = vunpack.c.l.b16 %v1800
        %v1856 = vunpack.c.h.b16 %v1800
        %v1857 = vpack.c.b16 %v1851, %v1849
        %v1858 = vpack.c.b16 %v1852, %v1850
        %v1859 = vpack.c.b16 %v1855, %v1853
        %v1860 = vpack.c.b16 %v1856, %v1854
        %s1865 = scalar_lea.vmem %s3, 64
        %v1866 = vld [vmem:[%s1865] sm:$0xf]
        %v1867 = vld [vmem:[%s1865 + $0x4] sm:$0xf]
        %v1868 = vld [vmem:[%s1865 + $0x8] sm:$0xf]
        %v1869 = vld [vmem:[%s1865 + $0xc] sm:$0xf]
        %v1870 = vld [vmem:[%s1865 + $0x10] sm:$0xf]
        %v1871 = vld [vmem:[%s1865 + $0x14] sm:$0xf]
        %v1872 = vld [vmem:[%s1865 + $0x18] sm:$0xf]
        %v1873 = vld [vmem:[%s1865 + $0x1c] sm:$0xf]
        %s1874 = scalar_lea.vmem %s4, 128
        %v1875 = vld [vmem:[%s1874] sm:$0xff]
        %v1876 = vld [vmem:[%s1874 + $0x8] sm:$0xff]
        %v1877 = vld [vmem:[%s1874 + $0x10] sm:$0xff]
        %v1878 = vld [vmem:[%s1874 + $0x18] sm:$0xff]
        %v1879 = vld [vmem:[%s1874 + $0x20] sm:$0xff]
        %v1880 = vld [vmem:[%s1874 + $0x28] sm:$0xff]
        %v1881 = vld [vmem:[%s1874 + $0x30] sm:$0xff]
        %v1882 = vld [vmem:[%s1874 + $0x38] sm:$0xff]
        %1884 = vset.pattern.permute.xlu0 0
        %1885 = vperm.xlu0 %1884, %v1875
        %v1886 = vpop.permute.xlu0 %1885
        %1889 = vset.pattern.permute.xlu0 0
        %1890 = vperm.xlu0 %1889, %v1876
        %v1891 = vpop.permute.xlu0 %1890
        %1894 = vset.pattern.permute.xlu0 0
        %1895 = vperm.xlu0 %1894, %v1877
        %v1896 = vpop.permute.xlu0 %1895
        %1899 = vset.pattern.permute.xlu0 0
        %1900 = vperm.xlu0 %1899, %v1878
        %v1901 = vpop.permute.xlu0 %1900
        %1904 = vset.pattern.permute.xlu0 0
        %1905 = vperm.xlu0 %1904, %v1879
        %v1906 = vpop.permute.xlu0 %1905
        %1909 = vset.pattern.permute.xlu0 0
        %1910 = vperm.xlu0 %1909, %v1880
        %v1911 = vpop.permute.xlu0 %1910
        %1914 = vset.pattern.permute.xlu0 0
        %1915 = vperm.xlu0 %1914, %v1881
        %v1916 = vpop.permute.xlu0 %1915
        %1919 = vset.pattern.permute.xlu0 0
        %1920 = vperm.xlu0 %1919, %v1882
        %v1921 = vpop.permute.xlu0 %1920
        %v1931 = vunpack.c.l.b16 %v1866
        %v1932 = vunpack.c.l.b16 %v1867
        %v1933 = vunpack.c.l.b16 %v1868
        %v1934 = vunpack.c.l.b16 %v1869
        %v1935 = vunpack.c.l.b16 %v1870
        %v1936 = vunpack.c.l.b16 %v1871
        %v1937 = vunpack.c.l.b16 %v1872
        %v1938 = vunpack.c.l.b16 %v1873
        %v1939 = vpack.c.b16 %v1932, %v1931
        %v1940 = vpack.c.b16 %v1934, %v1933
        %v1941 = vpack.c.b16 %v1936, %v1935
        %v1942 = vpack.c.b16 %v1938, %v1937
        %v1944 = vsel %vm717, %v1939, 0
        %v1947 = vsel %vm717, %v1940, 0
        %v1950 = vsel %vm717, %v1941, 0
        %v1953 = vsel %vm717, %v1942, 0
        %1955 = vmatpush.bf16.msra.mxu0 0
        %1956 = vmatpush.bf16.msra.mxu0 0
        %1957 = vmatpush.bf16.msra.mxu0 %v1859
        %1958 = vmatpush.bf16.msra.mxu0 %v1857
        %1959 = vmatpush.bf16.msra.mxu0 %v1839
        %1960 = vmatpush.bf16.msra.mxu0 %v1837
        %1961 = vmatpush.bf16.msra.mxu0 %v1819
        %1962 = vmatpush.bf16.msra.mxu0 %v1817
        %1963 = vmatmul.bf16.gmra.mxu0 %v1944
        %v1964 = vpop.f32.mrf.mxu0
        %v1965 = vadd.f32 %v1886, %v1964
        %v1966 = vpop.f32.mrf.mxu0
        %v1967 = vadd.f32 %v1891, %v1966
        %1968 = vmatmul.bf16.gmra.mxu0 %v1947
        %v1969 = vpop.f32.mrf.mxu0
        %v1970 = vadd.f32 %v1896, %v1969
        %v1971 = vpop.f32.mrf.mxu0
        %v1972 = vadd.f32 %v1901, %v1971
        %1973 = vmatmul.bf16.gmra.mxu0 %v1950
        %v1974 = vpop.f32.mrf.mxu0
        %v1975 = vadd.f32 %v1906, %v1974
        %v1976 = vpop.f32.mrf.mxu0
        %v1977 = vadd.f32 %v1911, %v1976
        %1978 = vmatmul.bf16.gmra.mxu0 %v1953
        %v1979 = vpop.f32.mrf.mxu0
        %v1980 = vadd.f32 %v1916, %v1979
        %v1981 = vpop.f32.mrf.mxu0
        %v1982 = vadd.f32 %v1921, %v1981
        %1983 = vdwg.mxu0
        %1984 = vmatpush.bf16.msra.mxu0 0
        %1985 = vmatpush.bf16.msra.mxu0 0
        %1986 = vmatpush.bf16.msra.mxu0 %v1860
        %1987 = vmatpush.bf16.msra.mxu0 %v1858
        %1988 = vmatpush.bf16.msra.mxu0 %v1840
        %1989 = vmatpush.bf16.msra.mxu0 %v1838
        %1990 = vmatpush.bf16.msra.mxu0 %v1820
        %1991 = vmatpush.bf16.msra.mxu0 %v1818
        %1992 = vmatmul.bf16.gmra.mxu0 %v1944
        %v1993 = vpop.f32.mrf.mxu0
        %v1994 = vadd.f32 %v1886, %v1993
        %v1995 = vpop.f32.mrf.mxu0
        %v1996 = vadd.f32 %v1891, %v1995
        %1997 = vmatmul.bf16.gmra.mxu0 %v1947
        %v1998 = vpop.f32.mrf.mxu0
        %v1999 = vadd.f32 %v1896, %v1998
        %v2000 = vpop.f32.mrf.mxu0
        %v2001 = vadd.f32 %v1901, %v2000
        %2002 = vmatmul.bf16.gmra.mxu0 %v1950
        %v2003 = vpop.f32.mrf.mxu0
        %v2004 = vadd.f32 %v1906, %v2003
        %v2005 = vpop.f32.mrf.mxu0
        %v2006 = vadd.f32 %v1911, %v2005
        %2007 = vmatmul.bf16.gmra.mxu0 %v1953
        %v2008 = vpop.f32.mrf.mxu0
        %v2009 = vadd.f32 %v1916, %v2008
        %v2010 = vpop.f32.mrf.mxu0
        %v2011 = vadd.f32 %v1921, %v2010
        %2012 = vdwg.mxu0
        %v2013 = vxor.u32 %v1965, 2147483648
        %v2014 = vxor.u32 %v1994, 2147483648
        %v2015 = vxor.u32 %v1967, 2147483648
        %v2016 = vxor.u32 %v1996, 2147483648
        %v2017 = vxor.u32 %v1970, 2147483648
        %v2018 = vxor.u32 %v1999, 2147483648
        %v2019 = vxor.u32 %v1972, 2147483648
        %v2020 = vxor.u32 %v2001, 2147483648
        %v2021 = vmul.f32 %v2013, 1.442695
        %v2022 = vpow.pop %v2021
        %v2023 = vmul.f32 %v2014, 1.442695
        %v2024 = vpow.pop %v2023
        %v2025 = vmul.f32 %v2015, 1.442695
        %v2026 = vpow.pop %v2025
        %v2027 = vmul.f32 %v2016, 1.442695
        %v2028 = vpow.pop %v2027
        %v2029 = vmul.f32 %v2017, 1.442695
        %v2030 = vpow.pop %v2029
        %v2031 = vmul.f32 %v2018, 1.442695
        %v2032 = vpow.pop %v2031
        %v2033 = vmul.f32 %v2019, 1.442695
        %v2034 = vpow.pop %v2033
        %v2035 = vmul.f32 %v2020, 1.442695
        %v2036 = vpow.pop %v2035
        %v2037 = vadd.f32 %v2022, 1.0
        %v2038 = vadd.f32 %v2024, 1.0
        %v2039 = vadd.f32 %v2026, 1.0
        %v2040 = vadd.f32 %v2028, 1.0
        %v2041 = vadd.f32 %v2030, 1.0
        %v2042 = vadd.f32 %v2032, 1.0
        %v2043 = vadd.f32 %v2034, 1.0
        %v2044 = vadd.f32 %v2036, 1.0
        %v2045 = vrcp.pop %v2037
        %v2046 = vmul.f32 %v2037, %v2045
        %v2047 = vsub.f32 1.0, %v2046
        %v2048 = vmul.f32 %v2045, %v2047
        %v2049 = vadd.f32 %v2045, %v2048
        %vm2050 = vweird.f32 %v2037
        %vm2051 = vweird.f32 %v2045
        %vm2052 = vmor %vm2050, %vm2051
        %v2053 = vsel %vm2052, %v2045, %v2049
        %v2054 = vand.u32 2147483647, %v2037
        %vm2055 = vcmp.eq.f32.partialorder %v2054, 8.507059e+37
        %v2056 = vand.u32 %v2037, 2147483648
        %v2057 = vor.u32 1.1754944e-38, %v2056
        %v2058 = vsel %vm2055, %v2057, %v2053
        %v2059 = vmul.f32 1.0, %v2058
        %v2060 = vrcp.pop %v2038
        %v2061 = vmul.f32 %v2038, %v2060
        %v2062 = vsub.f32 1.0, %v2061
        %v2063 = vmul.f32 %v2060, %v2062
        %v2064 = vadd.f32 %v2060, %v2063
        %vm2065 = vweird.f32 %v2038
        %vm2066 = vweird.f32 %v2060
        %vm2067 = vmor %vm2065, %vm2066
        %v2068 = vsel %vm2067, %v2060, %v2064
        %v2069 = vand.u32 2147483647, %v2038
        %vm2070 = vcmp.eq.f32.partialorder %v2069, 8.507059e+37
        %v2071 = vand.u32 %v2038, 2147483648
        %v2072 = vor.u32 1.1754944e-38, %v2071
        %v2073 = vsel %vm2070, %v2072, %v2068
        %v2074 = vmul.f32 1.0, %v2073
        %v2075 = vrcp.pop %v2039
        %v2076 = vmul.f32 %v2039, %v2075
        %v2077 = vsub.f32 1.0, %v2076
        %v2078 = vmul.f32 %v2075, %v2077
        %v2079 = vadd.f32 %v2075, %v2078
        %vm2080 = vweird.f32 %v2039
        %vm2081 = vweird.f32 %v2075
        %vm2082 = vmor %vm2080, %vm2081
        %v2083 = vsel %vm2082, %v2075, %v2079
        %v2084 = vand.u32 2147483647, %v2039
        %vm2085 = vcmp.eq.f32.partialorder %v2084, 8.507059e+37
        %v2086 = vand.u32 %v2039, 2147483648
        %v2087 = vor.u32 1.1754944e-38, %v2086
        %v2088 = vsel %vm2085, %v2087, %v2083
        %v2089 = vmul.f32 1.0, %v2088
        %v2090 = vrcp.pop %v2040
        %v2091 = vmul.f32 %v2040, %v2090
        %v2092 = vsub.f32 1.0, %v2091
        %v2093 = vmul.f32 %v2090, %v2092
        %v2094 = vadd.f32 %v2090, %v2093
        %vm2095 = vweird.f32 %v2040
        %vm2096 = vweird.f32 %v2090
        %vm2097 = vmor %vm2095, %vm2096
        %v2098 = vsel %vm2097, %v2090, %v2094
        %v2099 = vand.u32 2147483647, %v2040
        %vm2100 = vcmp.eq.f32.partialorder %v2099, 8.507059e+37
        %v2101 = vand.u32 %v2040, 2147483648
        %v2102 = vor.u32 1.1754944e-38, %v2101
        %v2103 = vsel %vm2100, %v2102, %v2098
        %v2104 = vmul.f32 1.0, %v2103
        %v2105 = vrcp.pop %v2041
        %v2106 = vmul.f32 %v2041, %v2105
        %v2107 = vsub.f32 1.0, %v2106
        %v2108 = vmul.f32 %v2105, %v2107
        %v2109 = vadd.f32 %v2105, %v2108
        %vm2110 = vweird.f32 %v2041
        %vm2111 = vweird.f32 %v2105
        %vm2112 = vmor %vm2110, %vm2111
        %v2113 = vsel %vm2112, %v2105, %v2109
        %v2114 = vand.u32 2147483647, %v2041
        %vm2115 = vcmp.eq.f32.partialorder %v2114, 8.507059e+37
        %v2116 = vand.u32 %v2041, 2147483648
        %v2117 = vor.u32 1.1754944e-38, %v2116
        %v2118 = vsel %vm2115, %v2117, %v2113
        %v2119 = vmul.f32 1.0, %v2118
        %v2120 = vrcp.pop %v2042
        %v2121 = vmul.f32 %v2042, %v2120
        %v2122 = vsub.f32 1.0, %v2121
        %v2123 = vmul.f32 %v2120, %v2122
        %v2124 = vadd.f32 %v2120, %v2123
        %vm2125 = vweird.f32 %v2042
        %vm2126 = vweird.f32 %v2120
        %vm2127 = vmor %vm2125, %vm2126
        %v2128 = vsel %vm2127, %v2120, %v2124
        %v2129 = vand.u32 2147483647, %v2042
        %vm2130 = vcmp.eq.f32.partialorder %v2129, 8.507059e+37
        %v2131 = vand.u32 %v2042, 2147483648
        %v2132 = vor.u32 1.1754944e-38, %v2131
        %v2133 = vsel %vm2130, %v2132, %v2128
        %v2134 = vmul.f32 1.0, %v2133
        %v2135 = vrcp.pop %v2043
        %v2136 = vmul.f32 %v2043, %v2135
        %v2137 = vsub.f32 1.0, %v2136
        %v2138 = vmul.f32 %v2135, %v2137
        %v2139 = vadd.f32 %v2135, %v2138
        %vm2140 = vweird.f32 %v2043
        %vm2141 = vweird.f32 %v2135
        %vm2142 = vmor %vm2140, %vm2141
        %v2143 = vsel %vm2142, %v2135, %v2139
        %v2144 = vand.u32 2147483647, %v2043
        %vm2145 = vcmp.eq.f32.partialorder %v2144, 8.507059e+37
        %v2146 = vand.u32 %v2043, 2147483648
        %v2147 = vor.u32 1.1754944e-38, %v2146
        %v2148 = vsel %vm2145, %v2147, %v2143
        %v2149 = vmul.f32 1.0, %v2148
        %v2150 = vrcp.pop %v2044
        %v2151 = vmul.f32 %v2044, %v2150
        %v2152 = vsub.f32 1.0, %v2151
        %v2153 = vmul.f32 %v2150, %v2152
        %v2154 = vadd.f32 %v2150, %v2153
        %vm2155 = vweird.f32 %v2044
        %vm2156 = vweird.f32 %v2150
        %vm2157 = vmor %vm2155, %vm2156
        %v2158 = vsel %vm2157, %v2150, %v2154
        %v2159 = vand.u32 2147483647, %v2044
        %vm2160 = vcmp.eq.f32.partialorder %v2159, 8.507059e+37
        %v2161 = vand.u32 %v2044, 2147483648
        %v2162 = vor.u32 1.1754944e-38, %v2161
        %v2163 = vsel %vm2160, %v2162, %v2158
        %v2164 = vmul.f32 1.0, %v2163
        %v2165 = vtanh.pop %v1975
        %v2166 = vtanh.pop %v2004
        %v2167 = vtanh.pop %v1977
        %v2168 = vtanh.pop %v2006
        %v2169 = vtanh.pop %v1980
        %v2170 = vtanh.pop %v2009
        %v2171 = vtanh.pop %v1982
        %v2172 = vtanh.pop %v2011
        %v2173 = vmul.f32 %v2059, %v2165
        %v2174 = vmul.f32 %v2074, %v2166
        %v2175 = vmul.f32 %v2089, %v2167
        %v2176 = vmul.f32 %v2104, %v2168
        %v2177 = vmul.f32 %v2119, %v2169
        %v2178 = vmul.f32 %v2134, %v2170
        %v2179 = vmul.f32 %v2149, %v2171
        %v2180 = vmul.f32 %v2164, %v2172
        %v2181 = vpack.c.bf16 %v2175, %v2173
        %v2182 = vpack.c.bf16 %v2176, %v2174
        %v2183 = vpack.c.bf16 %v2179, %v2177
        %v2184 = vpack.c.bf16 %v2180, %v2178
        %s2185 = scalar_lea.vmem %s5, 64
        %v2186 = vld [vmem:[%s2185] sm:$0xf]
        %v2187 = vld [vmem:[%s2185 + $0x4] sm:$0xf]
        %v2188 = vld [vmem:[%s2185 + $0x8] sm:$0xf]
        %v2189 = vld [vmem:[%s2185 + $0xc] sm:$0xf]
        %v2190 = vld [vmem:[%s2185 + $0x10] sm:$0xf]
        %v2191 = vld [vmem:[%s2185 + $0x14] sm:$0xf]
        %v2192 = vld [vmem:[%s2185 + $0x18] sm:$0xf]
        %v2193 = vld [vmem:[%s2185 + $0x1c] sm:$0xf]
        %v2202 = vunpack.c.l.b16 %v2186
        %v2203 = vunpack.c.l.b16 %v2187
        %v2204 = vunpack.c.l.b16 %v2188
        %v2205 = vunpack.c.l.b16 %v2189
        %v2206 = vunpack.c.l.b16 %v2190
        %v2207 = vunpack.c.l.b16 %v2191
        %v2208 = vunpack.c.l.b16 %v2192
        %v2209 = vunpack.c.l.b16 %v2193
        %v2210 = vpack.c.b16 %v2203, %v2202
        %v2211 = vpack.c.b16 %v2205, %v2204
        %v2212 = vpack.c.b16 %v2207, %v2206
        %v2213 = vpack.c.b16 %v2209, %v2208
        %v2215 = vsel %vm988, %v2210, 0
        %v2218 = vsel %vm988, %v2211, 0
        %v2221 = vsel %vm988, %v2212, 0
        %v2224 = vsel %vm988, %v2213, 0
        %2226 = vmatpush.bf16.msra.mxu0 0
        %2227 = vmatpush.bf16.msra.mxu0 0
        %2228 = vmatpush.bf16.msra.mxu0 0
        %2229 = vmatpush.bf16.msra.mxu0 0
        %2230 = vmatpush.bf16.msra.mxu0 0
        %2231 = vmatpush.bf16.msra.mxu0 0
        %2232 = vmatpush.bf16.msra.mxu0 %v2183
        %2233 = vmatpush.bf16.msra.mxu0 %v2181
        %2234 = vmatmul.bf16.gmra.mxu0 %v2215
        %v2235 = vpop.f32.mrf.mxu0
        %v2236 = vadd.f32 0.0, %v2235
        %v2237 = vpop.f32.mrf.mxu0
        %v2238 = vadd.f32 0.0, %v2237
        %2239 = vmatmul.bf16.gmra.mxu0 %v2218
        %v2240 = vpop.f32.mrf.mxu0
        %v2241 = vadd.f32 0.0, %v2240
        %v2242 = vpop.f32.mrf.mxu0
        %v2243 = vadd.f32 0.0, %v2242
        %2244 = vmatmul.bf16.gmra.mxu0 %v2221
        %v2245 = vpop.f32.mrf.mxu0
        %v2246 = vadd.f32 0.0, %v2245
        %v2247 = vpop.f32.mrf.mxu0
        %v2248 = vadd.f32 0.0, %v2247
        %2249 = vmatmul.bf16.gmra.mxu0 %v2224
        %v2250 = vpop.f32.mrf.mxu0
        %v2251 = vadd.f32 0.0, %v2250
        %v2252 = vpop.f32.mrf.mxu0
        %v2253 = vadd.f32 0.0, %v2252
        %2254 = vdwg.mxu0
        %2255 = vmatpush.bf16.msra.mxu0 0
        %2256 = vmatpush.bf16.msra.mxu0 0
        %2257 = vmatpush.bf16.msra.mxu0 0
        %2258 = vmatpush.bf16.msra.mxu0 0
        %2259 = vmatpush.bf16.msra.mxu0 0
        %2260 = vmatpush.bf16.msra.mxu0 0
        %2261 = vmatpush.bf16.msra.mxu0 %v2184
        %2262 = vmatpush.bf16.msra.mxu0 %v2182
        %2263 = vmatmul.bf16.gmra.mxu0 %v2215
        %v2264 = vpop.f32.mrf.mxu0
        %v2265 = vadd.f32 0.0, %v2264
        %v2266 = vpop.f32.mrf.mxu0
        %v2267 = vadd.f32 0.0, %v2266
        %2268 = vmatmul.bf16.gmra.mxu0 %v2218
        %v2269 = vpop.f32.mrf.mxu0
        %v2270 = vadd.f32 0.0, %v2269
        %v2271 = vpop.f32.mrf.mxu0
        %v2272 = vadd.f32 0.0, %v2271
        %2273 = vmatmul.bf16.gmra.mxu0 %v2221
        %v2274 = vpop.f32.mrf.mxu0
        %v2275 = vadd.f32 0.0, %v2274
        %v2276 = vpop.f32.mrf.mxu0
        %v2277 = vadd.f32 0.0, %v2276
        %2278 = vmatmul.bf16.gmra.mxu0 %v2224
        %v2279 = vpop.f32.mrf.mxu0
        %v2280 = vadd.f32 0.0, %v2279
        %v2281 = vpop.f32.mrf.mxu0
        %v2282 = vadd.f32 0.0, %v2281
        %2283 = vdwg.mxu0
        %v2284 = vadd.f32 %v1713, %v2236
        %v2285 = vadd.f32 %v1714, %v2265
        %v2286 = vadd.f32 %v1715, %v2238
        %v2287 = vadd.f32 %v1716, %v2267
        %v2288 = vadd.f32 %v1717, %v2241
        %v2289 = vadd.f32 %v1718, %v2270
        %v2290 = vadd.f32 %v1719, %v2243
        %v2291 = vadd.f32 %v1720, %v2272
        %s2292 = scalar_lea.vmem %s6, 64
        %v2293 = vld [vmem:[%s2292] sm:$0xff]
        %v2294 = vld [vmem:[%s2292 + $0x8] sm:$0xff]
        %v2295 = vld [vmem:[%s2292 + $0x10] sm:$0xff]
        %v2296 = vld [vmem:[%s2292 + $0x18] sm:$0xff]
        %2298 = vset.pattern.permute.xlu0 0
        %2299 = vperm.xlu0 %2298, %v2293
        %v2300 = vpop.permute.xlu0 %2299
        %2303 = vset.pattern.permute.xlu0 0
        %2304 = vperm.xlu0 %2303, %v2294
        %v2305 = vpop.permute.xlu0 %2304
        %2308 = vset.pattern.permute.xlu0 0
        %2309 = vperm.xlu0 %2308, %v2295
        %v2310 = vpop.permute.xlu0 %2309
        %2313 = vset.pattern.permute.xlu0 0
        %2314 = vperm.xlu0 %2313, %v2296
        %v2315 = vpop.permute.xlu0 %2314
        %v2317 = vadd.f32 %v2284, %v2300
        %v2318 = vadd.f32 %v2285, %v2300
        %v2319 = vadd.f32 %v2286, %v2305
        %v2320 = vadd.f32 %v2287, %v2305
        %v2321 = vadd.f32 %v2288, %v2310
        %v2322 = vadd.f32 %v2289, %v2310
        %v2323 = vadd.f32 %v2290, %v2315
        %v2324 = vadd.f32 %v2291, %v2315
        %v2325 = vmul.f32 %v2317, 0.70710677
        %v2326 = vmul.f32 %v2318, 0.70710677
        %v2327 = vmul.f32 %v2319, 0.70710677
        %v2328 = vmul.f32 %v2320, 0.70710677
        %v2329 = vmul.f32 %v2321, 0.70710677
        %v2330 = vmul.f32 %v2322, 0.70710677
        %v2331 = vmul.f32 %v2323, 0.70710677
        %v2332 = vmul.f32 %v2324, 0.70710677
        %v2333 = vadd.f32 %v1721, %v2246
        %v2334 = vadd.f32 %v1722, %v2275
        %v2335 = vadd.f32 %v1723, %v2248
        %v2336 = vadd.f32 %v1724, %v2277
        %v2337 = vadd.f32 %v1725, %v2251
        %v2338 = vadd.f32 %v1726, %v2280
        %v2339 = vadd.f32 %v1727, %v2253
        %v2340 = vadd.f32 %v1728, %v2282
        %2341 = vrot.lane.b32.xlu0 %v2325, 2
        %v2342 = vpop.permute.xlu0 %2341
        %2343 = vrot.lane.b32.xlu0 %v2327, 2
        %v2344 = vpop.permute.xlu0 %2343
        %2345 = vrot.lane.b32.xlu0 %v2329, 2
        %v2346 = vpop.permute.xlu0 %2345
        %2347 = vrot.lane.b32.xlu0 %v2331, 2
        %v2348 = vpop.permute.xlu0 %2347
        %2349 = vrot.lane.b32.xlu0 %v2326, 2
        %v2350 = vpop.permute.xlu0 %2349
        %2351 = vrot.lane.b32.xlu0 %v2328, 2
        %v2352 = vpop.permute.xlu0 %2351
        %2353 = vrot.lane.b32.xlu0 %v2330, 2
        %v2354 = vpop.permute.xlu0 %2353
        %2355 = vrot.lane.b32.xlu0 %v2332, 2
        %v2356 = vpop.permute.xlu0 %2355
        %v2357 = vsel %vm1131, %v2342, %v2350
        %v2358 = vsel %vm1131, %v2344, %v2352
        %v2359 = vsel %vm1131, %v2346, %v2354
        %v2360 = vsel %vm1131, %v2348, %v2356
        %v2361 = vsel %vm1131, %v2350, %v2342
        %v2362 = vsel %vm1131, %v2352, %v2344
        %v2363 = vsel %vm1131, %v2354, %v2346
        %v2364 = vsel %vm1131, %v2356, %v2348
        %v2365 = vsel %vm499, %v2361, 0.0
        %v2366 = vsel %vm500, %v2357, 0.0
        %v2367 = vsel %vm499, %v2362, 0.0
        %v2368 = vsel %vm500, %v2358, 0.0
        %v2369 = vsel %vm499, %v2363, 0.0
        %v2370 = vsel %vm500, %v2359, 0.0
        %v2371 = vsel %vm499, %v2364, 0.0
        %v2372 = vsel %vm500, %v2360, 0.0
        %v2373 = vpack.c.bf16 %v2366, %v2365
        %v2374 = vpack.c.bf16 %v2368, %v2367
        %v2375 = vpack.c.bf16 %v2370, %v2369
        %v2376 = vpack.c.bf16 %v2372, %v2371
        %2377 = vrot.lane.b32.xlu0 %v2325, 126
        %v2378 = vpop.permute.xlu0 %2377
        %2379 = vrot.lane.b32.xlu0 %v2327, 126
        %v2380 = vpop.permute.xlu0 %2379
        %2381 = vrot.lane.b32.xlu0 %v2329, 126
        %v2382 = vpop.permute.xlu0 %2381
        %2383 = vrot.lane.b32.xlu0 %v2331, 126
        %v2384 = vpop.permute.xlu0 %2383
        %2385 = vrot.lane.b32.xlu0 %v2326, 126
        %v2386 = vpop.permute.xlu0 %2385
        %2387 = vrot.lane.b32.xlu0 %v2328, 126
        %v2388 = vpop.permute.xlu0 %2387
        %2389 = vrot.lane.b32.xlu0 %v2330, 126
        %v2390 = vpop.permute.xlu0 %2389
        %2391 = vrot.lane.b32.xlu0 %v2332, 126
        %v2392 = vpop.permute.xlu0 %2391
        %v2393 = vsel %vm1168, %v2378, %v2386
        %v2394 = vsel %vm1168, %v2380, %v2388
        %v2395 = vsel %vm1168, %v2382, %v2390
        %v2396 = vsel %vm1168, %v2384, %v2392
        %v2397 = vsel %vm1168, %v2386, %v2378
        %v2398 = vsel %vm1168, %v2388, %v2380
        %v2399 = vsel %vm1168, %v2390, %v2382
        %v2400 = vsel %vm1168, %v2392, %v2384
        %v2401 = vsel %vm501, %v2393, 0.0
        %v2402 = vsel %vm502, %v2397, 0.0
        %v2403 = vsel %vm501, %v2394, 0.0
        %v2404 = vsel %vm502, %v2398, 0.0
        %v2405 = vsel %vm501, %v2395, 0.0
        %v2406 = vsel %vm502, %v2399, 0.0
        %v2407 = vsel %vm501, %v2396, 0.0
        %v2408 = vsel %vm502, %v2400, 0.0
        %v2409 = vpack.c.bf16 %v2402, %v2401
        %v2410 = vpack.c.bf16 %v2404, %v2403
        %v2411 = vpack.c.bf16 %v2406, %v2405
        %v2412 = vpack.c.bf16 %v2408, %v2407
        %v2413 = vpack.c.bf16 %v2326, %v2325
        %v2414 = vpack.c.bf16 %v2328, %v2327
        %v2415 = vpack.c.bf16 %v2330, %v2329
        %v2416 = vpack.c.bf16 %v2332, %v2331
        %v2421 = vunpack.c.l.b16 %v2373
        %v2422 = vunpack.c.h.b16 %v2373
        %v2423 = vunpack.c.l.b16 %v2374
        %v2424 = vunpack.c.h.b16 %v2374
        %v2425 = vunpack.c.l.b16 %v2375
        %v2426 = vunpack.c.h.b16 %v2375
        %v2427 = vunpack.c.l.b16 %v2376
        %v2428 = vunpack.c.h.b16 %v2376
        %v2429 = vpack.c.b16 %v2423, %v2421
        %v2430 = vpack.c.b16 %v2424, %v2422
        %v2431 = vpack.c.b16 %v2427, %v2425
        %v2432 = vpack.c.b16 %v2428, %v2426
        %v2441 = vunpack.c.l.b16 %v2413
        %v2442 = vunpack.c.h.b16 %v2413
        %v2443 = vunpack.c.l.b16 %v2414
        %v2444 = vunpack.c.h.b16 %v2414
        %v2445 = vunpack.c.l.b16 %v2415
        %v2446 = vunpack.c.h.b16 %v2415
        %v2447 = vunpack.c.l.b16 %v2416
        %v2448 = vunpack.c.h.b16 %v2416
        %v2449 = vpack.c.b16 %v2443, %v2441
        %v2450 = vpack.c.b16 %v2444, %v2442
        %v2451 = vpack.c.b16 %v2447, %v2445
        %v2452 = vpack.c.b16 %v2448, %v2446
        %v2461 = vunpack.c.l.b16 %v2409
        %v2462 = vunpack.c.h.b16 %v2409
        %v2463 = vunpack.c.l.b16 %v2410
        %v2464 = vunpack.c.h.b16 %v2410
        %v2465 = vunpack.c.l.b16 %v2411
        %v2466 = vunpack.c.h.b16 %v2411
        %v2467 = vunpack.c.l.b16 %v2412
        %v2468 = vunpack.c.h.b16 %v2412
        %v2469 = vpack.c.b16 %v2463, %v2461
        %v2470 = vpack.c.b16 %v2464, %v2462
        %v2471 = vpack.c.b16 %v2467, %v2465
        %v2472 = vpack.c.b16 %v2468, %v2466
        %s2477 = scalar_lea.vmem %s3, 96
        %v2478 = vld [vmem:[%s2477] sm:$0xf]
        %v2479 = vld [vmem:[%s2477 + $0x4] sm:$0xf]
        %v2480 = vld [vmem:[%s2477 + $0x8] sm:$0xf]
        %v2481 = vld [vmem:[%s2477 + $0xc] sm:$0xf]
        %v2482 = vld [vmem:[%s2477 + $0x10] sm:$0xf]
        %v2483 = vld [vmem:[%s2477 + $0x14] sm:$0xf]
        %v2484 = vld [vmem:[%s2477 + $0x18] sm:$0xf]
        %v2485 = vld [vmem:[%s2477 + $0x1c] sm:$0xf]
        %s2486 = scalar_lea.vmem %s4, 192
        %v2487 = vld [vmem:[%s2486] sm:$0xff]
        %v2488 = vld [vmem:[%s2486 + $0x8] sm:$0xff]
        %v2489 = vld [vmem:[%s2486 + $0x10] sm:$0xff]
        %v2490 = vld [vmem:[%s2486 + $0x18] sm:$0xff]
        %v2491 = vld [vmem:[%s2486 + $0x20] sm:$0xff]
        %v2492 = vld [vmem:[%s2486 + $0x28] sm:$0xff]
        %v2493 = vld [vmem:[%s2486 + $0x30] sm:$0xff]
        %v2494 = vld [vmem:[%s2486 + $0x38] sm:$0xff]
        %2496 = vset.pattern.permute.xlu0 0
        %2497 = vperm.xlu0 %2496, %v2487
        %v2498 = vpop.permute.xlu0 %2497
        %2501 = vset.pattern.permute.xlu0 0
        %2502 = vperm.xlu0 %2501, %v2488
        %v2503 = vpop.permute.xlu0 %2502
        %2506 = vset.pattern.permute.xlu0 0
        %2507 = vperm.xlu0 %2506, %v2489
        %v2508 = vpop.permute.xlu0 %2507
        %2511 = vset.pattern.permute.xlu0 0
        %2512 = vperm.xlu0 %2511, %v2490
        %v2513 = vpop.permute.xlu0 %2512
        %2516 = vset.pattern.permute.xlu0 0
        %2517 = vperm.xlu0 %2516, %v2491
        %v2518 = vpop.permute.xlu0 %2517
        %2521 = vset.pattern.permute.xlu0 0
        %2522 = vperm.xlu0 %2521, %v2492
        %v2523 = vpop.permute.xlu0 %2522
        %2526 = vset.pattern.permute.xlu0 0
        %2527 = vperm.xlu0 %2526, %v2493
        %v2528 = vpop.permute.xlu0 %2527
        %2531 = vset.pattern.permute.xlu0 0
        %2532 = vperm.xlu0 %2531, %v2494
        %v2533 = vpop.permute.xlu0 %2532
        %v2543 = vunpack.c.l.b16 %v2478
        %v2544 = vunpack.c.l.b16 %v2479
        %v2545 = vunpack.c.l.b16 %v2480
        %v2546 = vunpack.c.l.b16 %v2481
        %v2547 = vunpack.c.l.b16 %v2482
        %v2548 = vunpack.c.l.b16 %v2483
        %v2549 = vunpack.c.l.b16 %v2484
        %v2550 = vunpack.c.l.b16 %v2485
        %v2551 = vpack.c.b16 %v2544, %v2543
        %v2552 = vpack.c.b16 %v2546, %v2545
        %v2553 = vpack.c.b16 %v2548, %v2547
        %v2554 = vpack.c.b16 %v2550, %v2549
        %v2556 = vsel %vm717, %v2551, 0
        %v2559 = vsel %vm717, %v2552, 0
        %v2562 = vsel %vm717, %v2553, 0
        %v2565 = vsel %vm717, %v2554, 0
        %2567 = vmatpush.bf16.msra.mxu0 0
        %2568 = vmatpush.bf16.msra.mxu0 0
        %2569 = vmatpush.bf16.msra.mxu0 %v2471
        %2570 = vmatpush.bf16.msra.mxu0 %v2469
        %2571 = vmatpush.bf16.msra.mxu0 %v2451
        %2572 = vmatpush.bf16.msra.mxu0 %v2449
        %2573 = vmatpush.bf16.msra.mxu0 %v2431
        %2574 = vmatpush.bf16.msra.mxu0 %v2429
        %2575 = vmatmul.bf16.gmra.mxu0 %v2556
        %v2576 = vpop.f32.mrf.mxu0
        %v2577 = vadd.f32 %v2498, %v2576
        %v2578 = vpop.f32.mrf.mxu0
        %v2579 = vadd.f32 %v2503, %v2578
        %2580 = vmatmul.bf16.gmra.mxu0 %v2559
        %v2581 = vpop.f32.mrf.mxu0
        %v2582 = vadd.f32 %v2508, %v2581
        %v2583 = vpop.f32.mrf.mxu0
        %v2584 = vadd.f32 %v2513, %v2583
        %2585 = vmatmul.bf16.gmra.mxu0 %v2562
        %v2586 = vpop.f32.mrf.mxu0
        %v2587 = vadd.f32 %v2518, %v2586
        %v2588 = vpop.f32.mrf.mxu0
        %v2589 = vadd.f32 %v2523, %v2588
        %2590 = vmatmul.bf16.gmra.mxu0 %v2565
        %v2591 = vpop.f32.mrf.mxu0
        %v2592 = vadd.f32 %v2528, %v2591
        %v2593 = vpop.f32.mrf.mxu0
        %v2594 = vadd.f32 %v2533, %v2593
        %2595 = vdwg.mxu0
        %2596 = vmatpush.bf16.msra.mxu0 0
        %2597 = vmatpush.bf16.msra.mxu0 0
        %2598 = vmatpush.bf16.msra.mxu0 %v2472
        %2599 = vmatpush.bf16.msra.mxu0 %v2470
        %2600 = vmatpush.bf16.msra.mxu0 %v2452
        %2601 = vmatpush.bf16.msra.mxu0 %v2450
        %2602 = vmatpush.bf16.msra.mxu0 %v2432
        %2603 = vmatpush.bf16.msra.mxu0 %v2430
        %2604 = vmatmul.bf16.gmra.mxu0 %v2556
        %v2605 = vpop.f32.mrf.mxu0
        %v2606 = vadd.f32 %v2498, %v2605
        %v2607 = vpop.f32.mrf.mxu0
        %v2608 = vadd.f32 %v2503, %v2607
        %2609 = vmatmul.bf16.gmra.mxu0 %v2559
        %v2610 = vpop.f32.mrf.mxu0
        %v2611 = vadd.f32 %v2508, %v2610
        %v2612 = vpop.f32.mrf.mxu0
        %v2613 = vadd.f32 %v2513, %v2612
        %2614 = vmatmul.bf16.gmra.mxu0 %v2562
        %v2615 = vpop.f32.mrf.mxu0
        %v2616 = vadd.f32 %v2518, %v2615
        %v2617 = vpop.f32.mrf.mxu0
        %v2618 = vadd.f32 %v2523, %v2617
        %2619 = vmatmul.bf16.gmra.mxu0 %v2565
        %v2620 = vpop.f32.mrf.mxu0
        %v2621 = vadd.f32 %v2528, %v2620
        %v2622 = vpop.f32.mrf.mxu0
        %v2623 = vadd.f32 %v2533, %v2622
        %2624 = vdwg.mxu0
        %v2625 = vxor.u32 %v2577, 2147483648
        %v2626 = vxor.u32 %v2606, 2147483648
        %v2627 = vxor.u32 %v2579, 2147483648
        %v2628 = vxor.u32 %v2608, 2147483648
        %v2629 = vxor.u32 %v2582, 2147483648
        %v2630 = vxor.u32 %v2611, 2147483648
        %v2631 = vxor.u32 %v2584, 2147483648
        %v2632 = vxor.u32 %v2613, 2147483648
        %v2633 = vmul.f32 %v2625, 1.442695
        %v2634 = vpow.pop %v2633
        %v2635 = vmul.f32 %v2626, 1.442695
        %v2636 = vpow.pop %v2635
        %v2637 = vmul.f32 %v2627, 1.442695
        %v2638 = vpow.pop %v2637
        %v2639 = vmul.f32 %v2628, 1.442695
        %v2640 = vpow.pop %v2639
        %v2641 = vmul.f32 %v2629, 1.442695
        %v2642 = vpow.pop %v2641
        %v2643 = vmul.f32 %v2630, 1.442695
        %v2644 = vpow.pop %v2643
        %v2645 = vmul.f32 %v2631, 1.442695
        %v2646 = vpow.pop %v2645
        %v2647 = vmul.f32 %v2632, 1.442695
        %v2648 = vpow.pop %v2647
        %v2649 = vadd.f32 %v2634, 1.0
        %v2650 = vadd.f32 %v2636, 1.0
        %v2651 = vadd.f32 %v2638, 1.0
        %v2652 = vadd.f32 %v2640, 1.0
        %v2653 = vadd.f32 %v2642, 1.0
        %v2654 = vadd.f32 %v2644, 1.0
        %v2655 = vadd.f32 %v2646, 1.0
        %v2656 = vadd.f32 %v2648, 1.0
        %v2657 = vrcp.pop %v2649
        %v2658 = vmul.f32 %v2649, %v2657
        %v2659 = vsub.f32 1.0, %v2658
        %v2660 = vmul.f32 %v2657, %v2659
        %v2661 = vadd.f32 %v2657, %v2660
        %vm2662 = vweird.f32 %v2649
        %vm2663 = vweird.f32 %v2657
        %vm2664 = vmor %vm2662, %vm2663
        %v2665 = vsel %vm2664, %v2657, %v2661
        %v2666 = vand.u32 2147483647, %v2649
        %vm2667 = vcmp.eq.f32.partialorder %v2666, 8.507059e+37
        %v2668 = vand.u32 %v2649, 2147483648
        %v2669 = vor.u32 1.1754944e-38, %v2668
        %v2670 = vsel %vm2667, %v2669, %v2665
        %v2671 = vmul.f32 1.0, %v2670
        %v2672 = vrcp.pop %v2650
        %v2673 = vmul.f32 %v2650, %v2672
        %v2674 = vsub.f32 1.0, %v2673
        %v2675 = vmul.f32 %v2672, %v2674
        %v2676 = vadd.f32 %v2672, %v2675
        %vm2677 = vweird.f32 %v2650
        %vm2678 = vweird.f32 %v2672
        %vm2679 = vmor %vm2677, %vm2678
        %v2680 = vsel %vm2679, %v2672, %v2676
        %v2681 = vand.u32 2147483647, %v2650
        %vm2682 = vcmp.eq.f32.partialorder %v2681, 8.507059e+37
        %v2683 = vand.u32 %v2650, 2147483648
        %v2684 = vor.u32 1.1754944e-38, %v2683
        %v2685 = vsel %vm2682, %v2684, %v2680
        %v2686 = vmul.f32 1.0, %v2685
        %v2687 = vrcp.pop %v2651
        %v2688 = vmul.f32 %v2651, %v2687
        %v2689 = vsub.f32 1.0, %v2688
        %v2690 = vmul.f32 %v2687, %v2689
        %v2691 = vadd.f32 %v2687, %v2690
        %vm2692 = vweird.f32 %v2651
        %vm2693 = vweird.f32 %v2687
        %vm2694 = vmor %vm2692, %vm2693
        %v2695 = vsel %vm2694, %v2687, %v2691
        %v2696 = vand.u32 2147483647, %v2651
        %vm2697 = vcmp.eq.f32.partialorder %v2696, 8.507059e+37
        %v2698 = vand.u32 %v2651, 2147483648
        %v2699 = vor.u32 1.1754944e-38, %v2698
        %v2700 = vsel %vm2697, %v2699, %v2695
        %v2701 = vmul.f32 1.0, %v2700
        %v2702 = vrcp.pop %v2652
        %v2703 = vmul.f32 %v2652, %v2702
        %v2704 = vsub.f32 1.0, %v2703
        %v2705 = vmul.f32 %v2702, %v2704
        %v2706 = vadd.f32 %v2702, %v2705
        %vm2707 = vweird.f32 %v2652
        %vm2708 = vweird.f32 %v2702
        %vm2709 = vmor %vm2707, %vm2708
        %v2710 = vsel %vm2709, %v2702, %v2706
        %v2711 = vand.u32 2147483647, %v2652
        %vm2712 = vcmp.eq.f32.partialorder %v2711, 8.507059e+37
        %v2713 = vand.u32 %v2652, 2147483648
        %v2714 = vor.u32 1.1754944e-38, %v2713
        %v2715 = vsel %vm2712, %v2714, %v2710
        %v2716 = vmul.f32 1.0, %v2715
        %v2717 = vrcp.pop %v2653
        %v2718 = vmul.f32 %v2653, %v2717
        %v2719 = vsub.f32 1.0, %v2718
        %v2720 = vmul.f32 %v2717, %v2719
        %v2721 = vadd.f32 %v2717, %v2720
        %vm2722 = vweird.f32 %v2653
        %vm2723 = vweird.f32 %v2717
        %vm2724 = vmor %vm2722, %vm2723
        %v2725 = vsel %vm2724, %v2717, %v2721
        %v2726 = vand.u32 2147483647, %v2653
        %vm2727 = vcmp.eq.f32.partialorder %v2726, 8.507059e+37
        %v2728 = vand.u32 %v2653, 2147483648
        %v2729 = vor.u32 1.1754944e-38, %v2728
        %v2730 = vsel %vm2727, %v2729, %v2725
        %v2731 = vmul.f32 1.0, %v2730
        %v2732 = vrcp.pop %v2654
        %v2733 = vmul.f32 %v2654, %v2732
        %v2734 = vsub.f32 1.0, %v2733
        %v2735 = vmul.f32 %v2732, %v2734
        %v2736 = vadd.f32 %v2732, %v2735
        %vm2737 = vweird.f32 %v2654
        %vm2738 = vweird.f32 %v2732
        %vm2739 = vmor %vm2737, %vm2738
        %v2740 = vsel %vm2739, %v2732, %v2736
        %v2741 = vand.u32 2147483647, %v2654
        %vm2742 = vcmp.eq.f32.partialorder %v2741, 8.507059e+37
        %v2743 = vand.u32 %v2654, 2147483648
        %v2744 = vor.u32 1.1754944e-38, %v2743
        %v2745 = vsel %vm2742, %v2744, %v2740
        %v2746 = vmul.f32 1.0, %v2745
        %v2747 = vrcp.pop %v2655
        %v2748 = vmul.f32 %v2655, %v2747
        %v2749 = vsub.f32 1.0, %v2748
        %v2750 = vmul.f32 %v2747, %v2749
        %v2751 = vadd.f32 %v2747, %v2750
        %vm2752 = vweird.f32 %v2655
        %vm2753 = vweird.f32 %v2747
        %vm2754 = vmor %vm2752, %vm2753
        %v2755 = vsel %vm2754, %v2747, %v2751
        %v2756 = vand.u32 2147483647, %v2655
        %vm2757 = vcmp.eq.f32.partialorder %v2756, 8.507059e+37
        %v2758 = vand.u32 %v2655, 2147483648
        %v2759 = vor.u32 1.1754944e-38, %v2758
        %v2760 = vsel %vm2757, %v2759, %v2755
        %v2761 = vmul.f32 1.0, %v2760
        %v2762 = vrcp.pop %v2656
        %v2763 = vmul.f32 %v2656, %v2762
        %v2764 = vsub.f32 1.0, %v2763
        %v2765 = vmul.f32 %v2762, %v2764
        %v2766 = vadd.f32 %v2762, %v2765
        %vm2767 = vweird.f32 %v2656
        %vm2768 = vweird.f32 %v2762
        %vm2769 = vmor %vm2767, %vm2768
        %v2770 = vsel %vm2769, %v2762, %v2766
        %v2771 = vand.u32 2147483647, %v2656
        %vm2772 = vcmp.eq.f32.partialorder %v2771, 8.507059e+37
        %v2773 = vand.u32 %v2656, 2147483648
        %v2774 = vor.u32 1.1754944e-38, %v2773
        %v2775 = vsel %vm2772, %v2774, %v2770
        %v2776 = vmul.f32 1.0, %v2775
        %v2777 = vtanh.pop %v2587
        %v2778 = vtanh.pop %v2616
        %v2779 = vtanh.pop %v2589
        %v2780 = vtanh.pop %v2618
        %v2781 = vtanh.pop %v2592
        %v2782 = vtanh.pop %v2621
        %v2783 = vtanh.pop %v2594
        %v2784 = vtanh.pop %v2623
        %v2785 = vmul.f32 %v2671, %v2777
        %v2786 = vmul.f32 %v2686, %v2778
        %v2787 = vmul.f32 %v2701, %v2779
        %v2788 = vmul.f32 %v2716, %v2780
        %v2789 = vmul.f32 %v2731, %v2781
        %v2790 = vmul.f32 %v2746, %v2782
        %v2791 = vmul.f32 %v2761, %v2783
        %v2792 = vmul.f32 %v2776, %v2784
        %v2793 = vpack.c.bf16 %v2787, %v2785
        %v2794 = vpack.c.bf16 %v2788, %v2786
        %v2795 = vpack.c.bf16 %v2791, %v2789
        %v2796 = vpack.c.bf16 %v2792, %v2790
        %s2797 = scalar_lea.vmem %s5, 96
        %v2798 = vld [vmem:[%s2797] sm:$0xf]
        %v2799 = vld [vmem:[%s2797 + $0x4] sm:$0xf]
        %v2800 = vld [vmem:[%s2797 + $0x8] sm:$0xf]
        %v2801 = vld [vmem:[%s2797 + $0xc] sm:$0xf]
        %v2802 = vld [vmem:[%s2797 + $0x10] sm:$0xf]
        %v2803 = vld [vmem:[%s2797 + $0x14] sm:$0xf]
        %v2804 = vld [vmem:[%s2797 + $0x18] sm:$0xf]
        %v2805 = vld [vmem:[%s2797 + $0x1c] sm:$0xf]
        %v2814 = vunpack.c.l.b16 %v2798
        %v2815 = vunpack.c.l.b16 %v2799
        %v2816 = vunpack.c.l.b16 %v2800
        %v2817 = vunpack.c.l.b16 %v2801
        %v2818 = vunpack.c.l.b16 %v2802
        %v2819 = vunpack.c.l.b16 %v2803
        %v2820 = vunpack.c.l.b16 %v2804
        %v2821 = vunpack.c.l.b16 %v2805
        %v2822 = vpack.c.b16 %v2815, %v2814
        %v2823 = vpack.c.b16 %v2817, %v2816
        %v2824 = vpack.c.b16 %v2819, %v2818
        %v2825 = vpack.c.b16 %v2821, %v2820
        %v2827 = vsel %vm988, %v2822, 0
        %v2830 = vsel %vm988, %v2823, 0
        %v2833 = vsel %vm988, %v2824, 0
        %v2836 = vsel %vm988, %v2825, 0
        %2838 = vmatpush.bf16.msra.mxu0 0
        %2839 = vmatpush.bf16.msra.mxu0 0
        %2840 = vmatpush.bf16.msra.mxu0 0
        %2841 = vmatpush.bf16.msra.mxu0 0
        %2842 = vmatpush.bf16.msra.mxu0 0
        %2843 = vmatpush.bf16.msra.mxu0 0
        %2844 = vmatpush.bf16.msra.mxu0 %v2795
        %2845 = vmatpush.bf16.msra.mxu0 %v2793
        %2846 = vmatmul.bf16.gmra.mxu0 %v2827
        %v2847 = vpop.f32.mrf.mxu0
        %v2848 = vpop.f32.mrf.mxu0
        %2849 = vmatmul.bf16.gmra.mxu0 %v2830
        %v2850 = vpop.f32.mrf.mxu0
        %v2851 = vpop.f32.mrf.mxu0
        %2852 = vmatmul.bf16.gmra.mxu0 %v2833
        %v2853 = vpop.f32.mrf.mxu0
        %v2854 = vadd.f32 0.0, %v2853
        %v2855 = vpop.f32.mrf.mxu0
        %v2856 = vadd.f32 0.0, %v2855
        %2857 = vmatmul.bf16.gmra.mxu0 %v2836
        %v2858 = vpop.f32.mrf.mxu0
        %v2859 = vadd.f32 0.0, %v2858
        %v2860 = vpop.f32.mrf.mxu0
        %v2861 = vadd.f32 0.0, %v2860
        %2862 = vdwg.mxu0
        %2863 = vmatpush.bf16.msra.mxu0 0
        %2864 = vmatpush.bf16.msra.mxu0 0
        %2865 = vmatpush.bf16.msra.mxu0 0
        %2866 = vmatpush.bf16.msra.mxu0 0
        %2867 = vmatpush.bf16.msra.mxu0 0
        %2868 = vmatpush.bf16.msra.mxu0 0
        %2869 = vmatpush.bf16.msra.mxu0 %v2796
        %2870 = vmatpush.bf16.msra.mxu0 %v2794
        %2871 = vmatmul.bf16.gmra.mxu0 %v2827
        %v2872 = vpop.f32.mrf.mxu0
        %v2873 = vpop.f32.mrf.mxu0
        %2874 = vmatmul.bf16.gmra.mxu0 %v2830
        %v2875 = vpop.f32.mrf.mxu0
        %v2876 = vpop.f32.mrf.mxu0
        %2877 = vmatmul.bf16.gmra.mxu0 %v2833
        %v2878 = vpop.f32.mrf.mxu0
        %v2879 = vadd.f32 0.0, %v2878
        %v2880 = vpop.f32.mrf.mxu0
        %v2881 = vadd.f32 0.0, %v2880
        %2882 = vmatmul.bf16.gmra.mxu0 %v2836
        %v2883 = vpop.f32.mrf.mxu0
        %v2884 = vadd.f32 0.0, %v2883
        %v2885 = vpop.f32.mrf.mxu0
        %v2886 = vadd.f32 0.0, %v2885
        %2887 = vdwg.mxu0
        %v2888 = vadd.f32 %v2333, %v2854
        %v2889 = vadd.f32 %v2334, %v2879
        %v2890 = vadd.f32 %v2335, %v2856
        %v2891 = vadd.f32 %v2336, %v2881
        %v2892 = vadd.f32 %v2337, %v2859
        %v2893 = vadd.f32 %v2338, %v2884
        %v2894 = vadd.f32 %v2339, %v2861
        %v2895 = vadd.f32 %v2340, %v2886
        %v2896 = vld [vmem:[%s7] sm:$0xff]
        %v2897 = vld [vmem:[%s7 + $0x8] sm:$0xff]
        %v2898 = vld [vmem:[%s7 + $0x10] sm:$0xff]
        %v2899 = vld [vmem:[%s7 + $0x18] sm:$0xff]
        %2901 = vset.pattern.permute.xlu0 0
        %2902 = vperm.xlu0 %2901, %v2896
        %v2903 = vpop.permute.xlu0 %2902
        %2906 = vset.pattern.permute.xlu0 0
        %2907 = vperm.xlu0 %2906, %v2897
        %v2908 = vpop.permute.xlu0 %2907
        %2911 = vset.pattern.permute.xlu0 0
        %2912 = vperm.xlu0 %2911, %v2898
        %v2913 = vpop.permute.xlu0 %2912
        %2916 = vset.pattern.permute.xlu0 0
        %2917 = vperm.xlu0 %2916, %v2899
        %v2918 = vpop.permute.xlu0 %2917
        %v2920 = vadd.f32 %v2888, %v2903
        %v2921 = vadd.f32 %v2889, %v2903
        %v2922 = vadd.f32 %v2890, %v2908
        %v2923 = vadd.f32 %v2891, %v2908
        %v2924 = vadd.f32 %v2892, %v2913
        %v2925 = vadd.f32 %v2893, %v2913
        %v2926 = vadd.f32 %v2894, %v2918
        %v2927 = vadd.f32 %v2895, %v2918
        %v2928 = vmul.f32 %v2920, 0.5
        %v2929 = vmul.f32 %v2921, 0.5
        %v2930 = vmul.f32 %v2922, 0.5
        %v2931 = vmul.f32 %v2923, 0.5
        %v2932 = vmul.f32 %v2924, 0.5
        %v2933 = vmul.f32 %v2925, 0.5
        %v2934 = vmul.f32 %v2926, 0.5
        %v2935 = vmul.f32 %v2927, 0.5
        %v2936 = vpack.c.bf16 %v2930, %v2928
        %v2937 = vpack.c.bf16 %v2931, %v2929
        %v2938 = vpack.c.bf16 %v2934, %v2932
        %v2939 = vpack.c.bf16 %v2935, %v2933
        %v2940 = vld [vmem:[%s8] sm:$0xf]
        %v2941 = vld [vmem:[%s8 + $0x4] sm:$0xf]
        %v2942 = vld [vmem:[%s8 + $0x8] sm:$0xf]
        %v2943 = vld [vmem:[%s8 + $0xc] sm:$0xf]
        %v2944 = vld [vmem:[%s9] sm:$0xff]
        %v2945 = vld [vmem:[%s9 + $0x8] sm:$0xff]
        %v2946 = vld [vmem:[%s9 + $0x10] sm:$0xff]
        %v2947 = vld [vmem:[%s9 + $0x18] sm:$0xff]
        %2949 = vset.pattern.permute.xlu0 0
        %2950 = vperm.xlu0 %2949, %v2944
        %v2951 = vpop.permute.xlu0 %2950
        %2954 = vset.pattern.permute.xlu0 0
        %2955 = vperm.xlu0 %2954, %v2945
        %v2956 = vpop.permute.xlu0 %2955
        %2959 = vset.pattern.permute.xlu0 0
        %2960 = vperm.xlu0 %2959, %v2946
        %v2961 = vpop.permute.xlu0 %2960
        %2964 = vset.pattern.permute.xlu0 0
        %2965 = vperm.xlu0 %2964, %v2947
        %v2966 = vpop.permute.xlu0 %2965
        %v2972 = vunpack.c.l.b16 %v2940
        %v2973 = vunpack.c.l.b16 %v2941
        %v2974 = vunpack.c.l.b16 %v2942
        %v2975 = vunpack.c.l.b16 %v2943
        %v2976 = vpack.c.b16 %v2973, %v2972
        %v2977 = vpack.c.b16 %v2975, %v2974
        %v2979 = vsel %vm988, %v2976, 0
        %v2982 = vsel %vm988, %v2977, 0
        %2984 = vmatpush.bf16.msra.mxu0 0
        %2985 = vmatpush.bf16.msra.mxu0 0
        %2986 = vmatpush.bf16.msra.mxu0 0
        %2987 = vmatpush.bf16.msra.mxu0 0
        %2988 = vmatpush.bf16.msra.mxu0 0
        %2989 = vmatpush.bf16.msra.mxu0 0
        %2990 = vmatpush.bf16.msra.mxu0 %v2938
        %2991 = vmatpush.bf16.msra.mxu0 %v2936
        %2992 = vmatmul.bf16.gmra.mxu0 %v2979
        %v2993 = vpop.f32.mrf.mxu0
        %v2994 = vadd.f32 %v2951, %v2993
        %v2995 = vpop.f32.mrf.mxu0
        %v2996 = vadd.f32 %v2956, %v2995
        %2997 = vmatmul.bf16.gmra.mxu0 %v2982
        %v2998 = vpop.f32.mrf.mxu0
        %v2999 = vadd.f32 %v2961, %v2998
        %v3000 = vpop.f32.mrf.mxu0
        %v3001 = vadd.f32 %v2966, %v3000
        %3002 = vdwg.mxu0
        %3003 = vmatpush.bf16.msra.mxu0 0
        %3004 = vmatpush.bf16.msra.mxu0 0
        %3005 = vmatpush.bf16.msra.mxu0 0
        %3006 = vmatpush.bf16.msra.mxu0 0
        %3007 = vmatpush.bf16.msra.mxu0 0
        %3008 = vmatpush.bf16.msra.mxu0 0
        %3009 = vmatpush.bf16.msra.mxu0 %v2939
        %3010 = vmatpush.bf16.msra.mxu0 %v2937
        %3011 = vmatmul.bf16.gmra.mxu0 %v2979
        %v3012 = vpop.f32.mrf.mxu0
        %v3013 = vadd.f32 %v2951, %v3012
        %v3014 = vpop.f32.mrf.mxu0
        %v3015 = vadd.f32 %v2956, %v3014
        %3016 = vmatmul.bf16.gmra.mxu0 %v2982
        %v3017 = vpop.f32.mrf.mxu0
        %v3018 = vadd.f32 %v2961, %v3017
        %v3019 = vpop.f32.mrf.mxu0
        %v3020 = vadd.f32 %v2966, %v3019
        %3021 = vdwg.mxu0
        %v3022 = vmax.f32 %v2994, 0.0
        %v3023 = vmax.f32 %v3013, 0.0
        %v3024 = vmax.f32 %v2996, 0.0
        %v3025 = vmax.f32 %v3015, 0.0
        %v3026 = vmax.f32 %v2999, 0.0
        %v3027 = vmax.f32 %v3018, 0.0
        %v3028 = vmax.f32 %v3001, 0.0
        %v3029 = vmax.f32 %v3020, 0.0
        %v3030 = vld [vmem:[%s10] sm:$0xff]
        %v3031 = vld [vmem:[%s10 + $0x8] sm:$0xff]
        %v3032 = vld [vmem:[%s10 + $0x10] sm:$0xff]
        %v3033 = vld [vmem:[%s10 + $0x18] sm:$0xff]
        %3035 = vset.pattern.permute.xlu0 0
        %3036 = vperm.xlu0 %3035, %v3030
        %v3037 = vpop.permute.xlu0 %3036
        %3040 = vset.pattern.permute.xlu0 0
        %3041 = vperm.xlu0 %3040, %v3031
        %v3042 = vpop.permute.xlu0 %3041
        %3045 = vset.pattern.permute.xlu0 0
        %3046 = vperm.xlu0 %3045, %v3032
        %v3047 = vpop.permute.xlu0 %3046
        %3050 = vset.pattern.permute.xlu0 0
        %3051 = vperm.xlu0 %3050, %v3033
        %v3052 = vpop.permute.xlu0 %3051
        %v3054 = vmul.f32 %v3022, %v3037
        %v3055 = vmul.f32 %v3023, %v3037
        %v3056 = vmul.f32 %v3024, %v3042
        %v3057 = vmul.f32 %v3025, %v3042
        %v3058 = vmul.f32 %v3026, %v3047
        %v3059 = vmul.f32 %v3027, %v3047
        %v3060 = vmul.f32 %v3028, %v3052
        %v3061 = vmul.f32 %v3029, %v3052
        %v3062 = vadd.f32 %v3054, %v3056
        %v3063 = vadd.f32 %v3062, %v3058
        %v3064 = vadd.f32 %v3063, %v3060
        %v3065 = vrot.slane %v3064, 4
        %v3066 = vadd.f32 %v3064, %v3065
        %v3067 = vrot.slane %v3066, 2
        %v3068 = vadd.f32 %v3066, %v3067
        %v3069 = vrot.slane %v3068, 1
        %v3070 = vadd.f32 %v3068, %v3069
        %v3071 = vadd.f32 %v3055, %v3057
        %v3072 = vadd.f32 %v3071, %v3059
        %v3073 = vadd.f32 %v3072, %v3061
        %v3074 = vrot.slane %v3073, 4
        %v3075 = vadd.f32 %v3073, %v3074
        %v3076 = vrot.slane %v3075, 2
        %v3077 = vadd.f32 %v3075, %v3076
        %v3078 = vrot.slane %v3077, 1
        %v3079 = vadd.f32 %v3077, %v3078
        %v3080 = vld [vmem:[#allocation2] sm:$0x1]
        %3082 = vset.pattern.permute.xlu0 0
        %3083 = vperm.xlu0 %3082, %v3080
        %v3084 = vpop.permute.xlu0 %3083
        %v3086 = vperm.slane %v3084, 0
        %v3087 = vadd.f32 %v3070, %v3086
        %v3088 = vadd.f32 %v3079, %v3086
        %v3091 = vrot.slane %v3088, 7
        %vm3092 = vcmask 1040384
        %v3093 = vsel %vm3092, %v3087, %v3091
        %v3095 = vlaneseq
        %vm3096 = vcmp.ge.s32.totalorder %v3095, 0
        %vm3097 = vcmp.lt.s32.totalorder %v3095, 256
        %vm3098 = vmand %vm3096, %vm3097
        %3099 = vst.msk [vmem:[%s406] sm:$0x3] %vm3098, %v3093
        %s3100 = sand.u32 %s293, 1
        %s3101 = scalar_lea.sflag [#allocation4], %s3100
        %s3102 = sand.u32 %s293, 1
        %s3103 = smul.addr %s3102, 2
        %s3104 = scalar_lea.vmem [#allocation3], %s3103
        // Predicated region
        $region69: #{tpu_custom_call.1} parent=67 // pred_check
          %p3105 = pneg %p303
        $region70: #{tpu_custom_call.1} parent=67 // pred_check_branch
          %3107 = sbr.rel (%p3105) target = $region72
        $region71: #{tpu_custom_call.1} parent=67 // pred_region
          %3109 = vsyncadd %s3101, 0
          %s3110 = smul.addr %s28, 2
          %s3111 = scalar_lea.hbm %s12, %s3110
          %s3113 = sshll.u32 %s3104, 4
          %s3114 = int_to_ptr.vmem [resolvable:$true] %s3113
          %s3115 = sshll.u32 %s3111, 4
          %s3116 = int_to_ptr.hbm [resolvable:$true] %s3115
          %3118 = dma.vmem_to_hbm [thread:$0]  %s3114, 32, %s3116, %s3101
        $region72: #{tpu_custom_call.1} parent=67 // pred_fallthru
          _
      $region68: #{tpu_custom_call.1} parent=5 // pred_fallthru
        _
      %p3119 = scmp.le.s32.totalorder 2, %s23
      // Predicated region
      $region73: #{tpu_custom_call.1} parent=5 // pred_check
        %p3120 = pneg %p3119
      $region74: #{tpu_custom_call.1} parent=5 // pred_check_branch
        %3122 = sbr.rel (%p3120) target = $region76
      $region75: #{tpu_custom_call.1} parent=5 // pred_region
        %s3123 = ssub.s32 %s23, 2
        // Predicated region
        $region77: #{tpu_custom_call.1} parent=75 // pred_check
          %p3124 = pneg %p309
        $region78: #{tpu_custom_call.1} parent=75 // pred_check_branch
          %3126 = sbr.rel (%p3124) target = $region80
        $region79: #{tpu_custom_call.1} parent=75 // pred_region
          %s3127 = sand.u32 %s294, 1
          %s3128 = scalar_lea.sflag [#allocation4], %s3127
          %s3129 = sand.u32 %s294, 1
          %s3130 = smul.addr %s3129, 2
          %s3131 = scalar_lea.vmem [#allocation3], %s3130
          %3133 = dma.done %s3128, 32
        $region80: #{tpu_custom_call.1} parent=75 // pred_fallthru
          _
      $region76: #{tpu_custom_call.1} parent=5 // pred_fallthru
        _
    $region6: #{tpu_custom_call.1} parent=1 // loop_footer
      %s27 = sadd.s32 1, %s23
    $region7: #{tpu_custom_call.1} parent=1 // loop_footer_branch
      %22 = sbr.rel target = $region3
    $region8: #{tpu_custom_call.1} parent=1 // loop_exit
      _
    %3134 = vsyncpa [#allocation4], 1
    %s3135 = scalar_lea.sflag [#allocation4], 1
    %3136 = vsyncpa %s3135, 1

</llo_original>
